<compile_context>
chip_gen: v7x
topology: tpu7x:2x2x1
jax: 0.10.0
libtpu: 0.0.40
codegen_flags: <defaults>
</compile_context>

<pallas_src>
import math
import functools

import jax
import jax.numpy as jnp
from jax import lax
from jax.experimental import pallas as pl
from jax.experimental.pallas import tpu as pltpu

NEG_INF = -1e9

# Weight stack indices (matching the PyTorch module's Linear layers):
# 0 _d_node_query   1 _d_node_key      2 _q_node_query    3 _q_node_key
# 4 _dq_node_fc     5 _qd_node_fc      6 _self_node_fc (has bias)
# 7 _dd_node_fc_left   8 _qq_node_fc_left   9 _dq_node_fc_left  10 _qd_node_fc_left
# 11 _dd_node_fc_right 12 _qq_node_fc_right 13 _dq_node_fc_right 14 _qd_node_fc_right
NUM_W = 15

# Weights applied to d-nodes / q-nodes (order defines the fused-weight columns).
D_IDX = (0, 1, 5, 6, 7, 10, 11, 14)   # query, key, qd_fc, self, dd_l, qd_l, dd_r, qd_r
Q_IDX = (2, 3, 4, 6, 8, 9, 12, 13)    # query, key, dq_fc, self, qq_l, dq_l, qq_r, dq_r


def _gcn_kernel(d_ref, q_ref, dmc_ref, dmr_ref, qmc_ref, qmr_ref,
                ner_dd_ref, ner_qq_ref, ner_dq_ref, ner_qd_ref,
                g_dd_ref, g_qq_ref, g_dq_ref, g_qd_ref,
                wd_ref, wq_ref, b_ref,
                d_out_ref, q_out_ref, *, iteration_steps):
    Bt, Ld, D = d_ref.shape
    Lq = q_ref.shape[1]
    f32 = jnp.float32

    d = d_ref[...].astype(f32)        # (Bt, Ld, D)
    q = q_ref[...].astype(f32)        # (Bt, Lq, D)
    dm_c = dmc_ref[...].astype(f32)   # (Bt, Ld, 1)
    dm_r = dmr_ref[...].astype(f32)   # (Bt, 1, Ld)
    qm_c = qmc_ref[...].astype(f32)   # (Bt, Lq, 1)
    qm_r = qmr_ref[...].astype(f32)   # (Bt, 1, Lq)

    ner_dd = ner_dd_ref[...].astype(f32)   # (Bt, Ld, Ld)
    ner_qq = ner_qq_ref[...].astype(f32)   # (Bt, Lq, Lq)
    ner_dq = ner_dq_ref[...].astype(f32)   # (Bt, Ld, Lq)
    ner_qd = ner_qd_ref[...].astype(f32)   # (Bt, Lq, Ld)
    g_dd = g_dd_ref[...].astype(f32)
    g_qq = g_qq_ref[...].astype(f32)
    g_dq = g_dq_ref[...].astype(f32)
    g_qd = g_qd_ref[...].astype(f32)

    wd = wd_ref[...]                  # (D, 8*D)
    wq = wq_ref[...]                  # (D, 8*D)
    bias = b_ref[...]                 # (1, D), broadcasts over (Bt, L, D)

    def eye(n):
        r = lax.broadcasted_iota(jnp.int32, (n, n), 0)
        c = lax.broadcasted_iota(jnp.int32, (n, n), 1)
        return (r == c).astype(f32)

    # ---- loop-invariant graph / mask construction (all masks are exactly 0/1) ----
    d_mask = dm_r * dm_c * ner_dd
    dd_graph = d_mask * (1.0 - eye(Ld))
    dd_left = dd_graph * g_dd
    dd_right = dd_graph - dd_left

    q_mask = qm_r * qm_c * ner_qq
    qq_graph = q_mask * (1.0 - eye(Lq))
    qq_left = qq_graph * g_qq
    qq_right = qq_graph - qq_left

    dq_graph = dm_c * qm_r * ner_dq
    dq_left = dq_graph * g_dq
    dq_right = dq_graph - dq_left

    qd_graph = qm_c * dm_r * ner_qd
    qd_left = qd_graph * g_qd
    qd_right = qd_graph - qd_left

    # neighbor counts (left + right = graph since graph values are 0/1)
    d_nn = jnp.sum(dd_graph, -1, keepdims=True) + jnp.sum(dq_graph, -1, keepdims=True)
    q_nn = jnp.sum(qq_graph, -1, keepdims=True) + jnp.sum(qd_graph, -1, keepdims=True)
    inv_d_nn = pl.reciprocal(jnp.maximum(d_nn, 1.0), approx=True)   # (Bt, Ld, 1)
    inv_q_nn = pl.reciprocal(jnp.maximum(q_nn, 1.0), approx=True)   # (Bt, Lq, 1)

    # additive score masks (hoisted out of the loop); fully-masked rows end up
    # multiplied by zero aggregation masks, so additive == masked_fill here.
    d_add = jnp.where(d_mask > 0.0, 0.0, NEG_INF)
    q_add = jnp.where(q_mask > 0.0, 0.0, NEG_INF)
    dq_add = jnp.where(dq_graph > 0.0, 0.0, NEG_INF)
    qd_add = jnp.where(qd_graph > 0.0, 0.0, NEG_INF)

    def softmax(s):
        m = jnp.max(s, axis=-1, keepdims=True)
        e = jnp.exp(s - m)
        return e * pl.reciprocal(jnp.sum(e, axis=-1, keepdims=True), approx=True)

    def bdot_nt(a, b):    # (B, M, D) x (B, N, D) -> (B, M, N)
        return jnp.einsum('bqd,bkd->bqk', a, b, preferred_element_type=f32)

    def bdot(a, b):       # (B, M, K) x (B, K, D) -> (B, M, D)
        return jnp.einsum('bqk,bkd->bqd', a, b, preferred_element_type=f32)

    def step(d, q):
        # fused linears: one wide matmul per node set (N = 8*D, multiple of 128)
        d_lin = jnp.dot(d.reshape(Bt * Ld, D), wd,
                        preferred_element_type=f32).reshape(Bt, Ld, 8 * D)
        q_lin = jnp.dot(q.reshape(Bt * Lq, D), wq,
                        preferred_element_type=f32).reshape(Bt, Lq, 8 * D)

        def dl(k):  # slice k-th D-wide projection of the d-node fused matmul
            return d_lin[:, :, k * D:(k + 1) * D]

        def ql(k):
            return q_lin[:, :, k * D:(k + 1) * D]

        # attentions (1/sqrt(D) already folded into the query weights)
        d_attn = softmax(bdot_nt(dl(0), dl(1)) + d_add)
        q_attn = softmax(bdot_nt(ql(0), ql(1)) + q_add)
        dq_attn = softmax(bdot_nt(d, ql(2)) + dq_add)
        qd_attn = softmax(bdot_nt(q, dl(2)) + qd_add)

        self_d = dl(3) + bias
        self_q = ql(3) + bias

        # fused aggregation: one contraction per node set over K = 2*(Ld+Lq)
        d_agg_w = jnp.concatenate(
            [d_attn * dd_left, d_attn * dd_right,
             dq_attn * dq_left, dq_attn * dq_right], axis=-1)       # (Bt, Ld, 2L)
        d_agg_v = jnp.concatenate([dl(4), dl(6), ql(5), ql(7)], axis=1)  # (Bt, 2L, D)
        agg_d = bdot(d_agg_w, d_agg_v) * inv_d_nn

        q_agg_w = jnp.concatenate(
            [q_attn * qq_left, q_attn * qq_right,
             qd_attn * qd_left, qd_attn * qd_right], axis=-1)       # (Bt, Lq, 2L)
        q_agg_v = jnp.concatenate([ql(4), ql(6), dl(5), dl(7)], axis=1)  # (Bt, 2L, D)
        agg_q = bdot(q_agg_w, q_agg_v) * inv_q_nn

        d_new = jnp.maximum(self_d + agg_d, 0.0)
        q_new = jnp.maximum(self_q + agg_q, 0.0)
        return d_new, q_new

    if iteration_steps <= 2:
        for _ in range(iteration_steps):
            d, q = step(d, q)
    else:
        d, q = lax.fori_loop(0, iteration_steps, lambda _, c: step(*c), (d, q))

    # lane-dense stores: (Bt, L*D) rows instead of D=32-wide masked stores
    d_out_ref[...] = d.reshape(Bt, Ld * D).astype(d_out_ref.dtype)
    q_out_ref[...] = q.reshape(Bt, Lq * D).astype(q_out_ref.dtype)


def _pick_batch_tile(B):
    """Largest batch tile <= 32 that is a multiple of 8, divides B, and leaves
    >= 2 grid steps (keeps both v7x TensorCores busy); otherwise the whole batch."""
    best = None
    for bt in range(8, min(B // 2, 32) + 1, 8):
        if B % bt == 0:
            best = bt
    return best if best is not None else B


def gcn_forward(d_node, q_node, d_node_mask, q_node_mask, ner_mask, graph,
                w_stack, b_self, iteration_steps=1, batch_tile=None):
    B, Ld, D = d_node.shape
    Lq = q_node.shape[1]
    f32 = jnp.float32

    Bt = _pick_batch_tile(B) if batch_tile is None else batch_tile
    assert B % Bt == 0, "batch_tile must divide batch size"

    # ---- weight packing (wrapper-side, free XLA plumbing) ----
    w = [w_stack[i].astype(f32) for i in range(NUM_W)]
    scale = 1.0 / math.sqrt(D)
    w[0] = w[0] * scale          # fold 1/sqrt(d_k) into the query projections
    w[2] = w[2] * scale
    wd = jnp.concatenate([w[i] for i in D_IDX], axis=1)   # (D, 8*D)
    wq = jnp.concatenate([w[i] for i in Q_IDX], axis=1)   # (D, 8*D)

    # ---- mask plumbing: expand node masks, pre-slice ner/graph quadrants ----
    dmc = d_node_mask.astype(f32)[:, :, None]   # (B, Ld, 1)
    dmr = d_node_mask.astype(f32)[:, None, :]   # (B, 1, Ld)
    qmc = q_node_mask.astype(f32)[:, :, None]   # (B, Lq, 1)
    qmr = q_node_mask.astype(f32)[:, None, :]   # (B, 1, Lq)

    ner = ner_mask.astype(f32)
    g = graph.astype(f32)
    ner_dd, ner_qq = ner[:, :Ld, :Ld], ner[:, Ld:, Ld:]
    ner_dq, ner_qd = ner[:, :Ld, Ld:], ner[:, Ld:, :Ld]
    g_dd, g_qq = g[:, :Ld, :Ld], g[:, Ld:, Ld:]
    g_dq, g_qd = g[:, :Ld, Ld:], g[:, Ld:, :Ld]

    kernel = functools.partial(_gcn_kernel, iteration_steps=iteration_steps)
    b3 = lambda b: (b, 0, 0)
    b2 = lambda b: (b, 0)
    const2 = lambda b: (0, 0)

    # NOTE: at production D, keep the (D, 8D) weight blocks single-buffered /
    # raise vmem_limit_bytes for v7x's 64 MiB VMEM; unnecessary at this size.
    d_out, q_out = pl.pallas_call(
        kernel,
        out_shape=(jax.ShapeDtypeStruct((B, Ld * D), f32),
                   jax.ShapeDtypeStruct((B, Lq * D), f32)),
        grid_spec=pltpu.PrefetchScalarGridSpec(
            num_scalar_prefetch=0,
            grid=(B // Bt,),
            in_specs=[
                pl.BlockSpec((Bt, Ld, D), b3),        # d_node
                pl.BlockSpec((Bt, Lq, D), b3),        # q_node
                pl.BlockSpec((Bt, Ld, 1), b3),        # d mask (col)
                pl.BlockSpec((Bt, 1, Ld), b3),        # d mask (row)
                pl.BlockSpec((Bt, Lq, 1), b3),        # q mask (col)
                pl.BlockSpec((Bt, 1, Lq), b3),        # q mask (row)
                pl.BlockSpec((Bt, Ld, Ld), b3),       # ner_dd
                pl.BlockSpec((Bt, Lq, Lq), b3),       # ner_qq
                pl.BlockSpec((Bt, Ld, Lq), b3),       # ner_dq
                pl.BlockSpec((Bt, Lq, Ld), b3),       # ner_qd
                pl.BlockSpec((Bt, Ld, Ld), b3),       # graph_dd
                pl.BlockSpec((Bt, Lq, Lq), b3),       # graph_qq
                pl.BlockSpec((Bt, Ld, Lq), b3),       # graph_dq
                pl.BlockSpec((Bt, Lq, Ld), b3),       # graph_qd
                pl.BlockSpec((D, 8 * D), const2),     # fused d-side weights
                pl.BlockSpec((D, 8 * D), const2),     # fused q-side weights
                pl.BlockSpec((1, D), const2),         # self_node_fc bias
            ],
            out_specs=(
                pl.BlockSpec((Bt, Ld * D), b2),       # lane-dense output slabs
                pl.BlockSpec((Bt, Lq * D), b2),
            ),
        ),
        compiler_params=pltpu.CompilerParams(dimension_semantics=("parallel",)),
    )(d_node.astype(f32), q_node.astype(f32), dmc, dmr, qmc, qmr,
      ner_dd, ner_qq, ner_dq, ner_qd, g_dd, g_qq, g_dq, g_qd,
      wd, wq, b_self.astype(f32))

    return d_out.reshape(B, Ld, D), q_out.reshape(B, Lq, D)


def gcn_reference(d_node, q_node, d_node_mask, q_node_mask, ner_mask, graph,
                  w, b, iteration_steps=1):
    """Pure-JAX reference mirroring the PyTorch forward (for numeric check)."""
    B, Ld, D = d_node.shape
    Lq = q_node.shape[1]
    f32 = jnp.float32
    dm = d_node_mask.astype(f32)
    qm = q_node_mask.astype(f32)
    ner = ner_mask.astype(f32)
    g = graph.astype(f32)
    eye_d = jnp.eye(Ld, dtype=f32)[None]
    eye_q = jnp.eye(Lq, dtype=f32)[None]

    d_mask = dm[:, None, :] * dm[:, :, None] * ner[:, :Ld, :Ld]
    dd_graph = d_mask * (1 - eye_d)
    dd_l, dd_r = dd_graph * g[:, :Ld, :Ld], dd_graph * (1 - g[:, :Ld, :Ld])
    q_mask = qm[:, None, :] * qm[:, :, None] * ner[:, Ld:, Ld:]
    qq_graph = q_mask * (1 - eye_q)
    qq_l, qq_r = qq_graph * g[:, Ld:, Ld:], qq_graph * (1 - g[:, Ld:, Ld:])
    dq_graph = dm[:, :, None] * qm[:, None, :] * ner[:, :Ld, Ld:]
    dq_l, dq_r = dq_graph * g[:, :Ld, Ld:], dq_graph * (1 - g[:, :Ld, Ld:])
    qd_graph = qm[:, :, None] * dm[:, None, :] * ner[:, Ld:, :Ld]
    qd_l, qd_r = qd_graph * g[:, Ld:, :Ld], qd_graph * (1 - g[:, Ld:, :Ld])

    d_nn = dd_l.sum(-1) + dd_r.sum(-1) + dq_l.sum(-1) + dq_r.sum(-1)
    d_nn = jnp.where(d_nn >= 1, d_nn, 1.0)
    q_nn = qq_l.sum(-1) + qq_r.sum(-1) + qd_l.sum(-1) + qd_r.sum(-1)
    q_nn = jnp.where(q_nn >= 1, q_nn, 1.0)

    d, q = d_node.astype(f32), q_node.astype(f32)
    lin = lambda x, i: x @ w[i]
    sm = jax.nn.softmax
    for _ in range(iteration_steps):
        ds = (lin(d, 0) @ lin(d, 1).transpose(0, 2, 1)) / math.sqrt(D)
        d_attn = sm(jnp.where(d_mask == 0, NEG_INF, ds), axis=-1)
        qs = (lin(q, 2) @ lin(q, 3).transpose(0, 2, 1)) / math.sqrt(D)
        q_attn = sm(jnp.where(q_mask == 0, NEG_INF, qs), axis=-1)
        dqs = d @ lin(q, 4).transpose(0, 2, 1)
        dq_attn = sm(jnp.where(dq_graph == 0, NEG_INF, dqs), axis=-1)
        qds = q @ lin(d, 5).transpose(0, 2, 1)
        qd_attn = sm(jnp.where(qd_graph == 0, NEG_INF, qds), axis=-1)
        self_d, self_q = lin(d, 6) + b, lin(q, 6) + b
        ddl = jnp.where(dd_l == 0, 0.0, d_attn) @ lin(d, 7)
        qdl = jnp.where(qd_l == 0, 0.0, qd_attn) @ lin(d, 10)
        qql = jnp.where(qq_l == 0, 0.0, q_attn) @ lin(q, 8)
        dql = jnp.where(dq_l == 0, 0.0, dq_attn) @ lin(q, 9)
        ddr = jnp.where(dd_r == 0, 0.0, d_attn) @ lin(d, 11)
        qdr = jnp.where(qd_r == 0, 0.0, qd_attn) @ lin(d, 14)
        qqr = jnp.where(qq_r == 0, 0.0, q_attn) @ lin(q, 12)
        dqr = jnp.where(dq_r == 0, 0.0, dq_attn) @ lin(q, 13)
        agg_d = (ddl + ddr + dql + dqr) / d_nn[..., None]
        agg_q = (qql + qqr + qdl + qdr) / q_nn[..., None]
        d = jax.nn.relu(self_d + agg_d)
        q = jax.nn.relu(self_q + agg_q)
    return d, q


if __name__ == "__main__":
    B, Ld, Lq, D = 16, 8, 8, 32
    L = Ld + Lq
    ITER = 1

    key = jax.random.PRNGKey(0)
    kw, kb, kd, kq, kdm, kqm, kner, kg = jax.random.split(key, 8)

    bound = 1.0 / math.sqrt(D)
    # Deterministic synthetic parameters (stacked, already (in_dim, out_dim)).
    w_stack = jax.random.uniform(kw, (NUM_W, D, D), jnp.float32, -bound, bound)
    b_self = jax.random.uniform(kb, (1, D), jnp.float32, -bound, bound)

    d_node = jax.random.normal(kd, (B, Ld, D), jnp.float32)
    q_node = jax.random.normal(kq, (B, Lq, D), jnp.float32)
    d_node_mask = (jax.random.uniform(kdm, (B, Ld)) > 0.2).astype(jnp.float32)
    q_node_mask = (jax.random.uniform(kqm, (B, Lq)) > 0.2).astype(jnp.float32)
    ner_mask = (jax.random.uniform(kner, (B, L, L)) > 0.3).astype(jnp.float32)
    graph = (jax.random.uniform(kg, (B, L, L)) > 0.5).astype(jnp.float32)

    d_out, q_out = gcn_forward(d_node, q_node, d_node_mask, q_node_mask,
                               ner_mask, graph, w_stack, b_self,
                               iteration_steps=ITER)
    jax.block_until_ready((d_out, q_out))

    d_ref, q_ref = gcn_reference(d_node, q_node, d_node_mask, q_node_mask,
                                 ner_mask, graph, w_stack, b_self,
                                 iteration_steps=ITER)
    assert jnp.allclose(d_out, d_ref, atol=1e-2, rtol=1e-2)
    assert jnp.allclose(q_out, q_ref, atol=1e-2, rtol=1e-2)

    print("KERNEL_OK")
</pallas_src>

<mosaic_0001>
module attributes {stable_mosaic.version = 11 : i64} {
  func.func @_gcn_kernel(%arg0: i32, %arg1: memref<8x8x32xf32, #tpu.memory_space<vmem>>, %arg2: memref<8x8x32xf32, #tpu.memory_space<vmem>>, %arg3: memref<8x8x1xf32, #tpu.memory_space<vmem>>, %arg4: memref<8x1x8xf32, #tpu.memory_space<vmem>>, %arg5: memref<8x8x1xf32, #tpu.memory_space<vmem>>, %arg6: memref<8x1x8xf32, #tpu.memory_space<vmem>>, %arg7: memref<8x8x8xf32, #tpu.memory_space<vmem>>, %arg8: memref<8x8x8xf32, #tpu.memory_space<vmem>>, %arg9: memref<8x8x8xf32, #tpu.memory_space<vmem>>, %arg10: memref<8x8x8xf32, #tpu.memory_space<vmem>>, %arg11: memref<8x8x8xf32, #tpu.memory_space<vmem>>, %arg12: memref<8x8x8xf32, #tpu.memory_space<vmem>>, %arg13: memref<8x8x8xf32, #tpu.memory_space<vmem>>, %arg14: memref<8x8x8xf32, #tpu.memory_space<vmem>>, %arg15: memref<32x256xf32, #tpu.memory_space<vmem>>, %arg16: memref<32x256xf32, #tpu.memory_space<vmem>>, %arg17: memref<1x32xf32, #tpu.memory_space<vmem>>, %arg18: memref<8x256xf32, #tpu.memory_space<vmem>>, %arg19: memref<8x256xf32, #tpu.memory_space<vmem>>) attributes {dimension_semantics = [#tpu.dimension_semantics<parallel>], iteration_bounds = array<i64: 2>, scalar_prefetch = 0 : i64, scratch_operands = 0 : i64, tpu.core_type = #tpu.core_type<tc>, window_params = [{transform_indices = @transform_0, window_bounds = array<i64: 8, 8, 32>}, {transform_indices = @transform_1, window_bounds = array<i64: 8, 8, 32>}, {transform_indices = @transform_2, window_bounds = array<i64: 8, 8, 1>}, {transform_indices = @transform_3, window_bounds = array<i64: 8, 1, 8>}, {transform_indices = @transform_4, window_bounds = array<i64: 8, 8, 1>}, {transform_indices = @transform_5, window_bounds = array<i64: 8, 1, 8>}, {transform_indices = @transform_6, window_bounds = array<i64: 8, 8, 8>}, {transform_indices = @transform_7, window_bounds = array<i64: 8, 8, 8>}, {transform_indices = @transform_8, window_bounds = array<i64: 8, 8, 8>}, {transform_indices = @transform_9, window_bounds = array<i64: 8, 8, 8>}, {transform_indices = @transform_10, window_bounds = array<i64: 8, 8, 8>}, {transform_indices = @transform_11, window_bounds = array<i64: 8, 8, 8>}, {transform_indices = @transform_12, window_bounds = array<i64: 8, 8, 8>}, {transform_indices = @transform_13, window_bounds = array<i64: 8, 8, 8>}, {pipeline_mode = #tpu.pipeline_mode<synchronous>, transform_indices = @transform_14, window_bounds = array<i64: 32, 256>}, {pipeline_mode = #tpu.pipeline_mode<synchronous>, transform_indices = @transform_15, window_bounds = array<i64: 32, 256>}, {pipeline_mode = #tpu.pipeline_mode<synchronous>, transform_indices = @transform_16, window_bounds = array<i64: 1, 32>}, {transform_indices = @transform_17, window_bounds = array<i64: 8, 256>}, {transform_indices = @transform_18, window_bounds = array<i64: 8, 256>}]} {
    %c0 = arith.constant 0 : index
    %c0_0 = arith.constant 0 : index
    %c0_1 = arith.constant 0 : index
    %0 = vector.load %arg1[%c0, %c0_0, %c0_1] : memref<8x8x32xf32, #tpu.memory_space<vmem>>, vector<8x8x32xf32>
    %c0_2 = arith.constant 0 : index
    %c0_3 = arith.constant 0 : index
    %c0_4 = arith.constant 0 : index
    %1 = vector.load %arg2[%c0_2, %c0_3, %c0_4] : memref<8x8x32xf32, #tpu.memory_space<vmem>>, vector<8x8x32xf32>
    %c0_5 = arith.constant 0 : index
    %c0_6 = arith.constant 0 : index
    %c0_7 = arith.constant 0 : index
    %2 = vector.load %arg3[%c0_5, %c0_6, %c0_7] : memref<8x8x1xf32, #tpu.memory_space<vmem>>, vector<8x8x1xf32>
    %c0_8 = arith.constant 0 : index
    %c0_9 = arith.constant 0 : index
    %c0_10 = arith.constant 0 : index
    %3 = vector.load %arg4[%c0_8, %c0_9, %c0_10] : memref<8x1x8xf32, #tpu.memory_space<vmem>>, vector<8x1x8xf32>
    %c0_11 = arith.constant 0 : index
    %c0_12 = arith.constant 0 : index
    %c0_13 = arith.constant 0 : index
    %4 = vector.load %arg5[%c0_11, %c0_12, %c0_13] : memref<8x8x1xf32, #tpu.memory_space<vmem>>, vector<8x8x1xf32>
    %c0_14 = arith.constant 0 : index
    %c0_15 = arith.constant 0 : index
    %c0_16 = arith.constant 0 : index
    %5 = vector.load %arg6[%c0_14, %c0_15, %c0_16] : memref<8x1x8xf32, #tpu.memory_space<vmem>>, vector<8x1x8xf32>
    %c0_17 = arith.constant 0 : index
    %c0_18 = arith.constant 0 : index
    %c0_19 = arith.constant 0 : index
    %6 = vector.load %arg7[%c0_17, %c0_18, %c0_19] : memref<8x8x8xf32, #tpu.memory_space<vmem>>, vector<8x8x8xf32>
    %c0_20 = arith.constant 0 : index
    %c0_21 = arith.constant 0 : index
    %c0_22 = arith.constant 0 : index
    %7 = vector.load %arg8[%c0_20, %c0_21, %c0_22] : memref<8x8x8xf32, #tpu.memory_space<vmem>>, vector<8x8x8xf32>
    %c0_23 = arith.constant 0 : index
    %c0_24 = arith.constant 0 : index
    %c0_25 = arith.constant 0 : index
    %8 = vector.load %arg9[%c0_23, %c0_24, %c0_25] : memref<8x8x8xf32, #tpu.memory_space<vmem>>, vector<8x8x8xf32>
    %c0_26 = arith.constant 0 : index
    %c0_27 = arith.constant 0 : index
    %c0_28 = arith.constant 0 : index
    %9 = vector.load %arg10[%c0_26, %c0_27, %c0_28] : memref<8x8x8xf32, #tpu.memory_space<vmem>>, vector<8x8x8xf32>
    %c0_29 = arith.constant 0 : index
    %c0_30 = arith.constant 0 : index
    %c0_31 = arith.constant 0 : index
    %10 = vector.load %arg11[%c0_29, %c0_30, %c0_31] : memref<8x8x8xf32, #tpu.memory_space<vmem>>, vector<8x8x8xf32>
    %c0_32 = arith.constant 0 : index
    %c0_33 = arith.constant 0 : index
    %c0_34 = arith.constant 0 : index
    %11 = vector.load %arg12[%c0_32, %c0_33, %c0_34] : memref<8x8x8xf32, #tpu.memory_space<vmem>>, vector<8x8x8xf32>
    %c0_35 = arith.constant 0 : index
    %c0_36 = arith.constant 0 : index
    %c0_37 = arith.constant 0 : index
    %12 = vector.load %arg13[%c0_35, %c0_36, %c0_37] : memref<8x8x8xf32, #tpu.memory_space<vmem>>, vector<8x8x8xf32>
    %c0_38 = arith.constant 0 : index
    %c0_39 = arith.constant 0 : index
    %c0_40 = arith.constant 0 : index
    %13 = vector.load %arg14[%c0_38, %c0_39, %c0_40] : memref<8x8x8xf32, #tpu.memory_space<vmem>>, vector<8x8x8xf32>
    %c0_41 = arith.constant 0 : index
    %c0_42 = arith.constant 0 : index
    %14 = vector.load %arg15[%c0_41, %c0_42] : memref<32x256xf32, #tpu.memory_space<vmem>>, vector<32x256xf32>
    %c0_43 = arith.constant 0 : index
    %c0_44 = arith.constant 0 : index
    %15 = vector.load %arg16[%c0_43, %c0_44] : memref<32x256xf32, #tpu.memory_space<vmem>>, vector<32x256xf32>
    %c0_45 = arith.constant 0 : index
    %c0_46 = arith.constant 0 : index
    %16 = vector.load %arg17[%c0_45, %c0_46] : memref<1x32xf32, #tpu.memory_space<vmem>>, vector<1x32xf32>
    %17 = vector.broadcast %3 : vector<8x1x8xf32> to vector<8x8x8xf32>
    %18 = vector.broadcast %2 : vector<8x8x1xf32> to vector<8x8x8xf32>
    %19 = arith.mulf %17, %18 : vector<8x8x8xf32>
    %20 = arith.mulf %19, %6 : vector<8x8x8xf32>
    %21 = tpu.iota {dimensions = array<i32: 0>} : vector<8x8xi32>
    %22 = tpu.iota {dimensions = array<i32: 1>} : vector<8x8xi32>
    %23 = arith.cmpi eq, %21, %22 : vector<8x8xi32>
    %24 = arith.extui %23 : vector<8x8xi1> to vector<8x8xi32>
    %25 = arith.sitofp %24 : vector<8x8xi32> to vector<8x8xf32>
    %cst = arith.constant 1.000000e+00 : f32
    %26 = vector.broadcast %cst : f32 to vector<8x8xf32>
    %27 = arith.subf %26, %25 : vector<8x8xf32>
    %28 = vector.shape_cast %27 : vector<8x8xf32> to vector<1x8x8xf32>
    %29 = vector.broadcast %28 : vector<1x8x8xf32> to vector<8x8x8xf32>
    %30 = arith.mulf %20, %29 : vector<8x8x8xf32>
    %31 = arith.mulf %30, %10 : vector<8x8x8xf32>
    %32 = arith.subf %30, %31 : vector<8x8x8xf32>
    %33 = vector.broadcast %5 : vector<8x1x8xf32> to vector<8x8x8xf32>
    %34 = vector.broadcast %4 : vector<8x8x1xf32> to vector<8x8x8xf32>
    %35 = arith.mulf %33, %34 : vector<8x8x8xf32>
    %36 = arith.mulf %35, %7 : vector<8x8x8xf32>
    %37 = tpu.iota {dimensions = array<i32: 0>} : vector<8x8xi32>
    %38 = tpu.iota {dimensions = array<i32: 1>} : vector<8x8xi32>
    %39 = arith.cmpi eq, %37, %38 : vector<8x8xi32>
    %40 = arith.extui %39 : vector<8x8xi1> to vector<8x8xi32>
    %41 = arith.sitofp %40 : vector<8x8xi32> to vector<8x8xf32>
    %cst_47 = arith.constant 1.000000e+00 : f32
    %42 = vector.broadcast %cst_47 : f32 to vector<8x8xf32>
    %43 = arith.subf %42, %41 : vector<8x8xf32>
    %44 = vector.shape_cast %43 : vector<8x8xf32> to vector<1x8x8xf32>
    %45 = vector.broadcast %44 : vector<1x8x8xf32> to vector<8x8x8xf32>
    %46 = arith.mulf %36, %45 : vector<8x8x8xf32>
    %47 = arith.mulf %46, %11 : vector<8x8x8xf32>
    %48 = arith.subf %46, %47 : vector<8x8x8xf32>
    %49 = vector.broadcast %2 : vector<8x8x1xf32> to vector<8x8x8xf32>
    %50 = vector.broadcast %5 : vector<8x1x8xf32> to vector<8x8x8xf32>
    %51 = arith.mulf %49, %50 : vector<8x8x8xf32>
    %52 = arith.mulf %51, %8 : vector<8x8x8xf32>
    %53 = arith.mulf %52, %12 : vector<8x8x8xf32>
    %54 = arith.subf %52, %53 : vector<8x8x8xf32>
    %55 = vector.broadcast %4 : vector<8x8x1xf32> to vector<8x8x8xf32>
    %56 = vector.broadcast %3 : vector<8x1x8xf32> to vector<8x8x8xf32>
    %57 = arith.mulf %55, %56 : vector<8x8x8xf32>
    %58 = arith.mulf %57, %9 : vector<8x8x8xf32>
    %59 = arith.mulf %58, %13 : vector<8x8x8xf32>
    %60 = arith.subf %58, %59 : vector<8x8x8xf32>
    %cst_48 = arith.constant dense<0.000000e+00> : vector<8x8xf32>
    %61 = vector.multi_reduction <add>, %30, %cst_48 [2] : vector<8x8x8xf32> to vector<8x8xf32>
    %62 = vector.shape_cast %61 : vector<8x8xf32> to vector<8x8x1xf32>
    %cst_49 = arith.constant dense<0.000000e+00> : vector<8x8xf32>
    %63 = vector.multi_reduction <add>, %52, %cst_49 [2] : vector<8x8x8xf32> to vector<8x8xf32>
    %64 = vector.shape_cast %63 : vector<8x8xf32> to vector<8x8x1xf32>
    %65 = arith.addf %62, %64 : vector<8x8x1xf32>
    %cst_50 = arith.constant dense<0.000000e+00> : vector<8x8xf32>
    %66 = vector.multi_reduction <add>, %46, %cst_50 [2] : vector<8x8x8xf32> to vector<8x8xf32>
    %67 = vector.shape_cast %66 : vector<8x8xf32> to vector<8x8x1xf32>
    %cst_51 = arith.constant dense<0.000000e+00> : vector<8x8xf32>
    %68 = vector.multi_reduction <add>, %58, %cst_51 [2] : vector<8x8x8xf32> to vector<8x8xf32>
    %69 = vector.shape_cast %68 : vector<8x8xf32> to vector<8x8x1xf32>
    %70 = arith.addf %67, %69 : vector<8x8x1xf32>
    %cst_52 = arith.constant 1.000000e+00 : f32
    %71 = vector.broadcast %cst_52 : f32 to vector<8x8x1xf32>
    %72 = arith.maximumf %65, %71 : vector<8x8x1xf32>
    %73 = tpu.reciprocal %72 {approx = true} : vector<8x8x1xf32> -> vector<8x8x1xf32>
    %cst_53 = arith.constant 1.000000e+00 : f32
    %74 = vector.broadcast %cst_53 : f32 to vector<8x8x1xf32>
    %75 = arith.maximumf %70, %74 : vector<8x8x1xf32>
    %76 = tpu.reciprocal %75 {approx = true} : vector<8x8x1xf32> -> vector<8x8x1xf32>
    %cst_54 = arith.constant 0.000000e+00 : f32
    %77 = vector.broadcast %cst_54 : f32 to vector<8x8x8xf32>
    %78 = arith.cmpf ogt, %20, %77 : vector<8x8x8xf32>
    %cst_55 = arith.constant 0.000000e+00 : f32
    %cst_56 = arith.constant -1.000000e+09 : f32
    %79 = vector.broadcast %cst_55 : f32 to vector<8x8x8xf32>
    %80 = vector.broadcast %cst_56 : f32 to vector<8x8x8xf32>
    %81 = arith.select %78, %79, %80 : vector<8x8x8xi1>, vector<8x8x8xf32>
    %cst_57 = arith.constant 0.000000e+00 : f32
    %82 = vector.broadcast %cst_57 : f32 to vector<8x8x8xf32>
    %83 = arith.cmpf ogt, %36, %82 : vector<8x8x8xf32>
    %cst_58 = arith.constant 0.000000e+00 : f32
    %cst_59 = arith.constant -1.000000e+09 : f32
    %84 = vector.broadcast %cst_58 : f32 to vector<8x8x8xf32>
    %85 = vector.broadcast %cst_59 : f32 to vector<8x8x8xf32>
    %86 = arith.select %83, %84, %85 : vector<8x8x8xi1>, vector<8x8x8xf32>
    %cst_60 = arith.constant 0.000000e+00 : f32
    %87 = vector.broadcast %cst_60 : f32 to vector<8x8x8xf32>
    %88 = arith.cmpf ogt, %52, %87 : vector<8x8x8xf32>
    %cst_61 = arith.constant 0.000000e+00 : f32
    %cst_62 = arith.constant -1.000000e+09 : f32
    %89 = vector.broadcast %cst_61 : f32 to vector<8x8x8xf32>
    %90 = vector.broadcast %cst_62 : f32 to vector<8x8x8xf32>
    %91 = arith.select %88, %89, %90 : vector<8x8x8xi1>, vector<8x8x8xf32>
    %cst_63 = arith.constant 0.000000e+00 : f32
    %92 = vector.broadcast %cst_63 : f32 to vector<8x8x8xf32>
    %93 = arith.cmpf ogt, %58, %92 : vector<8x8x8xf32>
    %cst_64 = arith.constant 0.000000e+00 : f32
    %cst_65 = arith.constant -1.000000e+09 : f32
    %94 = vector.broadcast %cst_64 : f32 to vector<8x8x8xf32>
    %95 = vector.broadcast %cst_65 : f32 to vector<8x8x8xf32>
    %96 = arith.select %93, %94, %95 : vector<8x8x8xi1>, vector<8x8x8xf32>
    %97 = vector.shape_cast %0 : vector<8x8x32xf32> to vector<64x32xf32>
    %cst_66 = arith.constant dense<0.000000e+00> : vector<64x256xf32>
    %98 = tpu.matmul %97, %14, %cst_66 {dimension_numbers = #tpu.dot_dimension_numbers<[1], [0], [0], [1], [0, 0, 1, 1], [], []>} : vector<64x32xf32>, vector<32x256xf32>, vector<64x256xf32> -> vector<64x256xf32>
    %99 = vector.shape_cast %98 : vector<64x256xf32> to vector<8x8x256xf32>
    %100 = vector.shape_cast %1 : vector<8x8x32xf32> to vector<64x32xf32>
    %cst_67 = arith.constant dense<0.000000e+00> : vector<64x256xf32>
    %101 = tpu.matmul %100, %15, %cst_67 {dimension_numbers = #tpu.dot_dimension_numbers<[1], [0], [0], [1], [0, 0, 1, 1], [], []>} : vector<64x32xf32>, vector<32x256xf32>, vector<64x256xf32> -> vector<64x256xf32>
    %102 = vector.shape_cast %101 : vector<64x256xf32> to vector<8x8x256xf32>
    %103 = vector.extract_strided_slice %99 {offsets = [0, 0, 0], sizes = [8, 8, 32], strides = [1, 1, 1]} : vector<8x8x256xf32> to vector<8x8x32xf32>
    %104 = vector.extract_strided_slice %99 {offsets = [0, 0, 32], sizes = [8, 8, 32], strides = [1, 1, 1]} : vector<8x8x256xf32> to vector<8x8x32xf32>
    "tpu.trace_start"() <{level = 10 : i32, message = "bqd,bkd->bqk"}> : () -> ()
    %cst_68 = arith.constant dense<0.000000e+00> : vector<8x8x8xf32>
    %105 = tpu.matmul %103, %104, %cst_68 {dimension_numbers = #tpu.dot_dimension_numbers<[2], [2], [1], [1], [0, 0, 0, 1, 1, 1], [0], [0]>} : vector<8x8x32xf32>, vector<8x8x32xf32>, vector<8x8x8xf32> -> vector<8x8x8xf32>
    "tpu.trace_stop"() : () -> ()
    %106 = arith.addf %105, %81 : vector<8x8x8xf32>
    %cst_69 = arith.constant dense<0xFF800000> : vector<8x8xf32>
    %107 = vector.multi_reduction <maximumf>, %106, %cst_69 [2] : vector<8x8x8xf32> to vector<8x8xf32>
    %108 = vector.shape_cast %107 : vector<8x8xf32> to vector<8x8x1xf32>
    %109 = vector.broadcast %108 : vector<8x8x1xf32> to vector<8x8x8xf32>
    %110 = arith.subf %106, %109 : vector<8x8x8xf32>
    %111 = math.exp %110 : vector<8x8x8xf32>
    %cst_70 = arith.constant dense<0.000000e+00> : vector<8x8xf32>
    %112 = vector.multi_reduction <add>, %111, %cst_70 [2] : vector<8x8x8xf32> to vector<8x8xf32>
    %113 = vector.shape_cast %112 : vector<8x8xf32> to vector<8x8x1xf32>
    %114 = tpu.reciprocal %113 {approx = true} : vector<8x8x1xf32> -> vector<8x8x1xf32>
    %115 = vector.broadcast %114 : vector<8x8x1xf32> to vector<8x8x8xf32>
    %116 = arith.mulf %111, %115 : vector<8x8x8xf32>
    %117 = vector.extract_strided_slice %102 {offsets = [0, 0, 0], sizes = [8, 8, 32], strides = [1, 1, 1]} : vector<8x8x256xf32> to vector<8x8x32xf32>
    %118 = vector.extract_strided_slice %102 {offsets = [0, 0, 32], sizes = [8, 8, 32], strides = [1, 1, 1]} : vector<8x8x256xf32> to vector<8x8x32xf32>
    "tpu.trace_start"() <{level = 10 : i32, message = "bqd,bkd->bqk"}> : () -> ()
    %cst_71 = arith.constant dense<0.000000e+00> : vector<8x8x8xf32>
    %119 = tpu.matmul %117, %118, %cst_71 {dimension_numbers = #tpu.dot_dimension_numbers<[2], [2], [1], [1], [0, 0, 0, 1, 1, 1], [0], [0]>} : vector<8x8x32xf32>, vector<8x8x32xf32>, vector<8x8x8xf32> -> vector<8x8x8xf32>
    "tpu.trace_stop"() : () -> ()
    %120 = arith.addf %119, %86 : vector<8x8x8xf32>
    %cst_72 = arith.constant dense<0xFF800000> : vector<8x8xf32>
    %121 = vector.multi_reduction <maximumf>, %120, %cst_72 [2] : vector<8x8x8xf32> to vector<8x8xf32>
    %122 = vector.shape_cast %121 : vector<8x8xf32> to vector<8x8x1xf32>
    %123 = vector.broadcast %122 : vector<8x8x1xf32> to vector<8x8x8xf32>
    %124 = arith.subf %120, %123 : vector<8x8x8xf32>
    %125 = math.exp %124 : vector<8x8x8xf32>
    %cst_73 = arith.constant dense<0.000000e+00> : vector<8x8xf32>
    %126 = vector.multi_reduction <add>, %125, %cst_73 [2] : vector<8x8x8xf32> to vector<8x8xf32>
    %127 = vector.shape_cast %126 : vector<8x8xf32> to vector<8x8x1xf32>
    %128 = tpu.reciprocal %127 {approx = true} : vector<8x8x1xf32> -> vector<8x8x1xf32>
    %129 = vector.broadcast %128 : vector<8x8x1xf32> to vector<8x8x8xf32>
    %130 = arith.mulf %125, %129 : vector<8x8x8xf32>
    %131 = vector.extract_strided_slice %102 {offsets = [0, 0, 64], sizes = [8, 8, 32], strides = [1, 1, 1]} : vector<8x8x256xf32> to vector<8x8x32xf32>
    "tpu.trace_start"() <{level = 10 : i32, message = "bqd,bkd->bqk"}> : () -> ()
    %cst_74 = arith.constant dense<0.000000e+00> : vector<8x8x8xf32>
    %132 = tpu.matmul %0, %131, %cst_74 {dimension_numbers = #tpu.dot_dimension_numbers<[2], [2], [1], [1], [0, 0, 0, 1, 1, 1], [0], [0]>} : vector<8x8x32xf32>, vector<8x8x32xf32>, vector<8x8x8xf32> -> vector<8x8x8xf32>
    "tpu.trace_stop"() : () -> ()
    %133 = arith.addf %132, %91 : vector<8x8x8xf32>
    %cst_75 = arith.constant dense<0xFF800000> : vector<8x8xf32>
    %134 = vector.multi_reduction <maximumf>, %133, %cst_75 [2] : vector<8x8x8xf32> to vector<8x8xf32>
    %135 = vector.shape_cast %134 : vector<8x8xf32> to vector<8x8x1xf32>
    %136 = vector.broadcast %135 : vector<8x8x1xf32> to vector<8x8x8xf32>
    %137 = arith.subf %133, %136 : vector<8x8x8xf32>
    %138 = math.exp %137 : vector<8x8x8xf32>
    %cst_76 = arith.constant dense<0.000000e+00> : vector<8x8xf32>
    %139 = vector.multi_reduction <add>, %138, %cst_76 [2] : vector<8x8x8xf32> to vector<8x8xf32>
    %140 = vector.shape_cast %139 : vector<8x8xf32> to vector<8x8x1xf32>
    %141 = tpu.reciprocal %140 {approx = true} : vector<8x8x1xf32> -> vector<8x8x1xf32>
    %142 = vector.broadcast %141 : vector<8x8x1xf32> to vector<8x8x8xf32>
    %143 = arith.mulf %138, %142 : vector<8x8x8xf32>
    %144 = vector.extract_strided_slice %99 {offsets = [0, 0, 64], sizes = [8, 8, 32], strides = [1, 1, 1]} : vector<8x8x256xf32> to vector<8x8x32xf32>
    "tpu.trace_start"() <{level = 10 : i32, message = "bqd,bkd->bqk"}> : () -> ()
    %cst_77 = arith.constant dense<0.000000e+00> : vector<8x8x8xf32>
    %145 = tpu.matmul %1, %144, %cst_77 {dimension_numbers = #tpu.dot_dimension_numbers<[2], [2], [1], [1], [0, 0, 0, 1, 1, 1], [0], [0]>} : vector<8x8x32xf32>, vector<8x8x32xf32>, vector<8x8x8xf32> -> vector<8x8x8xf32>
    "tpu.trace_stop"() : () -> ()
    %146 = arith.addf %145, %96 : vector<8x8x8xf32>
    %cst_78 = arith.constant dense<0xFF800000> : vector<8x8xf32>
    %147 = vector.multi_reduction <maximumf>, %146, %cst_78 [2] : vector<8x8x8xf32> to vector<8x8xf32>
    %148 = vector.shape_cast %147 : vector<8x8xf32> to vector<8x8x1xf32>
    %149 = vector.broadcast %148 : vector<8x8x1xf32> to vector<8x8x8xf32>
    %150 = arith.subf %146, %149 : vector<8x8x8xf32>
    %151 = math.exp %150 : vector<8x8x8xf32>
    %cst_79 = arith.constant dense<0.000000e+00> : vector<8x8xf32>
    %152 = vector.multi_reduction <add>, %151, %cst_79 [2] : vector<8x8x8xf32> to vector<8x8xf32>
    %153 = vector.shape_cast %152 : vector<8x8xf32> to vector<8x8x1xf32>
    %154 = tpu.reciprocal %153 {approx = true} : vector<8x8x1xf32> -> vector<8x8x1xf32>
    %155 = vector.broadcast %154 : vector<8x8x1xf32> to vector<8x8x8xf32>
    %156 = arith.mulf %151, %155 : vector<8x8x8xf32>
    %157 = vector.extract_strided_slice %99 {offsets = [0, 0, 96], sizes = [8, 8, 32], strides = [1, 1, 1]} : vector<8x8x256xf32> to vector<8x8x32xf32>
    %158 = vector.shape_cast %16 : vector<1x32xf32> to vector<1x1x32xf32>
    %159 = vector.broadcast %158 : vector<1x1x32xf32> to vector<8x8x32xf32>
    %160 = arith.addf %157, %159 : vector<8x8x32xf32>
    %161 = vector.extract_strided_slice %102 {offsets = [0, 0, 96], sizes = [8, 8, 32], strides = [1, 1, 1]} : vector<8x8x256xf32> to vector<8x8x32xf32>
    %162 = vector.shape_cast %16 : vector<1x32xf32> to vector<1x1x32xf32>
    %163 = vector.broadcast %162 : vector<1x1x32xf32> to vector<8x8x32xf32>
    %164 = arith.addf %161, %163 : vector<8x8x32xf32>
    %165 = arith.mulf %116, %31 : vector<8x8x8xf32>
    %166 = arith.mulf %116, %32 : vector<8x8x8xf32>
    %167 = arith.mulf %143, %53 : vector<8x8x8xf32>
    %168 = arith.mulf %143, %54 : vector<8x8x8xf32>
    %169 = tpu.concatenate %165, %166, %167, %168 in 2 : vector<8x8x8xf32>, vector<8x8x8xf32>, vector<8x8x8xf32>, vector<8x8x8xf32> -> vector<8x8x32xf32>
    %170 = vector.extract_strided_slice %99 {offsets = [0, 0, 128], sizes = [8, 8, 32], strides = [1, 1, 1]} : vector<8x8x256xf32> to vector<8x8x32xf32>
    %171 = vector.extract_strided_slice %99 {offsets = [0, 0, 192], sizes = [8, 8, 32], strides = [1, 1, 1]} : vector<8x8x256xf32> to vector<8x8x32xf32>
    %172 = vector.extract_strided_slice %102 {offsets = [0, 0, 160], sizes = [8, 8, 32], strides = [1, 1, 1]} : vector<8x8x256xf32> to vector<8x8x32xf32>
    %173 = vector.extract_strided_slice %102 {offsets = [0, 0, 224], sizes = [8, 8, 32], strides = [1, 1, 1]} : vector<8x8x256xf32> to vector<8x8x32xf32>
    %174 = tpu.concatenate %170, %171, %172, %173 in 1 : vector<8x8x32xf32>, vector<8x8x32xf32>, vector<8x8x32xf32>, vector<8x8x32xf32> -> vector<8x32x32xf32>
    "tpu.trace_start"() <{level = 10 : i32, message = "bqk,bkd->bqd"}> : () -> ()
    %cst_80 = arith.constant dense<0.000000e+00> : vector<8x8x32xf32>
    %175 = tpu.matmul %169, %174, %cst_80 {dimension_numbers = #tpu.dot_dimension_numbers<[2], [1], [1], [2], [0, 0, 0, 1, 1, 2], [0], [0]>} : vector<8x8x32xf32>, vector<8x32x32xf32>, vector<8x8x32xf32> -> vector<8x8x32xf32>
    "tpu.trace_stop"() : () -> ()
    %176 = vector.broadcast %73 : vector<8x8x1xf32> to vector<8x8x32xf32>
    %177 = arith.mulf %175, %176 : vector<8x8x32xf32>
    %178 = arith.mulf %130, %47 : vector<8x8x8xf32>
    %179 = arith.mulf %130, %48 : vector<8x8x8xf32>
    %180 = arith.mulf %156, %59 : vector<8x8x8xf32>
    %181 = arith.mulf %156, %60 : vector<8x8x8xf32>
    %182 = tpu.concatenate %178, %179, %180, %181 in 2 : vector<8x8x8xf32>, vector<8x8x8xf32>, vector<8x8x8xf32>, vector<8x8x8xf32> -> vector<8x8x32xf32>
    %183 = vector.extract_strided_slice %102 {offsets = [0, 0, 128], sizes = [8, 8, 32], strides = [1, 1, 1]} : vector<8x8x256xf32> to vector<8x8x32xf32>
    %184 = vector.extract_strided_slice %102 {offsets = [0, 0, 192], sizes = [8, 8, 32], strides = [1, 1, 1]} : vector<8x8x256xf32> to vector<8x8x32xf32>
    %185 = vector.extract_strided_slice %99 {offsets = [0, 0, 160], sizes = [8, 8, 32], strides = [1, 1, 1]} : vector<8x8x256xf32> to vector<8x8x32xf32>
    %186 = vector.extract_strided_slice %99 {offsets = [0, 0, 224], sizes = [8, 8, 32], strides = [1, 1, 1]} : vector<8x8x256xf32> to vector<8x8x32xf32>
    %187 = tpu.concatenate %183, %184, %185, %186 in 1 : vector<8x8x32xf32>, vector<8x8x32xf32>, vector<8x8x32xf32>, vector<8x8x32xf32> -> vector<8x32x32xf32>
    "tpu.trace_start"() <{level = 10 : i32, message = "bqk,bkd->bqd"}> : () -> ()
    %cst_81 = arith.constant dense<0.000000e+00> : vector<8x8x32xf32>
    %188 = tpu.matmul %182, %187, %cst_81 {dimension_numbers = #tpu.dot_dimension_numbers<[2], [1], [1], [2], [0, 0, 0, 1, 1, 2], [0], [0]>} : vector<8x8x32xf32>, vector<8x32x32xf32>, vector<8x8x32xf32> -> vector<8x8x32xf32>
    "tpu.trace_stop"() : () -> ()
    %189 = vector.broadcast %76 : vector<8x8x1xf32> to vector<8x8x32xf32>
    %190 = arith.mulf %188, %189 : vector<8x8x32xf32>
    %191 = arith.addf %160, %177 : vector<8x8x32xf32>
    %cst_82 = arith.constant 0.000000e+00 : f32
    %192 = vector.broadcast %cst_82 : f32 to vector<8x8x32xf32>
    %193 = arith.maximumf %191, %192 : vector<8x8x32xf32>
    %194 = arith.addf %164, %190 : vector<8x8x32xf32>
    %cst_83 = arith.constant 0.000000e+00 : f32
    %195 = vector.broadcast %cst_83 : f32 to vector<8x8x32xf32>
    %196 = arith.maximumf %194, %195 : vector<8x8x32xf32>
    %197 = vector.shape_cast %193 : vector<8x8x32xf32> to vector<8x256xf32>
    %c0_84 = arith.constant 0 : index
    %c0_85 = arith.constant 0 : index
    %198 = vector.load %arg18[%c0_84, %c0_85] : memref<8x256xf32, #tpu.memory_space<vmem>>, vector<8x256xf32>
    tpu.vector_store %arg18[%c0_84, %c0_85], %197 {strides = array<i32>} : memref<8x256xf32, #tpu.memory_space<vmem>>, vector<8x256xf32>,
    %199 = vector.shape_cast %196 : vector<8x8x32xf32> to vector<8x256xf32>
    %c0_86 = arith.constant 0 : index
    %c0_87 = arith.constant 0 : index
    %200 = vector.load %arg19[%c0_86, %c0_87] : memref<8x256xf32, #tpu.memory_space<vmem>>, vector<8x256xf32>
    tpu.vector_store %arg19[%c0_86, %c0_87], %199 {strides = array<i32>} : memref<8x256xf32, #tpu.memory_space<vmem>>, vector<8x256xf32>,
    return
  }
  func.func @transform_0(%arg0: i32) -> (i32, i32, i32) {
    %c0_i32 = arith.constant 0 : i32
    %c0_i32_0 = arith.constant 0 : i32
    %c0_i32_1 = arith.constant 0 : i32
    return %arg0, %c0_i32, %c0_i32_0 : i32, i32, i32
  }
  func.func @transform_1(%arg0: i32) -> (i32, i32, i32) {
    %c0_i32 = arith.constant 0 : i32
    %c0_i32_0 = arith.constant 0 : i32
    %c0_i32_1 = arith.constant 0 : i32
    return %arg0, %c0_i32, %c0_i32_0 : i32, i32, i32
  }
  func.func @transform_2(%arg0: i32) -> (i32, i32, i32) {
    %c0_i32 = arith.constant 0 : i32
    %c0_i32_0 = arith.constant 0 : i32
    %c0_i32_1 = arith.constant 0 : i32
    return %arg0, %c0_i32, %c0_i32_0 : i32, i32, i32
  }
  func.func @transform_3(%arg0: i32) -> (i32, i32, i32) {
    %c0_i32 = arith.constant 0 : i32
    %c0_i32_0 = arith.constant 0 : i32
    %c0_i32_1 = arith.constant 0 : i32
    return %arg0, %c0_i32, %c0_i32_0 : i32, i32, i32
  }
  func.func @transform_4(%arg0: i32) -> (i32, i32, i32) {
    %c0_i32 = arith.constant 0 : i32
    %c0_i32_0 = arith.constant 0 : i32
    %c0_i32_1 = arith.constant 0 : i32
    return %arg0, %c0_i32, %c0_i32_0 : i32, i32, i32
  }
  func.func @transform_5(%arg0: i32) -> (i32, i32, i32) {
    %c0_i32 = arith.constant 0 : i32
    %c0_i32_0 = arith.constant 0 : i32
    %c0_i32_1 = arith.constant 0 : i32
    return %arg0, %c0_i32, %c0_i32_0 : i32, i32, i32
  }
  func.func @transform_6(%arg0: i32) -> (i32, i32, i32) {
    %c0_i32 = arith.constant 0 : i32
    %c0_i32_0 = arith.constant 0 : i32
    %c0_i32_1 = arith.constant 0 : i32
    return %arg0, %c0_i32, %c0_i32_0 : i32, i32, i32
  }
  func.func @transform_7(%arg0: i32) -> (i32, i32, i32) {
    %c0_i32 = arith.constant 0 : i32
    %c0_i32_0 = arith.constant 0 : i32
    %c0_i32_1 = arith.constant 0 : i32
    return %arg0, %c0_i32, %c0_i32_0 : i32, i32, i32
  }
  func.func @transform_8(%arg0: i32) -> (i32, i32, i32) {
    %c0_i32 = arith.constant 0 : i32
    %c0_i32_0 = arith.constant 0 : i32
    %c0_i32_1 = arith.constant 0 : i32
    return %arg0, %c0_i32, %c0_i32_0 : i32, i32, i32
  }
  func.func @transform_9(%arg0: i32) -> (i32, i32, i32) {
    %c0_i32 = arith.constant 0 : i32
    %c0_i32_0 = arith.constant 0 : i32
    %c0_i32_1 = arith.constant 0 : i32
    return %arg0, %c0_i32, %c0_i32_0 : i32, i32, i32
  }
  func.func @transform_10(%arg0: i32) -> (i32, i32, i32) {
    %c0_i32 = arith.constant 0 : i32
    %c0_i32_0 = arith.constant 0 : i32
    %c0_i32_1 = arith.constant 0 : i32
    return %arg0, %c0_i32, %c0_i32_0 : i32, i32, i32
  }
  func.func @transform_11(%arg0: i32) -> (i32, i32, i32) {
    %c0_i32 = arith.constant 0 : i32
    %c0_i32_0 = arith.constant 0 : i32
    %c0_i32_1 = arith.constant 0 : i32
    return %arg0, %c0_i32, %c0_i32_0 : i32, i32, i32
  }
  func.func @transform_12(%arg0: i32) -> (i32, i32, i32) {
    %c0_i32 = arith.constant 0 : i32
    %c0_i32_0 = arith.constant 0 : i32
    %c0_i32_1 = arith.constant 0 : i32
    return %arg0, %c0_i32, %c0_i32_0 : i32, i32, i32
  }
  func.func @transform_13(%arg0: i32) -> (i32, i32, i32) {
    %c0_i32 = arith.constant 0 : i32
    %c0_i32_0 = arith.constant 0 : i32
    %c0_i32_1 = arith.constant 0 : i32
    return %arg0, %c0_i32, %c0_i32_0 : i32, i32, i32
  }
  func.func @transform_14(%arg0: i32) -> (i32, i32) {
    %c0_i32 = arith.constant 0 : i32
    %c0_i32_0 = arith.constant 0 : i32
    %c0_i32_1 = arith.constant 0 : i32
    return %c0_i32, %c0_i32_0 : i32, i32
  }
  func.func @transform_15(%arg0: i32) -> (i32, i32) {
    %c0_i32 = arith.constant 0 : i32
    %c0_i32_0 = arith.constant 0 : i32
    %c0_i32_1 = arith.constant 0 : i32
    return %c0_i32, %c0_i32_0 : i32, i32
  }
  func.func @transform_16(%arg0: i32) -> (i32, i32) {
    %c0_i32 = arith.constant 0 : i32
    %c0_i32_0 = arith.constant 0 : i32
    %c0_i32_1 = arith.constant 0 : i32
    return %c0_i32, %c0_i32_0 : i32, i32
  }
  func.func @transform_17(%arg0: i32) -> (i32, i32) {
    %c0_i32 = arith.constant 0 : i32
    %c0_i32_0 = arith.constant 0 : i32
    return %arg0, %c0_i32 : i32, i32
  }
  func.func @transform_18(%arg0: i32) -> (i32, i32) {
    %c0_i32 = arith.constant 0 : i32
    %c0_i32_0 = arith.constant 0 : i32
    return %arg0, %c0_i32 : i32, i32
  }
}

</mosaic_0001>

<llo_original>
// kernel: tpu_custom_call.1
$region0: #{tpu_custom_call.1}
  #allocation0 [shape = 'u32[]', space=smem, size = 0x4, offset = 0x4, fixed_abs, tag = 'smem constant byte address 0x4 - core index']
  #allocation1 [shape = 'u32[144,128]{1,0:T(1,128)}', space=vmem, size = 0x12000, scoped, tag = 'internal scratch']
  %s0 = inlined_call_operand.vmem [shape: f32[16,8,32], index: 0, kind: input, shape index: {}]
  %s1 = inlined_call_operand.vmem [shape: f32[16,8,32], index: 1, kind: input, shape index: {}]
  %s2 = inlined_call_operand.vmem [shape: f32[16,8,1], index: 2, kind: input, shape index: {}]
  %s3 = inlined_call_operand.vmem [shape: f32[16,1,8], index: 3, kind: input, shape index: {}]
  %s4 = inlined_call_operand.vmem [shape: f32[16,8,1], index: 4, kind: input, shape index: {}]
  %s5 = inlined_call_operand.vmem [shape: f32[16,1,8], index: 5, kind: input, shape index: {}]
  %s6 = inlined_call_operand.vmem [shape: f32[16,8,8], index: 6, kind: input, shape index: {}]
  %s7 = inlined_call_operand.vmem [shape: f32[16,8,8], index: 7, kind: input, shape index: {}]
  %s8 = inlined_call_operand.vmem [shape: f32[16,8,8], index: 8, kind: input, shape index: {}]
  %s9 = inlined_call_operand.vmem [shape: f32[16,8,8], index: 9, kind: input, shape index: {}]
  %s10 = inlined_call_operand.vmem [shape: f32[16,8,8], index: 10, kind: input, shape index: {}]
  %s11 = inlined_call_operand.vmem [shape: f32[16,8,8], index: 11, kind: input, shape index: {}]
  %s12 = inlined_call_operand.vmem [shape: f32[16,8,8], index: 12, kind: input, shape index: {}]
  %s13 = inlined_call_operand.vmem [shape: f32[16,8,8], index: 13, kind: input, shape index: {}]
  %s14 = inlined_call_operand.vmem [shape: f32[32,256], index: 14, kind: input, shape index: {}]
  %s15 = inlined_call_operand.vmem [shape: f32[32,256], index: 15, kind: input, shape index: {}]
  %s16 = inlined_call_operand.vmem [shape: f32[1,32], index: 16, kind: input, shape index: {}]
  %s17 = inlined_call_operand.hbm [shape: f32[16,256], index: 17, kind: output, shape index: {0}]
  %s18 = inlined_call_operand.hbm [shape: f32[16,256], index: 18, kind: output, shape index: {1}]
  %19 = xla_tuple %s17, %s18
  %s20 = sld [smem:[#allocation0]]
  $region109: #{tpu_custom_call.1} parent=0
    _
  %s22 = ssub.s32 1, %s20
  %s23 = scalar_select 0, %s22, %s20
  $region1: #{tpu_custom_call.1} parent=0
    #allocation2 [shape = 'u8[16384]{0}', space=vmem, size = 0x4000, scoped, tag = 'output window, operand 0']
    #allocation3 [shape = 's32[2]{0}', space=sflag, size = 0x8, scoped, tag = 'scoped memory for tpu_custom_call.1']
    #allocation4 [shape = 'u8[16384]{0}', space=vmem, size = 0x4000, scoped, tag = 'output window, operand 1']
    #allocation5 [shape = 's32[2]{0}', space=sflag, size = 0x8, scoped, tag = 'scoped memory for tpu_custom_call.1']
    %24 = vsyncpa [#allocation3], 0
    %s25 = scalar_lea.sflag [#allocation3], 1
    %26 = vsyncpa %s25, 0
    %27 = vsyncpa [#allocation5], 0
    %s28 = scalar_lea.sflag [#allocation5], 1
    %29 = vsyncpa %s28, 0
    loop: start=0, step=1, limit=4
    $region2: #{tpu_custom_call.1} parent=1 // loop_pre_header
      _
    $region3: #{tpu_custom_call.1} parent=1 // loop_header
      %s31 = sphi 0, %s35
      %p32 = scmp.ge.s32.totalorder %s31, 4
      %s41 = sphi 0, %s43
      %s44 = sphi 0, %s41
      %s45 = sphi 0, %s44
      %s61 = sphi 0, %s45
      %s67 = sphi 0, %s69
      %s70 = sphi 0, %s67
      %s71 = sphi 0, %s70
      %s87 = sphi 0, %s71
      %s93 = sphi 0, %s95
      %s96 = sphi 0, %s93
      %s97 = sphi 0, %s96
      %s113 = sphi 0, %s97
      %s119 = sphi 0, %s121
      %s122 = sphi 0, %s119
      %s123 = sphi 0, %s122
      %s139 = sphi 0, %s123
      %s145 = sphi 0, %s147
      %s148 = sphi 0, %s145
      %s149 = sphi 0, %s148
      %s165 = sphi 0, %s149
      %s171 = sphi 0, %s173
      %s174 = sphi 0, %s171
      %s175 = sphi 0, %s174
      %s191 = sphi 0, %s175
      %s197 = sphi 0, %s199
      %s200 = sphi 0, %s197
      %s201 = sphi 0, %s200
      %s217 = sphi 0, %s201
      %s223 = sphi 0, %s225
      %s226 = sphi 0, %s223
      %s227 = sphi 0, %s226
      %s243 = sphi 0, %s227
      %s249 = sphi 0, %s251
      %s252 = sphi 0, %s249
      %s253 = sphi 0, %s252
      %s269 = sphi 0, %s253
      %s275 = sphi 0, %s277
      %s278 = sphi 0, %s275
      %s279 = sphi 0, %s278
      %s295 = sphi 0, %s279
      %s301 = sphi 0, %s303
      %s304 = sphi 0, %s301
      %s305 = sphi 0, %s304
      %s321 = sphi 0, %s305
      %s327 = sphi 0, %s329
      %s330 = sphi 0, %s327
      %s331 = sphi 0, %s330
      %s347 = sphi 0, %s331
      %s353 = sphi 0, %s355
      %s356 = sphi 0, %s353
      %s357 = sphi 0, %s356
      %s373 = sphi 0, %s357
      %s379 = sphi 0, %s381
      %s382 = sphi 0, %s379
      %s383 = sphi 0, %s382
      %s399 = sphi 0, %s383
      %s403 = sphi 0, %s403
      %s405 = sphi 0, %s403
      %s406 = sphi 0, %s405
      %s420 = sphi 0, %s406
      %s424 = sphi 0, %s424
      %s426 = sphi 0, %s424
      %s427 = sphi 0, %s426
      %s441 = sphi 0, %s427
      %s445 = sphi 0, %s445
      %s447 = sphi 0, %s445
      %s448 = sphi 0, %s447
      %s462 = sphi 0, %s448
      %s468 = sphi 0, %s470
      %s471 = sphi 0, %s468
      %s472 = sphi 0, %s471
      %s488 = sphi 0, %s472
      %s494 = sphi 0, %s496
      %s497 = sphi 0, %s494
      %s498 = sphi 0, %s497
      %s514 = sphi 0, %s498
    $region4: #{tpu_custom_call.1} parent=1 // loop_header_branch
      %34 = sbr.rel (%p32) target = $region8
    $region5: #{tpu_custom_call.1} parent=1 // loop_body
      %s36 = ssub.s32 %s31, 1
      %s37 = ssub.s32 %s31, 2
      %s38 = sadd.s32 %s31, 1
      %s39 = ssub.s32 %s31, %s38
      %p40 = scmp.eq.s32.totalorder %s39, 0
      %s42 = sadd.s32 %s41, 1
      %s43 = scalar_select %p40, %s41, %s42
      %p46 = pneg %p40
      %p47 = scmp.eq.s32.totalorder %s31, 1
      %p48 = por %p46, %p47
      %p49 = scmp.ne.s32.totalorder %s41, %s44
      %p50 = scmp.eq.s32.totalorder %s31, 0
      %p51 = por %p49, %p50
      %p52 = scmp.ne.s32.totalorder %s41, %s44
      %p53 = scmp.eq.s32.totalorder %s36, 1
      %p54 = por %p52, %p53
      %p55 = scmp.ne.s32.totalorder %s44, %s45
      %p56 = scmp.eq.s32.totalorder %s36, 0
      %p57 = por %p55, %p56
      %p58 = scmp.ne.s32.totalorder %s44, %s45
      %p59 = scmp.eq.s32.totalorder %s37, 1
      %p60 = por %p58, %p59
      %p62 = scmp.ne.s32.totalorder %s45, %s61
      %p63 = scmp.eq.s32.totalorder %s37, 0
      %p64 = por %p62, %p63
      %s65 = ssub.s32 %s31, %s38
      %p66 = scmp.eq.s32.totalorder %s65, 0
      %s68 = sadd.s32 %s67, 1
      %s69 = scalar_select %p66, %s67, %s68
      %p72 = pneg %p66
      %p73 = scmp.eq.s32.totalorder %s31, 1
      %p74 = por %p72, %p73
      %p75 = scmp.ne.s32.totalorder %s67, %s70
      %p76 = scmp.eq.s32.totalorder %s31, 0
      %p77 = por %p75, %p76
      %p78 = scmp.ne.s32.totalorder %s67, %s70
      %p79 = scmp.eq.s32.totalorder %s36, 1
      %p80 = por %p78, %p79
      %p81 = scmp.ne.s32.totalorder %s70, %s71
      %p82 = scmp.eq.s32.totalorder %s36, 0
      %p83 = por %p81, %p82
      %p84 = scmp.ne.s32.totalorder %s70, %s71
      %p85 = scmp.eq.s32.totalorder %s37, 1
      %p86 = por %p84, %p85
      %p88 = scmp.ne.s32.totalorder %s71, %s87
      %p89 = scmp.eq.s32.totalorder %s37, 0
      %p90 = por %p88, %p89
      %s91 = ssub.s32 %s31, %s38
      %p92 = scmp.eq.s32.totalorder %s91, 0
      %s94 = sadd.s32 %s93, 1
      %s95 = scalar_select %p92, %s93, %s94
      %p98 = pneg %p92
      %p99 = scmp.eq.s32.totalorder %s31, 1
      %p100 = por %p98, %p99
      %p101 = scmp.ne.s32.totalorder %s93, %s96
      %p102 = scmp.eq.s32.totalorder %s31, 0
      %p103 = por %p101, %p102
      %p104 = scmp.ne.s32.totalorder %s93, %s96
      %p105 = scmp.eq.s32.totalorder %s36, 1
      %p106 = por %p104, %p105
      %p107 = scmp.ne.s32.totalorder %s96, %s97
      %p108 = scmp.eq.s32.totalorder %s36, 0
      %p109 = por %p107, %p108
      %p110 = scmp.ne.s32.totalorder %s96, %s97
      %p111 = scmp.eq.s32.totalorder %s37, 1
      %p112 = por %p110, %p111
      %p114 = scmp.ne.s32.totalorder %s97, %s113
      %p115 = scmp.eq.s32.totalorder %s37, 0
      %p116 = por %p114, %p115
      %s117 = ssub.s32 %s31, %s38
      %p118 = scmp.eq.s32.totalorder %s117, 0
      %s120 = sadd.s32 %s119, 1
      %s121 = scalar_select %p118, %s119, %s120
      %p124 = pneg %p118
      %p125 = scmp.eq.s32.totalorder %s31, 1
      %p126 = por %p124, %p125
      %p127 = scmp.ne.s32.totalorder %s119, %s122
      %p128 = scmp.eq.s32.totalorder %s31, 0
      %p129 = por %p127, %p128
      %p130 = scmp.ne.s32.totalorder %s119, %s122
      %p131 = scmp.eq.s32.totalorder %s36, 1
      %p132 = por %p130, %p131
      %p133 = scmp.ne.s32.totalorder %s122, %s123
      %p134 = scmp.eq.s32.totalorder %s36, 0
      %p135 = por %p133, %p134
      %p136 = scmp.ne.s32.totalorder %s122, %s123
      %p137 = scmp.eq.s32.totalorder %s37, 1
      %p138 = por %p136, %p137
      %p140 = scmp.ne.s32.totalorder %s123, %s139
      %p141 = scmp.eq.s32.totalorder %s37, 0
      %p142 = por %p140, %p141
      %s143 = ssub.s32 %s31, %s38
      %p144 = scmp.eq.s32.totalorder %s143, 0
      %s146 = sadd.s32 %s145, 1
      %s147 = scalar_select %p144, %s145, %s146
      %p150 = pneg %p144
      %p151 = scmp.eq.s32.totalorder %s31, 1
      %p152 = por %p150, %p151
      %p153 = scmp.ne.s32.totalorder %s145, %s148
      %p154 = scmp.eq.s32.totalorder %s31, 0
      %p155 = por %p153, %p154
      %p156 = scmp.ne.s32.totalorder %s145, %s148
      %p157 = scmp.eq.s32.totalorder %s36, 1
      %p158 = por %p156, %p157
      %p159 = scmp.ne.s32.totalorder %s148, %s149
      %p160 = scmp.eq.s32.totalorder %s36, 0
      %p161 = por %p159, %p160
      %p162 = scmp.ne.s32.totalorder %s148, %s149
      %p163 = scmp.eq.s32.totalorder %s37, 1
      %p164 = por %p162, %p163
      %p166 = scmp.ne.s32.totalorder %s149, %s165
      %p167 = scmp.eq.s32.totalorder %s37, 0
      %p168 = por %p166, %p167
      %s169 = ssub.s32 %s31, %s38
      %p170 = scmp.eq.s32.totalorder %s169, 0
      %s172 = sadd.s32 %s171, 1
      %s173 = scalar_select %p170, %s171, %s172
      %p176 = pneg %p170
      %p177 = scmp.eq.s32.totalorder %s31, 1
      %p178 = por %p176, %p177
      %p179 = scmp.ne.s32.totalorder %s171, %s174
      %p180 = scmp.eq.s32.totalorder %s31, 0
      %p181 = por %p179, %p180
      %p182 = scmp.ne.s32.totalorder %s171, %s174
      %p183 = scmp.eq.s32.totalorder %s36, 1
      %p184 = por %p182, %p183
      %p185 = scmp.ne.s32.totalorder %s174, %s175
      %p186 = scmp.eq.s32.totalorder %s36, 0
      %p187 = por %p185, %p186
      %p188 = scmp.ne.s32.totalorder %s174, %s175
      %p189 = scmp.eq.s32.totalorder %s37, 1
      %p190 = por %p188, %p189
      %p192 = scmp.ne.s32.totalorder %s175, %s191
      %p193 = scmp.eq.s32.totalorder %s37, 0
      %p194 = por %p192, %p193
      %s195 = ssub.s32 %s31, %s38
      %p196 = scmp.eq.s32.totalorder %s195, 0
      %s198 = sadd.s32 %s197, 1
      %s199 = scalar_select %p196, %s197, %s198
      %p202 = pneg %p196
      %p203 = scmp.eq.s32.totalorder %s31, 1
      %p204 = por %p202, %p203
      %p205 = scmp.ne.s32.totalorder %s197, %s200
      %p206 = scmp.eq.s32.totalorder %s31, 0
      %p207 = por %p205, %p206
      %p208 = scmp.ne.s32.totalorder %s197, %s200
      %p209 = scmp.eq.s32.totalorder %s36, 1
      %p210 = por %p208, %p209
      %p211 = scmp.ne.s32.totalorder %s200, %s201
      %p212 = scmp.eq.s32.totalorder %s36, 0
      %p213 = por %p211, %p212
      %p214 = scmp.ne.s32.totalorder %s200, %s201
      %p215 = scmp.eq.s32.totalorder %s37, 1
      %p216 = por %p214, %p215
      %p218 = scmp.ne.s32.totalorder %s201, %s217
      %p219 = scmp.eq.s32.totalorder %s37, 0
      %p220 = por %p218, %p219
      %s221 = ssub.s32 %s31, %s38
      %p222 = scmp.eq.s32.totalorder %s221, 0
      %s224 = sadd.s32 %s223, 1
      %s225 = scalar_select %p222, %s223, %s224
      %p228 = pneg %p222
      %p229 = scmp.eq.s32.totalorder %s31, 1
      %p230 = por %p228, %p229
      %p231 = scmp.ne.s32.totalorder %s223, %s226
      %p232 = scmp.eq.s32.totalorder %s31, 0
      %p233 = por %p231, %p232
      %p234 = scmp.ne.s32.totalorder %s223, %s226
      %p235 = scmp.eq.s32.totalorder %s36, 1
      %p236 = por %p234, %p235
      %p237 = scmp.ne.s32.totalorder %s226, %s227
      %p238 = scmp.eq.s32.totalorder %s36, 0
      %p239 = por %p237, %p238
      %p240 = scmp.ne.s32.totalorder %s226, %s227
      %p241 = scmp.eq.s32.totalorder %s37, 1
      %p242 = por %p240, %p241
      %p244 = scmp.ne.s32.totalorder %s227, %s243
      %p245 = scmp.eq.s32.totalorder %s37, 0
      %p246 = por %p244, %p245
      %s247 = ssub.s32 %s31, %s38
      %p248 = scmp.eq.s32.totalorder %s247, 0
      %s250 = sadd.s32 %s249, 1
      %s251 = scalar_select %p248, %s249, %s250
      %p254 = pneg %p248
      %p255 = scmp.eq.s32.totalorder %s31, 1
      %p256 = por %p254, %p255
      %p257 = scmp.ne.s32.totalorder %s249, %s252
      %p258 = scmp.eq.s32.totalorder %s31, 0
      %p259 = por %p257, %p258
      %p260 = scmp.ne.s32.totalorder %s249, %s252
      %p261 = scmp.eq.s32.totalorder %s36, 1
      %p262 = por %p260, %p261
      %p263 = scmp.ne.s32.totalorder %s252, %s253
      %p264 = scmp.eq.s32.totalorder %s36, 0
      %p265 = por %p263, %p264
      %p266 = scmp.ne.s32.totalorder %s252, %s253
      %p267 = scmp.eq.s32.totalorder %s37, 1
      %p268 = por %p266, %p267
      %p270 = scmp.ne.s32.totalorder %s253, %s269
      %p271 = scmp.eq.s32.totalorder %s37, 0
      %p272 = por %p270, %p271
      %s273 = ssub.s32 %s31, %s38
      %p274 = scmp.eq.s32.totalorder %s273, 0
      %s276 = sadd.s32 %s275, 1
      %s277 = scalar_select %p274, %s275, %s276
      %p280 = pneg %p274
      %p281 = scmp.eq.s32.totalorder %s31, 1
      %p282 = por %p280, %p281
      %p283 = scmp.ne.s32.totalorder %s275, %s278
      %p284 = scmp.eq.s32.totalorder %s31, 0
      %p285 = por %p283, %p284
      %p286 = scmp.ne.s32.totalorder %s275, %s278
      %p287 = scmp.eq.s32.totalorder %s36, 1
      %p288 = por %p286, %p287
      %p289 = scmp.ne.s32.totalorder %s278, %s279
      %p290 = scmp.eq.s32.totalorder %s36, 0
      %p291 = por %p289, %p290
      %p292 = scmp.ne.s32.totalorder %s278, %s279
      %p293 = scmp.eq.s32.totalorder %s37, 1
      %p294 = por %p292, %p293
      %p296 = scmp.ne.s32.totalorder %s279, %s295
      %p297 = scmp.eq.s32.totalorder %s37, 0
      %p298 = por %p296, %p297
      %s299 = ssub.s32 %s31, %s38
      %p300 = scmp.eq.s32.totalorder %s299, 0
      %s302 = sadd.s32 %s301, 1
      %s303 = scalar_select %p300, %s301, %s302
      %p306 = pneg %p300
      %p307 = scmp.eq.s32.totalorder %s31, 1
      %p308 = por %p306, %p307
      %p309 = scmp.ne.s32.totalorder %s301, %s304
      %p310 = scmp.eq.s32.totalorder %s31, 0
      %p311 = por %p309, %p310
      %p312 = scmp.ne.s32.totalorder %s301, %s304
      %p313 = scmp.eq.s32.totalorder %s36, 1
      %p314 = por %p312, %p313
      %p315 = scmp.ne.s32.totalorder %s304, %s305
      %p316 = scmp.eq.s32.totalorder %s36, 0
      %p317 = por %p315, %p316
      %p318 = scmp.ne.s32.totalorder %s304, %s305
      %p319 = scmp.eq.s32.totalorder %s37, 1
      %p320 = por %p318, %p319
      %p322 = scmp.ne.s32.totalorder %s305, %s321
      %p323 = scmp.eq.s32.totalorder %s37, 0
      %p324 = por %p322, %p323
      %s325 = ssub.s32 %s31, %s38
      %p326 = scmp.eq.s32.totalorder %s325, 0
      %s328 = sadd.s32 %s327, 1
      %s329 = scalar_select %p326, %s327, %s328
      %p332 = pneg %p326
      %p333 = scmp.eq.s32.totalorder %s31, 1
      %p334 = por %p332, %p333
      %p335 = scmp.ne.s32.totalorder %s327, %s330
      %p336 = scmp.eq.s32.totalorder %s31, 0
      %p337 = por %p335, %p336
      %p338 = scmp.ne.s32.totalorder %s327, %s330
      %p339 = scmp.eq.s32.totalorder %s36, 1
      %p340 = por %p338, %p339
      %p341 = scmp.ne.s32.totalorder %s330, %s331
      %p342 = scmp.eq.s32.totalorder %s36, 0
      %p343 = por %p341, %p342
      %p344 = scmp.ne.s32.totalorder %s330, %s331
      %p345 = scmp.eq.s32.totalorder %s37, 1
      %p346 = por %p344, %p345
      %p348 = scmp.ne.s32.totalorder %s331, %s347
      %p349 = scmp.eq.s32.totalorder %s37, 0
      %p350 = por %p348, %p349
      %s351 = ssub.s32 %s31, %s38
      %p352 = scmp.eq.s32.totalorder %s351, 0
      %s354 = sadd.s32 %s353, 1
      %s355 = scalar_select %p352, %s353, %s354
      %p358 = pneg %p352
      %p359 = scmp.eq.s32.totalorder %s31, 1
      %p360 = por %p358, %p359
      %p361 = scmp.ne.s32.totalorder %s353, %s356
      %p362 = scmp.eq.s32.totalorder %s31, 0
      %p363 = por %p361, %p362
      %p364 = scmp.ne.s32.totalorder %s353, %s356
      %p365 = scmp.eq.s32.totalorder %s36, 1
      %p366 = por %p364, %p365
      %p367 = scmp.ne.s32.totalorder %s356, %s357
      %p368 = scmp.eq.s32.totalorder %s36, 0
      %p369 = por %p367, %p368
      %p370 = scmp.ne.s32.totalorder %s356, %s357
      %p371 = scmp.eq.s32.totalorder %s37, 1
      %p372 = por %p370, %p371
      %p374 = scmp.ne.s32.totalorder %s357, %s373
      %p375 = scmp.eq.s32.totalorder %s37, 0
      %p376 = por %p374, %p375
      %s377 = ssub.s32 %s31, %s38
      %p378 = scmp.eq.s32.totalorder %s377, 0
      %s380 = sadd.s32 %s379, 1
      %s381 = scalar_select %p378, %s379, %s380
      %p384 = pneg %p378
      %p385 = scmp.eq.s32.totalorder %s31, 1
      %p386 = por %p384, %p385
      %p387 = scmp.ne.s32.totalorder %s379, %s382
      %p388 = scmp.eq.s32.totalorder %s31, 0
      %p389 = por %p387, %p388
      %p390 = scmp.ne.s32.totalorder %s379, %s382
      %p391 = scmp.eq.s32.totalorder %s36, 1
      %p392 = por %p390, %p391
      %p393 = scmp.ne.s32.totalorder %s382, %s383
      %p394 = scmp.eq.s32.totalorder %s36, 0
      %p395 = por %p393, %p394
      %p396 = scmp.ne.s32.totalorder %s382, %s383
      %p397 = scmp.eq.s32.totalorder %s37, 1
      %p398 = por %p396, %p397
      %p400 = scmp.ne.s32.totalorder %s383, %s399
      %p401 = scmp.eq.s32.totalorder %s37, 0
      %p402 = por %p400, %p401
      %s404 = sadd.s32 %s403, 1
      %p407 = scmp.eq.s32.totalorder %s31, 1
      %p408 = scmp.ne.s32.totalorder %s403, %s405
      %p409 = scmp.eq.s32.totalorder %s31, 0
      %p410 = por %p408, %p409
      %p411 = scmp.ne.s32.totalorder %s403, %s405
      %p412 = scmp.eq.s32.totalorder %s36, 1
      %p413 = por %p411, %p412
      %p414 = scmp.ne.s32.totalorder %s405, %s406
      %p415 = scmp.eq.s32.totalorder %s36, 0
      %p416 = por %p414, %p415
      %p417 = scmp.ne.s32.totalorder %s405, %s406
      %p418 = scmp.eq.s32.totalorder %s37, 1
      %p419 = por %p417, %p418
      %p421 = scmp.ne.s32.totalorder %s406, %s420
      %p422 = scmp.eq.s32.totalorder %s37, 0
      %p423 = por %p421, %p422
      %s425 = sadd.s32 %s424, 1
      %p428 = scmp.eq.s32.totalorder %s31, 1
      %p429 = scmp.ne.s32.totalorder %s424, %s426
      %p430 = scmp.eq.s32.totalorder %s31, 0
      %p431 = por %p429, %p430
      %p432 = scmp.ne.s32.totalorder %s424, %s426
      %p433 = scmp.eq.s32.totalorder %s36, 1
      %p434 = por %p432, %p433
      %p435 = scmp.ne.s32.totalorder %s426, %s427
      %p436 = scmp.eq.s32.totalorder %s36, 0
      %p437 = por %p435, %p436
      %p438 = scmp.ne.s32.totalorder %s426, %s427
      %p439 = scmp.eq.s32.totalorder %s37, 1
      %p440 = por %p438, %p439
      %p442 = scmp.ne.s32.totalorder %s427, %s441
      %p443 = scmp.eq.s32.totalorder %s37, 0
      %p444 = por %p442, %p443
      %s446 = sadd.s32 %s445, 1
      %p449 = scmp.eq.s32.totalorder %s31, 1
      %p450 = scmp.ne.s32.totalorder %s445, %s447
      %p451 = scmp.eq.s32.totalorder %s31, 0
      %p452 = por %p450, %p451
      %p453 = scmp.ne.s32.totalorder %s445, %s447
      %p454 = scmp.eq.s32.totalorder %s36, 1
      %p455 = por %p453, %p454
      %p456 = scmp.ne.s32.totalorder %s447, %s448
      %p457 = scmp.eq.s32.totalorder %s36, 0
      %p458 = por %p456, %p457
      %p459 = scmp.ne.s32.totalorder %s447, %s448
      %p460 = scmp.eq.s32.totalorder %s37, 1
      %p461 = por %p459, %p460
      %p463 = scmp.ne.s32.totalorder %s448, %s462
      %p464 = scmp.eq.s32.totalorder %s37, 0
      %p465 = por %p463, %p464
      %s466 = ssub.s32 %s31, %s38
      %p467 = scmp.eq.s32.totalorder %s466, 0
      %s469 = sadd.s32 %s468, 1
      %s470 = scalar_select %p467, %s468, %s469
      %p473 = pneg %p467
      %p474 = scmp.eq.s32.totalorder %s31, 1
      %p475 = por %p473, %p474
      %p476 = scmp.ne.s32.totalorder %s468, %s471
      %p477 = scmp.eq.s32.totalorder %s31, 0
      %p478 = por %p476, %p477
      %p479 = scmp.ne.s32.totalorder %s468, %s471
      %p480 = scmp.eq.s32.totalorder %s36, 1
      %p481 = por %p479, %p480
      %p482 = scmp.ne.s32.totalorder %s471, %s472
      %p483 = scmp.eq.s32.totalorder %s36, 0
      %p484 = por %p482, %p483
      %p485 = scmp.ne.s32.totalorder %s471, %s472
      %p486 = scmp.eq.s32.totalorder %s37, 1
      %p487 = por %p485, %p486
      %p489 = scmp.ne.s32.totalorder %s472, %s488
      %p490 = scmp.eq.s32.totalorder %s37, 0
      %p491 = por %p489, %p490
      %s492 = ssub.s32 %s31, %s38
      %p493 = scmp.eq.s32.totalorder %s492, 0
      %s495 = sadd.s32 %s494, 1
      %s496 = scalar_select %p493, %s494, %s495
      %p499 = pneg %p493
      %p500 = scmp.eq.s32.totalorder %s31, 1
      %p501 = por %p499, %p500
      %p502 = scmp.ne.s32.totalorder %s494, %s497
      %p503 = scmp.eq.s32.totalorder %s31, 0
      %p504 = por %p502, %p503
      %p505 = scmp.ne.s32.totalorder %s494, %s497
      %p506 = scmp.eq.s32.totalorder %s36, 1
      %p507 = por %p505, %p506
      %p508 = scmp.ne.s32.totalorder %s497, %s498
      %p509 = scmp.eq.s32.totalorder %s36, 0
      %p510 = por %p508, %p509
      %p511 = scmp.ne.s32.totalorder %s497, %s498
      %p512 = scmp.eq.s32.totalorder %s37, 1
      %p513 = por %p511, %p512
      %p515 = scmp.ne.s32.totalorder %s498, %s514
      %p516 = scmp.eq.s32.totalorder %s37, 0
      %p517 = por %p515, %p516
      %p518 = scmp.le.s32.totalorder 1, %s31
      %p519 = scmp.lt.s32.totalorder %s31, 3
      %p520 = pnand %p518, %p519
      %p521 = pneg %p520
      // Predicated region
      $region9: #{tpu_custom_call.1} parent=5 // pred_check
        _
      $region10: #{tpu_custom_call.1} parent=5 // pred_check_branch
        %523 = sbr.rel (%p520) target = $region12
      $region11: #{tpu_custom_call.1} parent=5 // pred_region
        %s524 = ssub.s32 %s31, 1
        // Predicated region
        $region13: #{tpu_custom_call.1} parent=11 // pred_check
          %p525 = pneg %p416
        $region14: #{tpu_custom_call.1} parent=11 // pred_check_branch
          %527 = sbr.rel (%p525) target = $region16
        $region15: #{tpu_custom_call.1} parent=11 // pred_region
          _
        $region16: #{tpu_custom_call.1} parent=11 // pred_fallthru
          _
        // Predicated region
        $region17: #{tpu_custom_call.1} parent=11 // pred_check
          %p528 = pneg %p437
        $region18: #{tpu_custom_call.1} parent=11 // pred_check_branch
          %530 = sbr.rel (%p528) target = $region20
        $region19: #{tpu_custom_call.1} parent=11 // pred_region
          _
        $region20: #{tpu_custom_call.1} parent=11 // pred_fallthru
          _
        // Predicated region
        $region21: #{tpu_custom_call.1} parent=11 // pred_check
          %p531 = pneg %p458
        $region22: #{tpu_custom_call.1} parent=11 // pred_check_branch
          %533 = sbr.rel (%p531) target = $region24
        $region23: #{tpu_custom_call.1} parent=11 // pred_region
          _
        $region24: #{tpu_custom_call.1} parent=11 // pred_fallthru
          _
      $region12: #{tpu_custom_call.1} parent=5 // pred_fallthru
        _
      %p534 = scmp.lt.s32.totalorder %s31, 2
      // Predicated region
      $region25: #{tpu_custom_call.1} parent=5 // pred_check
        %p535 = pneg %p534
      $region26: #{tpu_custom_call.1} parent=5 // pred_check_branch
        %537 = sbr.rel (%p535) target = $region28
      $region27: #{tpu_custom_call.1} parent=5 // pred_region
        // Predicated region
        $region29: #{tpu_custom_call.1} parent=27 // pred_check
          %p538 = pneg %p51
        $region30: #{tpu_custom_call.1} parent=27 // pred_check_branch
          %540 = sbr.rel (%p538) target = $region32
        $region31: #{tpu_custom_call.1} parent=27 // pred_region
          %s541 = smul.u32 8, %s31
          %p542 = scmp.lt.s32.totalorder %s541, 15
          %s543 = scalar_select %p542, %s541, 15
          %s544 = smul.addr %s543, 8
          %s545 = scalar_lea.vmem %s0, %s544
          %s546 = smul.u32 8, %s31
        $region32: #{tpu_custom_call.1} parent=27 // pred_fallthru
          _
        // Predicated region
        $region33: #{tpu_custom_call.1} parent=27 // pred_check
          %p547 = pneg %p77
        $region34: #{tpu_custom_call.1} parent=27 // pred_check_branch
          %549 = sbr.rel (%p547) target = $region36
        $region35: #{tpu_custom_call.1} parent=27 // pred_region
          %s550 = smul.u32 8, %s31
          %p551 = scmp.lt.s32.totalorder %s550, 15
          %s552 = scalar_select %p551, %s550, 15
          %s553 = smul.addr %s552, 8
          %s554 = scalar_lea.vmem %s1, %s553
          %s555 = smul.u32 8, %s31
        $region36: #{tpu_custom_call.1} parent=27 // pred_fallthru
          _
        // Predicated region
        $region37: #{tpu_custom_call.1} parent=27 // pred_check
          %p556 = pneg %p103
        $region38: #{tpu_custom_call.1} parent=27 // pred_check_branch
          %558 = sbr.rel (%p556) target = $region40
        $region39: #{tpu_custom_call.1} parent=27 // pred_region
          %s559 = smul.u32 8, %s31
          %p560 = scmp.lt.s32.totalorder %s559, 15
          %s561 = scalar_select %p560, %s559, 15
          %s562 = smul.addr %s561, 8
          %s563 = scalar_lea.vmem %s2, %s562
          %s564 = smul.u32 8, %s31
        $region40: #{tpu_custom_call.1} parent=27 // pred_fallthru
          _
        // Predicated region
        $region41: #{tpu_custom_call.1} parent=27 // pred_check
          %p565 = pneg %p129
        $region42: #{tpu_custom_call.1} parent=27 // pred_check_branch
          %567 = sbr.rel (%p565) target = $region44
        $region43: #{tpu_custom_call.1} parent=27 // pred_region
          %s568 = smul.u32 8, %s31
          %p569 = scmp.lt.s32.totalorder %s568, 15
          %s570 = scalar_select %p569, %s568, 15
          %s571 = scalar_lea.vmem %s3, %s570
          %s572 = smul.u32 8, %s31
        $region44: #{tpu_custom_call.1} parent=27 // pred_fallthru
          _
        // Predicated region
        $region45: #{tpu_custom_call.1} parent=27 // pred_check
          %p573 = pneg %p155
        $region46: #{tpu_custom_call.1} parent=27 // pred_check_branch
          %575 = sbr.rel (%p573) target = $region48
        $region47: #{tpu_custom_call.1} parent=27 // pred_region
          %s576 = smul.u32 8, %s31
          %p577 = scmp.lt.s32.totalorder %s576, 15
          %s578 = scalar_select %p577, %s576, 15
          %s579 = smul.addr %s578, 8
          %s580 = scalar_lea.vmem %s4, %s579
          %s581 = smul.u32 8, %s31
        $region48: #{tpu_custom_call.1} parent=27 // pred_fallthru
          _
        // Predicated region
        $region49: #{tpu_custom_call.1} parent=27 // pred_check
          %p582 = pneg %p181
        $region50: #{tpu_custom_call.1} parent=27 // pred_check_branch
          %584 = sbr.rel (%p582) target = $region52
        $region51: #{tpu_custom_call.1} parent=27 // pred_region
          %s585 = smul.u32 8, %s31
          %p586 = scmp.lt.s32.totalorder %s585, 15
          %s587 = scalar_select %p586, %s585, 15
          %s588 = scalar_lea.vmem %s5, %s587
          %s589 = smul.u32 8, %s31
        $region52: #{tpu_custom_call.1} parent=27 // pred_fallthru
          _
        // Predicated region
        $region53: #{tpu_custom_call.1} parent=27 // pred_check
          %p590 = pneg %p207
        $region54: #{tpu_custom_call.1} parent=27 // pred_check_branch
          %592 = sbr.rel (%p590) target = $region56
        $region55: #{tpu_custom_call.1} parent=27 // pred_region
          %s593 = smul.u32 8, %s31
          %p594 = scmp.lt.s32.totalorder %s593, 15
          %s595 = scalar_select %p594, %s593, 15
          %s596 = smul.addr %s595, 8
          %s597 = scalar_lea.vmem %s6, %s596
          %s598 = smul.u32 8, %s31
        $region56: #{tpu_custom_call.1} parent=27 // pred_fallthru
          _
        // Predicated region
        $region57: #{tpu_custom_call.1} parent=27 // pred_check
          %p599 = pneg %p233
        $region58: #{tpu_custom_call.1} parent=27 // pred_check_branch
          %601 = sbr.rel (%p599) target = $region60
        $region59: #{tpu_custom_call.1} parent=27 // pred_region
          %s602 = smul.u32 8, %s31
          %p603 = scmp.lt.s32.totalorder %s602, 15
          %s604 = scalar_select %p603, %s602, 15
          %s605 = smul.addr %s604, 8
          %s606 = scalar_lea.vmem %s7, %s605
          %s607 = smul.u32 8, %s31
        $region60: #{tpu_custom_call.1} parent=27 // pred_fallthru
          _
        // Predicated region
        $region61: #{tpu_custom_call.1} parent=27 // pred_check
          %p608 = pneg %p259
        $region62: #{tpu_custom_call.1} parent=27 // pred_check_branch
          %610 = sbr.rel (%p608) target = $region64
        $region63: #{tpu_custom_call.1} parent=27 // pred_region
          %s611 = smul.u32 8, %s31
          %p612 = scmp.lt.s32.totalorder %s611, 15
          %s613 = scalar_select %p612, %s611, 15
          %s614 = smul.addr %s613, 8
          %s615 = scalar_lea.vmem %s8, %s614
          %s616 = smul.u32 8, %s31
        $region64: #{tpu_custom_call.1} parent=27 // pred_fallthru
          _
        // Predicated region
        $region65: #{tpu_custom_call.1} parent=27 // pred_check
          %p617 = pneg %p285
        $region66: #{tpu_custom_call.1} parent=27 // pred_check_branch
          %619 = sbr.rel (%p617) target = $region68
        $region67: #{tpu_custom_call.1} parent=27 // pred_region
          %s620 = smul.u32 8, %s31
          %p621 = scmp.lt.s32.totalorder %s620, 15
          %s622 = scalar_select %p621, %s620, 15
          %s623 = smul.addr %s622, 8
          %s624 = scalar_lea.vmem %s9, %s623
          %s625 = smul.u32 8, %s31
        $region68: #{tpu_custom_call.1} parent=27 // pred_fallthru
          _
        // Predicated region
        $region69: #{tpu_custom_call.1} parent=27 // pred_check
          %p626 = pneg %p311
        $region70: #{tpu_custom_call.1} parent=27 // pred_check_branch
          %628 = sbr.rel (%p626) target = $region72
        $region71: #{tpu_custom_call.1} parent=27 // pred_region
          %s629 = smul.u32 8, %s31
          %p630 = scmp.lt.s32.totalorder %s629, 15
          %s631 = scalar_select %p630, %s629, 15
          %s632 = smul.addr %s631, 8
          %s633 = scalar_lea.vmem %s10, %s632
          %s634 = smul.u32 8, %s31
        $region72: #{tpu_custom_call.1} parent=27 // pred_fallthru
          _
        // Predicated region
        $region73: #{tpu_custom_call.1} parent=27 // pred_check
          %p635 = pneg %p337
        $region74: #{tpu_custom_call.1} parent=27 // pred_check_branch
          %637 = sbr.rel (%p635) target = $region76
        $region75: #{tpu_custom_call.1} parent=27 // pred_region
          %s638 = smul.u32 8, %s31
          %p639 = scmp.lt.s32.totalorder %s638, 15
          %s640 = scalar_select %p639, %s638, 15
          %s641 = smul.addr %s640, 8
          %s642 = scalar_lea.vmem %s11, %s641
          %s643 = smul.u32 8, %s31
        $region76: #{tpu_custom_call.1} parent=27 // pred_fallthru
          _
        // Predicated region
        $region77: #{tpu_custom_call.1} parent=27 // pred_check
          %p644 = pneg %p363
        $region78: #{tpu_custom_call.1} parent=27 // pred_check_branch
          %646 = sbr.rel (%p644) target = $region80
        $region79: #{tpu_custom_call.1} parent=27 // pred_region
          %s647 = smul.u32 8, %s31
          %p648 = scmp.lt.s32.totalorder %s647, 15
          %s649 = scalar_select %p648, %s647, 15
          %s650 = smul.addr %s649, 8
          %s651 = scalar_lea.vmem %s12, %s650
          %s652 = smul.u32 8, %s31
        $region80: #{tpu_custom_call.1} parent=27 // pred_fallthru
          _
        // Predicated region
        $region81: #{tpu_custom_call.1} parent=27 // pred_check
          %p653 = pneg %p389
        $region82: #{tpu_custom_call.1} parent=27 // pred_check_branch
          %655 = sbr.rel (%p653) target = $region84
        $region83: #{tpu_custom_call.1} parent=27 // pred_region
          %s656 = smul.u32 8, %s31
          %p657 = scmp.lt.s32.totalorder %s656, 15
          %s658 = scalar_select %p657, %s656, 15
          %s659 = smul.addr %s658, 8
          %s660 = scalar_lea.vmem %s13, %s659
          %s661 = smul.u32 8, %s31
        $region84: #{tpu_custom_call.1} parent=27 // pred_fallthru
          _
      $region28: #{tpu_custom_call.1} parent=5 // pred_fallthru
        _
      %p662 = scmp.le.s32.totalorder 1, %s31
      %p663 = scmp.lt.s32.totalorder %s31, 3
      %p664 = pnand %p662, %p663
      %p665 = pneg %p664
      // Predicated region
      $region85: #{tpu_custom_call.1} parent=5 // pred_check
        _
      $region86: #{tpu_custom_call.1} parent=5 // pred_check_branch
        %667 = sbr.rel (%p664) target = $region88
      $region87: #{tpu_custom_call.1} parent=5 // pred_region
        %s668 = ssub.s32 %s31, 1
        %s669 = smul.u32 8, %s36
        %p670 = scmp.lt.s32.totalorder %s669, 15
        %s671 = scalar_select %p670, %s669, 15
        %s672 = smul.addr %s671, 8
        %s673 = scalar_lea.vmem %s0, %s672
        %p674 = pneg %p57
        %p675 = pneg %p54
        %s676 = smul.u32 8, %s36
        %p677 = scmp.lt.s32.totalorder %s676, 15
        %s678 = scalar_select %p677, %s676, 15
        %s679 = smul.addr %s678, 8
        %s680 = scalar_lea.vmem %s1, %s679
        %p681 = pneg %p83
        %p682 = pneg %p80
        %s683 = smul.u32 8, %s36
        %p684 = scmp.lt.s32.totalorder %s683, 15
        %s685 = scalar_select %p684, %s683, 15
        %s686 = smul.addr %s685, 8
        %s687 = scalar_lea.vmem %s2, %s686
        %p688 = pneg %p109
        %p689 = pneg %p106
        %s690 = smul.u32 8, %s36
        %p691 = scmp.lt.s32.totalorder %s690, 15
        %s692 = scalar_select %p691, %s690, 15
        %s693 = scalar_lea.vmem %s3, %s692
        %p694 = pneg %p135
        %p695 = pneg %p132
        %s696 = smul.u32 8, %s36
        %p697 = scmp.lt.s32.totalorder %s696, 15
        %s698 = scalar_select %p697, %s696, 15
        %s699 = smul.addr %s698, 8
        %s700 = scalar_lea.vmem %s4, %s699
        %p701 = pneg %p161
        %p702 = pneg %p158
        %s703 = smul.u32 8, %s36
        %p704 = scmp.lt.s32.totalorder %s703, 15
        %s705 = scalar_select %p704, %s703, 15
        %s706 = scalar_lea.vmem %s5, %s705
        %p707 = pneg %p187
        %p708 = pneg %p184
        %s709 = smul.u32 8, %s36
        %p710 = scmp.lt.s32.totalorder %s709, 15
        %s711 = scalar_select %p710, %s709, 15
        %s712 = smul.addr %s711, 8
        %s713 = scalar_lea.vmem %s6, %s712
        %p714 = pneg %p213
        %p715 = pneg %p210
        %s716 = smul.u32 8, %s36
        %p717 = scmp.lt.s32.totalorder %s716, 15
        %s718 = scalar_select %p717, %s716, 15
        %s719 = smul.addr %s718, 8
        %s720 = scalar_lea.vmem %s7, %s719
        %p721 = pneg %p239
        %p722 = pneg %p236
        %s723 = smul.u32 8, %s36
        %p724 = scmp.lt.s32.totalorder %s723, 15
        %s725 = scalar_select %p724, %s723, 15
        %s726 = smul.addr %s725, 8
        %s727 = scalar_lea.vmem %s8, %s726
        %p728 = pneg %p265
        %p729 = pneg %p262
        %s730 = smul.u32 8, %s36
        %p731 = scmp.lt.s32.totalorder %s730, 15
        %s732 = scalar_select %p731, %s730, 15
        %s733 = smul.addr %s732, 8
        %s734 = scalar_lea.vmem %s9, %s733
        %p735 = pneg %p291
        %p736 = pneg %p288
        %s737 = smul.u32 8, %s36
        %p738 = scmp.lt.s32.totalorder %s737, 15
        %s739 = scalar_select %p738, %s737, 15
        %s740 = smul.addr %s739, 8
        %s741 = scalar_lea.vmem %s10, %s740
        %p742 = pneg %p317
        %p743 = pneg %p314
        %s744 = smul.u32 8, %s36
        %p745 = scmp.lt.s32.totalorder %s744, 15
        %s746 = scalar_select %p745, %s744, 15
        %s747 = smul.addr %s746, 8
        %s748 = scalar_lea.vmem %s11, %s747
        %p749 = pneg %p343
        %p750 = pneg %p340
        %s751 = smul.u32 8, %s36
        %p752 = scmp.lt.s32.totalorder %s751, 15
        %s753 = scalar_select %p752, %s751, 15
        %s754 = smul.addr %s753, 8
        %s755 = scalar_lea.vmem %s12, %s754
        %p756 = pneg %p369
        %p757 = pneg %p366
        %s758 = smul.u32 8, %s36
        %p759 = scmp.lt.s32.totalorder %s758, 15
        %s760 = scalar_select %p759, %s758, 15
        %s761 = smul.addr %s760, 8
        %s762 = scalar_lea.vmem %s13, %s761
        %p763 = pneg %p395
        %p764 = pneg %p392
        %p765 = pneg %p416
        %p766 = pneg %p413
        %p767 = pneg %p437
        %p768 = pneg %p434
        %p769 = pneg %p458
        %p770 = pneg %p455
        %p771 = pneg %p484
        %p772 = pneg %p481
        %s773 = sand.u32 %s471, 1
        %s774 = scalar_lea.sflag [#allocation3], %s773
        %s775 = sand.u32 %s471, 1
        %s776 = smul.addr %s775, 16
        %s777 = scalar_lea.vmem [#allocation2], %s776
        %p778 = pneg %p510
        %p779 = pneg %p507
        %s780 = sand.u32 %s497, 1
        %s781 = scalar_lea.sflag [#allocation5], %s780
        %s782 = sand.u32 %s497, 1
        %s783 = smul.addr %s782, 16
        %s784 = scalar_lea.vmem [#allocation4], %s783
        %s785 = smul.u32 8, %s36
        %p786 = scmp.lt.s32.totalorder %s785, 15
        %s787 = scalar_select %p786, %s785, 15
        %s788 = smul.addr %s787, 8
        %s789 = scalar_lea.vmem %s0, %s788
        %s790 = smul.u32 8, %s36
        %s791 = smul.u32 8, %s36
        %p792 = scmp.lt.s32.totalorder %s791, 15
        %s793 = scalar_select %p792, %s791, 15
        %s794 = smul.addr %s793, 8
        %s795 = scalar_lea.vmem %s1, %s794
        %s796 = smul.u32 8, %s36
        %s797 = smul.u32 8, %s36
        %p798 = scmp.lt.s32.totalorder %s797, 15
        %s799 = scalar_select %p798, %s797, 15
        %s800 = smul.addr %s799, 8
        %s801 = scalar_lea.vmem %s2, %s800
        %s802 = smul.u32 8, %s36
        %s803 = smul.u32 8, %s36
        %p804 = scmp.lt.s32.totalorder %s803, 15
        %s805 = scalar_select %p804, %s803, 15
        %s806 = scalar_lea.vmem %s3, %s805
        %s807 = smul.u32 8, %s36
        %s808 = smul.u32 8, %s36
        %p809 = scmp.lt.s32.totalorder %s808, 15
        %s810 = scalar_select %p809, %s808, 15
        %s811 = smul.addr %s810, 8
        %s812 = scalar_lea.vmem %s4, %s811
        %s813 = smul.u32 8, %s36
        %s814 = smul.u32 8, %s36
        %p815 = scmp.lt.s32.totalorder %s814, 15
        %s816 = scalar_select %p815, %s814, 15
        %s817 = scalar_lea.vmem %s5, %s816
        %s818 = smul.u32 8, %s36
        %s819 = smul.u32 8, %s36
        %p820 = scmp.lt.s32.totalorder %s819, 15
        %s821 = scalar_select %p820, %s819, 15
        %s822 = smul.addr %s821, 8
        %s823 = scalar_lea.vmem %s6, %s822
        %s824 = smul.u32 8, %s36
        %s825 = smul.u32 8, %s36
        %p826 = scmp.lt.s32.totalorder %s825, 15
        %s827 = scalar_select %p826, %s825, 15
        %s828 = smul.addr %s827, 8
        %s829 = scalar_lea.vmem %s7, %s828
        %s830 = smul.u32 8, %s36
        %s831 = smul.u32 8, %s36
        %p832 = scmp.lt.s32.totalorder %s831, 15
        %s833 = scalar_select %p832, %s831, 15
        %s834 = smul.addr %s833, 8
        %s835 = scalar_lea.vmem %s8, %s834
        %s836 = smul.u32 8, %s36
        %s837 = smul.u32 8, %s36
        %p838 = scmp.lt.s32.totalorder %s837, 15
        %s839 = scalar_select %p838, %s837, 15
        %s840 = smul.addr %s839, 8
        %s841 = scalar_lea.vmem %s9, %s840
        %s842 = smul.u32 8, %s36
        %s843 = smul.u32 8, %s36
        %p844 = scmp.lt.s32.totalorder %s843, 15
        %s845 = scalar_select %p844, %s843, 15
        %s846 = smul.addr %s845, 8
        %s847 = scalar_lea.vmem %s10, %s846
        %s848 = smul.u32 8, %s36
        %s849 = smul.u32 8, %s36
        %p850 = scmp.lt.s32.totalorder %s849, 15
        %s851 = scalar_select %p850, %s849, 15
        %s852 = smul.addr %s851, 8
        %s853 = scalar_lea.vmem %s11, %s852
        %s854 = smul.u32 8, %s36
        %s855 = smul.u32 8, %s36
        %p856 = scmp.lt.s32.totalorder %s855, 15
        %s857 = scalar_select %p856, %s855, 15
        %s858 = smul.addr %s857, 8
        %s859 = scalar_lea.vmem %s12, %s858
        %s860 = smul.u32 8, %s36
        %s861 = smul.u32 8, %s36
        %p862 = scmp.lt.s32.totalorder %s861, 15
        %s863 = scalar_select %p862, %s861, 15
        %s864 = smul.addr %s863, 8
        %s865 = scalar_lea.vmem %s13, %s864
        %s866 = smul.u32 8, %s36
        %v867 = vld [vmem:[%s789] sm:$0xff]
        %v868 = vld [vmem:[%s789 + $0x8] sm:$0xff]
        %v869 = vld [vmem:[%s789 + $0x10] sm:$0xff]
        %v870 = vld [vmem:[%s789 + $0x18] sm:$0xff]
        %v871 = vld [vmem:[%s789 + $0x20] sm:$0xff]
        %v872 = vld [vmem:[%s789 + $0x28] sm:$0xff]
        %v873 = vld [vmem:[%s789 + $0x30] sm:$0xff]
        %v874 = vld [vmem:[%s789 + $0x38] sm:$0xff]
        %v875 = vld [vmem:[%s795] sm:$0xff]
        %v876 = vld [vmem:[%s795 + $0x8] sm:$0xff]
        %v877 = vld [vmem:[%s795 + $0x10] sm:$0xff]
        %v878 = vld [vmem:[%s795 + $0x18] sm:$0xff]
        %v879 = vld [vmem:[%s795 + $0x20] sm:$0xff]
        %v880 = vld [vmem:[%s795 + $0x28] sm:$0xff]
        %v881 = vld [vmem:[%s795 + $0x30] sm:$0xff]
        %v882 = vld [vmem:[%s795 + $0x38] sm:$0xff]
        %v883 = vld [vmem:[%s801] sm:$0xff]
        %v884 = vld [vmem:[%s801 + $0x8] sm:$0xff]
        %v885 = vld [vmem:[%s801 + $0x10] sm:$0xff]
        %v886 = vld [vmem:[%s801 + $0x18] sm:$0xff]
        %v887 = vld [vmem:[%s801 + $0x20] sm:$0xff]
        %v888 = vld [vmem:[%s801 + $0x28] sm:$0xff]
        %v889 = vld [vmem:[%s801 + $0x30] sm:$0xff]
        %v890 = vld [vmem:[%s801 + $0x38] sm:$0xff]
        %v891 = vld [vmem:[%s806] sm:$0x1]
        %v892 = vld [vmem:[%s806 + $0x1] sm:$0x1]
        %v893 = vld [vmem:[%s806 + $0x2] sm:$0x1]
        %v894 = vld [vmem:[%s806 + $0x3] sm:$0x1]
        %v895 = vld [vmem:[%s806 + $0x4] sm:$0x1]
        %v896 = vld [vmem:[%s806 + $0x5] sm:$0x1]
        %v897 = vld [vmem:[%s806 + $0x6] sm:$0x1]
        %v898 = vld [vmem:[%s806 + $0x7] sm:$0x1]
        %v899 = vld [vmem:[%s812] sm:$0xff]
        %v900 = vld [vmem:[%s812 + $0x8] sm:$0xff]
        %v901 = vld [vmem:[%s812 + $0x10] sm:$0xff]
        %v902 = vld [vmem:[%s812 + $0x18] sm:$0xff]
        %v903 = vld [vmem:[%s812 + $0x20] sm:$0xff]
        %v904 = vld [vmem:[%s812 + $0x28] sm:$0xff]
        %v905 = vld [vmem:[%s812 + $0x30] sm:$0xff]
        %v906 = vld [vmem:[%s812 + $0x38] sm:$0xff]
        %v907 = vld [vmem:[%s817] sm:$0x1]
        %v908 = vld [vmem:[%s817 + $0x1] sm:$0x1]
        %v909 = vld [vmem:[%s817 + $0x2] sm:$0x1]
        %v910 = vld [vmem:[%s817 + $0x3] sm:$0x1]
        %v911 = vld [vmem:[%s817 + $0x4] sm:$0x1]
        %v912 = vld [vmem:[%s817 + $0x5] sm:$0x1]
        %v913 = vld [vmem:[%s817 + $0x6] sm:$0x1]
        %v914 = vld [vmem:[%s817 + $0x7] sm:$0x1]
        %v915 = vld [vmem:[%s823] sm:$0xff]
        %v916 = vld [vmem:[%s823 + $0x8] sm:$0xff]
        %v917 = vld [vmem:[%s823 + $0x10] sm:$0xff]
        %v918 = vld [vmem:[%s823 + $0x18] sm:$0xff]
        %v919 = vld [vmem:[%s823 + $0x20] sm:$0xff]
        %v920 = vld [vmem:[%s823 + $0x28] sm:$0xff]
        %v921 = vld [vmem:[%s823 + $0x30] sm:$0xff]
        %v922 = vld [vmem:[%s823 + $0x38] sm:$0xff]
        %v923 = vld [vmem:[%s829] sm:$0xff]
        %v924 = vld [vmem:[%s829 + $0x8] sm:$0xff]
        %v925 = vld [vmem:[%s829 + $0x10] sm:$0xff]
        %v926 = vld [vmem:[%s829 + $0x18] sm:$0xff]
        %v927 = vld [vmem:[%s829 + $0x20] sm:$0xff]
        %v928 = vld [vmem:[%s829 + $0x28] sm:$0xff]
        %v929 = vld [vmem:[%s829 + $0x30] sm:$0xff]
        %v930 = vld [vmem:[%s829 + $0x38] sm:$0xff]
        %v931 = vld [vmem:[%s835] sm:$0xff]
        %v932 = vld [vmem:[%s835 + $0x8] sm:$0xff]
        %v933 = vld [vmem:[%s835 + $0x10] sm:$0xff]
        %v934 = vld [vmem:[%s835 + $0x18] sm:$0xff]
        %v935 = vld [vmem:[%s835 + $0x20] sm:$0xff]
        %v936 = vld [vmem:[%s835 + $0x28] sm:$0xff]
        %v937 = vld [vmem:[%s835 + $0x30] sm:$0xff]
        %v938 = vld [vmem:[%s835 + $0x38] sm:$0xff]
        %v939 = vld [vmem:[%s841] sm:$0xff]
        %v940 = vld [vmem:[%s841 + $0x8] sm:$0xff]
        %v941 = vld [vmem:[%s841 + $0x10] sm:$0xff]
        %v942 = vld [vmem:[%s841 + $0x18] sm:$0xff]
        %v943 = vld [vmem:[%s841 + $0x20] sm:$0xff]
        %v944 = vld [vmem:[%s841 + $0x28] sm:$0xff]
        %v945 = vld [vmem:[%s841 + $0x30] sm:$0xff]
        %v946 = vld [vmem:[%s841 + $0x38] sm:$0xff]
        %v947 = vld [vmem:[%s847] sm:$0xff]
        %v948 = vld [vmem:[%s847 + $0x8] sm:$0xff]
        %v949 = vld [vmem:[%s847 + $0x10] sm:$0xff]
        %v950 = vld [vmem:[%s847 + $0x18] sm:$0xff]
        %v951 = vld [vmem:[%s847 + $0x20] sm:$0xff]
        %v952 = vld [vmem:[%s847 + $0x28] sm:$0xff]
        %v953 = vld [vmem:[%s847 + $0x30] sm:$0xff]
        %v954 = vld [vmem:[%s847 + $0x38] sm:$0xff]
        %v955 = vld [vmem:[%s853] sm:$0xff]
        %v956 = vld [vmem:[%s853 + $0x8] sm:$0xff]
        %v957 = vld [vmem:[%s853 + $0x10] sm:$0xff]
        %v958 = vld [vmem:[%s853 + $0x18] sm:$0xff]
        %v959 = vld [vmem:[%s853 + $0x20] sm:$0xff]
        %v960 = vld [vmem:[%s853 + $0x28] sm:$0xff]
        %v961 = vld [vmem:[%s853 + $0x30] sm:$0xff]
        %v962 = vld [vmem:[%s853 + $0x38] sm:$0xff]
        %v963 = vld [vmem:[%s859] sm:$0xff]
        %v964 = vld [vmem:[%s859 + $0x8] sm:$0xff]
        %v965 = vld [vmem:[%s859 + $0x10] sm:$0xff]
        %v966 = vld [vmem:[%s859 + $0x18] sm:$0xff]
        %v967 = vld [vmem:[%s859 + $0x20] sm:$0xff]
        %v968 = vld [vmem:[%s859 + $0x28] sm:$0xff]
        %v969 = vld [vmem:[%s859 + $0x30] sm:$0xff]
        %v970 = vld [vmem:[%s859 + $0x38] sm:$0xff]
        %v971 = vld [vmem:[%s865] sm:$0xff]
        %v972 = vld [vmem:[%s865 + $0x8] sm:$0xff]
        %v973 = vld [vmem:[%s865 + $0x10] sm:$0xff]
        %v974 = vld [vmem:[%s865 + $0x18] sm:$0xff]
        %v975 = vld [vmem:[%s865 + $0x20] sm:$0xff]
        %v976 = vld [vmem:[%s865 + $0x28] sm:$0xff]
        %v977 = vld [vmem:[%s865 + $0x30] sm:$0xff]
        %v978 = vld [vmem:[%s865 + $0x38] sm:$0xff]
        %v979 = vld [vmem:[%s14] sm:$0xff]
        %v980 = vld [vmem:[%s14 + $0x8] sm:$0xff]
        %v981 = vld [vmem:[%s14 + $0x10] sm:$0xff]
        %v982 = vld [vmem:[%s14 + $0x18] sm:$0xff]
        %v983 = vld [vmem:[%s14 + $0x20] sm:$0xff]
        %v984 = vld [vmem:[%s14 + $0x28] sm:$0xff]
        %v985 = vld [vmem:[%s14 + $0x30] sm:$0xff]
        %v986 = vld [vmem:[%s14 + $0x38] sm:$0xff]
        %v987 = vld [vmem:[%s15] sm:$0xff]
        %v988 = vld [vmem:[%s15 + $0x8] sm:$0xff]
        %v989 = vld [vmem:[%s15 + $0x10] sm:$0xff]
        %v990 = vld [vmem:[%s15 + $0x18] sm:$0xff]
        %v991 = vld [vmem:[%s15 + $0x20] sm:$0xff]
        %v992 = vld [vmem:[%s15 + $0x28] sm:$0xff]
        %v993 = vld [vmem:[%s15 + $0x30] sm:$0xff]
        %v994 = vld [vmem:[%s15 + $0x38] sm:$0xff]
        %v995 = vld [vmem:[%s16] sm:$0x1]
        %v1004 = vlaneseq
        %v1005 = vshrl.u32 %v1004, 7
        %v1006 = vsub.s32 0, %v1005
        %v1007 = vrot.slane %v891, %v1006
        %v1008 = vlaneseq
        %v1009 = vshrl.u32 %v1008, 7
        %v1010 = vsub.s32 0, %v1009
        %v1011 = vrot.slane %v892, %v1010
        %v1012 = vlaneseq
        %v1013 = vshrl.u32 %v1012, 7
        %v1014 = vsub.s32 0, %v1013
        %v1015 = vrot.slane %v893, %v1014
        %v1016 = vlaneseq
        %v1017 = vshrl.u32 %v1016, 7
        %v1018 = vsub.s32 0, %v1017
        %v1019 = vrot.slane %v894, %v1018
        %v1020 = vlaneseq
        %v1021 = vshrl.u32 %v1020, 7
        %v1022 = vsub.s32 0, %v1021
        %v1023 = vrot.slane %v895, %v1022
        %v1024 = vlaneseq
        %v1025 = vshrl.u32 %v1024, 7
        %v1026 = vsub.s32 0, %v1025
        %v1027 = vrot.slane %v896, %v1026
        %v1028 = vlaneseq
        %v1029 = vshrl.u32 %v1028, 7
        %v1030 = vsub.s32 0, %v1029
        %v1031 = vrot.slane %v897, %v1030
        %v1032 = vlaneseq
        %v1033 = vshrl.u32 %v1032, 7
        %v1034 = vsub.s32 0, %v1033
        %v1035 = vrot.slane %v898, %v1034
        %1045 = vset.pattern.permute.xlu0 0
        %1046 = vperm.xlu0 %1045, %v883
        %v1047 = vpop.permute.xlu0 %1046
        %1050 = vset.pattern.permute.xlu0 0
        %1051 = vperm.xlu0 %1050, %v884
        %v1052 = vpop.permute.xlu0 %1051
        %1055 = vset.pattern.permute.xlu0 0
        %1056 = vperm.xlu0 %1055, %v885
        %v1057 = vpop.permute.xlu0 %1056
        %1060 = vset.pattern.permute.xlu0 0
        %1061 = vperm.xlu0 %1060, %v886
        %v1062 = vpop.permute.xlu0 %1061
        %1065 = vset.pattern.permute.xlu0 0
        %1066 = vperm.xlu0 %1065, %v887
        %v1067 = vpop.permute.xlu0 %1066
        %1070 = vset.pattern.permute.xlu0 0
        %1071 = vperm.xlu0 %1070, %v888
        %v1072 = vpop.permute.xlu0 %1071
        %1075 = vset.pattern.permute.xlu0 0
        %1076 = vperm.xlu0 %1075, %v889
        %v1077 = vpop.permute.xlu0 %1076
        %1080 = vset.pattern.permute.xlu0 0
        %1081 = vperm.xlu0 %1080, %v890
        %v1082 = vpop.permute.xlu0 %1081
        %v1084 = vmul.f32 %v1007, %v1047
        %v1085 = vmul.f32 %v1011, %v1052
        %v1086 = vmul.f32 %v1015, %v1057
        %v1087 = vmul.f32 %v1019, %v1062
        %v1088 = vmul.f32 %v1023, %v1067
        %v1089 = vmul.f32 %v1027, %v1072
        %v1090 = vmul.f32 %v1031, %v1077
        %v1091 = vmul.f32 %v1035, %v1082
        %v1092 = vmul.f32 %v1084, %v915
        %v1093 = vmul.f32 %v1085, %v916
        %v1094 = vmul.f32 %v1086, %v917
        %v1095 = vmul.f32 %v1087, %v918
        %v1096 = vmul.f32 %v1088, %v919
        %v1097 = vmul.f32 %v1089, %v920
        %v1098 = vmul.f32 %v1090, %v921
        %v1099 = vmul.f32 %v1091, %v922
        %v1100 = vlaneseq
        %v1101 = vshrl.u32 %v1100, 7
        %v1102 = vlaneseq
        %v1103 = vand.u32 %v1102, 127
        %vm1104 = vcmp.eq.s32.totalorder %v1101, %v1103
        %v1105 = vsel %vm1104, 1, 0
        %v1106 = vcvt.s32.f32 %v1105
        %v1107 = vsub.f32 1.0, %v1106
        %v1108 = vmul.f32 %v1092, %v1107
        %v1109 = vmul.f32 %v1093, %v1107
        %v1110 = vmul.f32 %v1094, %v1107
        %v1111 = vmul.f32 %v1095, %v1107
        %v1112 = vmul.f32 %v1096, %v1107
        %v1113 = vmul.f32 %v1097, %v1107
        %v1114 = vmul.f32 %v1098, %v1107
        %v1115 = vmul.f32 %v1099, %v1107
        %v1116 = vmul.f32 %v1108, %v947
        %v1117 = vmul.f32 %v1109, %v948
        %v1118 = vmul.f32 %v1110, %v949
        %v1119 = vmul.f32 %v1111, %v950
        %v1120 = vmul.f32 %v1112, %v951
        %v1121 = vmul.f32 %v1113, %v952
        %v1122 = vmul.f32 %v1114, %v953
        %v1123 = vmul.f32 %v1115, %v954
        %v1124 = vsub.f32 %v1108, %v1116
        %v1125 = vsub.f32 %v1109, %v1117
        %v1126 = vsub.f32 %v1110, %v1118
        %v1127 = vsub.f32 %v1111, %v1119
        %v1128 = vsub.f32 %v1112, %v1120
        %v1129 = vsub.f32 %v1113, %v1121
        %v1130 = vsub.f32 %v1114, %v1122
        %v1131 = vsub.f32 %v1115, %v1123
        %v1140 = vlaneseq
        %v1141 = vshrl.u32 %v1140, 7
        %v1142 = vsub.s32 0, %v1141
        %v1143 = vrot.slane %v907, %v1142
        %v1144 = vlaneseq
        %v1145 = vshrl.u32 %v1144, 7
        %v1146 = vsub.s32 0, %v1145
        %v1147 = vrot.slane %v908, %v1146
        %v1148 = vlaneseq
        %v1149 = vshrl.u32 %v1148, 7
        %v1150 = vsub.s32 0, %v1149
        %v1151 = vrot.slane %v909, %v1150
        %v1152 = vlaneseq
        %v1153 = vshrl.u32 %v1152, 7
        %v1154 = vsub.s32 0, %v1153
        %v1155 = vrot.slane %v910, %v1154
        %v1156 = vlaneseq
        %v1157 = vshrl.u32 %v1156, 7
        %v1158 = vsub.s32 0, %v1157
        %v1159 = vrot.slane %v911, %v1158
        %v1160 = vlaneseq
        %v1161 = vshrl.u32 %v1160, 7
        %v1162 = vsub.s32 0, %v1161
        %v1163 = vrot.slane %v912, %v1162
        %v1164 = vlaneseq
        %v1165 = vshrl.u32 %v1164, 7
        %v1166 = vsub.s32 0, %v1165
        %v1167 = vrot.slane %v913, %v1166
        %v1168 = vlaneseq
        %v1169 = vshrl.u32 %v1168, 7
        %v1170 = vsub.s32 0, %v1169
        %v1171 = vrot.slane %v914, %v1170
        %1181 = vset.pattern.permute.xlu0 0
        %1182 = vperm.xlu0 %1181, %v899
        %v1183 = vpop.permute.xlu0 %1182
        %1186 = vset.pattern.permute.xlu0 0
        %1187 = vperm.xlu0 %1186, %v900
        %v1188 = vpop.permute.xlu0 %1187
        %1191 = vset.pattern.permute.xlu0 0
        %1192 = vperm.xlu0 %1191, %v901
        %v1193 = vpop.permute.xlu0 %1192
        %1196 = vset.pattern.permute.xlu0 0
        %1197 = vperm.xlu0 %1196, %v902
        %v1198 = vpop.permute.xlu0 %1197
        %1201 = vset.pattern.permute.xlu0 0
        %1202 = vperm.xlu0 %1201, %v903
        %v1203 = vpop.permute.xlu0 %1202
        %1206 = vset.pattern.permute.xlu0 0
        %1207 = vperm.xlu0 %1206, %v904
        %v1208 = vpop.permute.xlu0 %1207
        %1211 = vset.pattern.permute.xlu0 0
        %1212 = vperm.xlu0 %1211, %v905
        %v1213 = vpop.permute.xlu0 %1212
        %1216 = vset.pattern.permute.xlu0 0
        %1217 = vperm.xlu0 %1216, %v906
        %v1218 = vpop.permute.xlu0 %1217
        %v1220 = vmul.f32 %v1143, %v1183
        %v1221 = vmul.f32 %v1147, %v1188
        %v1222 = vmul.f32 %v1151, %v1193
        %v1223 = vmul.f32 %v1155, %v1198
        %v1224 = vmul.f32 %v1159, %v1203
        %v1225 = vmul.f32 %v1163, %v1208
        %v1226 = vmul.f32 %v1167, %v1213
        %v1227 = vmul.f32 %v1171, %v1218
        %v1228 = vmul.f32 %v1220, %v923
        %v1229 = vmul.f32 %v1221, %v924
        %v1230 = vmul.f32 %v1222, %v925
        %v1231 = vmul.f32 %v1223, %v926
        %v1232 = vmul.f32 %v1224, %v927
        %v1233 = vmul.f32 %v1225, %v928
        %v1234 = vmul.f32 %v1226, %v929
        %v1235 = vmul.f32 %v1227, %v930
        %v1236 = vmul.f32 %v1228, %v1107
        %v1237 = vmul.f32 %v1229, %v1107
        %v1238 = vmul.f32 %v1230, %v1107
        %v1239 = vmul.f32 %v1231, %v1107
        %v1240 = vmul.f32 %v1232, %v1107
        %v1241 = vmul.f32 %v1233, %v1107
        %v1242 = vmul.f32 %v1234, %v1107
        %v1243 = vmul.f32 %v1235, %v1107
        %v1244 = vmul.f32 %v1236, %v955
        %v1245 = vmul.f32 %v1237, %v956
        %v1246 = vmul.f32 %v1238, %v957
        %v1247 = vmul.f32 %v1239, %v958
        %v1248 = vmul.f32 %v1240, %v959
        %v1249 = vmul.f32 %v1241, %v960
        %v1250 = vmul.f32 %v1242, %v961
        %v1251 = vmul.f32 %v1243, %v962
        %v1252 = vsub.f32 %v1236, %v1244
        %v1253 = vsub.f32 %v1237, %v1245
        %v1254 = vsub.f32 %v1238, %v1246
        %v1255 = vsub.f32 %v1239, %v1247
        %v1256 = vsub.f32 %v1240, %v1248
        %v1257 = vsub.f32 %v1241, %v1249
        %v1258 = vsub.f32 %v1242, %v1250
        %v1259 = vsub.f32 %v1243, %v1251
        %v1260 = vmul.f32 %v1047, %v1143
        %v1261 = vmul.f32 %v1052, %v1147
        %v1262 = vmul.f32 %v1057, %v1151
        %v1263 = vmul.f32 %v1062, %v1155
        %v1264 = vmul.f32 %v1067, %v1159
        %v1265 = vmul.f32 %v1072, %v1163
        %v1266 = vmul.f32 %v1077, %v1167
        %v1267 = vmul.f32 %v1082, %v1171
        %v1268 = vmul.f32 %v1260, %v931
        %v1269 = vmul.f32 %v1261, %v932
        %v1270 = vmul.f32 %v1262, %v933
        %v1271 = vmul.f32 %v1263, %v934
        %v1272 = vmul.f32 %v1264, %v935
        %v1273 = vmul.f32 %v1265, %v936
        %v1274 = vmul.f32 %v1266, %v937
        %v1275 = vmul.f32 %v1267, %v938
        %v1276 = vmul.f32 %v1268, %v963
        %v1277 = vmul.f32 %v1269, %v964
        %v1278 = vmul.f32 %v1270, %v965
        %v1279 = vmul.f32 %v1271, %v966
        %v1280 = vmul.f32 %v1272, %v967
        %v1281 = vmul.f32 %v1273, %v968
        %v1282 = vmul.f32 %v1274, %v969
        %v1283 = vmul.f32 %v1275, %v970
        %v1284 = vsub.f32 %v1268, %v1276
        %v1285 = vsub.f32 %v1269, %v1277
        %v1286 = vsub.f32 %v1270, %v1278
        %v1287 = vsub.f32 %v1271, %v1279
        %v1288 = vsub.f32 %v1272, %v1280
        %v1289 = vsub.f32 %v1273, %v1281
        %v1290 = vsub.f32 %v1274, %v1282
        %v1291 = vsub.f32 %v1275, %v1283
        %v1292 = vmul.f32 %v1183, %v1007
        %v1293 = vmul.f32 %v1188, %v1011
        %v1294 = vmul.f32 %v1193, %v1015
        %v1295 = vmul.f32 %v1198, %v1019
        %v1296 = vmul.f32 %v1203, %v1023
        %v1297 = vmul.f32 %v1208, %v1027
        %v1298 = vmul.f32 %v1213, %v1031
        %v1299 = vmul.f32 %v1218, %v1035
        %v1300 = vmul.f32 %v1292, %v939
        %v1301 = vmul.f32 %v1293, %v940
        %v1302 = vmul.f32 %v1294, %v941
        %v1303 = vmul.f32 %v1295, %v942
        %v1304 = vmul.f32 %v1296, %v943
        %v1305 = vmul.f32 %v1297, %v944
        %v1306 = vmul.f32 %v1298, %v945
        %v1307 = vmul.f32 %v1299, %v946
        %v1308 = vmul.f32 %v1300, %v971
        %v1309 = vmul.f32 %v1301, %v972
        %v1310 = vmul.f32 %v1302, %v973
        %v1311 = vmul.f32 %v1303, %v974
        %v1312 = vmul.f32 %v1304, %v975
        %v1313 = vmul.f32 %v1305, %v976
        %v1314 = vmul.f32 %v1306, %v977
        %v1315 = vmul.f32 %v1307, %v978
        %v1316 = vsub.f32 %v1300, %v1308
        %v1317 = vsub.f32 %v1301, %v1309
        %v1318 = vsub.f32 %v1302, %v1310
        %v1319 = vsub.f32 %v1303, %v1311
        %v1320 = vsub.f32 %v1304, %v1312
        %v1321 = vsub.f32 %v1305, %v1313
        %v1322 = vsub.f32 %v1306, %v1314
        %v1323 = vsub.f32 %v1307, %v1315
        %vm1324 = vcmask 64512
        %v1325 = vsel %vm1324, %v1108, 0.0
        %1326 = vadd.xlane.f32.xlu0 %v1325
        %v1327 = vpop.xlane.xlu0 %1326
        %v1328 = vsel %vm1324, %v1109, 0.0
        %1329 = vadd.xlane.f32.xlu0 %v1328
        %v1330 = vpop.xlane.xlu0 %1329
        %v1331 = vsel %vm1324, %v1110, 0.0
        %1332 = vadd.xlane.f32.xlu0 %v1331
        %v1333 = vpop.xlane.xlu0 %1332
        %v1334 = vsel %vm1324, %v1111, 0.0
        %1335 = vadd.xlane.f32.xlu0 %v1334
        %v1336 = vpop.xlane.xlu0 %1335
        %v1337 = vsel %vm1324, %v1112, 0.0
        %1338 = vadd.xlane.f32.xlu0 %v1337
        %v1339 = vpop.xlane.xlu0 %1338
        %v1340 = vsel %vm1324, %v1113, 0.0
        %1341 = vadd.xlane.f32.xlu0 %v1340
        %v1342 = vpop.xlane.xlu0 %1341
        %v1343 = vsel %vm1324, %v1114, 0.0
        %1344 = vadd.xlane.f32.xlu0 %v1343
        %v1345 = vpop.xlane.xlu0 %1344
        %v1346 = vsel %vm1324, %v1115, 0.0
        %1347 = vadd.xlane.f32.xlu0 %v1346
        %v1348 = vpop.xlane.xlu0 %1347
        %v1349 = vsel %vm1324, %v1268, 0.0
        %1350 = vadd.xlane.f32.xlu0 %v1349
        %v1351 = vpop.xlane.xlu0 %1350
        %v1352 = vsel %vm1324, %v1269, 0.0
        %1353 = vadd.xlane.f32.xlu0 %v1352
        %v1354 = vpop.xlane.xlu0 %1353
        %v1355 = vsel %vm1324, %v1270, 0.0
        %1356 = vadd.xlane.f32.xlu0 %v1355
        %v1357 = vpop.xlane.xlu0 %1356
        %v1358 = vsel %vm1324, %v1271, 0.0
        %1359 = vadd.xlane.f32.xlu0 %v1358
        %v1360 = vpop.xlane.xlu0 %1359
        %v1361 = vsel %vm1324, %v1272, 0.0
        %1362 = vadd.xlane.f32.xlu0 %v1361
        %v1363 = vpop.xlane.xlu0 %1362
        %v1364 = vsel %vm1324, %v1273, 0.0
        %1365 = vadd.xlane.f32.xlu0 %v1364
        %v1366 = vpop.xlane.xlu0 %1365
        %v1367 = vsel %vm1324, %v1274, 0.0
        %1368 = vadd.xlane.f32.xlu0 %v1367
        %v1369 = vpop.xlane.xlu0 %1368
        %v1370 = vsel %vm1324, %v1275, 0.0
        %1371 = vadd.xlane.f32.xlu0 %v1370
        %v1372 = vpop.xlane.xlu0 %1371
        %v1373 = vadd.f32 %v1327, %v1351
        %v1374 = vadd.f32 %v1330, %v1354
        %v1375 = vadd.f32 %v1333, %v1357
        %v1376 = vadd.f32 %v1336, %v1360
        %v1377 = vadd.f32 %v1339, %v1363
        %v1378 = vadd.f32 %v1342, %v1366
        %v1379 = vadd.f32 %v1345, %v1369
        %v1380 = vadd.f32 %v1348, %v1372
        %v1381 = vsel %vm1324, %v1236, 0.0
        %1382 = vadd.xlane.f32.xlu0 %v1381
        %v1383 = vpop.xlane.xlu0 %1382
        %v1384 = vsel %vm1324, %v1237, 0.0
        %1385 = vadd.xlane.f32.xlu0 %v1384
        %v1386 = vpop.xlane.xlu0 %1385
        %v1387 = vsel %vm1324, %v1238, 0.0
        %1388 = vadd.xlane.f32.xlu0 %v1387
        %v1389 = vpop.xlane.xlu0 %1388
        %v1390 = vsel %vm1324, %v1239, 0.0
        %1391 = vadd.xlane.f32.xlu0 %v1390
        %v1392 = vpop.xlane.xlu0 %1391
        %v1393 = vsel %vm1324, %v1240, 0.0
        %1394 = vadd.xlane.f32.xlu0 %v1393
        %v1395 = vpop.xlane.xlu0 %1394
        %v1396 = vsel %vm1324, %v1241, 0.0
        %1397 = vadd.xlane.f32.xlu0 %v1396
        %v1398 = vpop.xlane.xlu0 %1397
        %v1399 = vsel %vm1324, %v1242, 0.0
        %1400 = vadd.xlane.f32.xlu0 %v1399
        %v1401 = vpop.xlane.xlu0 %1400
        %v1402 = vsel %vm1324, %v1243, 0.0
        %1403 = vadd.xlane.f32.xlu0 %v1402
        %v1404 = vpop.xlane.xlu0 %1403
        %v1405 = vsel %vm1324, %v1300, 0.0
        %1406 = vadd.xlane.f32.xlu0 %v1405
        %v1407 = vpop.xlane.xlu0 %1406
        %v1408 = vsel %vm1324, %v1301, 0.0
        %1409 = vadd.xlane.f32.xlu0 %v1408
        %v1410 = vpop.xlane.xlu0 %1409
        %v1411 = vsel %vm1324, %v1302, 0.0
        %1412 = vadd.xlane.f32.xlu0 %v1411
        %v1413 = vpop.xlane.xlu0 %1412
        %v1414 = vsel %vm1324, %v1303, 0.0
        %1415 = vadd.xlane.f32.xlu0 %v1414
        %v1416 = vpop.xlane.xlu0 %1415
        %v1417 = vsel %vm1324, %v1304, 0.0
        %1418 = vadd.xlane.f32.xlu0 %v1417
        %v1419 = vpop.xlane.xlu0 %1418
        %v1420 = vsel %vm1324, %v1305, 0.0
        %1421 = vadd.xlane.f32.xlu0 %v1420
        %v1422 = vpop.xlane.xlu0 %1421
        %v1423 = vsel %vm1324, %v1306, 0.0
        %1424 = vadd.xlane.f32.xlu0 %v1423
        %v1425 = vpop.xlane.xlu0 %1424
        %v1426 = vsel %vm1324, %v1307, 0.0
        %1427 = vadd.xlane.f32.xlu0 %v1426
        %v1428 = vpop.xlane.xlu0 %1427
        %v1429 = vadd.f32 %v1383, %v1407
        %v1430 = vadd.f32 %v1386, %v1410
        %v1431 = vadd.f32 %v1389, %v1413
        %v1432 = vadd.f32 %v1392, %v1416
        %v1433 = vadd.f32 %v1395, %v1419
        %v1434 = vadd.f32 %v1398, %v1422
        %v1435 = vadd.f32 %v1401, %v1425
        %v1436 = vadd.f32 %v1404, %v1428
        %v1437 = vmax.f32 %v1373, 1.0
        %v1438 = vmax.f32 %v1374, 1.0
        %v1439 = vmax.f32 %v1375, 1.0
        %v1440 = vmax.f32 %v1376, 1.0
        %v1441 = vmax.f32 %v1377, 1.0
        %v1442 = vmax.f32 %v1378, 1.0
        %v1443 = vmax.f32 %v1379, 1.0
        %v1444 = vmax.f32 %v1380, 1.0
        %v1445 = vrcp.pop %v1437
        %v1446 = vrcp.pop %v1438
        %v1447 = vrcp.pop %v1439
        %v1448 = vrcp.pop %v1440
        %v1449 = vrcp.pop %v1441
        %v1450 = vrcp.pop %v1442
        %v1451 = vrcp.pop %v1443
        %v1452 = vrcp.pop %v1444
        %v1453 = vmax.f32 %v1429, 1.0
        %v1454 = vmax.f32 %v1430, 1.0
        %v1455 = vmax.f32 %v1431, 1.0
        %v1456 = vmax.f32 %v1432, 1.0
        %v1457 = vmax.f32 %v1433, 1.0
        %v1458 = vmax.f32 %v1434, 1.0
        %v1459 = vmax.f32 %v1435, 1.0
        %v1460 = vmax.f32 %v1436, 1.0
        %v1461 = vrcp.pop %v1453
        %v1462 = vrcp.pop %v1454
        %v1463 = vrcp.pop %v1455
        %v1464 = vrcp.pop %v1456
        %v1465 = vrcp.pop %v1457
        %v1466 = vrcp.pop %v1458
        %v1467 = vrcp.pop %v1459
        %v1468 = vrcp.pop %v1460
        %vm1469 = vcmp.gt.f32.partialorder %v1092, 0.0
        %vm1470 = vcmp.gt.f32.partialorder %v1093, 0.0
        %vm1471 = vcmp.gt.f32.partialorder %v1094, 0.0
        %vm1472 = vcmp.gt.f32.partialorder %v1095, 0.0
        %vm1473 = vcmp.gt.f32.partialorder %v1096, 0.0
        %vm1474 = vcmp.gt.f32.partialorder %v1097, 0.0
        %vm1475 = vcmp.gt.f32.partialorder %v1098, 0.0
        %vm1476 = vcmp.gt.f32.partialorder %v1099, 0.0
        %v1477 = vsel %vm1469, 0.0, -1e+09
        %v1478 = vsel %vm1470, 0.0, -1e+09
        %v1479 = vsel %vm1471, 0.0, -1e+09
        %v1480 = vsel %vm1472, 0.0, -1e+09
        %v1481 = vsel %vm1473, 0.0, -1e+09
        %v1482 = vsel %vm1474, 0.0, -1e+09
        %v1483 = vsel %vm1475, 0.0, -1e+09
        %v1484 = vsel %vm1476, 0.0, -1e+09
        %vm1485 = vcmp.gt.f32.partialorder %v1228, 0.0
        %vm1486 = vcmp.gt.f32.partialorder %v1229, 0.0
        %vm1487 = vcmp.gt.f32.partialorder %v1230, 0.0
        %vm1488 = vcmp.gt.f32.partialorder %v1231, 0.0
        %vm1489 = vcmp.gt.f32.partialorder %v1232, 0.0
        %vm1490 = vcmp.gt.f32.partialorder %v1233, 0.0
        %vm1491 = vcmp.gt.f32.partialorder %v1234, 0.0
        %vm1492 = vcmp.gt.f32.partialorder %v1235, 0.0
        %v1493 = vsel %vm1485, 0.0, -1e+09
        %v1494 = vsel %vm1486, 0.0, -1e+09
        %v1495 = vsel %vm1487, 0.0, -1e+09
        %v1496 = vsel %vm1488, 0.0, -1e+09
        %v1497 = vsel %vm1489, 0.0, -1e+09
        %v1498 = vsel %vm1490, 0.0, -1e+09
        %v1499 = vsel %vm1491, 0.0, -1e+09
        %v1500 = vsel %vm1492, 0.0, -1e+09
        %vm1501 = vcmp.gt.f32.partialorder %v1268, 0.0
        %vm1502 = vcmp.gt.f32.partialorder %v1269, 0.0
        %vm1503 = vcmp.gt.f32.partialorder %v1270, 0.0
        %vm1504 = vcmp.gt.f32.partialorder %v1271, 0.0
        %vm1505 = vcmp.gt.f32.partialorder %v1272, 0.0
        %vm1506 = vcmp.gt.f32.partialorder %v1273, 0.0
        %vm1507 = vcmp.gt.f32.partialorder %v1274, 0.0
        %vm1508 = vcmp.gt.f32.partialorder %v1275, 0.0
        %v1509 = vsel %vm1501, 0.0, -1e+09
        %v1510 = vsel %vm1502, 0.0, -1e+09
        %v1511 = vsel %vm1503, 0.0, -1e+09
        %v1512 = vsel %vm1504, 0.0, -1e+09
        %v1513 = vsel %vm1505, 0.0, -1e+09
        %v1514 = vsel %vm1506, 0.0, -1e+09
        %v1515 = vsel %vm1507, 0.0, -1e+09
        %v1516 = vsel %vm1508, 0.0, -1e+09
        %vm1517 = vcmp.gt.f32.partialorder %v1300, 0.0
        %vm1518 = vcmp.gt.f32.partialorder %v1301, 0.0
        %vm1519 = vcmp.gt.f32.partialorder %v1302, 0.0
        %vm1520 = vcmp.gt.f32.partialorder %v1303, 0.0
        %vm1521 = vcmp.gt.f32.partialorder %v1304, 0.0
        %vm1522 = vcmp.gt.f32.partialorder %v1305, 0.0
        %vm1523 = vcmp.gt.f32.partialorder %v1306, 0.0
        %vm1524 = vcmp.gt.f32.partialorder %v1307, 0.0
        %v1525 = vsel %vm1517, 0.0, -1e+09
        %v1526 = vsel %vm1518, 0.0, -1e+09
        %v1527 = vsel %vm1519, 0.0, -1e+09
        %v1528 = vsel %vm1520, 0.0, -1e+09
        %v1529 = vsel %vm1521, 0.0, -1e+09
        %v1530 = vsel %vm1522, 0.0, -1e+09
        %v1531 = vsel %vm1523, 0.0, -1e+09
        %v1532 = vsel %vm1524, 0.0, -1e+09
        %vm1533 = vcmask 261120
        %v1535 = vsel %vm1533, %v867, 0
        %v1538 = vsel %vm1533, %v868, 0
        %v1541 = vsel %vm1533, %v869, 0
        %v1544 = vsel %vm1533, %v870, 0
        %v1547 = vsel %vm1533, %v871, 0
        %v1550 = vsel %vm1533, %v872, 0
        %v1553 = vsel %vm1533, %v873, 0
        %v1556 = vsel %vm1533, %v874, 0
        %1558 = vmatprep.subr.mxu0 %v980
        %1559 = vmatpush1.msra.mxu0 %v979
        %1560 = vmatprep.subr.mxu0 %v982
        %1561 = vmatpush1.msra.mxu0 %v981
        %1562 = vmatprep.subr.mxu0 %v984
        %1563 = vmatpush1.msra.mxu0 %v983
        %1564 = vmatprep.subr.mxu0 %v986
        %1565 = vmatpush1.msra.mxu0 %v985
        %1566 = vmatprep.subr.mxu0 0.0
        %1567 = vmatpush1.msra.mxu0 0.0
        %1568 = vmatprep.subr.mxu0 0.0
        %1569 = vmatpush1.msra.mxu0 0.0
        %1570 = vmatprep.subr.mxu0 0.0
        %1571 = vmatpush1.msra.mxu0 0.0
        %1572 = vmatprep.subr.mxu0 0.0
        %1573 = vmatpush1.msra.mxu0 0.0
        %1574 = vmatprep.subr.mxu0 0.0
        %1575 = vmatpush1.msra.mxu0 0.0
        %1576 = vmatprep.subr.mxu0 0.0
        %1577 = vmatpush1.msra.mxu0 0.0
        %1578 = vmatprep.subr.mxu0 0.0
        %1579 = vmatpush1.msra.mxu0 0.0
        %1580 = vmatprep.subr.mxu0 0.0
        %1581 = vmatpush1.msra.mxu0 0.0
        %1582 = vmatprep.subr.mxu0 0.0
        %1583 = vmatpush1.msra.mxu0 0.0
        %1584 = vmatprep.subr.mxu0 0.0
        %1585 = vmatpush1.msra.mxu0 0.0
        %1586 = vmatprep.subr.mxu0 0.0
        %1587 = vmatpush1.msra.mxu0 0.0
        %1588 = vmatprep.subr.mxu0 0.0
        %1589 = vmatpush1.msra.mxu0 0.0
        %1590 = vmatprep.subr.mxu0 0.0
        %1591 = vmatpush1.msra.mxu0 0.0
        %1592 = vmatprep.subr.mxu0 0.0
        %1593 = vmatpush1.msra.mxu0 0.0
        %1594 = vmatprep.subr.mxu0 0.0
        %1595 = vmatpush1.msra.mxu0 0.0
        %1596 = vmatprep.subr.mxu0 0.0
        %1597 = vmatpush1.msra.mxu0 0.0
        %1598 = vmatprep.subr.mxu0 0.0
        %1599 = vmatpush1.msra.mxu0 0.0
        %1600 = vmatprep.subr.mxu0 0.0
        %1601 = vmatpush1.msra.mxu0 0.0
        %1602 = vmatprep.subr.mxu0 0.0
        %1603 = vmatpush1.msra.mxu0 0.0
        %1604 = vmatprep.subr.mxu0 0.0
        %1605 = vmatpush1.msra.mxu0 0.0
        %1606 = vmatprep.subr.mxu0 0.0
        %1607 = vmatpush1.msra.mxu0 0.0
        %1608 = vmatprep.subr.mxu0 0.0
        %1609 = vmatpush1.msra.mxu0 0.0
        %1610 = vmatprep.subr.mxu0 0.0
        %1611 = vmatpush1.msra.mxu0 0.0
        %1612 = vmatprep.subr.mxu0 0.0
        %1613 = vmatpush1.msra.mxu0 0.0
        %1614 = vmatprep.subr.mxu0 0.0
        %1615 = vmatpush1.msra.mxu0 0.0
        %1616 = vmatprep.subr.mxu0 0.0
        %1617 = vmatpush1.msra.mxu0 0.0
        %1618 = vmatprep.subr.mxu0 0.0
        %1619 = vmatpush1.msra.mxu0 0.0
        %1620 = vmatprep.subr.mxu0 0.0
        %1621 = vmatpush1.msra.mxu0 0.0
        %1622 = vmatprep.mubr.f32.mxu0 0.0
        %1623 = vmatmul.mubr.f32.gmra.mrb[0].mxu0 %v1535
        %v1624 = vpop.f32.mrb[0].mxu0
        %v1625 = vadd.f32 0.0, %v1624
        %v1626 = vpop.f32.mrb[0].mxu0
        %v1627 = vadd.f32 0.0, %v1626
        %1628 = vmatprep.mubr.f32.mxu0 0.0
        %1629 = vmatmul.mubr.f32.gmra.mrb[0].mxu0 %v1538
        %v1630 = vpop.f32.mrb[0].mxu0
        %v1631 = vadd.f32 0.0, %v1630
        %v1632 = vpop.f32.mrb[0].mxu0
        %v1633 = vadd.f32 0.0, %v1632
        %1634 = vmatprep.mubr.f32.mxu0 0.0
        %1635 = vmatmul.mubr.f32.gmra.mrb[0].mxu0 %v1541
        %v1636 = vpop.f32.mrb[0].mxu0
        %v1637 = vadd.f32 0.0, %v1636
        %v1638 = vpop.f32.mrb[0].mxu0
        %v1639 = vadd.f32 0.0, %v1638
        %1640 = vmatprep.mubr.f32.mxu0 0.0
        %1641 = vmatmul.mubr.f32.gmra.mrb[0].mxu0 %v1544
        %v1642 = vpop.f32.mrb[0].mxu0
        %v1643 = vadd.f32 0.0, %v1642
        %v1644 = vpop.f32.mrb[0].mxu0
        %v1645 = vadd.f32 0.0, %v1644
        %1646 = vmatprep.mubr.f32.mxu0 0.0
        %1647 = vmatmul.mubr.f32.gmra.mrb[0].mxu0 %v1547
        %v1648 = vpop.f32.mrb[0].mxu0
        %v1649 = vadd.f32 0.0, %v1648
        %v1650 = vpop.f32.mrb[0].mxu0
        %v1651 = vadd.f32 0.0, %v1650
        %1652 = vmatprep.mubr.f32.mxu0 0.0
        %1653 = vmatmul.mubr.f32.gmra.mrb[0].mxu0 %v1550
        %v1654 = vpop.f32.mrb[0].mxu0
        %v1655 = vadd.f32 0.0, %v1654
        %v1656 = vpop.f32.mrb[0].mxu0
        %v1657 = vadd.f32 0.0, %v1656
        %1658 = vmatprep.mubr.f32.mxu0 0.0
        %1659 = vmatmul.mubr.f32.gmra.mrb[0].mxu0 %v1553
        %v1660 = vpop.f32.mrb[0].mxu0
        %v1661 = vadd.f32 0.0, %v1660
        %v1662 = vpop.f32.mrb[0].mxu0
        %v1663 = vadd.f32 0.0, %v1662
        %1664 = vmatprep.mubr.f32.mxu0 0.0
        %1665 = vmatmul.mubr.f32.gmra.mrb[0].mxu0 %v1556
        %v1666 = vpop.f32.mrb[0].mxu0
        %v1667 = vadd.f32 0.0, %v1666
        %v1668 = vpop.f32.mrb[0].mxu0
        %v1669 = vadd.f32 0.0, %v1668
        %1670 = vdwg.mxu0
        %v1672 = vsel %vm1533, %v875, 0
        %v1675 = vsel %vm1533, %v876, 0
        %v1678 = vsel %vm1533, %v877, 0
        %v1681 = vsel %vm1533, %v878, 0
        %v1684 = vsel %vm1533, %v879, 0
        %v1687 = vsel %vm1533, %v880, 0
        %v1690 = vsel %vm1533, %v881, 0
        %v1693 = vsel %vm1533, %v882, 0
        %1695 = vmatprep.subr.mxu0 %v988
        %1696 = vmatpush1.msra.mxu0 %v987
        %1697 = vmatprep.subr.mxu0 %v990
        %1698 = vmatpush1.msra.mxu0 %v989
        %1699 = vmatprep.subr.mxu0 %v992
        %1700 = vmatpush1.msra.mxu0 %v991
        %1701 = vmatprep.subr.mxu0 %v994
        %1702 = vmatpush1.msra.mxu0 %v993
        %1703 = vmatprep.subr.mxu0 0.0
        %1704 = vmatpush1.msra.mxu0 0.0
        %1705 = vmatprep.subr.mxu0 0.0
        %1706 = vmatpush1.msra.mxu0 0.0
        %1707 = vmatprep.subr.mxu0 0.0
        %1708 = vmatpush1.msra.mxu0 0.0
        %1709 = vmatprep.subr.mxu0 0.0
        %1710 = vmatpush1.msra.mxu0 0.0
        %1711 = vmatprep.subr.mxu0 0.0
        %1712 = vmatpush1.msra.mxu0 0.0
        %1713 = vmatprep.subr.mxu0 0.0
        %1714 = vmatpush1.msra.mxu0 0.0
        %1715 = vmatprep.subr.mxu0 0.0
        %1716 = vmatpush1.msra.mxu0 0.0
        %1717 = vmatprep.subr.mxu0 0.0
        %1718 = vmatpush1.msra.mxu0 0.0
        %1719 = vmatprep.subr.mxu0 0.0
        %1720 = vmatpush1.msra.mxu0 0.0
        %1721 = vmatprep.subr.mxu0 0.0
        %1722 = vmatpush1.msra.mxu0 0.0
        %1723 = vmatprep.subr.mxu0 0.0
        %1724 = vmatpush1.msra.mxu0 0.0
        %1725 = vmatprep.subr.mxu0 0.0
        %1726 = vmatpush1.msra.mxu0 0.0
        %1727 = vmatprep.subr.mxu0 0.0
        %1728 = vmatpush1.msra.mxu0 0.0
        %1729 = vmatprep.subr.mxu0 0.0
        %1730 = vmatpush1.msra.mxu0 0.0
        %1731 = vmatprep.subr.mxu0 0.0
        %1732 = vmatpush1.msra.mxu0 0.0
        %1733 = vmatprep.subr.mxu0 0.0
        %1734 = vmatpush1.msra.mxu0 0.0
        %1735 = vmatprep.subr.mxu0 0.0
        %1736 = vmatpush1.msra.mxu0 0.0
        %1737 = vmatprep.subr.mxu0 0.0
        %1738 = vmatpush1.msra.mxu0 0.0
        %1739 = vmatprep.subr.mxu0 0.0
        %1740 = vmatpush1.msra.mxu0 0.0
        %1741 = vmatprep.subr.mxu0 0.0
        %1742 = vmatpush1.msra.mxu0 0.0
        %1743 = vmatprep.subr.mxu0 0.0
        %1744 = vmatpush1.msra.mxu0 0.0
        %1745 = vmatprep.subr.mxu0 0.0
        %1746 = vmatpush1.msra.mxu0 0.0
        %1747 = vmatprep.subr.mxu0 0.0
        %1748 = vmatpush1.msra.mxu0 0.0
        %1749 = vmatprep.subr.mxu0 0.0
        %1750 = vmatpush1.msra.mxu0 0.0
        %1751 = vmatprep.subr.mxu0 0.0
        %1752 = vmatpush1.msra.mxu0 0.0
        %1753 = vmatprep.subr.mxu0 0.0
        %1754 = vmatpush1.msra.mxu0 0.0
        %1755 = vmatprep.subr.mxu0 0.0
        %1756 = vmatpush1.msra.mxu0 0.0
        %1757 = vmatprep.subr.mxu0 0.0
        %1758 = vmatpush1.msra.mxu0 0.0
        %1759 = vmatprep.mubr.f32.mxu0 0.0
        %1760 = vmatmul.mubr.f32.gmra.mrb[0].mxu0 %v1672
        %v1761 = vpop.f32.mrb[0].mxu0
        %v1762 = vadd.f32 0.0, %v1761
        %v1763 = vpop.f32.mrb[0].mxu0
        %v1764 = vadd.f32 0.0, %v1763
        %1765 = vmatprep.mubr.f32.mxu0 0.0
        %1766 = vmatmul.mubr.f32.gmra.mrb[0].mxu0 %v1675
        %v1767 = vpop.f32.mrb[0].mxu0
        %v1768 = vadd.f32 0.0, %v1767
        %v1769 = vpop.f32.mrb[0].mxu0
        %v1770 = vadd.f32 0.0, %v1769
        %1771 = vmatprep.mubr.f32.mxu0 0.0
        %1772 = vmatmul.mubr.f32.gmra.mrb[0].mxu0 %v1678
        %v1773 = vpop.f32.mrb[0].mxu0
        %v1774 = vadd.f32 0.0, %v1773
        %v1775 = vpop.f32.mrb[0].mxu0
        %v1776 = vadd.f32 0.0, %v1775
        %1777 = vmatprep.mubr.f32.mxu0 0.0
        %1778 = vmatmul.mubr.f32.gmra.mrb[0].mxu0 %v1681
        %v1779 = vpop.f32.mrb[0].mxu0
        %v1780 = vadd.f32 0.0, %v1779
        %v1781 = vpop.f32.mrb[0].mxu0
        %v1782 = vadd.f32 0.0, %v1781
        %1783 = vmatprep.mubr.f32.mxu0 0.0
        %1784 = vmatmul.mubr.f32.gmra.mrb[0].mxu0 %v1684
        %v1785 = vpop.f32.mrb[0].mxu0
        %v1786 = vadd.f32 0.0, %v1785
        %v1787 = vpop.f32.mrb[0].mxu0
        %v1788 = vadd.f32 0.0, %v1787
        %1789 = vmatprep.mubr.f32.mxu0 0.0
        %1790 = vmatmul.mubr.f32.gmra.mrb[0].mxu0 %v1687
        %v1791 = vpop.f32.mrb[0].mxu0
        %v1792 = vadd.f32 0.0, %v1791
        %v1793 = vpop.f32.mrb[0].mxu0
        %v1794 = vadd.f32 0.0, %v1793
        %1795 = vmatprep.mubr.f32.mxu0 0.0
        %1796 = vmatmul.mubr.f32.gmra.mrb[0].mxu0 %v1690
        %v1797 = vpop.f32.mrb[0].mxu0
        %v1798 = vadd.f32 0.0, %v1797
        %v1799 = vpop.f32.mrb[0].mxu0
        %v1800 = vadd.f32 0.0, %v1799
        %1801 = vmatprep.mubr.f32.mxu0 0.0
        %1802 = vmatmul.mubr.f32.gmra.mrb[0].mxu0 %v1693
        %v1803 = vpop.f32.mrb[0].mxu0
        %v1804 = vadd.f32 0.0, %v1803
        %v1805 = vpop.f32.mrb[0].mxu0
        %v1806 = vadd.f32 0.0, %v1805
        %1807 = vdwg.mxu0
        %1809 = vrot.lane.b32.xlu0 %v1625, 96
        %v1810 = vpop.permute.xlu0 %1809
        %v1811 = vsel %vm1533, %v1625, 0
        %v1813 = vsel %vm1533, %v1810, 0
        %1815 = vmatprep.subr.mxu0 0.0
        %1816 = vmatpush1.xpose.msra.mxu0 %v1813
        %1817 = vmatprep.subr.mxu0 0.0
        %1818 = vmatpush1.xpose.msra.mxu0 0.0
        %1819 = vmatprep.subr.mxu0 0.0
        %1820 = vmatpush1.xpose.msra.mxu0 0.0
        %1821 = vmatprep.subr.mxu0 0.0
        %1822 = vmatpush1.xpose.msra.mxu0 0.0
        %1823 = vmatprep.subr.mxu0 0.0
        %1824 = vmatpush1.xpose.msra.mxu0 0.0
        %1825 = vmatprep.subr.mxu0 0.0
        %1826 = vmatpush1.xpose.msra.mxu0 0.0
        %1827 = vmatprep.subr.mxu0 0.0
        %1828 = vmatpush1.xpose.msra.mxu0 0.0
        %1829 = vmatprep.subr.mxu0 0.0
        %1830 = vmatpush1.xpose.msra.mxu0 0.0
        %1831 = vmatprep.subr.mxu0 0.0
        %1832 = vmatpush1.xpose.msra.mxu0 0.0
        %1833 = vmatprep.subr.mxu0 0.0
        %1834 = vmatpush1.xpose.msra.mxu0 0.0
        %1835 = vmatprep.subr.mxu0 0.0
        %1836 = vmatpush1.xpose.msra.mxu0 0.0
        %1837 = vmatprep.subr.mxu0 0.0
        %1838 = vmatpush1.xpose.msra.mxu0 0.0
        %1839 = vmatprep.subr.mxu0 0.0
        %1840 = vmatpush1.xpose.msra.mxu0 0.0
        %1841 = vmatprep.subr.mxu0 0.0
        %1842 = vmatpush1.xpose.msra.mxu0 0.0
        %1843 = vmatprep.subr.mxu0 0.0
        %1844 = vmatpush1.xpose.msra.mxu0 0.0
        %1845 = vmatprep.subr.mxu0 0.0
        %1846 = vmatpush1.xpose.msra.mxu0 0.0
        %1847 = vmatprep.subr.mxu0 0.0
        %1848 = vmatpush1.xpose.msra.mxu0 0.0
        %1849 = vmatprep.subr.mxu0 0.0
        %1850 = vmatpush1.xpose.msra.mxu0 0.0
        %1851 = vmatprep.subr.mxu0 0.0
        %1852 = vmatpush1.xpose.msra.mxu0 0.0
        %1853 = vmatprep.subr.mxu0 0.0
        %1854 = vmatpush1.xpose.msra.mxu0 0.0
        %1855 = vmatprep.subr.mxu0 0.0
        %1856 = vmatpush1.xpose.msra.mxu0 0.0
        %1857 = vmatprep.subr.mxu0 0.0
        %1858 = vmatpush1.xpose.msra.mxu0 0.0
        %1859 = vmatprep.subr.mxu0 0.0
        %1860 = vmatpush1.xpose.msra.mxu0 0.0
        %1861 = vmatprep.subr.mxu0 0.0
        %1862 = vmatpush1.xpose.msra.mxu0 0.0
        %1863 = vmatprep.subr.mxu0 0.0
        %1864 = vmatpush1.xpose.msra.mxu0 0.0
        %1865 = vmatprep.subr.mxu0 0.0
        %1866 = vmatpush1.xpose.msra.mxu0 0.0
        %1867 = vmatprep.subr.mxu0 0.0
        %1868 = vmatpush1.xpose.msra.mxu0 0.0
        %1869 = vmatprep.subr.mxu0 0.0
        %1870 = vmatpush1.xpose.msra.mxu0 0.0
        %1871 = vmatprep.subr.mxu0 0.0
        %1872 = vmatpush1.xpose.msra.mxu0 0.0
        %1873 = vmatprep.subr.mxu0 0.0
        %1874 = vmatpush1.xpose.msra.mxu0 0.0
        %1875 = vmatprep.subr.mxu0 0.0
        %1876 = vmatpush1.xpose.msra.mxu0 0.0
        %1877 = vmatprep.subr.mxu0 0.0
        %1878 = vmatpush1.xpose.msra.mxu0 0.0
        %1879 = vmatprep.mubr.f32.mxu0 0.0
        %1880 = vmatmul.mubr.f32.gmra.mrb[0].mxu0 %v1811
        %v1881 = vpop.f32.mrb[0].mxu0
        %v1882 = vadd.f32 %v1477, %v1881
        %v1883 = vpop.f32.mrb[0].mxu0
        %1884 = vdwg.mxu0
        %1886 = vrot.lane.b32.xlu0 %v1631, 96
        %v1887 = vpop.permute.xlu0 %1886
        %v1888 = vsel %vm1533, %v1631, 0
        %v1890 = vsel %vm1533, %v1887, 0
        %1892 = vmatprep.subr.mxu0 0.0
        %1893 = vmatpush1.xpose.msra.mxu0 %v1890
        %1894 = vmatprep.subr.mxu0 0.0
        %1895 = vmatpush1.xpose.msra.mxu0 0.0
        %1896 = vmatprep.subr.mxu0 0.0
        %1897 = vmatpush1.xpose.msra.mxu0 0.0
        %1898 = vmatprep.subr.mxu0 0.0
        %1899 = vmatpush1.xpose.msra.mxu0 0.0
        %1900 = vmatprep.subr.mxu0 0.0
        %1901 = vmatpush1.xpose.msra.mxu0 0.0
        %1902 = vmatprep.subr.mxu0 0.0
        %1903 = vmatpush1.xpose.msra.mxu0 0.0
        %1904 = vmatprep.subr.mxu0 0.0
        %1905 = vmatpush1.xpose.msra.mxu0 0.0
        %1906 = vmatprep.subr.mxu0 0.0
        %1907 = vmatpush1.xpose.msra.mxu0 0.0
        %1908 = vmatprep.subr.mxu0 0.0
        %1909 = vmatpush1.xpose.msra.mxu0 0.0
        %1910 = vmatprep.subr.mxu0 0.0
        %1911 = vmatpush1.xpose.msra.mxu0 0.0
        %1912 = vmatprep.subr.mxu0 0.0
        %1913 = vmatpush1.xpose.msra.mxu0 0.0
        %1914 = vmatprep.subr.mxu0 0.0
        %1915 = vmatpush1.xpose.msra.mxu0 0.0
        %1916 = vmatprep.subr.mxu0 0.0
        %1917 = vmatpush1.xpose.msra.mxu0 0.0
        %1918 = vmatprep.subr.mxu0 0.0
        %1919 = vmatpush1.xpose.msra.mxu0 0.0
        %1920 = vmatprep.subr.mxu0 0.0
        %1921 = vmatpush1.xpose.msra.mxu0 0.0
        %1922 = vmatprep.subr.mxu0 0.0
        %1923 = vmatpush1.xpose.msra.mxu0 0.0
        %1924 = vmatprep.subr.mxu0 0.0
        %1925 = vmatpush1.xpose.msra.mxu0 0.0
        %1926 = vmatprep.subr.mxu0 0.0
        %1927 = vmatpush1.xpose.msra.mxu0 0.0
        %1928 = vmatprep.subr.mxu0 0.0
        %1929 = vmatpush1.xpose.msra.mxu0 0.0
        %1930 = vmatprep.subr.mxu0 0.0
        %1931 = vmatpush1.xpose.msra.mxu0 0.0
        %1932 = vmatprep.subr.mxu0 0.0
        %1933 = vmatpush1.xpose.msra.mxu0 0.0
        %1934 = vmatprep.subr.mxu0 0.0
        %1935 = vmatpush1.xpose.msra.mxu0 0.0
        %1936 = vmatprep.subr.mxu0 0.0
        %1937 = vmatpush1.xpose.msra.mxu0 0.0
        %1938 = vmatprep.subr.mxu0 0.0
        %1939 = vmatpush1.xpose.msra.mxu0 0.0
        %1940 = vmatprep.subr.mxu0 0.0
        %1941 = vmatpush1.xpose.msra.mxu0 0.0
        %1942 = vmatprep.subr.mxu0 0.0
        %1943 = vmatpush1.xpose.msra.mxu0 0.0
        %1944 = vmatprep.subr.mxu0 0.0
        %1945 = vmatpush1.xpose.msra.mxu0 0.0
        %1946 = vmatprep.subr.mxu0 0.0
        %1947 = vmatpush1.xpose.msra.mxu0 0.0
        %1948 = vmatprep.subr.mxu0 0.0
        %1949 = vmatpush1.xpose.msra.mxu0 0.0
        %1950 = vmatprep.subr.mxu0 0.0
        %1951 = vmatpush1.xpose.msra.mxu0 0.0
        %1952 = vmatprep.subr.mxu0 0.0
        %1953 = vmatpush1.xpose.msra.mxu0 0.0
        %1954 = vmatprep.subr.mxu0 0.0
        %1955 = vmatpush1.xpose.msra.mxu0 0.0
        %1956 = vmatprep.mubr.f32.mxu0 0.0
        %1957 = vmatmul.mubr.f32.gmra.mrb[0].mxu0 %v1888
        %v1958 = vpop.f32.mrb[0].mxu0
        %v1959 = vadd.f32 %v1478, %v1958
        %v1960 = vpop.f32.mrb[0].mxu0
        %1961 = vdwg.mxu0
        %1963 = vrot.lane.b32.xlu0 %v1637, 96
        %v1964 = vpop.permute.xlu0 %1963
        %v1965 = vsel %vm1533, %v1637, 0
        %v1967 = vsel %vm1533, %v1964, 0
        %1969 = vmatprep.subr.mxu0 0.0
        %1970 = vmatpush1.xpose.msra.mxu0 %v1967
        %1971 = vmatprep.subr.mxu0 0.0
        %1972 = vmatpush1.xpose.msra.mxu0 0.0
        %1973 = vmatprep.subr.mxu0 0.0
        %1974 = vmatpush1.xpose.msra.mxu0 0.0
        %1975 = vmatprep.subr.mxu0 0.0
        %1976 = vmatpush1.xpose.msra.mxu0 0.0
        %1977 = vmatprep.subr.mxu0 0.0
        %1978 = vmatpush1.xpose.msra.mxu0 0.0
        %1979 = vmatprep.subr.mxu0 0.0
        %1980 = vmatpush1.xpose.msra.mxu0 0.0
        %1981 = vmatprep.subr.mxu0 0.0
        %1982 = vmatpush1.xpose.msra.mxu0 0.0
        %1983 = vmatprep.subr.mxu0 0.0
        %1984 = vmatpush1.xpose.msra.mxu0 0.0
        %1985 = vmatprep.subr.mxu0 0.0
        %1986 = vmatpush1.xpose.msra.mxu0 0.0
        %1987 = vmatprep.subr.mxu0 0.0
        %1988 = vmatpush1.xpose.msra.mxu0 0.0
        %1989 = vmatprep.subr.mxu0 0.0
        %1990 = vmatpush1.xpose.msra.mxu0 0.0
        %1991 = vmatprep.subr.mxu0 0.0
        %1992 = vmatpush1.xpose.msra.mxu0 0.0
        %1993 = vmatprep.subr.mxu0 0.0
        %1994 = vmatpush1.xpose.msra.mxu0 0.0
        %1995 = vmatprep.subr.mxu0 0.0
        %1996 = vmatpush1.xpose.msra.mxu0 0.0
        %1997 = vmatprep.subr.mxu0 0.0
        %1998 = vmatpush1.xpose.msra.mxu0 0.0
        %1999 = vmatprep.subr.mxu0 0.0
        %2000 = vmatpush1.xpose.msra.mxu0 0.0
        %2001 = vmatprep.subr.mxu0 0.0
        %2002 = vmatpush1.xpose.msra.mxu0 0.0
        %2003 = vmatprep.subr.mxu0 0.0
        %2004 = vmatpush1.xpose.msra.mxu0 0.0
        %2005 = vmatprep.subr.mxu0 0.0
        %2006 = vmatpush1.xpose.msra.mxu0 0.0
        %2007 = vmatprep.subr.mxu0 0.0
        %2008 = vmatpush1.xpose.msra.mxu0 0.0
        %2009 = vmatprep.subr.mxu0 0.0
        %2010 = vmatpush1.xpose.msra.mxu0 0.0
        %2011 = vmatprep.subr.mxu0 0.0
        %2012 = vmatpush1.xpose.msra.mxu0 0.0
        %2013 = vmatprep.subr.mxu0 0.0
        %2014 = vmatpush1.xpose.msra.mxu0 0.0
        %2015 = vmatprep.subr.mxu0 0.0
        %2016 = vmatpush1.xpose.msra.mxu0 0.0
        %2017 = vmatprep.subr.mxu0 0.0
        %2018 = vmatpush1.xpose.msra.mxu0 0.0
        %2019 = vmatprep.subr.mxu0 0.0
        %2020 = vmatpush1.xpose.msra.mxu0 0.0
        %2021 = vmatprep.subr.mxu0 0.0
        %2022 = vmatpush1.xpose.msra.mxu0 0.0
        %2023 = vmatprep.subr.mxu0 0.0
        %2024 = vmatpush1.xpose.msra.mxu0 0.0
        %2025 = vmatprep.subr.mxu0 0.0
        %2026 = vmatpush1.xpose.msra.mxu0 0.0
        %2027 = vmatprep.subr.mxu0 0.0
        %2028 = vmatpush1.xpose.msra.mxu0 0.0
        %2029 = vmatprep.subr.mxu0 0.0
        %2030 = vmatpush1.xpose.msra.mxu0 0.0
        %2031 = vmatprep.subr.mxu0 0.0
        %2032 = vmatpush1.xpose.msra.mxu0 0.0
        %2033 = vmatprep.mubr.f32.mxu0 0.0
        %2034 = vmatmul.mubr.f32.gmra.mrb[0].mxu0 %v1965
        %v2035 = vpop.f32.mrb[0].mxu0
        %v2036 = vadd.f32 %v1479, %v2035
        %v2037 = vpop.f32.mrb[0].mxu0
        %2038 = vdwg.mxu0
        %2040 = vrot.lane.b32.xlu0 %v1643, 96
        %v2041 = vpop.permute.xlu0 %2040
        %v2042 = vsel %vm1533, %v1643, 0
        %v2044 = vsel %vm1533, %v2041, 0
        %2046 = vmatprep.subr.mxu0 0.0
        %2047 = vmatpush1.xpose.msra.mxu0 %v2044
        %2048 = vmatprep.subr.mxu0 0.0
        %2049 = vmatpush1.xpose.msra.mxu0 0.0
        %2050 = vmatprep.subr.mxu0 0.0
        %2051 = vmatpush1.xpose.msra.mxu0 0.0
        %2052 = vmatprep.subr.mxu0 0.0
        %2053 = vmatpush1.xpose.msra.mxu0 0.0
        %2054 = vmatprep.subr.mxu0 0.0
        %2055 = vmatpush1.xpose.msra.mxu0 0.0
        %2056 = vmatprep.subr.mxu0 0.0
        %2057 = vmatpush1.xpose.msra.mxu0 0.0
        %2058 = vmatprep.subr.mxu0 0.0
        %2059 = vmatpush1.xpose.msra.mxu0 0.0
        %2060 = vmatprep.subr.mxu0 0.0
        %2061 = vmatpush1.xpose.msra.mxu0 0.0
        %2062 = vmatprep.subr.mxu0 0.0
        %2063 = vmatpush1.xpose.msra.mxu0 0.0
        %2064 = vmatprep.subr.mxu0 0.0
        %2065 = vmatpush1.xpose.msra.mxu0 0.0
        %2066 = vmatprep.subr.mxu0 0.0
        %2067 = vmatpush1.xpose.msra.mxu0 0.0
        %2068 = vmatprep.subr.mxu0 0.0
        %2069 = vmatpush1.xpose.msra.mxu0 0.0
        %2070 = vmatprep.subr.mxu0 0.0
        %2071 = vmatpush1.xpose.msra.mxu0 0.0
        %2072 = vmatprep.subr.mxu0 0.0
        %2073 = vmatpush1.xpose.msra.mxu0 0.0
        %2074 = vmatprep.subr.mxu0 0.0
        %2075 = vmatpush1.xpose.msra.mxu0 0.0
        %2076 = vmatprep.subr.mxu0 0.0
        %2077 = vmatpush1.xpose.msra.mxu0 0.0
        %2078 = vmatprep.subr.mxu0 0.0
        %2079 = vmatpush1.xpose.msra.mxu0 0.0
        %2080 = vmatprep.subr.mxu0 0.0
        %2081 = vmatpush1.xpose.msra.mxu0 0.0
        %2082 = vmatprep.subr.mxu0 0.0
        %2083 = vmatpush1.xpose.msra.mxu0 0.0
        %2084 = vmatprep.subr.mxu0 0.0
        %2085 = vmatpush1.xpose.msra.mxu0 0.0
        %2086 = vmatprep.subr.mxu0 0.0
        %2087 = vmatpush1.xpose.msra.mxu0 0.0
        %2088 = vmatprep.subr.mxu0 0.0
        %2089 = vmatpush1.xpose.msra.mxu0 0.0
        %2090 = vmatprep.subr.mxu0 0.0
        %2091 = vmatpush1.xpose.msra.mxu0 0.0
        %2092 = vmatprep.subr.mxu0 0.0
        %2093 = vmatpush1.xpose.msra.mxu0 0.0
        %2094 = vmatprep.subr.mxu0 0.0
        %2095 = vmatpush1.xpose.msra.mxu0 0.0
        %2096 = vmatprep.subr.mxu0 0.0
        %2097 = vmatpush1.xpose.msra.mxu0 0.0
        %2098 = vmatprep.subr.mxu0 0.0
        %2099 = vmatpush1.xpose.msra.mxu0 0.0
        %2100 = vmatprep.subr.mxu0 0.0
        %2101 = vmatpush1.xpose.msra.mxu0 0.0
        %2102 = vmatprep.subr.mxu0 0.0
        %2103 = vmatpush1.xpose.msra.mxu0 0.0
        %2104 = vmatprep.subr.mxu0 0.0
        %2105 = vmatpush1.xpose.msra.mxu0 0.0
        %2106 = vmatprep.subr.mxu0 0.0
        %2107 = vmatpush1.xpose.msra.mxu0 0.0
        %2108 = vmatprep.subr.mxu0 0.0
        %2109 = vmatpush1.xpose.msra.mxu0 0.0
        %2110 = vmatprep.mubr.f32.mxu0 0.0
        %2111 = vmatmul.mubr.f32.gmra.mrb[0].mxu0 %v2042
        %v2112 = vpop.f32.mrb[0].mxu0
        %v2113 = vadd.f32 %v1480, %v2112
        %v2114 = vpop.f32.mrb[0].mxu0
        %2115 = vdwg.mxu0
        %2117 = vrot.lane.b32.xlu0 %v1649, 96
        %v2118 = vpop.permute.xlu0 %2117
        %v2119 = vsel %vm1533, %v1649, 0
        %v2121 = vsel %vm1533, %v2118, 0
        %2123 = vmatprep.subr.mxu0 0.0
        %2124 = vmatpush1.xpose.msra.mxu0 %v2121
        %2125 = vmatprep.subr.mxu0 0.0
        %2126 = vmatpush1.xpose.msra.mxu0 0.0
        %2127 = vmatprep.subr.mxu0 0.0
        %2128 = vmatpush1.xpose.msra.mxu0 0.0
        %2129 = vmatprep.subr.mxu0 0.0
        %2130 = vmatpush1.xpose.msra.mxu0 0.0
        %2131 = vmatprep.subr.mxu0 0.0
        %2132 = vmatpush1.xpose.msra.mxu0 0.0
        %2133 = vmatprep.subr.mxu0 0.0
        %2134 = vmatpush1.xpose.msra.mxu0 0.0
        %2135 = vmatprep.subr.mxu0 0.0
        %2136 = vmatpush1.xpose.msra.mxu0 0.0
        %2137 = vmatprep.subr.mxu0 0.0
        %2138 = vmatpush1.xpose.msra.mxu0 0.0
        %2139 = vmatprep.subr.mxu0 0.0
        %2140 = vmatpush1.xpose.msra.mxu0 0.0
        %2141 = vmatprep.subr.mxu0 0.0
        %2142 = vmatpush1.xpose.msra.mxu0 0.0
        %2143 = vmatprep.subr.mxu0 0.0
        %2144 = vmatpush1.xpose.msra.mxu0 0.0
        %2145 = vmatprep.subr.mxu0 0.0
        %2146 = vmatpush1.xpose.msra.mxu0 0.0
        %2147 = vmatprep.subr.mxu0 0.0
        %2148 = vmatpush1.xpose.msra.mxu0 0.0
        %2149 = vmatprep.subr.mxu0 0.0
        %2150 = vmatpush1.xpose.msra.mxu0 0.0
        %2151 = vmatprep.subr.mxu0 0.0
        %2152 = vmatpush1.xpose.msra.mxu0 0.0
        %2153 = vmatprep.subr.mxu0 0.0
        %2154 = vmatpush1.xpose.msra.mxu0 0.0
        %2155 = vmatprep.subr.mxu0 0.0
        %2156 = vmatpush1.xpose.msra.mxu0 0.0
        %2157 = vmatprep.subr.mxu0 0.0
        %2158 = vmatpush1.xpose.msra.mxu0 0.0
        %2159 = vmatprep.subr.mxu0 0.0
        %2160 = vmatpush1.xpose.msra.mxu0 0.0
        %2161 = vmatprep.subr.mxu0 0.0
        %2162 = vmatpush1.xpose.msra.mxu0 0.0
        %2163 = vmatprep.subr.mxu0 0.0
        %2164 = vmatpush1.xpose.msra.mxu0 0.0
        %2165 = vmatprep.subr.mxu0 0.0
        %2166 = vmatpush1.xpose.msra.mxu0 0.0
        %2167 = vmatprep.subr.mxu0 0.0
        %2168 = vmatpush1.xpose.msra.mxu0 0.0
        %2169 = vmatprep.subr.mxu0 0.0
        %2170 = vmatpush1.xpose.msra.mxu0 0.0
        %2171 = vmatprep.subr.mxu0 0.0
        %2172 = vmatpush1.xpose.msra.mxu0 0.0
        %2173 = vmatprep.subr.mxu0 0.0
        %2174 = vmatpush1.xpose.msra.mxu0 0.0
        %2175 = vmatprep.subr.mxu0 0.0
        %2176 = vmatpush1.xpose.msra.mxu0 0.0
        %2177 = vmatprep.subr.mxu0 0.0
        %2178 = vmatpush1.xpose.msra.mxu0 0.0
        %2179 = vmatprep.subr.mxu0 0.0
        %2180 = vmatpush1.xpose.msra.mxu0 0.0
        %2181 = vmatprep.subr.mxu0 0.0
        %2182 = vmatpush1.xpose.msra.mxu0 0.0
        %2183 = vmatprep.subr.mxu0 0.0
        %2184 = vmatpush1.xpose.msra.mxu0 0.0
        %2185 = vmatprep.subr.mxu0 0.0
        %2186 = vmatpush1.xpose.msra.mxu0 0.0
        %2187 = vmatprep.mubr.f32.mxu0 0.0
        %2188 = vmatmul.mubr.f32.gmra.mrb[0].mxu0 %v2119
        %v2189 = vpop.f32.mrb[0].mxu0
        %v2190 = vadd.f32 %v1481, %v2189
        %v2191 = vpop.f32.mrb[0].mxu0
        %2192 = vdwg.mxu0
        %2194 = vrot.lane.b32.xlu0 %v1655, 96
        %v2195 = vpop.permute.xlu0 %2194
        %v2196 = vsel %vm1533, %v1655, 0
        %v2198 = vsel %vm1533, %v2195, 0
        %2200 = vmatprep.subr.mxu0 0.0
        %2201 = vmatpush1.xpose.msra.mxu0 %v2198
        %2202 = vmatprep.subr.mxu0 0.0
        %2203 = vmatpush1.xpose.msra.mxu0 0.0
        %2204 = vmatprep.subr.mxu0 0.0
        %2205 = vmatpush1.xpose.msra.mxu0 0.0
        %2206 = vmatprep.subr.mxu0 0.0
        %2207 = vmatpush1.xpose.msra.mxu0 0.0
        %2208 = vmatprep.subr.mxu0 0.0
        %2209 = vmatpush1.xpose.msra.mxu0 0.0
        %2210 = vmatprep.subr.mxu0 0.0
        %2211 = vmatpush1.xpose.msra.mxu0 0.0
        %2212 = vmatprep.subr.mxu0 0.0
        %2213 = vmatpush1.xpose.msra.mxu0 0.0
        %2214 = vmatprep.subr.mxu0 0.0
        %2215 = vmatpush1.xpose.msra.mxu0 0.0
        %2216 = vmatprep.subr.mxu0 0.0
        %2217 = vmatpush1.xpose.msra.mxu0 0.0
        %2218 = vmatprep.subr.mxu0 0.0
        %2219 = vmatpush1.xpose.msra.mxu0 0.0
        %2220 = vmatprep.subr.mxu0 0.0
        %2221 = vmatpush1.xpose.msra.mxu0 0.0
        %2222 = vmatprep.subr.mxu0 0.0
        %2223 = vmatpush1.xpose.msra.mxu0 0.0
        %2224 = vmatprep.subr.mxu0 0.0
        %2225 = vmatpush1.xpose.msra.mxu0 0.0
        %2226 = vmatprep.subr.mxu0 0.0
        %2227 = vmatpush1.xpose.msra.mxu0 0.0
        %2228 = vmatprep.subr.mxu0 0.0
        %2229 = vmatpush1.xpose.msra.mxu0 0.0
        %2230 = vmatprep.subr.mxu0 0.0
        %2231 = vmatpush1.xpose.msra.mxu0 0.0
        %2232 = vmatprep.subr.mxu0 0.0
        %2233 = vmatpush1.xpose.msra.mxu0 0.0
        %2234 = vmatprep.subr.mxu0 0.0
        %2235 = vmatpush1.xpose.msra.mxu0 0.0
        %2236 = vmatprep.subr.mxu0 0.0
        %2237 = vmatpush1.xpose.msra.mxu0 0.0
        %2238 = vmatprep.subr.mxu0 0.0
        %2239 = vmatpush1.xpose.msra.mxu0 0.0
        %2240 = vmatprep.subr.mxu0 0.0
        %2241 = vmatpush1.xpose.msra.mxu0 0.0
        %2242 = vmatprep.subr.mxu0 0.0
        %2243 = vmatpush1.xpose.msra.mxu0 0.0
        %2244 = vmatprep.subr.mxu0 0.0
        %2245 = vmatpush1.xpose.msra.mxu0 0.0
        %2246 = vmatprep.subr.mxu0 0.0
        %2247 = vmatpush1.xpose.msra.mxu0 0.0
        %2248 = vmatprep.subr.mxu0 0.0
        %2249 = vmatpush1.xpose.msra.mxu0 0.0
        %2250 = vmatprep.subr.mxu0 0.0
        %2251 = vmatpush1.xpose.msra.mxu0 0.0
        %2252 = vmatprep.subr.mxu0 0.0
        %2253 = vmatpush1.xpose.msra.mxu0 0.0
        %2254 = vmatprep.subr.mxu0 0.0
        %2255 = vmatpush1.xpose.msra.mxu0 0.0
        %2256 = vmatprep.subr.mxu0 0.0
        %2257 = vmatpush1.xpose.msra.mxu0 0.0
        %2258 = vmatprep.subr.mxu0 0.0
        %2259 = vmatpush1.xpose.msra.mxu0 0.0
        %2260 = vmatprep.subr.mxu0 0.0
        %2261 = vmatpush1.xpose.msra.mxu0 0.0
        %2262 = vmatprep.subr.mxu0 0.0
        %2263 = vmatpush1.xpose.msra.mxu0 0.0
        %2264 = vmatprep.mubr.f32.mxu0 0.0
        %2265 = vmatmul.mubr.f32.gmra.mrb[0].mxu0 %v2196
        %v2266 = vpop.f32.mrb[0].mxu0
        %v2267 = vadd.f32 %v1482, %v2266
        %v2268 = vpop.f32.mrb[0].mxu0
        %2269 = vdwg.mxu0
        %2271 = vrot.lane.b32.xlu0 %v1661, 96
        %v2272 = vpop.permute.xlu0 %2271
        %v2273 = vsel %vm1533, %v1661, 0
        %v2275 = vsel %vm1533, %v2272, 0
        %2277 = vmatprep.subr.mxu0 0.0
        %2278 = vmatpush1.xpose.msra.mxu0 %v2275
        %2279 = vmatprep.subr.mxu0 0.0
        %2280 = vmatpush1.xpose.msra.mxu0 0.0
        %2281 = vmatprep.subr.mxu0 0.0
        %2282 = vmatpush1.xpose.msra.mxu0 0.0
        %2283 = vmatprep.subr.mxu0 0.0
        %2284 = vmatpush1.xpose.msra.mxu0 0.0
        %2285 = vmatprep.subr.mxu0 0.0
        %2286 = vmatpush1.xpose.msra.mxu0 0.0
        %2287 = vmatprep.subr.mxu0 0.0
        %2288 = vmatpush1.xpose.msra.mxu0 0.0
        %2289 = vmatprep.subr.mxu0 0.0
        %2290 = vmatpush1.xpose.msra.mxu0 0.0
        %2291 = vmatprep.subr.mxu0 0.0
        %2292 = vmatpush1.xpose.msra.mxu0 0.0
        %2293 = vmatprep.subr.mxu0 0.0
        %2294 = vmatpush1.xpose.msra.mxu0 0.0
        %2295 = vmatprep.subr.mxu0 0.0
        %2296 = vmatpush1.xpose.msra.mxu0 0.0
        %2297 = vmatprep.subr.mxu0 0.0
        %2298 = vmatpush1.xpose.msra.mxu0 0.0
        %2299 = vmatprep.subr.mxu0 0.0
        %2300 = vmatpush1.xpose.msra.mxu0 0.0
        %2301 = vmatprep.subr.mxu0 0.0
        %2302 = vmatpush1.xpose.msra.mxu0 0.0
        %2303 = vmatprep.subr.mxu0 0.0
        %2304 = vmatpush1.xpose.msra.mxu0 0.0
        %2305 = vmatprep.subr.mxu0 0.0
        %2306 = vmatpush1.xpose.msra.mxu0 0.0
        %2307 = vmatprep.subr.mxu0 0.0
        %2308 = vmatpush1.xpose.msra.mxu0 0.0
        %2309 = vmatprep.subr.mxu0 0.0
        %2310 = vmatpush1.xpose.msra.mxu0 0.0
        %2311 = vmatprep.subr.mxu0 0.0
        %2312 = vmatpush1.xpose.msra.mxu0 0.0
        %2313 = vmatprep.subr.mxu0 0.0
        %2314 = vmatpush1.xpose.msra.mxu0 0.0
        %2315 = vmatprep.subr.mxu0 0.0
        %2316 = vmatpush1.xpose.msra.mxu0 0.0
        %2317 = vmatprep.subr.mxu0 0.0
        %2318 = vmatpush1.xpose.msra.mxu0 0.0
        %2319 = vmatprep.subr.mxu0 0.0
        %2320 = vmatpush1.xpose.msra.mxu0 0.0
        %2321 = vmatprep.subr.mxu0 0.0
        %2322 = vmatpush1.xpose.msra.mxu0 0.0
        %2323 = vmatprep.subr.mxu0 0.0
        %2324 = vmatpush1.xpose.msra.mxu0 0.0
        %2325 = vmatprep.subr.mxu0 0.0
        %2326 = vmatpush1.xpose.msra.mxu0 0.0
        %2327 = vmatprep.subr.mxu0 0.0
        %2328 = vmatpush1.xpose.msra.mxu0 0.0
        %2329 = vmatprep.subr.mxu0 0.0
        %2330 = vmatpush1.xpose.msra.mxu0 0.0
        %2331 = vmatprep.subr.mxu0 0.0
        %2332 = vmatpush1.xpose.msra.mxu0 0.0
        %2333 = vmatprep.subr.mxu0 0.0
        %2334 = vmatpush1.xpose.msra.mxu0 0.0
        %2335 = vmatprep.subr.mxu0 0.0
        %2336 = vmatpush1.xpose.msra.mxu0 0.0
        %2337 = vmatprep.subr.mxu0 0.0
        %2338 = vmatpush1.xpose.msra.mxu0 0.0
        %2339 = vmatprep.subr.mxu0 0.0
        %2340 = vmatpush1.xpose.msra.mxu0 0.0
        %2341 = vmatprep.mubr.f32.mxu0 0.0
        %2342 = vmatmul.mubr.f32.gmra.mrb[0].mxu0 %v2273
        %v2343 = vpop.f32.mrb[0].mxu0
        %v2344 = vadd.f32 %v1483, %v2343
        %v2345 = vpop.f32.mrb[0].mxu0
        %2346 = vdwg.mxu0
        %2348 = vrot.lane.b32.xlu0 %v1667, 96
        %v2349 = vpop.permute.xlu0 %2348
        %v2350 = vsel %vm1533, %v1667, 0
        %v2352 = vsel %vm1533, %v2349, 0
        %2354 = vmatprep.subr.mxu0 0.0
        %2355 = vmatpush1.xpose.msra.mxu0 %v2352
        %2356 = vmatprep.subr.mxu0 0.0
        %2357 = vmatpush1.xpose.msra.mxu0 0.0
        %2358 = vmatprep.subr.mxu0 0.0
        %2359 = vmatpush1.xpose.msra.mxu0 0.0
        %2360 = vmatprep.subr.mxu0 0.0
        %2361 = vmatpush1.xpose.msra.mxu0 0.0
        %2362 = vmatprep.subr.mxu0 0.0
        %2363 = vmatpush1.xpose.msra.mxu0 0.0
        %2364 = vmatprep.subr.mxu0 0.0
        %2365 = vmatpush1.xpose.msra.mxu0 0.0
        %2366 = vmatprep.subr.mxu0 0.0
        %2367 = vmatpush1.xpose.msra.mxu0 0.0
        %2368 = vmatprep.subr.mxu0 0.0
        %2369 = vmatpush1.xpose.msra.mxu0 0.0
        %2370 = vmatprep.subr.mxu0 0.0
        %2371 = vmatpush1.xpose.msra.mxu0 0.0
        %2372 = vmatprep.subr.mxu0 0.0
        %2373 = vmatpush1.xpose.msra.mxu0 0.0
        %2374 = vmatprep.subr.mxu0 0.0
        %2375 = vmatpush1.xpose.msra.mxu0 0.0
        %2376 = vmatprep.subr.mxu0 0.0
        %2377 = vmatpush1.xpose.msra.mxu0 0.0
        %2378 = vmatprep.subr.mxu0 0.0
        %2379 = vmatpush1.xpose.msra.mxu0 0.0
        %2380 = vmatprep.subr.mxu0 0.0
        %2381 = vmatpush1.xpose.msra.mxu0 0.0
        %2382 = vmatprep.subr.mxu0 0.0
        %2383 = vmatpush1.xpose.msra.mxu0 0.0
        %2384 = vmatprep.subr.mxu0 0.0
        %2385 = vmatpush1.xpose.msra.mxu0 0.0
        %2386 = vmatprep.subr.mxu0 0.0
        %2387 = vmatpush1.xpose.msra.mxu0 0.0
        %2388 = vmatprep.subr.mxu0 0.0
        %2389 = vmatpush1.xpose.msra.mxu0 0.0
        %2390 = vmatprep.subr.mxu0 0.0
        %2391 = vmatpush1.xpose.msra.mxu0 0.0
        %2392 = vmatprep.subr.mxu0 0.0
        %2393 = vmatpush1.xpose.msra.mxu0 0.0
        %2394 = vmatprep.subr.mxu0 0.0
        %2395 = vmatpush1.xpose.msra.mxu0 0.0
        %2396 = vmatprep.subr.mxu0 0.0
        %2397 = vmatpush1.xpose.msra.mxu0 0.0
        %2398 = vmatprep.subr.mxu0 0.0
        %2399 = vmatpush1.xpose.msra.mxu0 0.0
        %2400 = vmatprep.subr.mxu0 0.0
        %2401 = vmatpush1.xpose.msra.mxu0 0.0
        %2402 = vmatprep.subr.mxu0 0.0
        %2403 = vmatpush1.xpose.msra.mxu0 0.0
        %2404 = vmatprep.subr.mxu0 0.0
        %2405 = vmatpush1.xpose.msra.mxu0 0.0
        %2406 = vmatprep.subr.mxu0 0.0
        %2407 = vmatpush1.xpose.msra.mxu0 0.0
        %2408 = vmatprep.subr.mxu0 0.0
        %2409 = vmatpush1.xpose.msra.mxu0 0.0
        %2410 = vmatprep.subr.mxu0 0.0
        %2411 = vmatpush1.xpose.msra.mxu0 0.0
        %2412 = vmatprep.subr.mxu0 0.0
        %2413 = vmatpush1.xpose.msra.mxu0 0.0
        %2414 = vmatprep.subr.mxu0 0.0
        %2415 = vmatpush1.xpose.msra.mxu0 0.0
        %2416 = vmatprep.subr.mxu0 0.0
        %2417 = vmatpush1.xpose.msra.mxu0 0.0
        %2418 = vmatprep.mubr.f32.mxu0 0.0
        %2419 = vmatmul.mubr.f32.gmra.mrb[0].mxu0 %v2350
        %v2420 = vpop.f32.mrb[0].mxu0
        %v2421 = vadd.f32 %v1484, %v2420
        %v2422 = vpop.f32.mrb[0].mxu0
        %2423 = vdwg.mxu0
        %v2424 = vsel %vm1324, %v1882, -inf
        %2425 = vmax.xlane.f32.xlu0 %v2424
        %v2426 = vpop.xlane.xlu0 %2425
        %v2427 = vsel %vm1324, %v1959, -inf
        %2428 = vmax.xlane.f32.xlu0 %v2427
        %v2429 = vpop.xlane.xlu0 %2428
        %v2430 = vsel %vm1324, %v2036, -inf
        %2431 = vmax.xlane.f32.xlu0 %v2430
        %v2432 = vpop.xlane.xlu0 %2431
        %v2433 = vsel %vm1324, %v2113, -inf
        %2434 = vmax.xlane.f32.xlu0 %v2433
        %v2435 = vpop.xlane.xlu0 %2434
        %v2436 = vsel %vm1324, %v2190, -inf
        %2437 = vmax.xlane.f32.xlu0 %v2436
        %v2438 = vpop.xlane.xlu0 %2437
        %v2439 = vsel %vm1324, %v2267, -inf
        %2440 = vmax.xlane.f32.xlu0 %v2439
        %v2441 = vpop.xlane.xlu0 %2440
        %v2442 = vsel %vm1324, %v2344, -inf
        %2443 = vmax.xlane.f32.xlu0 %v2442
        %v2444 = vpop.xlane.xlu0 %2443
        %v2445 = vsel %vm1324, %v2421, -inf
        %2446 = vmax.xlane.f32.xlu0 %v2445
        %v2447 = vpop.xlane.xlu0 %2446
        %v2448 = vsub.f32 %v1882, %v2426
        %v2449 = vsub.f32 %v1959, %v2429
        %v2450 = vsub.f32 %v2036, %v2432
        %v2451 = vsub.f32 %v2113, %v2435
        %v2452 = vsub.f32 %v2190, %v2438
        %v2453 = vsub.f32 %v2267, %v2441
        %v2454 = vsub.f32 %v2344, %v2444
        %v2455 = vsub.f32 %v2421, %v2447
        %v2456 = vmul.f32 %v2448, 1.442695
        %v2457 = vpow.pop %v2456
        %v2458 = vmul.f32 %v2449, 1.442695
        %v2459 = vpow.pop %v2458
        %v2460 = vmul.f32 %v2450, 1.442695
        %v2461 = vpow.pop %v2460
        %v2462 = vmul.f32 %v2451, 1.442695
        %v2463 = vpow.pop %v2462
        %v2464 = vmul.f32 %v2452, 1.442695
        %v2465 = vpow.pop %v2464
        %v2466 = vmul.f32 %v2453, 1.442695
        %v2467 = vpow.pop %v2466
        %v2468 = vmul.f32 %v2454, 1.442695
        %v2469 = vpow.pop %v2468
        %v2470 = vmul.f32 %v2455, 1.442695
        %v2471 = vpow.pop %v2470
        %v2472 = vsel %vm1324, %v2457, 0.0
        %2473 = vadd.xlane.f32.xlu0 %v2472
        %v2474 = vpop.xlane.xlu0 %2473
        %v2475 = vsel %vm1324, %v2459, 0.0
        %2476 = vadd.xlane.f32.xlu0 %v2475
        %v2477 = vpop.xlane.xlu0 %2476
        %v2478 = vsel %vm1324, %v2461, 0.0
        %2479 = vadd.xlane.f32.xlu0 %v2478
        %v2480 = vpop.xlane.xlu0 %2479
        %v2481 = vsel %vm1324, %v2463, 0.0
        %2482 = vadd.xlane.f32.xlu0 %v2481
        %v2483 = vpop.xlane.xlu0 %2482
        %v2484 = vsel %vm1324, %v2465, 0.0
        %2485 = vadd.xlane.f32.xlu0 %v2484
        %v2486 = vpop.xlane.xlu0 %2485
        %v2487 = vsel %vm1324, %v2467, 0.0
        %2488 = vadd.xlane.f32.xlu0 %v2487
        %v2489 = vpop.xlane.xlu0 %2488
        %v2490 = vsel %vm1324, %v2469, 0.0
        %2491 = vadd.xlane.f32.xlu0 %v2490
        %v2492 = vpop.xlane.xlu0 %2491
        %v2493 = vsel %vm1324, %v2471, 0.0
        %2494 = vadd.xlane.f32.xlu0 %v2493
        %v2495 = vpop.xlane.xlu0 %2494
        %v2496 = vrcp.pop %v2474
        %v2497 = vrcp.pop %v2477
        %v2498 = vrcp.pop %v2480
        %v2499 = vrcp.pop %v2483
        %v2500 = vrcp.pop %v2486
        %v2501 = vrcp.pop %v2489
        %v2502 = vrcp.pop %v2492
        %v2503 = vrcp.pop %v2495
        %v2504 = vmul.f32 %v2457, %v2496
        %v2505 = vmul.f32 %v2459, %v2497
        %v2506 = vmul.f32 %v2461, %v2498
        %v2507 = vmul.f32 %v2463, %v2499
        %v2508 = vmul.f32 %v2465, %v2500
        %v2509 = vmul.f32 %v2467, %v2501
        %v2510 = vmul.f32 %v2469, %v2502
        %v2511 = vmul.f32 %v2471, %v2503
        %2513 = vrot.lane.b32.xlu0 %v1762, 96
        %v2514 = vpop.permute.xlu0 %2513
        %v2515 = vsel %vm1533, %v1762, 0
        %v2517 = vsel %vm1533, %v2514, 0
        %2519 = vmatprep.subr.mxu0 0.0
        %2520 = vmatpush1.xpose.msra.mxu0 %v2517
        %2521 = vmatprep.subr.mxu0 0.0
        %2522 = vmatpush1.xpose.msra.mxu0 0.0
        %2523 = vmatprep.subr.mxu0 0.0
        %2524 = vmatpush1.xpose.msra.mxu0 0.0
        %2525 = vmatprep.subr.mxu0 0.0
        %2526 = vmatpush1.xpose.msra.mxu0 0.0
        %2527 = vmatprep.subr.mxu0 0.0
        %2528 = vmatpush1.xpose.msra.mxu0 0.0
        %2529 = vmatprep.subr.mxu0 0.0
        %2530 = vmatpush1.xpose.msra.mxu0 0.0
        %2531 = vmatprep.subr.mxu0 0.0
        %2532 = vmatpush1.xpose.msra.mxu0 0.0
        %2533 = vmatprep.subr.mxu0 0.0
        %2534 = vmatpush1.xpose.msra.mxu0 0.0
        %2535 = vmatprep.subr.mxu0 0.0
        %2536 = vmatpush1.xpose.msra.mxu0 0.0
        %2537 = vmatprep.subr.mxu0 0.0
        %2538 = vmatpush1.xpose.msra.mxu0 0.0
        %2539 = vmatprep.subr.mxu0 0.0
        %2540 = vmatpush1.xpose.msra.mxu0 0.0
        %2541 = vmatprep.subr.mxu0 0.0
        %2542 = vmatpush1.xpose.msra.mxu0 0.0
        %2543 = vmatprep.subr.mxu0 0.0
        %2544 = vmatpush1.xpose.msra.mxu0 0.0
        %2545 = vmatprep.subr.mxu0 0.0
        %2546 = vmatpush1.xpose.msra.mxu0 0.0
        %2547 = vmatprep.subr.mxu0 0.0
        %2548 = vmatpush1.xpose.msra.mxu0 0.0
        %2549 = vmatprep.subr.mxu0 0.0
        %2550 = vmatpush1.xpose.msra.mxu0 0.0
        %2551 = vmatprep.subr.mxu0 0.0
        %2552 = vmatpush1.xpose.msra.mxu0 0.0
        %2553 = vmatprep.subr.mxu0 0.0
        %2554 = vmatpush1.xpose.msra.mxu0 0.0
        %2555 = vmatprep.subr.mxu0 0.0
        %2556 = vmatpush1.xpose.msra.mxu0 0.0
        %2557 = vmatprep.subr.mxu0 0.0
        %2558 = vmatpush1.xpose.msra.mxu0 0.0
        %2559 = vmatprep.subr.mxu0 0.0
        %2560 = vmatpush1.xpose.msra.mxu0 0.0
        %2561 = vmatprep.subr.mxu0 0.0
        %2562 = vmatpush1.xpose.msra.mxu0 0.0
        %2563 = vmatprep.subr.mxu0 0.0
        %2564 = vmatpush1.xpose.msra.mxu0 0.0
        %2565 = vmatprep.subr.mxu0 0.0
        %2566 = vmatpush1.xpose.msra.mxu0 0.0
        %2567 = vmatprep.subr.mxu0 0.0
        %2568 = vmatpush1.xpose.msra.mxu0 0.0
        %2569 = vmatprep.subr.mxu0 0.0
        %2570 = vmatpush1.xpose.msra.mxu0 0.0
        %2571 = vmatprep.subr.mxu0 0.0
        %2572 = vmatpush1.xpose.msra.mxu0 0.0
        %2573 = vmatprep.subr.mxu0 0.0
        %2574 = vmatpush1.xpose.msra.mxu0 0.0
        %2575 = vmatprep.subr.mxu0 0.0
        %2576 = vmatpush1.xpose.msra.mxu0 0.0
        %2577 = vmatprep.subr.mxu0 0.0
        %2578 = vmatpush1.xpose.msra.mxu0 0.0
        %2579 = vmatprep.subr.mxu0 0.0
        %2580 = vmatpush1.xpose.msra.mxu0 0.0
        %2581 = vmatprep.subr.mxu0 0.0
        %2582 = vmatpush1.xpose.msra.mxu0 0.0
        %2583 = vmatprep.mubr.f32.mxu0 0.0
        %2584 = vmatmul.mubr.f32.gmra.mrb[0].mxu0 %v2515
        %v2585 = vpop.f32.mrb[0].mxu0
        %v2586 = vadd.f32 %v1493, %v2585
        %v2587 = vpop.f32.mrb[0].mxu0
        %2588 = vdwg.mxu0
        %2590 = vrot.lane.b32.xlu0 %v1768, 96
        %v2591 = vpop.permute.xlu0 %2590
        %v2592 = vsel %vm1533, %v1768, 0
        %v2594 = vsel %vm1533, %v2591, 0
        %2596 = vmatprep.subr.mxu0 0.0
        %2597 = vmatpush1.xpose.msra.mxu0 %v2594
        %2598 = vmatprep.subr.mxu0 0.0
        %2599 = vmatpush1.xpose.msra.mxu0 0.0
        %2600 = vmatprep.subr.mxu0 0.0
        %2601 = vmatpush1.xpose.msra.mxu0 0.0
        %2602 = vmatprep.subr.mxu0 0.0
        %2603 = vmatpush1.xpose.msra.mxu0 0.0
        %2604 = vmatprep.subr.mxu0 0.0
        %2605 = vmatpush1.xpose.msra.mxu0 0.0
        %2606 = vmatprep.subr.mxu0 0.0
        %2607 = vmatpush1.xpose.msra.mxu0 0.0
        %2608 = vmatprep.subr.mxu0 0.0
        %2609 = vmatpush1.xpose.msra.mxu0 0.0
        %2610 = vmatprep.subr.mxu0 0.0
        %2611 = vmatpush1.xpose.msra.mxu0 0.0
        %2612 = vmatprep.subr.mxu0 0.0
        %2613 = vmatpush1.xpose.msra.mxu0 0.0
        %2614 = vmatprep.subr.mxu0 0.0
        %2615 = vmatpush1.xpose.msra.mxu0 0.0
        %2616 = vmatprep.subr.mxu0 0.0
        %2617 = vmatpush1.xpose.msra.mxu0 0.0
        %2618 = vmatprep.subr.mxu0 0.0
        %2619 = vmatpush1.xpose.msra.mxu0 0.0
        %2620 = vmatprep.subr.mxu0 0.0
        %2621 = vmatpush1.xpose.msra.mxu0 0.0
        %2622 = vmatprep.subr.mxu0 0.0
        %2623 = vmatpush1.xpose.msra.mxu0 0.0
        %2624 = vmatprep.subr.mxu0 0.0
        %2625 = vmatpush1.xpose.msra.mxu0 0.0
        %2626 = vmatprep.subr.mxu0 0.0
        %2627 = vmatpush1.xpose.msra.mxu0 0.0
        %2628 = vmatprep.subr.mxu0 0.0
        %2629 = vmatpush1.xpose.msra.mxu0 0.0
        %2630 = vmatprep.subr.mxu0 0.0
        %2631 = vmatpush1.xpose.msra.mxu0 0.0
        %2632 = vmatprep.subr.mxu0 0.0
        %2633 = vmatpush1.xpose.msra.mxu0 0.0
        %2634 = vmatprep.subr.mxu0 0.0
        %2635 = vmatpush1.xpose.msra.mxu0 0.0
        %2636 = vmatprep.subr.mxu0 0.0
        %2637 = vmatpush1.xpose.msra.mxu0 0.0
        %2638 = vmatprep.subr.mxu0 0.0
        %2639 = vmatpush1.xpose.msra.mxu0 0.0
        %2640 = vmatprep.subr.mxu0 0.0
        %2641 = vmatpush1.xpose.msra.mxu0 0.0
        %2642 = vmatprep.subr.mxu0 0.0
        %2643 = vmatpush1.xpose.msra.mxu0 0.0
        %2644 = vmatprep.subr.mxu0 0.0
        %2645 = vmatpush1.xpose.msra.mxu0 0.0
        %2646 = vmatprep.subr.mxu0 0.0
        %2647 = vmatpush1.xpose.msra.mxu0 0.0
        %2648 = vmatprep.subr.mxu0 0.0
        %2649 = vmatpush1.xpose.msra.mxu0 0.0
        %2650 = vmatprep.subr.mxu0 0.0
        %2651 = vmatpush1.xpose.msra.mxu0 0.0
        %2652 = vmatprep.subr.mxu0 0.0
        %2653 = vmatpush1.xpose.msra.mxu0 0.0
        %2654 = vmatprep.subr.mxu0 0.0
        %2655 = vmatpush1.xpose.msra.mxu0 0.0
        %2656 = vmatprep.subr.mxu0 0.0
        %2657 = vmatpush1.xpose.msra.mxu0 0.0
        %2658 = vmatprep.subr.mxu0 0.0
        %2659 = vmatpush1.xpose.msra.mxu0 0.0
        %2660 = vmatprep.mubr.f32.mxu0 0.0
        %2661 = vmatmul.mubr.f32.gmra.mrb[0].mxu0 %v2592
        %v2662 = vpop.f32.mrb[0].mxu0
        %v2663 = vadd.f32 %v1494, %v2662
        %v2664 = vpop.f32.mrb[0].mxu0
        %2665 = vdwg.mxu0
        %2667 = vrot.lane.b32.xlu0 %v1774, 96
        %v2668 = vpop.permute.xlu0 %2667
        %v2669 = vsel %vm1533, %v1774, 0
        %v2671 = vsel %vm1533, %v2668, 0
        %2673 = vmatprep.subr.mxu0 0.0
        %2674 = vmatpush1.xpose.msra.mxu0 %v2671
        %2675 = vmatprep.subr.mxu0 0.0
        %2676 = vmatpush1.xpose.msra.mxu0 0.0
        %2677 = vmatprep.subr.mxu0 0.0
        %2678 = vmatpush1.xpose.msra.mxu0 0.0
        %2679 = vmatprep.subr.mxu0 0.0
        %2680 = vmatpush1.xpose.msra.mxu0 0.0
        %2681 = vmatprep.subr.mxu0 0.0
        %2682 = vmatpush1.xpose.msra.mxu0 0.0
        %2683 = vmatprep.subr.mxu0 0.0
        %2684 = vmatpush1.xpose.msra.mxu0 0.0
        %2685 = vmatprep.subr.mxu0 0.0
        %2686 = vmatpush1.xpose.msra.mxu0 0.0
        %2687 = vmatprep.subr.mxu0 0.0
        %2688 = vmatpush1.xpose.msra.mxu0 0.0
        %2689 = vmatprep.subr.mxu0 0.0
        %2690 = vmatpush1.xpose.msra.mxu0 0.0
        %2691 = vmatprep.subr.mxu0 0.0
        %2692 = vmatpush1.xpose.msra.mxu0 0.0
        %2693 = vmatprep.subr.mxu0 0.0
        %2694 = vmatpush1.xpose.msra.mxu0 0.0
        %2695 = vmatprep.subr.mxu0 0.0
        %2696 = vmatpush1.xpose.msra.mxu0 0.0
        %2697 = vmatprep.subr.mxu0 0.0
        %2698 = vmatpush1.xpose.msra.mxu0 0.0
        %2699 = vmatprep.subr.mxu0 0.0
        %2700 = vmatpush1.xpose.msra.mxu0 0.0
        %2701 = vmatprep.subr.mxu0 0.0
        %2702 = vmatpush1.xpose.msra.mxu0 0.0
        %2703 = vmatprep.subr.mxu0 0.0
        %2704 = vmatpush1.xpose.msra.mxu0 0.0
        %2705 = vmatprep.subr.mxu0 0.0
        %2706 = vmatpush1.xpose.msra.mxu0 0.0
        %2707 = vmatprep.subr.mxu0 0.0
        %2708 = vmatpush1.xpose.msra.mxu0 0.0
        %2709 = vmatprep.subr.mxu0 0.0
        %2710 = vmatpush1.xpose.msra.mxu0 0.0
        %2711 = vmatprep.subr.mxu0 0.0
        %2712 = vmatpush1.xpose.msra.mxu0 0.0
        %2713 = vmatprep.subr.mxu0 0.0
        %2714 = vmatpush1.xpose.msra.mxu0 0.0
        %2715 = vmatprep.subr.mxu0 0.0
        %2716 = vmatpush1.xpose.msra.mxu0 0.0
        %2717 = vmatprep.subr.mxu0 0.0
        %2718 = vmatpush1.xpose.msra.mxu0 0.0
        %2719 = vmatprep.subr.mxu0 0.0
        %2720 = vmatpush1.xpose.msra.mxu0 0.0
        %2721 = vmatprep.subr.mxu0 0.0
        %2722 = vmatpush1.xpose.msra.mxu0 0.0
        %2723 = vmatprep.subr.mxu0 0.0
        %2724 = vmatpush1.xpose.msra.mxu0 0.0
        %2725 = vmatprep.subr.mxu0 0.0
        %2726 = vmatpush1.xpose.msra.mxu0 0.0
        %2727 = vmatprep.subr.mxu0 0.0
        %2728 = vmatpush1.xpose.msra.mxu0 0.0
        %2729 = vmatprep.subr.mxu0 0.0
        %2730 = vmatpush1.xpose.msra.mxu0 0.0
        %2731 = vmatprep.subr.mxu0 0.0
        %2732 = vmatpush1.xpose.msra.mxu0 0.0
        %2733 = vmatprep.subr.mxu0 0.0
        %2734 = vmatpush1.xpose.msra.mxu0 0.0
        %2735 = vmatprep.subr.mxu0 0.0
        %2736 = vmatpush1.xpose.msra.mxu0 0.0
        %2737 = vmatprep.mubr.f32.mxu0 0.0
        %2738 = vmatmul.mubr.f32.gmra.mrb[0].mxu0 %v2669
        %v2739 = vpop.f32.mrb[0].mxu0
        %v2740 = vadd.f32 %v1495, %v2739
        %v2741 = vpop.f32.mrb[0].mxu0
        %2742 = vdwg.mxu0
        %2744 = vrot.lane.b32.xlu0 %v1780, 96
        %v2745 = vpop.permute.xlu0 %2744
        %v2746 = vsel %vm1533, %v1780, 0
        %v2748 = vsel %vm1533, %v2745, 0
        %2750 = vmatprep.subr.mxu0 0.0
        %2751 = vmatpush1.xpose.msra.mxu0 %v2748
        %2752 = vmatprep.subr.mxu0 0.0
        %2753 = vmatpush1.xpose.msra.mxu0 0.0
        %2754 = vmatprep.subr.mxu0 0.0
        %2755 = vmatpush1.xpose.msra.mxu0 0.0
        %2756 = vmatprep.subr.mxu0 0.0
        %2757 = vmatpush1.xpose.msra.mxu0 0.0
        %2758 = vmatprep.subr.mxu0 0.0
        %2759 = vmatpush1.xpose.msra.mxu0 0.0
        %2760 = vmatprep.subr.mxu0 0.0
        %2761 = vmatpush1.xpose.msra.mxu0 0.0
        %2762 = vmatprep.subr.mxu0 0.0
        %2763 = vmatpush1.xpose.msra.mxu0 0.0
        %2764 = vmatprep.subr.mxu0 0.0
        %2765 = vmatpush1.xpose.msra.mxu0 0.0
        %2766 = vmatprep.subr.mxu0 0.0
        %2767 = vmatpush1.xpose.msra.mxu0 0.0
        %2768 = vmatprep.subr.mxu0 0.0
        %2769 = vmatpush1.xpose.msra.mxu0 0.0
        %2770 = vmatprep.subr.mxu0 0.0
        %2771 = vmatpush1.xpose.msra.mxu0 0.0
        %2772 = vmatprep.subr.mxu0 0.0
        %2773 = vmatpush1.xpose.msra.mxu0 0.0
        %2774 = vmatprep.subr.mxu0 0.0
        %2775 = vmatpush1.xpose.msra.mxu0 0.0
        %2776 = vmatprep.subr.mxu0 0.0
        %2777 = vmatpush1.xpose.msra.mxu0 0.0
        %2778 = vmatprep.subr.mxu0 0.0
        %2779 = vmatpush1.xpose.msra.mxu0 0.0
        %2780 = vmatprep.subr.mxu0 0.0
        %2781 = vmatpush1.xpose.msra.mxu0 0.0
        %2782 = vmatprep.subr.mxu0 0.0
        %2783 = vmatpush1.xpose.msra.mxu0 0.0
        %2784 = vmatprep.subr.mxu0 0.0
        %2785 = vmatpush1.xpose.msra.mxu0 0.0
        %2786 = vmatprep.subr.mxu0 0.0
        %2787 = vmatpush1.xpose.msra.mxu0 0.0
        %2788 = vmatprep.subr.mxu0 0.0
        %2789 = vmatpush1.xpose.msra.mxu0 0.0
        %2790 = vmatprep.subr.mxu0 0.0
        %2791 = vmatpush1.xpose.msra.mxu0 0.0
        %2792 = vmatprep.subr.mxu0 0.0
        %2793 = vmatpush1.xpose.msra.mxu0 0.0
        %2794 = vmatprep.subr.mxu0 0.0
        %2795 = vmatpush1.xpose.msra.mxu0 0.0
        %2796 = vmatprep.subr.mxu0 0.0
        %2797 = vmatpush1.xpose.msra.mxu0 0.0
        %2798 = vmatprep.subr.mxu0 0.0
        %2799 = vmatpush1.xpose.msra.mxu0 0.0
        %2800 = vmatprep.subr.mxu0 0.0
        %2801 = vmatpush1.xpose.msra.mxu0 0.0
        %2802 = vmatprep.subr.mxu0 0.0
        %2803 = vmatpush1.xpose.msra.mxu0 0.0
        %2804 = vmatprep.subr.mxu0 0.0
        %2805 = vmatpush1.xpose.msra.mxu0 0.0
        %2806 = vmatprep.subr.mxu0 0.0
        %2807 = vmatpush1.xpose.msra.mxu0 0.0
        %2808 = vmatprep.subr.mxu0 0.0
        %2809 = vmatpush1.xpose.msra.mxu0 0.0
        %2810 = vmatprep.subr.mxu0 0.0
        %2811 = vmatpush1.xpose.msra.mxu0 0.0
        %2812 = vmatprep.subr.mxu0 0.0
        %2813 = vmatpush1.xpose.msra.mxu0 0.0
        %2814 = vmatprep.mubr.f32.mxu0 0.0
        %2815 = vmatmul.mubr.f32.gmra.mrb[0].mxu0 %v2746
        %v2816 = vpop.f32.mrb[0].mxu0
        %v2817 = vadd.f32 %v1496, %v2816
        %v2818 = vpop.f32.mrb[0].mxu0
        %2819 = vdwg.mxu0
        %2821 = vrot.lane.b32.xlu0 %v1786, 96
        %v2822 = vpop.permute.xlu0 %2821
        %v2823 = vsel %vm1533, %v1786, 0
        %v2825 = vsel %vm1533, %v2822, 0
        %2827 = vmatprep.subr.mxu0 0.0
        %2828 = vmatpush1.xpose.msra.mxu0 %v2825
        %2829 = vmatprep.subr.mxu0 0.0
        %2830 = vmatpush1.xpose.msra.mxu0 0.0
        %2831 = vmatprep.subr.mxu0 0.0
        %2832 = vmatpush1.xpose.msra.mxu0 0.0
        %2833 = vmatprep.subr.mxu0 0.0
        %2834 = vmatpush1.xpose.msra.mxu0 0.0
        %2835 = vmatprep.subr.mxu0 0.0
        %2836 = vmatpush1.xpose.msra.mxu0 0.0
        %2837 = vmatprep.subr.mxu0 0.0
        %2838 = vmatpush1.xpose.msra.mxu0 0.0
        %2839 = vmatprep.subr.mxu0 0.0
        %2840 = vmatpush1.xpose.msra.mxu0 0.0
        %2841 = vmatprep.subr.mxu0 0.0
        %2842 = vmatpush1.xpose.msra.mxu0 0.0
        %2843 = vmatprep.subr.mxu0 0.0
        %2844 = vmatpush1.xpose.msra.mxu0 0.0
        %2845 = vmatprep.subr.mxu0 0.0
        %2846 = vmatpush1.xpose.msra.mxu0 0.0
        %2847 = vmatprep.subr.mxu0 0.0
        %2848 = vmatpush1.xpose.msra.mxu0 0.0
        %2849 = vmatprep.subr.mxu0 0.0
        %2850 = vmatpush1.xpose.msra.mxu0 0.0
        %2851 = vmatprep.subr.mxu0 0.0
        %2852 = vmatpush1.xpose.msra.mxu0 0.0
        %2853 = vmatprep.subr.mxu0 0.0
        %2854 = vmatpush1.xpose.msra.mxu0 0.0
        %2855 = vmatprep.subr.mxu0 0.0
        %2856 = vmatpush1.xpose.msra.mxu0 0.0
        %2857 = vmatprep.subr.mxu0 0.0
        %2858 = vmatpush1.xpose.msra.mxu0 0.0
        %2859 = vmatprep.subr.mxu0 0.0
        %2860 = vmatpush1.xpose.msra.mxu0 0.0
        %2861 = vmatprep.subr.mxu0 0.0
        %2862 = vmatpush1.xpose.msra.mxu0 0.0
        %2863 = vmatprep.subr.mxu0 0.0
        %2864 = vmatpush1.xpose.msra.mxu0 0.0
        %2865 = vmatprep.subr.mxu0 0.0
        %2866 = vmatpush1.xpose.msra.mxu0 0.0
        %2867 = vmatprep.subr.mxu0 0.0
        %2868 = vmatpush1.xpose.msra.mxu0 0.0
        %2869 = vmatprep.subr.mxu0 0.0
        %2870 = vmatpush1.xpose.msra.mxu0 0.0
        %2871 = vmatprep.subr.mxu0 0.0
        %2872 = vmatpush1.xpose.msra.mxu0 0.0
        %2873 = vmatprep.subr.mxu0 0.0
        %2874 = vmatpush1.xpose.msra.mxu0 0.0
        %2875 = vmatprep.subr.mxu0 0.0
        %2876 = vmatpush1.xpose.msra.mxu0 0.0
        %2877 = vmatprep.subr.mxu0 0.0
        %2878 = vmatpush1.xpose.msra.mxu0 0.0
        %2879 = vmatprep.subr.mxu0 0.0
        %2880 = vmatpush1.xpose.msra.mxu0 0.0
        %2881 = vmatprep.subr.mxu0 0.0
        %2882 = vmatpush1.xpose.msra.mxu0 0.0
        %2883 = vmatprep.subr.mxu0 0.0
        %2884 = vmatpush1.xpose.msra.mxu0 0.0
        %2885 = vmatprep.subr.mxu0 0.0
        %2886 = vmatpush1.xpose.msra.mxu0 0.0
        %2887 = vmatprep.subr.mxu0 0.0
        %2888 = vmatpush1.xpose.msra.mxu0 0.0
        %2889 = vmatprep.subr.mxu0 0.0
        %2890 = vmatpush1.xpose.msra.mxu0 0.0
        %2891 = vmatprep.mubr.f32.mxu0 0.0
        %2892 = vmatmul.mubr.f32.gmra.mrb[0].mxu0 %v2823
        %v2893 = vpop.f32.mrb[0].mxu0
        %v2894 = vadd.f32 %v1497, %v2893
        %v2895 = vpop.f32.mrb[0].mxu0
        %2896 = vdwg.mxu0
        %2898 = vrot.lane.b32.xlu0 %v1792, 96
        %v2899 = vpop.permute.xlu0 %2898
        %v2900 = vsel %vm1533, %v1792, 0
        %v2902 = vsel %vm1533, %v2899, 0
        %2904 = vmatprep.subr.mxu0 0.0
        %2905 = vmatpush1.xpose.msra.mxu0 %v2902
        %2906 = vmatprep.subr.mxu0 0.0
        %2907 = vmatpush1.xpose.msra.mxu0 0.0
        %2908 = vmatprep.subr.mxu0 0.0
        %2909 = vmatpush1.xpose.msra.mxu0 0.0
        %2910 = vmatprep.subr.mxu0 0.0
        %2911 = vmatpush1.xpose.msra.mxu0 0.0
        %2912 = vmatprep.subr.mxu0 0.0
        %2913 = vmatpush1.xpose.msra.mxu0 0.0
        %2914 = vmatprep.subr.mxu0 0.0
        %2915 = vmatpush1.xpose.msra.mxu0 0.0
        %2916 = vmatprep.subr.mxu0 0.0
        %2917 = vmatpush1.xpose.msra.mxu0 0.0
        %2918 = vmatprep.subr.mxu0 0.0
        %2919 = vmatpush1.xpose.msra.mxu0 0.0
        %2920 = vmatprep.subr.mxu0 0.0
        %2921 = vmatpush1.xpose.msra.mxu0 0.0
        %2922 = vmatprep.subr.mxu0 0.0
        %2923 = vmatpush1.xpose.msra.mxu0 0.0
        %2924 = vmatprep.subr.mxu0 0.0
        %2925 = vmatpush1.xpose.msra.mxu0 0.0
        %2926 = vmatprep.subr.mxu0 0.0
        %2927 = vmatpush1.xpose.msra.mxu0 0.0
        %2928 = vmatprep.subr.mxu0 0.0
        %2929 = vmatpush1.xpose.msra.mxu0 0.0
        %2930 = vmatprep.subr.mxu0 0.0
        %2931 = vmatpush1.xpose.msra.mxu0 0.0
        %2932 = vmatprep.subr.mxu0 0.0
        %2933 = vmatpush1.xpose.msra.mxu0 0.0
        %2934 = vmatprep.subr.mxu0 0.0
        %2935 = vmatpush1.xpose.msra.mxu0 0.0
        %2936 = vmatprep.subr.mxu0 0.0
        %2937 = vmatpush1.xpose.msra.mxu0 0.0
        %2938 = vmatprep.subr.mxu0 0.0
        %2939 = vmatpush1.xpose.msra.mxu0 0.0
        %2940 = vmatprep.subr.mxu0 0.0
        %2941 = vmatpush1.xpose.msra.mxu0 0.0
        %2942 = vmatprep.subr.mxu0 0.0
        %2943 = vmatpush1.xpose.msra.mxu0 0.0
        %2944 = vmatprep.subr.mxu0 0.0
        %2945 = vmatpush1.xpose.msra.mxu0 0.0
        %2946 = vmatprep.subr.mxu0 0.0
        %2947 = vmatpush1.xpose.msra.mxu0 0.0
        %2948 = vmatprep.subr.mxu0 0.0
        %2949 = vmatpush1.xpose.msra.mxu0 0.0
        %2950 = vmatprep.subr.mxu0 0.0
        %2951 = vmatpush1.xpose.msra.mxu0 0.0
        %2952 = vmatprep.subr.mxu0 0.0
        %2953 = vmatpush1.xpose.msra.mxu0 0.0
        %2954 = vmatprep.subr.mxu0 0.0
        %2955 = vmatpush1.xpose.msra.mxu0 0.0
        %2956 = vmatprep.subr.mxu0 0.0
        %2957 = vmatpush1.xpose.msra.mxu0 0.0
        %2958 = vmatprep.subr.mxu0 0.0
        %2959 = vmatpush1.xpose.msra.mxu0 0.0
        %2960 = vmatprep.subr.mxu0 0.0
        %2961 = vmatpush1.xpose.msra.mxu0 0.0
        %2962 = vmatprep.subr.mxu0 0.0
        %2963 = vmatpush1.xpose.msra.mxu0 0.0
        %2964 = vmatprep.subr.mxu0 0.0
        %2965 = vmatpush1.xpose.msra.mxu0 0.0
        %2966 = vmatprep.subr.mxu0 0.0
        %2967 = vmatpush1.xpose.msra.mxu0 0.0
        %2968 = vmatprep.mubr.f32.mxu0 0.0
        %2969 = vmatmul.mubr.f32.gmra.mrb[0].mxu0 %v2900
        %v2970 = vpop.f32.mrb[0].mxu0
        %v2971 = vadd.f32 %v1498, %v2970
        %v2972 = vpop.f32.mrb[0].mxu0
        %2973 = vdwg.mxu0
        %2975 = vrot.lane.b32.xlu0 %v1798, 96
        %v2976 = vpop.permute.xlu0 %2975
        %v2977 = vsel %vm1533, %v1798, 0
        %v2979 = vsel %vm1533, %v2976, 0
        %2981 = vmatprep.subr.mxu0 0.0
        %2982 = vmatpush1.xpose.msra.mxu0 %v2979
        %2983 = vmatprep.subr.mxu0 0.0
        %2984 = vmatpush1.xpose.msra.mxu0 0.0
        %2985 = vmatprep.subr.mxu0 0.0
        %2986 = vmatpush1.xpose.msra.mxu0 0.0
        %2987 = vmatprep.subr.mxu0 0.0
        %2988 = vmatpush1.xpose.msra.mxu0 0.0
        %2989 = vmatprep.subr.mxu0 0.0
        %2990 = vmatpush1.xpose.msra.mxu0 0.0
        %2991 = vmatprep.subr.mxu0 0.0
        %2992 = vmatpush1.xpose.msra.mxu0 0.0
        %2993 = vmatprep.subr.mxu0 0.0
        %2994 = vmatpush1.xpose.msra.mxu0 0.0
        %2995 = vmatprep.subr.mxu0 0.0
        %2996 = vmatpush1.xpose.msra.mxu0 0.0
        %2997 = vmatprep.subr.mxu0 0.0
        %2998 = vmatpush1.xpose.msra.mxu0 0.0
        %2999 = vmatprep.subr.mxu0 0.0
        %3000 = vmatpush1.xpose.msra.mxu0 0.0
        %3001 = vmatprep.subr.mxu0 0.0
        %3002 = vmatpush1.xpose.msra.mxu0 0.0
        %3003 = vmatprep.subr.mxu0 0.0
        %3004 = vmatpush1.xpose.msra.mxu0 0.0
        %3005 = vmatprep.subr.mxu0 0.0
        %3006 = vmatpush1.xpose.msra.mxu0 0.0
        %3007 = vmatprep.subr.mxu0 0.0
        %3008 = vmatpush1.xpose.msra.mxu0 0.0
        %3009 = vmatprep.subr.mxu0 0.0
        %3010 = vmatpush1.xpose.msra.mxu0 0.0
        %3011 = vmatprep.subr.mxu0 0.0
        %3012 = vmatpush1.xpose.msra.mxu0 0.0
        %3013 = vmatprep.subr.mxu0 0.0
        %3014 = vmatpush1.xpose.msra.mxu0 0.0
        %3015 = vmatprep.subr.mxu0 0.0
        %3016 = vmatpush1.xpose.msra.mxu0 0.0
        %3017 = vmatprep.subr.mxu0 0.0
        %3018 = vmatpush1.xpose.msra.mxu0 0.0
        %3019 = vmatprep.subr.mxu0 0.0
        %3020 = vmatpush1.xpose.msra.mxu0 0.0
        %3021 = vmatprep.subr.mxu0 0.0
        %3022 = vmatpush1.xpose.msra.mxu0 0.0
        %3023 = vmatprep.subr.mxu0 0.0
        %3024 = vmatpush1.xpose.msra.mxu0 0.0
        %3025 = vmatprep.subr.mxu0 0.0
        %3026 = vmatpush1.xpose.msra.mxu0 0.0
        %3027 = vmatprep.subr.mxu0 0.0
        %3028 = vmatpush1.xpose.msra.mxu0 0.0
        %3029 = vmatprep.subr.mxu0 0.0
        %3030 = vmatpush1.xpose.msra.mxu0 0.0
        %3031 = vmatprep.subr.mxu0 0.0
        %3032 = vmatpush1.xpose.msra.mxu0 0.0
        %3033 = vmatprep.subr.mxu0 0.0
        %3034 = vmatpush1.xpose.msra.mxu0 0.0
        %3035 = vmatprep.subr.mxu0 0.0
        %3036 = vmatpush1.xpose.msra.mxu0 0.0
        %3037 = vmatprep.subr.mxu0 0.0
        %3038 = vmatpush1.xpose.msra.mxu0 0.0
        %3039 = vmatprep.subr.mxu0 0.0
        %3040 = vmatpush1.xpose.msra.mxu0 0.0
        %3041 = vmatprep.subr.mxu0 0.0
        %3042 = vmatpush1.xpose.msra.mxu0 0.0
        %3043 = vmatprep.subr.mxu0 0.0
        %3044 = vmatpush1.xpose.msra.mxu0 0.0
        %3045 = vmatprep.mubr.f32.mxu0 0.0
        %3046 = vmatmul.mubr.f32.gmra.mrb[0].mxu0 %v2977
        %v3047 = vpop.f32.mrb[0].mxu0
        %v3048 = vadd.f32 %v1499, %v3047
        %v3049 = vpop.f32.mrb[0].mxu0
        %3050 = vdwg.mxu0
        %3052 = vrot.lane.b32.xlu0 %v1804, 96
        %v3053 = vpop.permute.xlu0 %3052
        %v3054 = vsel %vm1533, %v1804, 0
        %v3056 = vsel %vm1533, %v3053, 0
        %3058 = vmatprep.subr.mxu0 0.0
        %3059 = vmatpush1.xpose.msra.mxu0 %v3056
        %3060 = vmatprep.subr.mxu0 0.0
        %3061 = vmatpush1.xpose.msra.mxu0 0.0
        %3062 = vmatprep.subr.mxu0 0.0
        %3063 = vmatpush1.xpose.msra.mxu0 0.0
        %3064 = vmatprep.subr.mxu0 0.0
        %3065 = vmatpush1.xpose.msra.mxu0 0.0
        %3066 = vmatprep.subr.mxu0 0.0
        %3067 = vmatpush1.xpose.msra.mxu0 0.0
        %3068 = vmatprep.subr.mxu0 0.0
        %3069 = vmatpush1.xpose.msra.mxu0 0.0
        %3070 = vmatprep.subr.mxu0 0.0
        %3071 = vmatpush1.xpose.msra.mxu0 0.0
        %3072 = vmatprep.subr.mxu0 0.0
        %3073 = vmatpush1.xpose.msra.mxu0 0.0
        %3074 = vmatprep.subr.mxu0 0.0
        %3075 = vmatpush1.xpose.msra.mxu0 0.0
        %3076 = vmatprep.subr.mxu0 0.0
        %3077 = vmatpush1.xpose.msra.mxu0 0.0
        %3078 = vmatprep.subr.mxu0 0.0
        %3079 = vmatpush1.xpose.msra.mxu0 0.0
        %3080 = vmatprep.subr.mxu0 0.0
        %3081 = vmatpush1.xpose.msra.mxu0 0.0
        %3082 = vmatprep.subr.mxu0 0.0
        %3083 = vmatpush1.xpose.msra.mxu0 0.0
        %3084 = vmatprep.subr.mxu0 0.0
        %3085 = vmatpush1.xpose.msra.mxu0 0.0
        %3086 = vmatprep.subr.mxu0 0.0
        %3087 = vmatpush1.xpose.msra.mxu0 0.0
        %3088 = vmatprep.subr.mxu0 0.0
        %3089 = vmatpush1.xpose.msra.mxu0 0.0
        %3090 = vmatprep.subr.mxu0 0.0
        %3091 = vmatpush1.xpose.msra.mxu0 0.0
        %3092 = vmatprep.subr.mxu0 0.0
        %3093 = vmatpush1.xpose.msra.mxu0 0.0
        %3094 = vmatprep.subr.mxu0 0.0
        %3095 = vmatpush1.xpose.msra.mxu0 0.0
        %3096 = vmatprep.subr.mxu0 0.0
        %3097 = vmatpush1.xpose.msra.mxu0 0.0
        %3098 = vmatprep.subr.mxu0 0.0
        %3099 = vmatpush1.xpose.msra.mxu0 0.0
        %3100 = vmatprep.subr.mxu0 0.0
        %3101 = vmatpush1.xpose.msra.mxu0 0.0
        %3102 = vmatprep.subr.mxu0 0.0
        %3103 = vmatpush1.xpose.msra.mxu0 0.0
        %3104 = vmatprep.subr.mxu0 0.0
        %3105 = vmatpush1.xpose.msra.mxu0 0.0
        %3106 = vmatprep.subr.mxu0 0.0
        %3107 = vmatpush1.xpose.msra.mxu0 0.0
        %3108 = vmatprep.subr.mxu0 0.0
        %3109 = vmatpush1.xpose.msra.mxu0 0.0
        %3110 = vmatprep.subr.mxu0 0.0
        %3111 = vmatpush1.xpose.msra.mxu0 0.0
        %3112 = vmatprep.subr.mxu0 0.0
        %3113 = vmatpush1.xpose.msra.mxu0 0.0
        %3114 = vmatprep.subr.mxu0 0.0
        %3115 = vmatpush1.xpose.msra.mxu0 0.0
        %3116 = vmatprep.subr.mxu0 0.0
        %3117 = vmatpush1.xpose.msra.mxu0 0.0
        %3118 = vmatprep.subr.mxu0 0.0
        %3119 = vmatpush1.xpose.msra.mxu0 0.0
        %3120 = vmatprep.subr.mxu0 0.0
        %3121 = vmatpush1.xpose.msra.mxu0 0.0
        %3122 = vmatprep.mubr.f32.mxu0 0.0
        %3123 = vmatmul.mubr.f32.gmra.mrb[0].mxu0 %v3054
        %v3124 = vpop.f32.mrb[0].mxu0
        %v3125 = vadd.f32 %v1500, %v3124
        %v3126 = vpop.f32.mrb[0].mxu0
        %3127 = vdwg.mxu0
        %v3128 = vsel %vm1324, %v2586, -inf
        %3129 = vmax.xlane.f32.xlu0 %v3128
        %v3130 = vpop.xlane.xlu0 %3129
        %v3131 = vsel %vm1324, %v2663, -inf
        %3132 = vmax.xlane.f32.xlu0 %v3131
        %v3133 = vpop.xlane.xlu0 %3132
        %v3134 = vsel %vm1324, %v2740, -inf
        %3135 = vmax.xlane.f32.xlu0 %v3134
        %v3136 = vpop.xlane.xlu0 %3135
        %v3137 = vsel %vm1324, %v2817, -inf
        %3138 = vmax.xlane.f32.xlu0 %v3137
        %v3139 = vpop.xlane.xlu0 %3138
        %v3140 = vsel %vm1324, %v2894, -inf
        %3141 = vmax.xlane.f32.xlu0 %v3140
        %v3142 = vpop.xlane.xlu0 %3141
        %v3143 = vsel %vm1324, %v2971, -inf
        %3144 = vmax.xlane.f32.xlu0 %v3143
        %v3145 = vpop.xlane.xlu0 %3144
        %v3146 = vsel %vm1324, %v3048, -inf
        %3147 = vmax.xlane.f32.xlu0 %v3146
        %v3148 = vpop.xlane.xlu0 %3147
        %v3149 = vsel %vm1324, %v3125, -inf
        %3150 = vmax.xlane.f32.xlu0 %v3149
        %v3151 = vpop.xlane.xlu0 %3150
        %v3152 = vsub.f32 %v2586, %v3130
        %v3153 = vsub.f32 %v2663, %v3133
        %v3154 = vsub.f32 %v2740, %v3136
        %v3155 = vsub.f32 %v2817, %v3139
        %v3156 = vsub.f32 %v2894, %v3142
        %v3157 = vsub.f32 %v2971, %v3145
        %v3158 = vsub.f32 %v3048, %v3148
        %v3159 = vsub.f32 %v3125, %v3151
        %v3160 = vmul.f32 %v3152, 1.442695
        %v3161 = vpow.pop %v3160
        %v3162 = vmul.f32 %v3153, 1.442695
        %v3163 = vpow.pop %v3162
        %v3164 = vmul.f32 %v3154, 1.442695
        %v3165 = vpow.pop %v3164
        %v3166 = vmul.f32 %v3155, 1.442695
        %v3167 = vpow.pop %v3166
        %v3168 = vmul.f32 %v3156, 1.442695
        %v3169 = vpow.pop %v3168
        %v3170 = vmul.f32 %v3157, 1.442695
        %v3171 = vpow.pop %v3170
        %v3172 = vmul.f32 %v3158, 1.442695
        %v3173 = vpow.pop %v3172
        %v3174 = vmul.f32 %v3159, 1.442695
        %v3175 = vpow.pop %v3174
        %v3176 = vsel %vm1324, %v3161, 0.0
        %3177 = vadd.xlane.f32.xlu0 %v3176
        %v3178 = vpop.xlane.xlu0 %3177
        %v3179 = vsel %vm1324, %v3163, 0.0
        %3180 = vadd.xlane.f32.xlu0 %v3179
        %v3181 = vpop.xlane.xlu0 %3180
        %v3182 = vsel %vm1324, %v3165, 0.0
        %3183 = vadd.xlane.f32.xlu0 %v3182
        %v3184 = vpop.xlane.xlu0 %3183
        %v3185 = vsel %vm1324, %v3167, 0.0
        %3186 = vadd.xlane.f32.xlu0 %v3185
        %v3187 = vpop.xlane.xlu0 %3186
        %v3188 = vsel %vm1324, %v3169, 0.0
        %3189 = vadd.xlane.f32.xlu0 %v3188
        %v3190 = vpop.xlane.xlu0 %3189
        %v3191 = vsel %vm1324, %v3171, 0.0
        %3192 = vadd.xlane.f32.xlu0 %v3191
        %v3193 = vpop.xlane.xlu0 %3192
        %v3194 = vsel %vm1324, %v3173, 0.0
        %3195 = vadd.xlane.f32.xlu0 %v3194
        %v3196 = vpop.xlane.xlu0 %3195
        %v3197 = vsel %vm1324, %v3175, 0.0
        %3198 = vadd.xlane.f32.xlu0 %v3197
        %v3199 = vpop.xlane.xlu0 %3198
        %v3200 = vrcp.pop %v3178
        %v3201 = vrcp.pop %v3181
        %v3202 = vrcp.pop %v3184
        %v3203 = vrcp.pop %v3187
        %v3204 = vrcp.pop %v3190
        %v3205 = vrcp.pop %v3193
        %v3206 = vrcp.pop %v3196
        %v3207 = vrcp.pop %v3199
        %v3208 = vmul.f32 %v3161, %v3200
        %v3209 = vmul.f32 %v3163, %v3201
        %v3210 = vmul.f32 %v3165, %v3202
        %v3211 = vmul.f32 %v3167, %v3203
        %v3212 = vmul.f32 %v3169, %v3204
        %v3213 = vmul.f32 %v3171, %v3205
        %v3214 = vmul.f32 %v3173, %v3206
        %v3215 = vmul.f32 %v3175, %v3207
        %3216 = vrot.lane.b32.xlu0 %v1762, 64
        %v3217 = vpop.permute.xlu0 %3216
        %v3218 = vsel %vm1533, %v3217, 0
        %3220 = vmatprep.subr.mxu0 0.0
        %3221 = vmatpush1.xpose.msra.mxu0 %v3218
        %3222 = vmatprep.subr.mxu0 0.0
        %3223 = vmatpush1.xpose.msra.mxu0 0.0
        %3224 = vmatprep.subr.mxu0 0.0
        %3225 = vmatpush1.xpose.msra.mxu0 0.0
        %3226 = vmatprep.subr.mxu0 0.0
        %3227 = vmatpush1.xpose.msra.mxu0 0.0
        %3228 = vmatprep.subr.mxu0 0.0
        %3229 = vmatpush1.xpose.msra.mxu0 0.0
        %3230 = vmatprep.subr.mxu0 0.0
        %3231 = vmatpush1.xpose.msra.mxu0 0.0
        %3232 = vmatprep.subr.mxu0 0.0
        %3233 = vmatpush1.xpose.msra.mxu0 0.0
        %3234 = vmatprep.subr.mxu0 0.0
        %3235 = vmatpush1.xpose.msra.mxu0 0.0
        %3236 = vmatprep.subr.mxu0 0.0
        %3237 = vmatpush1.xpose.msra.mxu0 0.0
        %3238 = vmatprep.subr.mxu0 0.0
        %3239 = vmatpush1.xpose.msra.mxu0 0.0
        %3240 = vmatprep.subr.mxu0 0.0
        %3241 = vmatpush1.xpose.msra.mxu0 0.0
        %3242 = vmatprep.subr.mxu0 0.0
        %3243 = vmatpush1.xpose.msra.mxu0 0.0
        %3244 = vmatprep.subr.mxu0 0.0
        %3245 = vmatpush1.xpose.msra.mxu0 0.0
        %3246 = vmatprep.subr.mxu0 0.0
        %3247 = vmatpush1.xpose.msra.mxu0 0.0
        %3248 = vmatprep.subr.mxu0 0.0
        %3249 = vmatpush1.xpose.msra.mxu0 0.0
        %3250 = vmatprep.subr.mxu0 0.0
        %3251 = vmatpush1.xpose.msra.mxu0 0.0
        %3252 = vmatprep.subr.mxu0 0.0
        %3253 = vmatpush1.xpose.msra.mxu0 0.0
        %3254 = vmatprep.subr.mxu0 0.0
        %3255 = vmatpush1.xpose.msra.mxu0 0.0
        %3256 = vmatprep.subr.mxu0 0.0
        %3257 = vmatpush1.xpose.msra.mxu0 0.0
        %3258 = vmatprep.subr.mxu0 0.0
        %3259 = vmatpush1.xpose.msra.mxu0 0.0
        %3260 = vmatprep.subr.mxu0 0.0
        %3261 = vmatpush1.xpose.msra.mxu0 0.0
        %3262 = vmatprep.subr.mxu0 0.0
        %3263 = vmatpush1.xpose.msra.mxu0 0.0
        %3264 = vmatprep.subr.mxu0 0.0
        %3265 = vmatpush1.xpose.msra.mxu0 0.0
        %3266 = vmatprep.subr.mxu0 0.0
        %3267 = vmatpush1.xpose.msra.mxu0 0.0
        %3268 = vmatprep.subr.mxu0 0.0
        %3269 = vmatpush1.xpose.msra.mxu0 0.0
        %3270 = vmatprep.subr.mxu0 0.0
        %3271 = vmatpush1.xpose.msra.mxu0 0.0
        %3272 = vmatprep.subr.mxu0 0.0
        %3273 = vmatpush1.xpose.msra.mxu0 0.0
        %3274 = vmatprep.subr.mxu0 0.0
        %3275 = vmatpush1.xpose.msra.mxu0 0.0
        %3276 = vmatprep.subr.mxu0 0.0
        %3277 = vmatpush1.xpose.msra.mxu0 0.0
        %3278 = vmatprep.subr.mxu0 0.0
        %3279 = vmatpush1.xpose.msra.mxu0 0.0
        %3280 = vmatprep.subr.mxu0 0.0
        %3281 = vmatpush1.xpose.msra.mxu0 0.0
        %3282 = vmatprep.subr.mxu0 0.0
        %3283 = vmatpush1.xpose.msra.mxu0 0.0
        %3284 = vmatprep.mubr.f32.mxu0 0.0
        %3285 = vmatmul.mubr.f32.gmra.mrb[0].mxu0 %v1535
        %v3286 = vpop.f32.mrb[0].mxu0
        %v3287 = vadd.f32 %v1509, %v3286
        %v3288 = vpop.f32.mrb[0].mxu0
        %3289 = vdwg.mxu0
        %3290 = vrot.lane.b32.xlu0 %v1768, 64
        %v3291 = vpop.permute.xlu0 %3290
        %v3292 = vsel %vm1533, %v3291, 0
        %3294 = vmatprep.subr.mxu0 0.0
        %3295 = vmatpush1.xpose.msra.mxu0 %v3292
        %3296 = vmatprep.subr.mxu0 0.0
        %3297 = vmatpush1.xpose.msra.mxu0 0.0
        %3298 = vmatprep.subr.mxu0 0.0
        %3299 = vmatpush1.xpose.msra.mxu0 0.0
        %3300 = vmatprep.subr.mxu0 0.0
        %3301 = vmatpush1.xpose.msra.mxu0 0.0
        %3302 = vmatprep.subr.mxu0 0.0
        %3303 = vmatpush1.xpose.msra.mxu0 0.0
        %3304 = vmatprep.subr.mxu0 0.0
        %3305 = vmatpush1.xpose.msra.mxu0 0.0
        %3306 = vmatprep.subr.mxu0 0.0
        %3307 = vmatpush1.xpose.msra.mxu0 0.0
        %3308 = vmatprep.subr.mxu0 0.0
        %3309 = vmatpush1.xpose.msra.mxu0 0.0
        %3310 = vmatprep.subr.mxu0 0.0
        %3311 = vmatpush1.xpose.msra.mxu0 0.0
        %3312 = vmatprep.subr.mxu0 0.0
        %3313 = vmatpush1.xpose.msra.mxu0 0.0
        %3314 = vmatprep.subr.mxu0 0.0
        %3315 = vmatpush1.xpose.msra.mxu0 0.0
        %3316 = vmatprep.subr.mxu0 0.0
        %3317 = vmatpush1.xpose.msra.mxu0 0.0
        %3318 = vmatprep.subr.mxu0 0.0
        %3319 = vmatpush1.xpose.msra.mxu0 0.0
        %3320 = vmatprep.subr.mxu0 0.0
        %3321 = vmatpush1.xpose.msra.mxu0 0.0
        %3322 = vmatprep.subr.mxu0 0.0
        %3323 = vmatpush1.xpose.msra.mxu0 0.0
        %3324 = vmatprep.subr.mxu0 0.0
        %3325 = vmatpush1.xpose.msra.mxu0 0.0
        %3326 = vmatprep.subr.mxu0 0.0
        %3327 = vmatpush1.xpose.msra.mxu0 0.0
        %3328 = vmatprep.subr.mxu0 0.0
        %3329 = vmatpush1.xpose.msra.mxu0 0.0
        %3330 = vmatprep.subr.mxu0 0.0
        %3331 = vmatpush1.xpose.msra.mxu0 0.0
        %3332 = vmatprep.subr.mxu0 0.0
        %3333 = vmatpush1.xpose.msra.mxu0 0.0
        %3334 = vmatprep.subr.mxu0 0.0
        %3335 = vmatpush1.xpose.msra.mxu0 0.0
        %3336 = vmatprep.subr.mxu0 0.0
        %3337 = vmatpush1.xpose.msra.mxu0 0.0
        %3338 = vmatprep.subr.mxu0 0.0
        %3339 = vmatpush1.xpose.msra.mxu0 0.0
        %3340 = vmatprep.subr.mxu0 0.0
        %3341 = vmatpush1.xpose.msra.mxu0 0.0
        %3342 = vmatprep.subr.mxu0 0.0
        %3343 = vmatpush1.xpose.msra.mxu0 0.0
        %3344 = vmatprep.subr.mxu0 0.0
        %3345 = vmatpush1.xpose.msra.mxu0 0.0
        %3346 = vmatprep.subr.mxu0 0.0
        %3347 = vmatpush1.xpose.msra.mxu0 0.0
        %3348 = vmatprep.subr.mxu0 0.0
        %3349 = vmatpush1.xpose.msra.mxu0 0.0
        %3350 = vmatprep.subr.mxu0 0.0
        %3351 = vmatpush1.xpose.msra.mxu0 0.0
        %3352 = vmatprep.subr.mxu0 0.0
        %3353 = vmatpush1.xpose.msra.mxu0 0.0
        %3354 = vmatprep.subr.mxu0 0.0
        %3355 = vmatpush1.xpose.msra.mxu0 0.0
        %3356 = vmatprep.subr.mxu0 0.0
        %3357 = vmatpush1.xpose.msra.mxu0 0.0
        %3358 = vmatprep.mubr.f32.mxu0 0.0
        %3359 = vmatmul.mubr.f32.gmra.mrb[0].mxu0 %v1538
        %v3360 = vpop.f32.mrb[0].mxu0
        %v3361 = vadd.f32 %v1510, %v3360
        %v3362 = vpop.f32.mrb[0].mxu0
        %3363 = vdwg.mxu0
        %3364 = vrot.lane.b32.xlu0 %v1774, 64
        %v3365 = vpop.permute.xlu0 %3364
        %v3366 = vsel %vm1533, %v3365, 0
        %3368 = vmatprep.subr.mxu0 0.0
        %3369 = vmatpush1.xpose.msra.mxu0 %v3366
        %3370 = vmatprep.subr.mxu0 0.0
        %3371 = vmatpush1.xpose.msra.mxu0 0.0
        %3372 = vmatprep.subr.mxu0 0.0
        %3373 = vmatpush1.xpose.msra.mxu0 0.0
        %3374 = vmatprep.subr.mxu0 0.0
        %3375 = vmatpush1.xpose.msra.mxu0 0.0
        %3376 = vmatprep.subr.mxu0 0.0
        %3377 = vmatpush1.xpose.msra.mxu0 0.0
        %3378 = vmatprep.subr.mxu0 0.0
        %3379 = vmatpush1.xpose.msra.mxu0 0.0
        %3380 = vmatprep.subr.mxu0 0.0
        %3381 = vmatpush1.xpose.msra.mxu0 0.0
        %3382 = vmatprep.subr.mxu0 0.0
        %3383 = vmatpush1.xpose.msra.mxu0 0.0
        %3384 = vmatprep.subr.mxu0 0.0
        %3385 = vmatpush1.xpose.msra.mxu0 0.0
        %3386 = vmatprep.subr.mxu0 0.0
        %3387 = vmatpush1.xpose.msra.mxu0 0.0
        %3388 = vmatprep.subr.mxu0 0.0
        %3389 = vmatpush1.xpose.msra.mxu0 0.0
        %3390 = vmatprep.subr.mxu0 0.0
        %3391 = vmatpush1.xpose.msra.mxu0 0.0
        %3392 = vmatprep.subr.mxu0 0.0
        %3393 = vmatpush1.xpose.msra.mxu0 0.0
        %3394 = vmatprep.subr.mxu0 0.0
        %3395 = vmatpush1.xpose.msra.mxu0 0.0
        %3396 = vmatprep.subr.mxu0 0.0
        %3397 = vmatpush1.xpose.msra.mxu0 0.0
        %3398 = vmatprep.subr.mxu0 0.0
        %3399 = vmatpush1.xpose.msra.mxu0 0.0
        %3400 = vmatprep.subr.mxu0 0.0
        %3401 = vmatpush1.xpose.msra.mxu0 0.0
        %3402 = vmatprep.subr.mxu0 0.0
        %3403 = vmatpush1.xpose.msra.mxu0 0.0
        %3404 = vmatprep.subr.mxu0 0.0
        %3405 = vmatpush1.xpose.msra.mxu0 0.0
        %3406 = vmatprep.subr.mxu0 0.0
        %3407 = vmatpush1.xpose.msra.mxu0 0.0
        %3408 = vmatprep.subr.mxu0 0.0
        %3409 = vmatpush1.xpose.msra.mxu0 0.0
        %3410 = vmatprep.subr.mxu0 0.0
        %3411 = vmatpush1.xpose.msra.mxu0 0.0
        %3412 = vmatprep.subr.mxu0 0.0
        %3413 = vmatpush1.xpose.msra.mxu0 0.0
        %3414 = vmatprep.subr.mxu0 0.0
        %3415 = vmatpush1.xpose.msra.mxu0 0.0
        %3416 = vmatprep.subr.mxu0 0.0
        %3417 = vmatpush1.xpose.msra.mxu0 0.0
        %3418 = vmatprep.subr.mxu0 0.0
        %3419 = vmatpush1.xpose.msra.mxu0 0.0
        %3420 = vmatprep.subr.mxu0 0.0
        %3421 = vmatpush1.xpose.msra.mxu0 0.0
        %3422 = vmatprep.subr.mxu0 0.0
        %3423 = vmatpush1.xpose.msra.mxu0 0.0
        %3424 = vmatprep.subr.mxu0 0.0
        %3425 = vmatpush1.xpose.msra.mxu0 0.0
        %3426 = vmatprep.subr.mxu0 0.0
        %3427 = vmatpush1.xpose.msra.mxu0 0.0
        %3428 = vmatprep.subr.mxu0 0.0
        %3429 = vmatpush1.xpose.msra.mxu0 0.0
        %3430 = vmatprep.subr.mxu0 0.0
        %3431 = vmatpush1.xpose.msra.mxu0 0.0
        %3432 = vmatprep.mubr.f32.mxu0 0.0
        %3433 = vmatmul.mubr.f32.gmra.mrb[0].mxu0 %v1541
        %v3434 = vpop.f32.mrb[0].mxu0
        %v3435 = vadd.f32 %v1511, %v3434
        %v3436 = vpop.f32.mrb[0].mxu0
        %3437 = vdwg.mxu0
        %3438 = vrot.lane.b32.xlu0 %v1780, 64
        %v3439 = vpop.permute.xlu0 %3438
        %v3440 = vsel %vm1533, %v3439, 0
        %3442 = vmatprep.subr.mxu0 0.0
        %3443 = vmatpush1.xpose.msra.mxu0 %v3440
        %3444 = vmatprep.subr.mxu0 0.0
        %3445 = vmatpush1.xpose.msra.mxu0 0.0
        %3446 = vmatprep.subr.mxu0 0.0
        %3447 = vmatpush1.xpose.msra.mxu0 0.0
        %3448 = vmatprep.subr.mxu0 0.0
        %3449 = vmatpush1.xpose.msra.mxu0 0.0
        %3450 = vmatprep.subr.mxu0 0.0
        %3451 = vmatpush1.xpose.msra.mxu0 0.0
        %3452 = vmatprep.subr.mxu0 0.0
        %3453 = vmatpush1.xpose.msra.mxu0 0.0
        %3454 = vmatprep.subr.mxu0 0.0
        %3455 = vmatpush1.xpose.msra.mxu0 0.0
        %3456 = vmatprep.subr.mxu0 0.0
        %3457 = vmatpush1.xpose.msra.mxu0 0.0
        %3458 = vmatprep.subr.mxu0 0.0
        %3459 = vmatpush1.xpose.msra.mxu0 0.0
        %3460 = vmatprep.subr.mxu0 0.0
        %3461 = vmatpush1.xpose.msra.mxu0 0.0
        %3462 = vmatprep.subr.mxu0 0.0
        %3463 = vmatpush1.xpose.msra.mxu0 0.0
        %3464 = vmatprep.subr.mxu0 0.0
        %3465 = vmatpush1.xpose.msra.mxu0 0.0
        %3466 = vmatprep.subr.mxu0 0.0
        %3467 = vmatpush1.xpose.msra.mxu0 0.0
        %3468 = vmatprep.subr.mxu0 0.0
        %3469 = vmatpush1.xpose.msra.mxu0 0.0
        %3470 = vmatprep.subr.mxu0 0.0
        %3471 = vmatpush1.xpose.msra.mxu0 0.0
        %3472 = vmatprep.subr.mxu0 0.0
        %3473 = vmatpush1.xpose.msra.mxu0 0.0
        %3474 = vmatprep.subr.mxu0 0.0
        %3475 = vmatpush1.xpose.msra.mxu0 0.0
        %3476 = vmatprep.subr.mxu0 0.0
        %3477 = vmatpush1.xpose.msra.mxu0 0.0
        %3478 = vmatprep.subr.mxu0 0.0
        %3479 = vmatpush1.xpose.msra.mxu0 0.0
        %3480 = vmatprep.subr.mxu0 0.0
        %3481 = vmatpush1.xpose.msra.mxu0 0.0
        %3482 = vmatprep.subr.mxu0 0.0
        %3483 = vmatpush1.xpose.msra.mxu0 0.0
        %3484 = vmatprep.subr.mxu0 0.0
        %3485 = vmatpush1.xpose.msra.mxu0 0.0
        %3486 = vmatprep.subr.mxu0 0.0
        %3487 = vmatpush1.xpose.msra.mxu0 0.0
        %3488 = vmatprep.subr.mxu0 0.0
        %3489 = vmatpush1.xpose.msra.mxu0 0.0
        %3490 = vmatprep.subr.mxu0 0.0
        %3491 = vmatpush1.xpose.msra.mxu0 0.0
        %3492 = vmatprep.subr.mxu0 0.0
        %3493 = vmatpush1.xpose.msra.mxu0 0.0
        %3494 = vmatprep.subr.mxu0 0.0
        %3495 = vmatpush1.xpose.msra.mxu0 0.0
        %3496 = vmatprep.subr.mxu0 0.0
        %3497 = vmatpush1.xpose.msra.mxu0 0.0
        %3498 = vmatprep.subr.mxu0 0.0
        %3499 = vmatpush1.xpose.msra.mxu0 0.0
        %3500 = vmatprep.subr.mxu0 0.0
        %3501 = vmatpush1.xpose.msra.mxu0 0.0
        %3502 = vmatprep.subr.mxu0 0.0
        %3503 = vmatpush1.xpose.msra.mxu0 0.0
        %3504 = vmatprep.subr.mxu0 0.0
        %3505 = vmatpush1.xpose.msra.mxu0 0.0
        %3506 = vmatprep.mubr.f32.mxu0 0.0
        %3507 = vmatmul.mubr.f32.gmra.mrb[0].mxu0 %v1544
        %v3508 = vpop.f32.mrb[0].mxu0
        %v3509 = vadd.f32 %v1512, %v3508
        %v3510 = vpop.f32.mrb[0].mxu0
        %3511 = vdwg.mxu0
        %3512 = vrot.lane.b32.xlu0 %v1786, 64
        %v3513 = vpop.permute.xlu0 %3512
        %v3514 = vsel %vm1533, %v3513, 0
        %3516 = vmatprep.subr.mxu0 0.0
        %3517 = vmatpush1.xpose.msra.mxu0 %v3514
        %3518 = vmatprep.subr.mxu0 0.0
        %3519 = vmatpush1.xpose.msra.mxu0 0.0
        %3520 = vmatprep.subr.mxu0 0.0
        %3521 = vmatpush1.xpose.msra.mxu0 0.0
        %3522 = vmatprep.subr.mxu0 0.0
        %3523 = vmatpush1.xpose.msra.mxu0 0.0
        %3524 = vmatprep.subr.mxu0 0.0
        %3525 = vmatpush1.xpose.msra.mxu0 0.0
        %3526 = vmatprep.subr.mxu0 0.0
        %3527 = vmatpush1.xpose.msra.mxu0 0.0
        %3528 = vmatprep.subr.mxu0 0.0
        %3529 = vmatpush1.xpose.msra.mxu0 0.0
        %3530 = vmatprep.subr.mxu0 0.0
        %3531 = vmatpush1.xpose.msra.mxu0 0.0
        %3532 = vmatprep.subr.mxu0 0.0
        %3533 = vmatpush1.xpose.msra.mxu0 0.0
        %3534 = vmatprep.subr.mxu0 0.0
        %3535 = vmatpush1.xpose.msra.mxu0 0.0
        %3536 = vmatprep.subr.mxu0 0.0
        %3537 = vmatpush1.xpose.msra.mxu0 0.0
        %3538 = vmatprep.subr.mxu0 0.0
        %3539 = vmatpush1.xpose.msra.mxu0 0.0
        %3540 = vmatprep.subr.mxu0 0.0
        %3541 = vmatpush1.xpose.msra.mxu0 0.0
        %3542 = vmatprep.subr.mxu0 0.0
        %3543 = vmatpush1.xpose.msra.mxu0 0.0
        %3544 = vmatprep.subr.mxu0 0.0
        %3545 = vmatpush1.xpose.msra.mxu0 0.0
        %3546 = vmatprep.subr.mxu0 0.0
        %3547 = vmatpush1.xpose.msra.mxu0 0.0
        %3548 = vmatprep.subr.mxu0 0.0
        %3549 = vmatpush1.xpose.msra.mxu0 0.0
        %3550 = vmatprep.subr.mxu0 0.0
        %3551 = vmatpush1.xpose.msra.mxu0 0.0
        %3552 = vmatprep.subr.mxu0 0.0
        %3553 = vmatpush1.xpose.msra.mxu0 0.0
        %3554 = vmatprep.subr.mxu0 0.0
        %3555 = vmatpush1.xpose.msra.mxu0 0.0
        %3556 = vmatprep.subr.mxu0 0.0
        %3557 = vmatpush1.xpose.msra.mxu0 0.0
        %3558 = vmatprep.subr.mxu0 0.0
        %3559 = vmatpush1.xpose.msra.mxu0 0.0
        %3560 = vmatprep.subr.mxu0 0.0
        %3561 = vmatpush1.xpose.msra.mxu0 0.0
        %3562 = vmatprep.subr.mxu0 0.0
        %3563 = vmatpush1.xpose.msra.mxu0 0.0
        %3564 = vmatprep.subr.mxu0 0.0
        %3565 = vmatpush1.xpose.msra.mxu0 0.0
        %3566 = vmatprep.subr.mxu0 0.0
        %3567 = vmatpush1.xpose.msra.mxu0 0.0
        %3568 = vmatprep.subr.mxu0 0.0
        %3569 = vmatpush1.xpose.msra.mxu0 0.0
        %3570 = vmatprep.subr.mxu0 0.0
        %3571 = vmatpush1.xpose.msra.mxu0 0.0
        %3572 = vmatprep.subr.mxu0 0.0
        %3573 = vmatpush1.xpose.msra.mxu0 0.0
        %3574 = vmatprep.subr.mxu0 0.0
        %3575 = vmatpush1.xpose.msra.mxu0 0.0
        %3576 = vmatprep.subr.mxu0 0.0
        %3577 = vmatpush1.xpose.msra.mxu0 0.0
        %3578 = vmatprep.subr.mxu0 0.0
        %3579 = vmatpush1.xpose.msra.mxu0 0.0
        %3580 = vmatprep.mubr.f32.mxu0 0.0
        %3581 = vmatmul.mubr.f32.gmra.mrb[0].mxu0 %v1547
        %v3582 = vpop.f32.mrb[0].mxu0
        %v3583 = vadd.f32 %v1513, %v3582
        %v3584 = vpop.f32.mrb[0].mxu0
        %3585 = vdwg.mxu0
        %3586 = vrot.lane.b32.xlu0 %v1792, 64
        %v3587 = vpop.permute.xlu0 %3586
        %v3588 = vsel %vm1533, %v3587, 0
        %3590 = vmatprep.subr.mxu0 0.0
        %3591 = vmatpush1.xpose.msra.mxu0 %v3588
        %3592 = vmatprep.subr.mxu0 0.0
        %3593 = vmatpush1.xpose.msra.mxu0 0.0
        %3594 = vmatprep.subr.mxu0 0.0
        %3595 = vmatpush1.xpose.msra.mxu0 0.0
        %3596 = vmatprep.subr.mxu0 0.0
        %3597 = vmatpush1.xpose.msra.mxu0 0.0
        %3598 = vmatprep.subr.mxu0 0.0
        %3599 = vmatpush1.xpose.msra.mxu0 0.0
        %3600 = vmatprep.subr.mxu0 0.0
        %3601 = vmatpush1.xpose.msra.mxu0 0.0
        %3602 = vmatprep.subr.mxu0 0.0
        %3603 = vmatpush1.xpose.msra.mxu0 0.0
        %3604 = vmatprep.subr.mxu0 0.0
        %3605 = vmatpush1.xpose.msra.mxu0 0.0
        %3606 = vmatprep.subr.mxu0 0.0
        %3607 = vmatpush1.xpose.msra.mxu0 0.0
        %3608 = vmatprep.subr.mxu0 0.0
        %3609 = vmatpush1.xpose.msra.mxu0 0.0
        %3610 = vmatprep.subr.mxu0 0.0
        %3611 = vmatpush1.xpose.msra.mxu0 0.0
        %3612 = vmatprep.subr.mxu0 0.0
        %3613 = vmatpush1.xpose.msra.mxu0 0.0
        %3614 = vmatprep.subr.mxu0 0.0
        %3615 = vmatpush1.xpose.msra.mxu0 0.0
        %3616 = vmatprep.subr.mxu0 0.0
        %3617 = vmatpush1.xpose.msra.mxu0 0.0
        %3618 = vmatprep.subr.mxu0 0.0
        %3619 = vmatpush1.xpose.msra.mxu0 0.0
        %3620 = vmatprep.subr.mxu0 0.0
        %3621 = vmatpush1.xpose.msra.mxu0 0.0
        %3622 = vmatprep.subr.mxu0 0.0
        %3623 = vmatpush1.xpose.msra.mxu0 0.0
        %3624 = vmatprep.subr.mxu0 0.0
        %3625 = vmatpush1.xpose.msra.mxu0 0.0
        %3626 = vmatprep.subr.mxu0 0.0
        %3627 = vmatpush1.xpose.msra.mxu0 0.0
        %3628 = vmatprep.subr.mxu0 0.0
        %3629 = vmatpush1.xpose.msra.mxu0 0.0
        %3630 = vmatprep.subr.mxu0 0.0
        %3631 = vmatpush1.xpose.msra.mxu0 0.0
        %3632 = vmatprep.subr.mxu0 0.0
        %3633 = vmatpush1.xpose.msra.mxu0 0.0
        %3634 = vmatprep.subr.mxu0 0.0
        %3635 = vmatpush1.xpose.msra.mxu0 0.0
        %3636 = vmatprep.subr.mxu0 0.0
        %3637 = vmatpush1.xpose.msra.mxu0 0.0
        %3638 = vmatprep.subr.mxu0 0.0
        %3639 = vmatpush1.xpose.msra.mxu0 0.0
        %3640 = vmatprep.subr.mxu0 0.0
        %3641 = vmatpush1.xpose.msra.mxu0 0.0
        %3642 = vmatprep.subr.mxu0 0.0
        %3643 = vmatpush1.xpose.msra.mxu0 0.0
        %3644 = vmatprep.subr.mxu0 0.0
        %3645 = vmatpush1.xpose.msra.mxu0 0.0
        %3646 = vmatprep.subr.mxu0 0.0
        %3647 = vmatpush1.xpose.msra.mxu0 0.0
        %3648 = vmatprep.subr.mxu0 0.0
        %3649 = vmatpush1.xpose.msra.mxu0 0.0
        %3650 = vmatprep.subr.mxu0 0.0
        %3651 = vmatpush1.xpose.msra.mxu0 0.0
        %3652 = vmatprep.subr.mxu0 0.0
        %3653 = vmatpush1.xpose.msra.mxu0 0.0
        %3654 = vmatprep.mubr.f32.mxu0 0.0
        %3655 = vmatmul.mubr.f32.gmra.mrb[0].mxu0 %v1550
        %v3656 = vpop.f32.mrb[0].mxu0
        %v3657 = vadd.f32 %v1514, %v3656
        %v3658 = vpop.f32.mrb[0].mxu0
        %3659 = vdwg.mxu0
        %3660 = vrot.lane.b32.xlu0 %v1798, 64
        %v3661 = vpop.permute.xlu0 %3660
        %v3662 = vsel %vm1533, %v3661, 0
        %3664 = vmatprep.subr.mxu0 0.0
        %3665 = vmatpush1.xpose.msra.mxu0 %v3662
        %3666 = vmatprep.subr.mxu0 0.0
        %3667 = vmatpush1.xpose.msra.mxu0 0.0
        %3668 = vmatprep.subr.mxu0 0.0
        %3669 = vmatpush1.xpose.msra.mxu0 0.0
        %3670 = vmatprep.subr.mxu0 0.0
        %3671 = vmatpush1.xpose.msra.mxu0 0.0
        %3672 = vmatprep.subr.mxu0 0.0
        %3673 = vmatpush1.xpose.msra.mxu0 0.0
        %3674 = vmatprep.subr.mxu0 0.0
        %3675 = vmatpush1.xpose.msra.mxu0 0.0
        %3676 = vmatprep.subr.mxu0 0.0
        %3677 = vmatpush1.xpose.msra.mxu0 0.0
        %3678 = vmatprep.subr.mxu0 0.0
        %3679 = vmatpush1.xpose.msra.mxu0 0.0
        %3680 = vmatprep.subr.mxu0 0.0
        %3681 = vmatpush1.xpose.msra.mxu0 0.0
        %3682 = vmatprep.subr.mxu0 0.0
        %3683 = vmatpush1.xpose.msra.mxu0 0.0
        %3684 = vmatprep.subr.mxu0 0.0
        %3685 = vmatpush1.xpose.msra.mxu0 0.0
        %3686 = vmatprep.subr.mxu0 0.0
        %3687 = vmatpush1.xpose.msra.mxu0 0.0
        %3688 = vmatprep.subr.mxu0 0.0
        %3689 = vmatpush1.xpose.msra.mxu0 0.0
        %3690 = vmatprep.subr.mxu0 0.0
        %3691 = vmatpush1.xpose.msra.mxu0 0.0
        %3692 = vmatprep.subr.mxu0 0.0
        %3693 = vmatpush1.xpose.msra.mxu0 0.0
        %3694 = vmatprep.subr.mxu0 0.0
        %3695 = vmatpush1.xpose.msra.mxu0 0.0
        %3696 = vmatprep.subr.mxu0 0.0
        %3697 = vmatpush1.xpose.msra.mxu0 0.0
        %3698 = vmatprep.subr.mxu0 0.0
        %3699 = vmatpush1.xpose.msra.mxu0 0.0
        %3700 = vmatprep.subr.mxu0 0.0
        %3701 = vmatpush1.xpose.msra.mxu0 0.0
        %3702 = vmatprep.subr.mxu0 0.0
        %3703 = vmatpush1.xpose.msra.mxu0 0.0
        %3704 = vmatprep.subr.mxu0 0.0
        %3705 = vmatpush1.xpose.msra.mxu0 0.0
        %3706 = vmatprep.subr.mxu0 0.0
        %3707 = vmatpush1.xpose.msra.mxu0 0.0
        %3708 = vmatprep.subr.mxu0 0.0
        %3709 = vmatpush1.xpose.msra.mxu0 0.0
        %3710 = vmatprep.subr.mxu0 0.0
        %3711 = vmatpush1.xpose.msra.mxu0 0.0
        %3712 = vmatprep.subr.mxu0 0.0
        %3713 = vmatpush1.xpose.msra.mxu0 0.0
        %3714 = vmatprep.subr.mxu0 0.0
        %3715 = vmatpush1.xpose.msra.mxu0 0.0
        %3716 = vmatprep.subr.mxu0 0.0
        %3717 = vmatpush1.xpose.msra.mxu0 0.0
        %3718 = vmatprep.subr.mxu0 0.0
        %3719 = vmatpush1.xpose.msra.mxu0 0.0
        %3720 = vmatprep.subr.mxu0 0.0
        %3721 = vmatpush1.xpose.msra.mxu0 0.0
        %3722 = vmatprep.subr.mxu0 0.0
        %3723 = vmatpush1.xpose.msra.mxu0 0.0
        %3724 = vmatprep.subr.mxu0 0.0
        %3725 = vmatpush1.xpose.msra.mxu0 0.0
        %3726 = vmatprep.subr.mxu0 0.0
        %3727 = vmatpush1.xpose.msra.mxu0 0.0
        %3728 = vmatprep.mubr.f32.mxu0 0.0
        %3729 = vmatmul.mubr.f32.gmra.mrb[0].mxu0 %v1553
        %v3730 = vpop.f32.mrb[0].mxu0
        %v3731 = vadd.f32 %v1515, %v3730
        %v3732 = vpop.f32.mrb[0].mxu0
        %3733 = vdwg.mxu0
        %3734 = vrot.lane.b32.xlu0 %v1804, 64
        %v3735 = vpop.permute.xlu0 %3734
        %v3736 = vsel %vm1533, %v3735, 0
        %3738 = vmatprep.subr.mxu0 0.0
        %3739 = vmatpush1.xpose.msra.mxu0 %v3736
        %3740 = vmatprep.subr.mxu0 0.0
        %3741 = vmatpush1.xpose.msra.mxu0 0.0
        %3742 = vmatprep.subr.mxu0 0.0
        %3743 = vmatpush1.xpose.msra.mxu0 0.0
        %3744 = vmatprep.subr.mxu0 0.0
        %3745 = vmatpush1.xpose.msra.mxu0 0.0
        %3746 = vmatprep.subr.mxu0 0.0
        %3747 = vmatpush1.xpose.msra.mxu0 0.0
        %3748 = vmatprep.subr.mxu0 0.0
        %3749 = vmatpush1.xpose.msra.mxu0 0.0
        %3750 = vmatprep.subr.mxu0 0.0
        %3751 = vmatpush1.xpose.msra.mxu0 0.0
        %3752 = vmatprep.subr.mxu0 0.0
        %3753 = vmatpush1.xpose.msra.mxu0 0.0
        %3754 = vmatprep.subr.mxu0 0.0
        %3755 = vmatpush1.xpose.msra.mxu0 0.0
        %3756 = vmatprep.subr.mxu0 0.0
        %3757 = vmatpush1.xpose.msra.mxu0 0.0
        %3758 = vmatprep.subr.mxu0 0.0
        %3759 = vmatpush1.xpose.msra.mxu0 0.0
        %3760 = vmatprep.subr.mxu0 0.0
        %3761 = vmatpush1.xpose.msra.mxu0 0.0
        %3762 = vmatprep.subr.mxu0 0.0
        %3763 = vmatpush1.xpose.msra.mxu0 0.0
        %3764 = vmatprep.subr.mxu0 0.0
        %3765 = vmatpush1.xpose.msra.mxu0 0.0
        %3766 = vmatprep.subr.mxu0 0.0
        %3767 = vmatpush1.xpose.msra.mxu0 0.0
        %3768 = vmatprep.subr.mxu0 0.0
        %3769 = vmatpush1.xpose.msra.mxu0 0.0
        %3770 = vmatprep.subr.mxu0 0.0
        %3771 = vmatpush1.xpose.msra.mxu0 0.0
        %3772 = vmatprep.subr.mxu0 0.0
        %3773 = vmatpush1.xpose.msra.mxu0 0.0
        %3774 = vmatprep.subr.mxu0 0.0
        %3775 = vmatpush1.xpose.msra.mxu0 0.0
        %3776 = vmatprep.subr.mxu0 0.0
        %3777 = vmatpush1.xpose.msra.mxu0 0.0
        %3778 = vmatprep.subr.mxu0 0.0
        %3779 = vmatpush1.xpose.msra.mxu0 0.0
        %3780 = vmatprep.subr.mxu0 0.0
        %3781 = vmatpush1.xpose.msra.mxu0 0.0
        %3782 = vmatprep.subr.mxu0 0.0
        %3783 = vmatpush1.xpose.msra.mxu0 0.0
        %3784 = vmatprep.subr.mxu0 0.0
        %3785 = vmatpush1.xpose.msra.mxu0 0.0
        %3786 = vmatprep.subr.mxu0 0.0
        %3787 = vmatpush1.xpose.msra.mxu0 0.0
        %3788 = vmatprep.subr.mxu0 0.0
        %3789 = vmatpush1.xpose.msra.mxu0 0.0
        %3790 = vmatprep.subr.mxu0 0.0
        %3791 = vmatpush1.xpose.msra.mxu0 0.0
        %3792 = vmatprep.subr.mxu0 0.0
        %3793 = vmatpush1.xpose.msra.mxu0 0.0
        %3794 = vmatprep.subr.mxu0 0.0
        %3795 = vmatpush1.xpose.msra.mxu0 0.0
        %3796 = vmatprep.subr.mxu0 0.0
        %3797 = vmatpush1.xpose.msra.mxu0 0.0
        %3798 = vmatprep.subr.mxu0 0.0
        %3799 = vmatpush1.xpose.msra.mxu0 0.0
        %3800 = vmatprep.subr.mxu0 0.0
        %3801 = vmatpush1.xpose.msra.mxu0 0.0
        %3802 = vmatprep.mubr.f32.mxu0 0.0
        %3803 = vmatmul.mubr.f32.gmra.mrb[0].mxu0 %v1556
        %v3804 = vpop.f32.mrb[0].mxu0
        %v3805 = vadd.f32 %v1516, %v3804
        %v3806 = vpop.f32.mrb[0].mxu0
        %3807 = vdwg.mxu0
        %v3808 = vsel %vm1324, %v3287, -inf
        %3809 = vmax.xlane.f32.xlu0 %v3808
        %v3810 = vpop.xlane.xlu0 %3809
        %v3811 = vsel %vm1324, %v3361, -inf
        %3812 = vmax.xlane.f32.xlu0 %v3811
        %v3813 = vpop.xlane.xlu0 %3812
        %v3814 = vsel %vm1324, %v3435, -inf
        %3815 = vmax.xlane.f32.xlu0 %v3814
        %v3816 = vpop.xlane.xlu0 %3815
        %v3817 = vsel %vm1324, %v3509, -inf
        %3818 = vmax.xlane.f32.xlu0 %v3817
        %v3819 = vpop.xlane.xlu0 %3818
        %v3820 = vsel %vm1324, %v3583, -inf
        %3821 = vmax.xlane.f32.xlu0 %v3820
        %v3822 = vpop.xlane.xlu0 %3821
        %v3823 = vsel %vm1324, %v3657, -inf
        %3824 = vmax.xlane.f32.xlu0 %v3823
        %v3825 = vpop.xlane.xlu0 %3824
        %v3826 = vsel %vm1324, %v3731, -inf
        %3827 = vmax.xlane.f32.xlu0 %v3826
        %v3828 = vpop.xlane.xlu0 %3827
        %v3829 = vsel %vm1324, %v3805, -inf
        %3830 = vmax.xlane.f32.xlu0 %v3829
        %v3831 = vpop.xlane.xlu0 %3830
        %v3832 = vsub.f32 %v3287, %v3810
        %v3833 = vsub.f32 %v3361, %v3813
        %v3834 = vsub.f32 %v3435, %v3816
        %v3835 = vsub.f32 %v3509, %v3819
        %v3836 = vsub.f32 %v3583, %v3822
        %v3837 = vsub.f32 %v3657, %v3825
        %v3838 = vsub.f32 %v3731, %v3828
        %v3839 = vsub.f32 %v3805, %v3831
        %v3840 = vmul.f32 %v3832, 1.442695
        %v3841 = vpow.pop %v3840
        %v3842 = vmul.f32 %v3833, 1.442695
        %v3843 = vpow.pop %v3842
        %v3844 = vmul.f32 %v3834, 1.442695
        %v3845 = vpow.pop %v3844
        %v3846 = vmul.f32 %v3835, 1.442695
        %v3847 = vpow.pop %v3846
        %v3848 = vmul.f32 %v3836, 1.442695
        %v3849 = vpow.pop %v3848
        %v3850 = vmul.f32 %v3837, 1.442695
        %v3851 = vpow.pop %v3850
        %v3852 = vmul.f32 %v3838, 1.442695
        %v3853 = vpow.pop %v3852
        %v3854 = vmul.f32 %v3839, 1.442695
        %v3855 = vpow.pop %v3854
        %v3856 = vsel %vm1324, %v3841, 0.0
        %3857 = vadd.xlane.f32.xlu0 %v3856
        %v3858 = vpop.xlane.xlu0 %3857
        %v3859 = vsel %vm1324, %v3843, 0.0
        %3860 = vadd.xlane.f32.xlu0 %v3859
        %v3861 = vpop.xlane.xlu0 %3860
        %v3862 = vsel %vm1324, %v3845, 0.0
        %3863 = vadd.xlane.f32.xlu0 %v3862
        %v3864 = vpop.xlane.xlu0 %3863
        %v3865 = vsel %vm1324, %v3847, 0.0
        %3866 = vadd.xlane.f32.xlu0 %v3865
        %v3867 = vpop.xlane.xlu0 %3866
        %v3868 = vsel %vm1324, %v3849, 0.0
        %3869 = vadd.xlane.f32.xlu0 %v3868
        %v3870 = vpop.xlane.xlu0 %3869
        %v3871 = vsel %vm1324, %v3851, 0.0
        %3872 = vadd.xlane.f32.xlu0 %v3871
        %v3873 = vpop.xlane.xlu0 %3872
        %v3874 = vsel %vm1324, %v3853, 0.0
        %3875 = vadd.xlane.f32.xlu0 %v3874
        %v3876 = vpop.xlane.xlu0 %3875
        %v3877 = vsel %vm1324, %v3855, 0.0
        %3878 = vadd.xlane.f32.xlu0 %v3877
        %v3879 = vpop.xlane.xlu0 %3878
        %v3880 = vrcp.pop %v3858
        %v3881 = vrcp.pop %v3861
        %v3882 = vrcp.pop %v3864
        %v3883 = vrcp.pop %v3867
        %v3884 = vrcp.pop %v3870
        %v3885 = vrcp.pop %v3873
        %v3886 = vrcp.pop %v3876
        %v3887 = vrcp.pop %v3879
        %v3888 = vmul.f32 %v3841, %v3880
        %v3889 = vmul.f32 %v3843, %v3881
        %v3890 = vmul.f32 %v3845, %v3882
        %v3891 = vmul.f32 %v3847, %v3883
        %v3892 = vmul.f32 %v3849, %v3884
        %v3893 = vmul.f32 %v3851, %v3885
        %v3894 = vmul.f32 %v3853, %v3886
        %v3895 = vmul.f32 %v3855, %v3887
        %3896 = vrot.lane.b32.xlu0 %v1625, 64
        %v3897 = vpop.permute.xlu0 %3896
        %v3898 = vsel %vm1533, %v3897, 0
        %3900 = vmatprep.subr.mxu0 0.0
        %3901 = vmatpush1.xpose.msra.mxu0 %v3898
        %3902 = vmatprep.subr.mxu0 0.0
        %3903 = vmatpush1.xpose.msra.mxu0 0.0
        %3904 = vmatprep.subr.mxu0 0.0
        %3905 = vmatpush1.xpose.msra.mxu0 0.0
        %3906 = vmatprep.subr.mxu0 0.0
        %3907 = vmatpush1.xpose.msra.mxu0 0.0
        %3908 = vmatprep.subr.mxu0 0.0
        %3909 = vmatpush1.xpose.msra.mxu0 0.0
        %3910 = vmatprep.subr.mxu0 0.0
        %3911 = vmatpush1.xpose.msra.mxu0 0.0
        %3912 = vmatprep.subr.mxu0 0.0
        %3913 = vmatpush1.xpose.msra.mxu0 0.0
        %3914 = vmatprep.subr.mxu0 0.0
        %3915 = vmatpush1.xpose.msra.mxu0 0.0
        %3916 = vmatprep.subr.mxu0 0.0
        %3917 = vmatpush1.xpose.msra.mxu0 0.0
        %3918 = vmatprep.subr.mxu0 0.0
        %3919 = vmatpush1.xpose.msra.mxu0 0.0
        %3920 = vmatprep.subr.mxu0 0.0
        %3921 = vmatpush1.xpose.msra.mxu0 0.0
        %3922 = vmatprep.subr.mxu0 0.0
        %3923 = vmatpush1.xpose.msra.mxu0 0.0
        %3924 = vmatprep.subr.mxu0 0.0
        %3925 = vmatpush1.xpose.msra.mxu0 0.0
        %3926 = vmatprep.subr.mxu0 0.0
        %3927 = vmatpush1.xpose.msra.mxu0 0.0
        %3928 = vmatprep.subr.mxu0 0.0
        %3929 = vmatpush1.xpose.msra.mxu0 0.0
        %3930 = vmatprep.subr.mxu0 0.0
        %3931 = vmatpush1.xpose.msra.mxu0 0.0
        %3932 = vmatprep.subr.mxu0 0.0
        %3933 = vmatpush1.xpose.msra.mxu0 0.0
        %3934 = vmatprep.subr.mxu0 0.0
        %3935 = vmatpush1.xpose.msra.mxu0 0.0
        %3936 = vmatprep.subr.mxu0 0.0
        %3937 = vmatpush1.xpose.msra.mxu0 0.0
        %3938 = vmatprep.subr.mxu0 0.0
        %3939 = vmatpush1.xpose.msra.mxu0 0.0
        %3940 = vmatprep.subr.mxu0 0.0
        %3941 = vmatpush1.xpose.msra.mxu0 0.0
        %3942 = vmatprep.subr.mxu0 0.0
        %3943 = vmatpush1.xpose.msra.mxu0 0.0
        %3944 = vmatprep.subr.mxu0 0.0
        %3945 = vmatpush1.xpose.msra.mxu0 0.0
        %3946 = vmatprep.subr.mxu0 0.0
        %3947 = vmatpush1.xpose.msra.mxu0 0.0
        %3948 = vmatprep.subr.mxu0 0.0
        %3949 = vmatpush1.xpose.msra.mxu0 0.0
        %3950 = vmatprep.subr.mxu0 0.0
        %3951 = vmatpush1.xpose.msra.mxu0 0.0
        %3952 = vmatprep.subr.mxu0 0.0
        %3953 = vmatpush1.xpose.msra.mxu0 0.0
        %3954 = vmatprep.subr.mxu0 0.0
        %3955 = vmatpush1.xpose.msra.mxu0 0.0
        %3956 = vmatprep.subr.mxu0 0.0
        %3957 = vmatpush1.xpose.msra.mxu0 0.0
        %3958 = vmatprep.subr.mxu0 0.0
        %3959 = vmatpush1.xpose.msra.mxu0 0.0
        %3960 = vmatprep.subr.mxu0 0.0
        %3961 = vmatpush1.xpose.msra.mxu0 0.0
        %3962 = vmatprep.subr.mxu0 0.0
        %3963 = vmatpush1.xpose.msra.mxu0 0.0
        %3964 = vmatprep.mubr.f32.mxu0 0.0
        %3965 = vmatmul.mubr.f32.gmra.mrb[0].mxu0 %v1672
        %v3966 = vpop.f32.mrb[0].mxu0
        %v3967 = vadd.f32 %v1525, %v3966
        %v3968 = vpop.f32.mrb[0].mxu0
        %3969 = vdwg.mxu0
        %3970 = vrot.lane.b32.xlu0 %v1631, 64
        %v3971 = vpop.permute.xlu0 %3970
        %v3972 = vsel %vm1533, %v3971, 0
        %3974 = vmatprep.subr.mxu0 0.0
        %3975 = vmatpush1.xpose.msra.mxu0 %v3972
        %3976 = vmatprep.subr.mxu0 0.0
        %3977 = vmatpush1.xpose.msra.mxu0 0.0
        %3978 = vmatprep.subr.mxu0 0.0
        %3979 = vmatpush1.xpose.msra.mxu0 0.0
        %3980 = vmatprep.subr.mxu0 0.0
        %3981 = vmatpush1.xpose.msra.mxu0 0.0
        %3982 = vmatprep.subr.mxu0 0.0
        %3983 = vmatpush1.xpose.msra.mxu0 0.0
        %3984 = vmatprep.subr.mxu0 0.0
        %3985 = vmatpush1.xpose.msra.mxu0 0.0
        %3986 = vmatprep.subr.mxu0 0.0
        %3987 = vmatpush1.xpose.msra.mxu0 0.0
        %3988 = vmatprep.subr.mxu0 0.0
        %3989 = vmatpush1.xpose.msra.mxu0 0.0
        %3990 = vmatprep.subr.mxu0 0.0
        %3991 = vmatpush1.xpose.msra.mxu0 0.0
        %3992 = vmatprep.subr.mxu0 0.0
        %3993 = vmatpush1.xpose.msra.mxu0 0.0
        %3994 = vmatprep.subr.mxu0 0.0
        %3995 = vmatpush1.xpose.msra.mxu0 0.0
        %3996 = vmatprep.subr.mxu0 0.0
        %3997 = vmatpush1.xpose.msra.mxu0 0.0
        %3998 = vmatprep.subr.mxu0 0.0
        %3999 = vmatpush1.xpose.msra.mxu0 0.0
        %4000 = vmatprep.subr.mxu0 0.0
        %4001 = vmatpush1.xpose.msra.mxu0 0.0
        %4002 = vmatprep.subr.mxu0 0.0
        %4003 = vmatpush1.xpose.msra.mxu0 0.0
        %4004 = vmatprep.subr.mxu0 0.0
        %4005 = vmatpush1.xpose.msra.mxu0 0.0
        %4006 = vmatprep.subr.mxu0 0.0
        %4007 = vmatpush1.xpose.msra.mxu0 0.0
        %4008 = vmatprep.subr.mxu0 0.0
        %4009 = vmatpush1.xpose.msra.mxu0 0.0
        %4010 = vmatprep.subr.mxu0 0.0
        %4011 = vmatpush1.xpose.msra.mxu0 0.0
        %4012 = vmatprep.subr.mxu0 0.0
        %4013 = vmatpush1.xpose.msra.mxu0 0.0
        %4014 = vmatprep.subr.mxu0 0.0
        %4015 = vmatpush1.xpose.msra.mxu0 0.0
        %4016 = vmatprep.subr.mxu0 0.0
        %4017 = vmatpush1.xpose.msra.mxu0 0.0
        %4018 = vmatprep.subr.mxu0 0.0
        %4019 = vmatpush1.xpose.msra.mxu0 0.0
        %4020 = vmatprep.subr.mxu0 0.0
        %4021 = vmatpush1.xpose.msra.mxu0 0.0
        %4022 = vmatprep.subr.mxu0 0.0
        %4023 = vmatpush1.xpose.msra.mxu0 0.0
        %4024 = vmatprep.subr.mxu0 0.0
        %4025 = vmatpush1.xpose.msra.mxu0 0.0
        %4026 = vmatprep.subr.mxu0 0.0
        %4027 = vmatpush1.xpose.msra.mxu0 0.0
        %4028 = vmatprep.subr.mxu0 0.0
        %4029 = vmatpush1.xpose.msra.mxu0 0.0
        %4030 = vmatprep.subr.mxu0 0.0
        %4031 = vmatpush1.xpose.msra.mxu0 0.0
        %4032 = vmatprep.subr.mxu0 0.0
        %4033 = vmatpush1.xpose.msra.mxu0 0.0
        %4034 = vmatprep.subr.mxu0 0.0
        %4035 = vmatpush1.xpose.msra.mxu0 0.0
        %4036 = vmatprep.subr.mxu0 0.0
        %4037 = vmatpush1.xpose.msra.mxu0 0.0
        %4038 = vmatprep.mubr.f32.mxu0 0.0
        %4039 = vmatmul.mubr.f32.gmra.mrb[0].mxu0 %v1675
        %v4040 = vpop.f32.mrb[0].mxu0
        %v4041 = vadd.f32 %v1526, %v4040
        %v4042 = vpop.f32.mrb[0].mxu0
        %4043 = vdwg.mxu0
        %4044 = vrot.lane.b32.xlu0 %v1637, 64
        %v4045 = vpop.permute.xlu0 %4044
        %v4046 = vsel %vm1533, %v4045, 0
        %4048 = vmatprep.subr.mxu0 0.0
        %4049 = vmatpush1.xpose.msra.mxu0 %v4046
        %4050 = vmatprep.subr.mxu0 0.0
        %4051 = vmatpush1.xpose.msra.mxu0 0.0
        %4052 = vmatprep.subr.mxu0 0.0
        %4053 = vmatpush1.xpose.msra.mxu0 0.0
        %4054 = vmatprep.subr.mxu0 0.0
        %4055 = vmatpush1.xpose.msra.mxu0 0.0
        %4056 = vmatprep.subr.mxu0 0.0
        %4057 = vmatpush1.xpose.msra.mxu0 0.0
        %4058 = vmatprep.subr.mxu0 0.0
        %4059 = vmatpush1.xpose.msra.mxu0 0.0
        %4060 = vmatprep.subr.mxu0 0.0
        %4061 = vmatpush1.xpose.msra.mxu0 0.0
        %4062 = vmatprep.subr.mxu0 0.0
        %4063 = vmatpush1.xpose.msra.mxu0 0.0
        %4064 = vmatprep.subr.mxu0 0.0
        %4065 = vmatpush1.xpose.msra.mxu0 0.0
        %4066 = vmatprep.subr.mxu0 0.0
        %4067 = vmatpush1.xpose.msra.mxu0 0.0
        %4068 = vmatprep.subr.mxu0 0.0
        %4069 = vmatpush1.xpose.msra.mxu0 0.0
        %4070 = vmatprep.subr.mxu0 0.0
        %4071 = vmatpush1.xpose.msra.mxu0 0.0
        %4072 = vmatprep.subr.mxu0 0.0
        %4073 = vmatpush1.xpose.msra.mxu0 0.0
        %4074 = vmatprep.subr.mxu0 0.0
        %4075 = vmatpush1.xpose.msra.mxu0 0.0
        %4076 = vmatprep.subr.mxu0 0.0
        %4077 = vmatpush1.xpose.msra.mxu0 0.0
        %4078 = vmatprep.subr.mxu0 0.0
        %4079 = vmatpush1.xpose.msra.mxu0 0.0
        %4080 = vmatprep.subr.mxu0 0.0
        %4081 = vmatpush1.xpose.msra.mxu0 0.0
        %4082 = vmatprep.subr.mxu0 0.0
        %4083 = vmatpush1.xpose.msra.mxu0 0.0
        %4084 = vmatprep.subr.mxu0 0.0
        %4085 = vmatpush1.xpose.msra.mxu0 0.0
        %4086 = vmatprep.subr.mxu0 0.0
        %4087 = vmatpush1.xpose.msra.mxu0 0.0
        %4088 = vmatprep.subr.mxu0 0.0
        %4089 = vmatpush1.xpose.msra.mxu0 0.0
        %4090 = vmatprep.subr.mxu0 0.0
        %4091 = vmatpush1.xpose.msra.mxu0 0.0
        %4092 = vmatprep.subr.mxu0 0.0
        %4093 = vmatpush1.xpose.msra.mxu0 0.0
        %4094 = vmatprep.subr.mxu0 0.0
        %4095 = vmatpush1.xpose.msra.mxu0 0.0
        %4096 = vmatprep.subr.mxu0 0.0
        %4097 = vmatpush1.xpose.msra.mxu0 0.0
        %4098 = vmatprep.subr.mxu0 0.0
        %4099 = vmatpush1.xpose.msra.mxu0 0.0
        %4100 = vmatprep.subr.mxu0 0.0
        %4101 = vmatpush1.xpose.msra.mxu0 0.0
        %4102 = vmatprep.subr.mxu0 0.0
        %4103 = vmatpush1.xpose.msra.mxu0 0.0
        %4104 = vmatprep.subr.mxu0 0.0
        %4105 = vmatpush1.xpose.msra.mxu0 0.0
        %4106 = vmatprep.subr.mxu0 0.0
        %4107 = vmatpush1.xpose.msra.mxu0 0.0
        %4108 = vmatprep.subr.mxu0 0.0
        %4109 = vmatpush1.xpose.msra.mxu0 0.0
        %4110 = vmatprep.subr.mxu0 0.0
        %4111 = vmatpush1.xpose.msra.mxu0 0.0
        %4112 = vmatprep.mubr.f32.mxu0 0.0
        %4113 = vmatmul.mubr.f32.gmra.mrb[0].mxu0 %v1678
        %v4114 = vpop.f32.mrb[0].mxu0
        %v4115 = vadd.f32 %v1527, %v4114
        %v4116 = vpop.f32.mrb[0].mxu0
        %4117 = vdwg.mxu0
        %4118 = vrot.lane.b32.xlu0 %v1643, 64
        %v4119 = vpop.permute.xlu0 %4118
        %v4120 = vsel %vm1533, %v4119, 0
        %4122 = vmatprep.subr.mxu0 0.0
        %4123 = vmatpush1.xpose.msra.mxu0 %v4120
        %4124 = vmatprep.subr.mxu0 0.0
        %4125 = vmatpush1.xpose.msra.mxu0 0.0
        %4126 = vmatprep.subr.mxu0 0.0
        %4127 = vmatpush1.xpose.msra.mxu0 0.0
        %4128 = vmatprep.subr.mxu0 0.0
        %4129 = vmatpush1.xpose.msra.mxu0 0.0
        %4130 = vmatprep.subr.mxu0 0.0
        %4131 = vmatpush1.xpose.msra.mxu0 0.0
        %4132 = vmatprep.subr.mxu0 0.0
        %4133 = vmatpush1.xpose.msra.mxu0 0.0
        %4134 = vmatprep.subr.mxu0 0.0
        %4135 = vmatpush1.xpose.msra.mxu0 0.0
        %4136 = vmatprep.subr.mxu0 0.0
        %4137 = vmatpush1.xpose.msra.mxu0 0.0
        %4138 = vmatprep.subr.mxu0 0.0
        %4139 = vmatpush1.xpose.msra.mxu0 0.0
        %4140 = vmatprep.subr.mxu0 0.0
        %4141 = vmatpush1.xpose.msra.mxu0 0.0
        %4142 = vmatprep.subr.mxu0 0.0
        %4143 = vmatpush1.xpose.msra.mxu0 0.0
        %4144 = vmatprep.subr.mxu0 0.0
        %4145 = vmatpush1.xpose.msra.mxu0 0.0
        %4146 = vmatprep.subr.mxu0 0.0
        %4147 = vmatpush1.xpose.msra.mxu0 0.0
        %4148 = vmatprep.subr.mxu0 0.0
        %4149 = vmatpush1.xpose.msra.mxu0 0.0
        %4150 = vmatprep.subr.mxu0 0.0
        %4151 = vmatpush1.xpose.msra.mxu0 0.0
        %4152 = vmatprep.subr.mxu0 0.0
        %4153 = vmatpush1.xpose.msra.mxu0 0.0
        %4154 = vmatprep.subr.mxu0 0.0
        %4155 = vmatpush1.xpose.msra.mxu0 0.0
        %4156 = vmatprep.subr.mxu0 0.0
        %4157 = vmatpush1.xpose.msra.mxu0 0.0
        %4158 = vmatprep.subr.mxu0 0.0
        %4159 = vmatpush1.xpose.msra.mxu0 0.0
        %4160 = vmatprep.subr.mxu0 0.0
        %4161 = vmatpush1.xpose.msra.mxu0 0.0
        %4162 = vmatprep.subr.mxu0 0.0
        %4163 = vmatpush1.xpose.msra.mxu0 0.0
        %4164 = vmatprep.subr.mxu0 0.0
        %4165 = vmatpush1.xpose.msra.mxu0 0.0
        %4166 = vmatprep.subr.mxu0 0.0
        %4167 = vmatpush1.xpose.msra.mxu0 0.0
        %4168 = vmatprep.subr.mxu0 0.0
        %4169 = vmatpush1.xpose.msra.mxu0 0.0
        %4170 = vmatprep.subr.mxu0 0.0
        %4171 = vmatpush1.xpose.msra.mxu0 0.0
        %4172 = vmatprep.subr.mxu0 0.0
        %4173 = vmatpush1.xpose.msra.mxu0 0.0
        %4174 = vmatprep.subr.mxu0 0.0
        %4175 = vmatpush1.xpose.msra.mxu0 0.0
        %4176 = vmatprep.subr.mxu0 0.0
        %4177 = vmatpush1.xpose.msra.mxu0 0.0
        %4178 = vmatprep.subr.mxu0 0.0
        %4179 = vmatpush1.xpose.msra.mxu0 0.0
        %4180 = vmatprep.subr.mxu0 0.0
        %4181 = vmatpush1.xpose.msra.mxu0 0.0
        %4182 = vmatprep.subr.mxu0 0.0
        %4183 = vmatpush1.xpose.msra.mxu0 0.0
        %4184 = vmatprep.subr.mxu0 0.0
        %4185 = vmatpush1.xpose.msra.mxu0 0.0
        %4186 = vmatprep.mubr.f32.mxu0 0.0
        %4187 = vmatmul.mubr.f32.gmra.mrb[0].mxu0 %v1681
        %v4188 = vpop.f32.mrb[0].mxu0
        %v4189 = vadd.f32 %v1528, %v4188
        %v4190 = vpop.f32.mrb[0].mxu0
        %4191 = vdwg.mxu0
        %4192 = vrot.lane.b32.xlu0 %v1649, 64
        %v4193 = vpop.permute.xlu0 %4192
        %v4194 = vsel %vm1533, %v4193, 0
        %4196 = vmatprep.subr.mxu0 0.0
        %4197 = vmatpush1.xpose.msra.mxu0 %v4194
        %4198 = vmatprep.subr.mxu0 0.0
        %4199 = vmatpush1.xpose.msra.mxu0 0.0
        %4200 = vmatprep.subr.mxu0 0.0
        %4201 = vmatpush1.xpose.msra.mxu0 0.0
        %4202 = vmatprep.subr.mxu0 0.0
        %4203 = vmatpush1.xpose.msra.mxu0 0.0
        %4204 = vmatprep.subr.mxu0 0.0
        %4205 = vmatpush1.xpose.msra.mxu0 0.0
        %4206 = vmatprep.subr.mxu0 0.0
        %4207 = vmatpush1.xpose.msra.mxu0 0.0
        %4208 = vmatprep.subr.mxu0 0.0
        %4209 = vmatpush1.xpose.msra.mxu0 0.0
        %4210 = vmatprep.subr.mxu0 0.0
        %4211 = vmatpush1.xpose.msra.mxu0 0.0
        %4212 = vmatprep.subr.mxu0 0.0
        %4213 = vmatpush1.xpose.msra.mxu0 0.0
        %4214 = vmatprep.subr.mxu0 0.0
        %4215 = vmatpush1.xpose.msra.mxu0 0.0
        %4216 = vmatprep.subr.mxu0 0.0
        %4217 = vmatpush1.xpose.msra.mxu0 0.0
        %4218 = vmatprep.subr.mxu0 0.0
        %4219 = vmatpush1.xpose.msra.mxu0 0.0
        %4220 = vmatprep.subr.mxu0 0.0
        %4221 = vmatpush1.xpose.msra.mxu0 0.0
        %4222 = vmatprep.subr.mxu0 0.0
        %4223 = vmatpush1.xpose.msra.mxu0 0.0
        %4224 = vmatprep.subr.mxu0 0.0
        %4225 = vmatpush1.xpose.msra.mxu0 0.0
        %4226 = vmatprep.subr.mxu0 0.0
        %4227 = vmatpush1.xpose.msra.mxu0 0.0
        %4228 = vmatprep.subr.mxu0 0.0
        %4229 = vmatpush1.xpose.msra.mxu0 0.0
        %4230 = vmatprep.subr.mxu0 0.0
        %4231 = vmatpush1.xpose.msra.mxu0 0.0
        %4232 = vmatprep.subr.mxu0 0.0
        %4233 = vmatpush1.xpose.msra.mxu0 0.0
        %4234 = vmatprep.subr.mxu0 0.0
        %4235 = vmatpush1.xpose.msra.mxu0 0.0
        %4236 = vmatprep.subr.mxu0 0.0
        %4237 = vmatpush1.xpose.msra.mxu0 0.0
        %4238 = vmatprep.subr.mxu0 0.0
        %4239 = vmatpush1.xpose.msra.mxu0 0.0
        %4240 = vmatprep.subr.mxu0 0.0
        %4241 = vmatpush1.xpose.msra.mxu0 0.0
        %4242 = vmatprep.subr.mxu0 0.0
        %4243 = vmatpush1.xpose.msra.mxu0 0.0
        %4244 = vmatprep.subr.mxu0 0.0
        %4245 = vmatpush1.xpose.msra.mxu0 0.0
        %4246 = vmatprep.subr.mxu0 0.0
        %4247 = vmatpush1.xpose.msra.mxu0 0.0
        %4248 = vmatprep.subr.mxu0 0.0
        %4249 = vmatpush1.xpose.msra.mxu0 0.0
        %4250 = vmatprep.subr.mxu0 0.0
        %4251 = vmatpush1.xpose.msra.mxu0 0.0
        %4252 = vmatprep.subr.mxu0 0.0
        %4253 = vmatpush1.xpose.msra.mxu0 0.0
        %4254 = vmatprep.subr.mxu0 0.0
        %4255 = vmatpush1.xpose.msra.mxu0 0.0
        %4256 = vmatprep.subr.mxu0 0.0
        %4257 = vmatpush1.xpose.msra.mxu0 0.0
        %4258 = vmatprep.subr.mxu0 0.0
        %4259 = vmatpush1.xpose.msra.mxu0 0.0
        %4260 = vmatprep.mubr.f32.mxu0 0.0
        %4261 = vmatmul.mubr.f32.gmra.mrb[0].mxu0 %v1684
        %v4262 = vpop.f32.mrb[0].mxu0
        %v4263 = vadd.f32 %v1529, %v4262
        %v4264 = vpop.f32.mrb[0].mxu0
        %4265 = vdwg.mxu0
        %4266 = vrot.lane.b32.xlu0 %v1655, 64
        %v4267 = vpop.permute.xlu0 %4266
        %v4268 = vsel %vm1533, %v4267, 0
        %4270 = vmatprep.subr.mxu0 0.0
        %4271 = vmatpush1.xpose.msra.mxu0 %v4268
        %4272 = vmatprep.subr.mxu0 0.0
        %4273 = vmatpush1.xpose.msra.mxu0 0.0
        %4274 = vmatprep.subr.mxu0 0.0
        %4275 = vmatpush1.xpose.msra.mxu0 0.0
        %4276 = vmatprep.subr.mxu0 0.0
        %4277 = vmatpush1.xpose.msra.mxu0 0.0
        %4278 = vmatprep.subr.mxu0 0.0
        %4279 = vmatpush1.xpose.msra.mxu0 0.0
        %4280 = vmatprep.subr.mxu0 0.0
        %4281 = vmatpush1.xpose.msra.mxu0 0.0
        %4282 = vmatprep.subr.mxu0 0.0
        %4283 = vmatpush1.xpose.msra.mxu0 0.0
        %4284 = vmatprep.subr.mxu0 0.0
        %4285 = vmatpush1.xpose.msra.mxu0 0.0
        %4286 = vmatprep.subr.mxu0 0.0
        %4287 = vmatpush1.xpose.msra.mxu0 0.0
        %4288 = vmatprep.subr.mxu0 0.0
        %4289 = vmatpush1.xpose.msra.mxu0 0.0
        %4290 = vmatprep.subr.mxu0 0.0
        %4291 = vmatpush1.xpose.msra.mxu0 0.0
        %4292 = vmatprep.subr.mxu0 0.0
        %4293 = vmatpush1.xpose.msra.mxu0 0.0
        %4294 = vmatprep.subr.mxu0 0.0
        %4295 = vmatpush1.xpose.msra.mxu0 0.0
        %4296 = vmatprep.subr.mxu0 0.0
        %4297 = vmatpush1.xpose.msra.mxu0 0.0
        %4298 = vmatprep.subr.mxu0 0.0
        %4299 = vmatpush1.xpose.msra.mxu0 0.0
        %4300 = vmatprep.subr.mxu0 0.0
        %4301 = vmatpush1.xpose.msra.mxu0 0.0
        %4302 = vmatprep.subr.mxu0 0.0
        %4303 = vmatpush1.xpose.msra.mxu0 0.0
        %4304 = vmatprep.subr.mxu0 0.0
        %4305 = vmatpush1.xpose.msra.mxu0 0.0
        %4306 = vmatprep.subr.mxu0 0.0
        %4307 = vmatpush1.xpose.msra.mxu0 0.0
        %4308 = vmatprep.subr.mxu0 0.0
        %4309 = vmatpush1.xpose.msra.mxu0 0.0
        %4310 = vmatprep.subr.mxu0 0.0
        %4311 = vmatpush1.xpose.msra.mxu0 0.0
        %4312 = vmatprep.subr.mxu0 0.0
        %4313 = vmatpush1.xpose.msra.mxu0 0.0
        %4314 = vmatprep.subr.mxu0 0.0
        %4315 = vmatpush1.xpose.msra.mxu0 0.0
        %4316 = vmatprep.subr.mxu0 0.0
        %4317 = vmatpush1.xpose.msra.mxu0 0.0
        %4318 = vmatprep.subr.mxu0 0.0
        %4319 = vmatpush1.xpose.msra.mxu0 0.0
        %4320 = vmatprep.subr.mxu0 0.0
        %4321 = vmatpush1.xpose.msra.mxu0 0.0
        %4322 = vmatprep.subr.mxu0 0.0
        %4323 = vmatpush1.xpose.msra.mxu0 0.0
        %4324 = vmatprep.subr.mxu0 0.0
        %4325 = vmatpush1.xpose.msra.mxu0 0.0
        %4326 = vmatprep.subr.mxu0 0.0
        %4327 = vmatpush1.xpose.msra.mxu0 0.0
        %4328 = vmatprep.subr.mxu0 0.0
        %4329 = vmatpush1.xpose.msra.mxu0 0.0
        %4330 = vmatprep.subr.mxu0 0.0
        %4331 = vmatpush1.xpose.msra.mxu0 0.0
        %4332 = vmatprep.subr.mxu0 0.0
        %4333 = vmatpush1.xpose.msra.mxu0 0.0
        %4334 = vmatprep.mubr.f32.mxu0 0.0
        %4335 = vmatmul.mubr.f32.gmra.mrb[0].mxu0 %v1687
        %v4336 = vpop.f32.mrb[0].mxu0
        %v4337 = vadd.f32 %v1530, %v4336
        %v4338 = vpop.f32.mrb[0].mxu0
        %4339 = vdwg.mxu0
        %4340 = vrot.lane.b32.xlu0 %v1661, 64
        %v4341 = vpop.permute.xlu0 %4340
        %v4342 = vsel %vm1533, %v4341, 0
        %4344 = vmatprep.subr.mxu0 0.0
        %4345 = vmatpush1.xpose.msra.mxu0 %v4342
        %4346 = vmatprep.subr.mxu0 0.0
        %4347 = vmatpush1.xpose.msra.mxu0 0.0
        %4348 = vmatprep.subr.mxu0 0.0
        %4349 = vmatpush1.xpose.msra.mxu0 0.0
        %4350 = vmatprep.subr.mxu0 0.0
        %4351 = vmatpush1.xpose.msra.mxu0 0.0
        %4352 = vmatprep.subr.mxu0 0.0
        %4353 = vmatpush1.xpose.msra.mxu0 0.0
        %4354 = vmatprep.subr.mxu0 0.0
        %4355 = vmatpush1.xpose.msra.mxu0 0.0
        %4356 = vmatprep.subr.mxu0 0.0
        %4357 = vmatpush1.xpose.msra.mxu0 0.0
        %4358 = vmatprep.subr.mxu0 0.0
        %4359 = vmatpush1.xpose.msra.mxu0 0.0
        %4360 = vmatprep.subr.mxu0 0.0
        %4361 = vmatpush1.xpose.msra.mxu0 0.0
        %4362 = vmatprep.subr.mxu0 0.0
        %4363 = vmatpush1.xpose.msra.mxu0 0.0
        %4364 = vmatprep.subr.mxu0 0.0
        %4365 = vmatpush1.xpose.msra.mxu0 0.0
        %4366 = vmatprep.subr.mxu0 0.0
        %4367 = vmatpush1.xpose.msra.mxu0 0.0
        %4368 = vmatprep.subr.mxu0 0.0
        %4369 = vmatpush1.xpose.msra.mxu0 0.0
        %4370 = vmatprep.subr.mxu0 0.0
        %4371 = vmatpush1.xpose.msra.mxu0 0.0
        %4372 = vmatprep.subr.mxu0 0.0
        %4373 = vmatpush1.xpose.msra.mxu0 0.0
        %4374 = vmatprep.subr.mxu0 0.0
        %4375 = vmatpush1.xpose.msra.mxu0 0.0
        %4376 = vmatprep.subr.mxu0 0.0
        %4377 = vmatpush1.xpose.msra.mxu0 0.0
        %4378 = vmatprep.subr.mxu0 0.0
        %4379 = vmatpush1.xpose.msra.mxu0 0.0
        %4380 = vmatprep.subr.mxu0 0.0
        %4381 = vmatpush1.xpose.msra.mxu0 0.0
        %4382 = vmatprep.subr.mxu0 0.0
        %4383 = vmatpush1.xpose.msra.mxu0 0.0
        %4384 = vmatprep.subr.mxu0 0.0
        %4385 = vmatpush1.xpose.msra.mxu0 0.0
        %4386 = vmatprep.subr.mxu0 0.0
        %4387 = vmatpush1.xpose.msra.mxu0 0.0
        %4388 = vmatprep.subr.mxu0 0.0
        %4389 = vmatpush1.xpose.msra.mxu0 0.0
        %4390 = vmatprep.subr.mxu0 0.0
        %4391 = vmatpush1.xpose.msra.mxu0 0.0
        %4392 = vmatprep.subr.mxu0 0.0
        %4393 = vmatpush1.xpose.msra.mxu0 0.0
        %4394 = vmatprep.subr.mxu0 0.0
        %4395 = vmatpush1.xpose.msra.mxu0 0.0
        %4396 = vmatprep.subr.mxu0 0.0
        %4397 = vmatpush1.xpose.msra.mxu0 0.0
        %4398 = vmatprep.subr.mxu0 0.0
        %4399 = vmatpush1.xpose.msra.mxu0 0.0
        %4400 = vmatprep.subr.mxu0 0.0
        %4401 = vmatpush1.xpose.msra.mxu0 0.0
        %4402 = vmatprep.subr.mxu0 0.0
        %4403 = vmatpush1.xpose.msra.mxu0 0.0
        %4404 = vmatprep.subr.mxu0 0.0
        %4405 = vmatpush1.xpose.msra.mxu0 0.0
        %4406 = vmatprep.subr.mxu0 0.0
        %4407 = vmatpush1.xpose.msra.mxu0 0.0
        %4408 = vmatprep.mubr.f32.mxu0 0.0
        %4409 = vmatmul.mubr.f32.gmra.mrb[0].mxu0 %v1690
        %v4410 = vpop.f32.mrb[0].mxu0
        %v4411 = vadd.f32 %v1531, %v4410
        %v4412 = vpop.f32.mrb[0].mxu0
        %4413 = vdwg.mxu0
        %4414 = vrot.lane.b32.xlu0 %v1667, 64
        %v4415 = vpop.permute.xlu0 %4414
        %v4416 = vsel %vm1533, %v4415, 0
        %4418 = vmatprep.subr.mxu0 0.0
        %4419 = vmatpush1.xpose.msra.mxu0 %v4416
        %4420 = vmatprep.subr.mxu0 0.0
        %4421 = vmatpush1.xpose.msra.mxu0 0.0
        %4422 = vmatprep.subr.mxu0 0.0
        %4423 = vmatpush1.xpose.msra.mxu0 0.0
        %4424 = vmatprep.subr.mxu0 0.0
        %4425 = vmatpush1.xpose.msra.mxu0 0.0
        %4426 = vmatprep.subr.mxu0 0.0
        %4427 = vmatpush1.xpose.msra.mxu0 0.0
        %4428 = vmatprep.subr.mxu0 0.0
        %4429 = vmatpush1.xpose.msra.mxu0 0.0
        %4430 = vmatprep.subr.mxu0 0.0
        %4431 = vmatpush1.xpose.msra.mxu0 0.0
        %4432 = vmatprep.subr.mxu0 0.0
        %4433 = vmatpush1.xpose.msra.mxu0 0.0
        %4434 = vmatprep.subr.mxu0 0.0
        %4435 = vmatpush1.xpose.msra.mxu0 0.0
        %4436 = vmatprep.subr.mxu0 0.0
        %4437 = vmatpush1.xpose.msra.mxu0 0.0
        %4438 = vmatprep.subr.mxu0 0.0
        %4439 = vmatpush1.xpose.msra.mxu0 0.0
        %4440 = vmatprep.subr.mxu0 0.0
        %4441 = vmatpush1.xpose.msra.mxu0 0.0
        %4442 = vmatprep.subr.mxu0 0.0
        %4443 = vmatpush1.xpose.msra.mxu0 0.0
        %4444 = vmatprep.subr.mxu0 0.0
        %4445 = vmatpush1.xpose.msra.mxu0 0.0
        %4446 = vmatprep.subr.mxu0 0.0
        %4447 = vmatpush1.xpose.msra.mxu0 0.0
        %4448 = vmatprep.subr.mxu0 0.0
        %4449 = vmatpush1.xpose.msra.mxu0 0.0
        %4450 = vmatprep.subr.mxu0 0.0
        %4451 = vmatpush1.xpose.msra.mxu0 0.0
        %4452 = vmatprep.subr.mxu0 0.0
        %4453 = vmatpush1.xpose.msra.mxu0 0.0
        %4454 = vmatprep.subr.mxu0 0.0
        %4455 = vmatpush1.xpose.msra.mxu0 0.0
        %4456 = vmatprep.subr.mxu0 0.0
        %4457 = vmatpush1.xpose.msra.mxu0 0.0
        %4458 = vmatprep.subr.mxu0 0.0
        %4459 = vmatpush1.xpose.msra.mxu0 0.0
        %4460 = vmatprep.subr.mxu0 0.0
        %4461 = vmatpush1.xpose.msra.mxu0 0.0
        %4462 = vmatprep.subr.mxu0 0.0
        %4463 = vmatpush1.xpose.msra.mxu0 0.0
        %4464 = vmatprep.subr.mxu0 0.0
        %4465 = vmatpush1.xpose.msra.mxu0 0.0
        %4466 = vmatprep.subr.mxu0 0.0
        %4467 = vmatpush1.xpose.msra.mxu0 0.0
        %4468 = vmatprep.subr.mxu0 0.0
        %4469 = vmatpush1.xpose.msra.mxu0 0.0
        %4470 = vmatprep.subr.mxu0 0.0
        %4471 = vmatpush1.xpose.msra.mxu0 0.0
        %4472 = vmatprep.subr.mxu0 0.0
        %4473 = vmatpush1.xpose.msra.mxu0 0.0
        %4474 = vmatprep.subr.mxu0 0.0
        %4475 = vmatpush1.xpose.msra.mxu0 0.0
        %4476 = vmatprep.subr.mxu0 0.0
        %4477 = vmatpush1.xpose.msra.mxu0 0.0
        %4478 = vmatprep.subr.mxu0 0.0
        %4479 = vmatpush1.xpose.msra.mxu0 0.0
        %4480 = vmatprep.subr.mxu0 0.0
        %4481 = vmatpush1.xpose.msra.mxu0 0.0
        %4482 = vmatprep.mubr.f32.mxu0 0.0
        %4483 = vmatmul.mubr.f32.gmra.mrb[0].mxu0 %v1693
        %v4484 = vpop.f32.mrb[0].mxu0
        %v4485 = vadd.f32 %v1532, %v4484
        %v4486 = vpop.f32.mrb[0].mxu0
        %4487 = vdwg.mxu0
        %v4488 = vsel %vm1324, %v3967, -inf
        %4489 = vmax.xlane.f32.xlu0 %v4488
        %v4490 = vpop.xlane.xlu0 %4489
        %v4491 = vsel %vm1324, %v4041, -inf
        %4492 = vmax.xlane.f32.xlu0 %v4491
        %v4493 = vpop.xlane.xlu0 %4492
        %v4494 = vsel %vm1324, %v4115, -inf
        %4495 = vmax.xlane.f32.xlu0 %v4494
        %v4496 = vpop.xlane.xlu0 %4495
        %v4497 = vsel %vm1324, %v4189, -inf
        %4498 = vmax.xlane.f32.xlu0 %v4497
        %v4499 = vpop.xlane.xlu0 %4498
        %v4500 = vsel %vm1324, %v4263, -inf
        %4501 = vmax.xlane.f32.xlu0 %v4500
        %v4502 = vpop.xlane.xlu0 %4501
        %v4503 = vsel %vm1324, %v4337, -inf
        %4504 = vmax.xlane.f32.xlu0 %v4503
        %v4505 = vpop.xlane.xlu0 %4504
        %v4506 = vsel %vm1324, %v4411, -inf
        %4507 = vmax.xlane.f32.xlu0 %v4506
        %v4508 = vpop.xlane.xlu0 %4507
        %v4509 = vsel %vm1324, %v4485, -inf
        %4510 = vmax.xlane.f32.xlu0 %v4509
        %v4511 = vpop.xlane.xlu0 %4510
        %v4512 = vsub.f32 %v3967, %v4490
        %v4513 = vsub.f32 %v4041, %v4493
        %v4514 = vsub.f32 %v4115, %v4496
        %v4515 = vsub.f32 %v4189, %v4499
        %v4516 = vsub.f32 %v4263, %v4502
        %v4517 = vsub.f32 %v4337, %v4505
        %v4518 = vsub.f32 %v4411, %v4508
        %v4519 = vsub.f32 %v4485, %v4511
        %v4520 = vmul.f32 %v4512, 1.442695
        %v4521 = vpow.pop %v4520
        %v4522 = vmul.f32 %v4513, 1.442695
        %v4523 = vpow.pop %v4522
        %v4524 = vmul.f32 %v4514, 1.442695
        %v4525 = vpow.pop %v4524
        %v4526 = vmul.f32 %v4515, 1.442695
        %v4527 = vpow.pop %v4526
        %v4528 = vmul.f32 %v4516, 1.442695
        %v4529 = vpow.pop %v4528
        %v4530 = vmul.f32 %v4517, 1.442695
        %v4531 = vpow.pop %v4530
        %v4532 = vmul.f32 %v4518, 1.442695
        %v4533 = vpow.pop %v4532
        %v4534 = vmul.f32 %v4519, 1.442695
        %v4535 = vpow.pop %v4534
        %v4536 = vsel %vm1324, %v4521, 0.0
        %4537 = vadd.xlane.f32.xlu0 %v4536
        %v4538 = vpop.xlane.xlu0 %4537
        %v4539 = vsel %vm1324, %v4523, 0.0
        %4540 = vadd.xlane.f32.xlu0 %v4539
        %v4541 = vpop.xlane.xlu0 %4540
        %v4542 = vsel %vm1324, %v4525, 0.0
        %4543 = vadd.xlane.f32.xlu0 %v4542
        %v4544 = vpop.xlane.xlu0 %4543
        %v4545 = vsel %vm1324, %v4527, 0.0
        %4546 = vadd.xlane.f32.xlu0 %v4545
        %v4547 = vpop.xlane.xlu0 %4546
        %v4548 = vsel %vm1324, %v4529, 0.0
        %4549 = vadd.xlane.f32.xlu0 %v4548
        %v4550 = vpop.xlane.xlu0 %4549
        %v4551 = vsel %vm1324, %v4531, 0.0
        %4552 = vadd.xlane.f32.xlu0 %v4551
        %v4553 = vpop.xlane.xlu0 %4552
        %v4554 = vsel %vm1324, %v4533, 0.0
        %4555 = vadd.xlane.f32.xlu0 %v4554
        %v4556 = vpop.xlane.xlu0 %4555
        %v4557 = vsel %vm1324, %v4535, 0.0
        %4558 = vadd.xlane.f32.xlu0 %v4557
        %v4559 = vpop.xlane.xlu0 %4558
        %v4560 = vrcp.pop %v4538
        %v4561 = vrcp.pop %v4541
        %v4562 = vrcp.pop %v4544
        %v4563 = vrcp.pop %v4547
        %v4564 = vrcp.pop %v4550
        %v4565 = vrcp.pop %v4553
        %v4566 = vrcp.pop %v4556
        %v4567 = vrcp.pop %v4559
        %v4568 = vmul.f32 %v4521, %v4560
        %v4569 = vmul.f32 %v4523, %v4561
        %v4570 = vmul.f32 %v4525, %v4562
        %v4571 = vmul.f32 %v4527, %v4563
        %v4572 = vmul.f32 %v4529, %v4564
        %v4573 = vmul.f32 %v4531, %v4565
        %v4574 = vmul.f32 %v4533, %v4566
        %v4575 = vmul.f32 %v4535, %v4567
        %v4577 = vlaneseq
        %v4578 = vshrl.u32 %v4577, 7
        %v4579 = vsub.s32 0, %v4578
        %v4580 = vrot.slane %v995, %v4579
        %4581 = vrot.lane.b32.xlu0 %v4580, 96
        %v4582 = vpop.permute.xlu0 %4581
        %v4584 = vadd.f32 %v1625, %v4582
        %v4585 = vadd.f32 %v1631, %v4582
        %v4586 = vadd.f32 %v1637, %v4582
        %v4587 = vadd.f32 %v1643, %v4582
        %v4588 = vadd.f32 %v1649, %v4582
        %v4589 = vadd.f32 %v1655, %v4582
        %v4590 = vadd.f32 %v1661, %v4582
        %v4591 = vadd.f32 %v1667, %v4582
        %v4592 = vadd.f32 %v1762, %v4582
        %v4593 = vadd.f32 %v1768, %v4582
        %v4594 = vadd.f32 %v1774, %v4582
        %v4595 = vadd.f32 %v1780, %v4582
        %v4596 = vadd.f32 %v1786, %v4582
        %v4597 = vadd.f32 %v1792, %v4582
        %v4598 = vadd.f32 %v1798, %v4582
        %v4599 = vadd.f32 %v1804, %v4582
        %v4600 = vmul.f32 %v2504, %v1116
        %v4601 = vmul.f32 %v2505, %v1117
        %v4602 = vmul.f32 %v2506, %v1118
        %v4603 = vmul.f32 %v2507, %v1119
        %v4604 = vmul.f32 %v2508, %v1120
        %v4605 = vmul.f32 %v2509, %v1121
        %v4606 = vmul.f32 %v2510, %v1122
        %v4607 = vmul.f32 %v2511, %v1123
        %v4608 = vmul.f32 %v2504, %v1124
        %v4609 = vmul.f32 %v2505, %v1125
        %v4610 = vmul.f32 %v2506, %v1126
        %v4611 = vmul.f32 %v2507, %v1127
        %v4612 = vmul.f32 %v2508, %v1128
        %v4613 = vmul.f32 %v2509, %v1129
        %v4614 = vmul.f32 %v2510, %v1130
        %v4615 = vmul.f32 %v2511, %v1131
        %v4616 = vmul.f32 %v3888, %v1276
        %v4617 = vmul.f32 %v3889, %v1277
        %v4618 = vmul.f32 %v3890, %v1278
        %v4619 = vmul.f32 %v3891, %v1279
        %v4620 = vmul.f32 %v3892, %v1280
        %v4621 = vmul.f32 %v3893, %v1281
        %v4622 = vmul.f32 %v3894, %v1282
        %v4623 = vmul.f32 %v3895, %v1283
        %v4624 = vmul.f32 %v3888, %v1284
        %v4625 = vmul.f32 %v3889, %v1285
        %v4626 = vmul.f32 %v3890, %v1286
        %v4627 = vmul.f32 %v3891, %v1287
        %v4628 = vmul.f32 %v3892, %v1288
        %v4629 = vmul.f32 %v3893, %v1289
        %v4630 = vmul.f32 %v3894, %v1290
        %v4631 = vmul.f32 %v3895, %v1291
        %4640 = vrot.lane.b32.xlu0 %v4608, 8
        %v4641 = vpop.permute.xlu0 %4640
        %4642 = vrot.lane.b32.xlu0 %v4609, 8
        %v4643 = vpop.permute.xlu0 %4642
        %4644 = vrot.lane.b32.xlu0 %v4610, 8
        %v4645 = vpop.permute.xlu0 %4644
        %4646 = vrot.lane.b32.xlu0 %v4611, 8
        %v4647 = vpop.permute.xlu0 %4646
        %4648 = vrot.lane.b32.xlu0 %v4612, 8
        %v4649 = vpop.permute.xlu0 %4648
        %4650 = vrot.lane.b32.xlu0 %v4613, 8
        %v4651 = vpop.permute.xlu0 %4650
        %4652 = vrot.lane.b32.xlu0 %v4614, 8
        %v4653 = vpop.permute.xlu0 %4652
        %4654 = vrot.lane.b32.xlu0 %v4615, 8
        %v4655 = vpop.permute.xlu0 %4654
        %4672 = vrot.lane.b32.xlu0 %v4616, 16
        %v4673 = vpop.permute.xlu0 %4672
        %4674 = vrot.lane.b32.xlu0 %v4617, 16
        %v4675 = vpop.permute.xlu0 %4674
        %4676 = vrot.lane.b32.xlu0 %v4618, 16
        %v4677 = vpop.permute.xlu0 %4676
        %4678 = vrot.lane.b32.xlu0 %v4619, 16
        %v4679 = vpop.permute.xlu0 %4678
        %4680 = vrot.lane.b32.xlu0 %v4620, 16
        %v4681 = vpop.permute.xlu0 %4680
        %4682 = vrot.lane.b32.xlu0 %v4621, 16
        %v4683 = vpop.permute.xlu0 %4682
        %4684 = vrot.lane.b32.xlu0 %v4622, 16
        %v4685 = vpop.permute.xlu0 %4684
        %4686 = vrot.lane.b32.xlu0 %v4623, 16
        %v4687 = vpop.permute.xlu0 %4686
        %4704 = vrot.lane.b32.xlu0 %v4624, 24
        %v4705 = vpop.permute.xlu0 %4704
        %4706 = vrot.lane.b32.xlu0 %v4625, 24
        %v4707 = vpop.permute.xlu0 %4706
        %4708 = vrot.lane.b32.xlu0 %v4626, 24
        %v4709 = vpop.permute.xlu0 %4708
        %4710 = vrot.lane.b32.xlu0 %v4627, 24
        %v4711 = vpop.permute.xlu0 %4710
        %4712 = vrot.lane.b32.xlu0 %v4628, 24
        %v4713 = vpop.permute.xlu0 %4712
        %4714 = vrot.lane.b32.xlu0 %v4629, 24
        %v4715 = vpop.permute.xlu0 %4714
        %4716 = vrot.lane.b32.xlu0 %v4630, 24
        %v4717 = vpop.permute.xlu0 %4716
        %4718 = vrot.lane.b32.xlu0 %v4631, 24
        %v4719 = vpop.permute.xlu0 %4718
        %v4728 = vsel %vm1324, %v4600, %v4641
        %v4729 = vsel %vm1324, %v4601, %v4643
        %v4730 = vsel %vm1324, %v4602, %v4645
        %v4731 = vsel %vm1324, %v4603, %v4647
        %v4732 = vsel %vm1324, %v4604, %v4649
        %v4733 = vsel %vm1324, %v4605, %v4651
        %v4734 = vsel %vm1324, %v4606, %v4653
        %v4735 = vsel %vm1324, %v4607, %v4655
        %vm4736 = vcmask 130048
        %v4737 = vsel %vm4736, %v4728, %v4673
        %v4738 = vsel %vm4736, %v4729, %v4675
        %v4739 = vsel %vm4736, %v4730, %v4677
        %v4740 = vsel %vm4736, %v4731, %v4679
        %v4741 = vsel %vm4736, %v4732, %v4681
        %v4742 = vsel %vm4736, %v4733, %v4683
        %v4743 = vsel %vm4736, %v4734, %v4685
        %v4744 = vsel %vm4736, %v4735, %v4687
        %vm4745 = vcmask 195584
        %v4746 = vsel %vm4745, %v4737, %v4705
        %v4747 = vsel %vm4745, %v4738, %v4707
        %v4748 = vsel %vm4745, %v4739, %v4709
        %v4749 = vsel %vm4745, %v4740, %v4711
        %v4750 = vsel %vm4745, %v4741, %v4713
        %v4751 = vsel %vm4745, %v4742, %v4715
        %v4752 = vsel %vm4745, %v4743, %v4717
        %v4753 = vsel %vm4745, %v4744, %v4719
        %4762 = vrot.lane.b32.xlu0 %v1627, 64
        %v4763 = vpop.permute.xlu0 %4762
        %4764 = vrot.lane.b32.xlu0 %v1633, 64
        %v4765 = vpop.permute.xlu0 %4764
        %4766 = vrot.lane.b32.xlu0 %v1639, 64
        %v4767 = vpop.permute.xlu0 %4766
        %4768 = vrot.lane.b32.xlu0 %v1645, 64
        %v4769 = vpop.permute.xlu0 %4768
        %4770 = vrot.lane.b32.xlu0 %v1651, 64
        %v4771 = vpop.permute.xlu0 %4770
        %4772 = vrot.lane.b32.xlu0 %v1657, 64
        %v4773 = vpop.permute.xlu0 %4772
        %4774 = vrot.lane.b32.xlu0 %v1663, 64
        %v4775 = vpop.permute.xlu0 %4774
        %4776 = vrot.lane.b32.xlu0 %v1669, 64
        %v4777 = vpop.permute.xlu0 %4776
        %4794 = vrot.lane.b32.xlu0 %v1764, 96
        %v4795 = vpop.permute.xlu0 %4794
        %4796 = vrot.lane.b32.xlu0 %v1770, 96
        %v4797 = vpop.permute.xlu0 %4796
        %4798 = vrot.lane.b32.xlu0 %v1776, 96
        %v4799 = vpop.permute.xlu0 %4798
        %4800 = vrot.lane.b32.xlu0 %v1782, 96
        %v4801 = vpop.permute.xlu0 %4800
        %4802 = vrot.lane.b32.xlu0 %v1788, 96
        %v4803 = vpop.permute.xlu0 %4802
        %4804 = vrot.lane.b32.xlu0 %v1794, 96
        %v4805 = vpop.permute.xlu0 %4804
        %4806 = vrot.lane.b32.xlu0 %v1800, 96
        %v4807 = vpop.permute.xlu0 %4806
        %4808 = vrot.lane.b32.xlu0 %v1806, 96
        %v4809 = vpop.permute.xlu0 %4808
        %4818 = vrot.lane.b32.xlu0 %v1764, 32
        %v4819 = vpop.permute.xlu0 %4818
        %4820 = vrot.lane.b32.xlu0 %v1770, 32
        %v4821 = vpop.permute.xlu0 %4820
        %4822 = vrot.lane.b32.xlu0 %v1776, 32
        %v4823 = vpop.permute.xlu0 %4822
        %4824 = vrot.lane.b32.xlu0 %v1782, 32
        %v4825 = vpop.permute.xlu0 %4824
        %4826 = vrot.lane.b32.xlu0 %v1788, 32
        %v4827 = vpop.permute.xlu0 %4826
        %4828 = vrot.lane.b32.xlu0 %v1794, 32
        %v4829 = vpop.permute.xlu0 %4828
        %4830 = vrot.lane.b32.xlu0 %v1800, 32
        %v4831 = vpop.permute.xlu0 %4830
        %4832 = vrot.lane.b32.xlu0 %v1806, 32
        %v4833 = vpop.permute.xlu0 %4832
        %v4843 = vsel %vm1533, %v4746, 0
        %4845 = vmatprep.subr.mxu0 0.0
        %4846 = vmatpush1.msra.mxu0 %v1627
        %4847 = vmatprep.subr.mxu0 0.0
        %4848 = vmatpush1.msra.mxu0 %v4763
        %4849 = vmatprep.subr.mxu0 0.0
        %4850 = vmatpush1.msra.mxu0 %v4795
        %4851 = vmatprep.subr.mxu0 0.0
        %4852 = vmatpush1.msra.mxu0 %v4819
        %4853 = vmatprep.subr.mxu0 0.0
        %4854 = vmatpush1.msra.mxu0 0.0
        %4855 = vmatprep.subr.mxu0 0.0
        %4856 = vmatpush1.msra.mxu0 0.0
        %4857 = vmatprep.subr.mxu0 0.0
        %4858 = vmatpush1.msra.mxu0 0.0
        %4859 = vmatprep.subr.mxu0 0.0
        %4860 = vmatpush1.msra.mxu0 0.0
        %4861 = vmatprep.subr.mxu0 0.0
        %4862 = vmatpush1.msra.mxu0 0.0
        %4863 = vmatprep.subr.mxu0 0.0
        %4864 = vmatpush1.msra.mxu0 0.0
        %4865 = vmatprep.subr.mxu0 0.0
        %4866 = vmatpush1.msra.mxu0 0.0
        %4867 = vmatprep.subr.mxu0 0.0
        %4868 = vmatpush1.msra.mxu0 0.0
        %4869 = vmatprep.subr.mxu0 0.0
        %4870 = vmatpush1.msra.mxu0 0.0
        %4871 = vmatprep.subr.mxu0 0.0
        %4872 = vmatpush1.msra.mxu0 0.0
        %4873 = vmatprep.subr.mxu0 0.0
        %4874 = vmatpush1.msra.mxu0 0.0
        %4875 = vmatprep.subr.mxu0 0.0
        %4876 = vmatpush1.msra.mxu0 0.0
        %4877 = vmatprep.subr.mxu0 0.0
        %4878 = vmatpush1.msra.mxu0 0.0
        %4879 = vmatprep.subr.mxu0 0.0
        %4880 = vmatpush1.msra.mxu0 0.0
        %4881 = vmatprep.subr.mxu0 0.0
        %4882 = vmatpush1.msra.mxu0 0.0
        %4883 = vmatprep.subr.mxu0 0.0
        %4884 = vmatpush1.msra.mxu0 0.0
        %4885 = vmatprep.subr.mxu0 0.0
        %4886 = vmatpush1.msra.mxu0 0.0
        %4887 = vmatprep.subr.mxu0 0.0
        %4888 = vmatpush1.msra.mxu0 0.0
        %4889 = vmatprep.subr.mxu0 0.0
        %4890 = vmatpush1.msra.mxu0 0.0
        %4891 = vmatprep.subr.mxu0 0.0
        %4892 = vmatpush1.msra.mxu0 0.0
        %4893 = vmatprep.subr.mxu0 0.0
        %4894 = vmatpush1.msra.mxu0 0.0
        %4895 = vmatprep.subr.mxu0 0.0
        %4896 = vmatpush1.msra.mxu0 0.0
        %4897 = vmatprep.subr.mxu0 0.0
        %4898 = vmatpush1.msra.mxu0 0.0
        %4899 = vmatprep.subr.mxu0 0.0
        %4900 = vmatpush1.msra.mxu0 0.0
        %4901 = vmatprep.subr.mxu0 0.0
        %4902 = vmatpush1.msra.mxu0 0.0
        %4903 = vmatprep.subr.mxu0 0.0
        %4904 = vmatpush1.msra.mxu0 0.0
        %4905 = vmatprep.subr.mxu0 0.0
        %4906 = vmatpush1.msra.mxu0 0.0
        %4907 = vmatprep.subr.mxu0 0.0
        %4908 = vmatpush1.msra.mxu0 0.0
        %4909 = vmatprep.mubr.f32.mxu0 0.0
        %4910 = vmatmul.mubr.f32.gmra.mrb[0].mxu0 %v4843
        %v4911 = vpop.f32.mrb[0].mxu0
        %v4912 = vadd.f32 0.0, %v4911
        %v4913 = vpop.f32.mrb[0].mxu0
        %4914 = vdwg.mxu0
        %v4916 = vsel %vm1533, %v4747, 0
        %4918 = vmatprep.subr.mxu0 0.0
        %4919 = vmatpush1.msra.mxu0 %v1633
        %4920 = vmatprep.subr.mxu0 0.0
        %4921 = vmatpush1.msra.mxu0 %v4765
        %4922 = vmatprep.subr.mxu0 0.0
        %4923 = vmatpush1.msra.mxu0 %v4797
        %4924 = vmatprep.subr.mxu0 0.0
        %4925 = vmatpush1.msra.mxu0 %v4821
        %4926 = vmatprep.subr.mxu0 0.0
        %4927 = vmatpush1.msra.mxu0 0.0
        %4928 = vmatprep.subr.mxu0 0.0
        %4929 = vmatpush1.msra.mxu0 0.0
        %4930 = vmatprep.subr.mxu0 0.0
        %4931 = vmatpush1.msra.mxu0 0.0
        %4932 = vmatprep.subr.mxu0 0.0
        %4933 = vmatpush1.msra.mxu0 0.0
        %4934 = vmatprep.subr.mxu0 0.0
        %4935 = vmatpush1.msra.mxu0 0.0
        %4936 = vmatprep.subr.mxu0 0.0
        %4937 = vmatpush1.msra.mxu0 0.0
        %4938 = vmatprep.subr.mxu0 0.0
        %4939 = vmatpush1.msra.mxu0 0.0
        %4940 = vmatprep.subr.mxu0 0.0
        %4941 = vmatpush1.msra.mxu0 0.0
        %4942 = vmatprep.subr.mxu0 0.0
        %4943 = vmatpush1.msra.mxu0 0.0
        %4944 = vmatprep.subr.mxu0 0.0
        %4945 = vmatpush1.msra.mxu0 0.0
        %4946 = vmatprep.subr.mxu0 0.0
        %4947 = vmatpush1.msra.mxu0 0.0
        %4948 = vmatprep.subr.mxu0 0.0
        %4949 = vmatpush1.msra.mxu0 0.0
        %4950 = vmatprep.subr.mxu0 0.0
        %4951 = vmatpush1.msra.mxu0 0.0
        %4952 = vmatprep.subr.mxu0 0.0
        %4953 = vmatpush1.msra.mxu0 0.0
        %4954 = vmatprep.subr.mxu0 0.0
        %4955 = vmatpush1.msra.mxu0 0.0
        %4956 = vmatprep.subr.mxu0 0.0
        %4957 = vmatpush1.msra.mxu0 0.0
        %4958 = vmatprep.subr.mxu0 0.0
        %4959 = vmatpush1.msra.mxu0 0.0
        %4960 = vmatprep.subr.mxu0 0.0
        %4961 = vmatpush1.msra.mxu0 0.0
        %4962 = vmatprep.subr.mxu0 0.0
        %4963 = vmatpush1.msra.mxu0 0.0
        %4964 = vmatprep.subr.mxu0 0.0
        %4965 = vmatpush1.msra.mxu0 0.0
        %4966 = vmatprep.subr.mxu0 0.0
        %4967 = vmatpush1.msra.mxu0 0.0
        %4968 = vmatprep.subr.mxu0 0.0
        %4969 = vmatpush1.msra.mxu0 0.0
        %4970 = vmatprep.subr.mxu0 0.0
        %4971 = vmatpush1.msra.mxu0 0.0
        %4972 = vmatprep.subr.mxu0 0.0
        %4973 = vmatpush1.msra.mxu0 0.0
        %4974 = vmatprep.subr.mxu0 0.0
        %4975 = vmatpush1.msra.mxu0 0.0
        %4976 = vmatprep.subr.mxu0 0.0
        %4977 = vmatpush1.msra.mxu0 0.0
        %4978 = vmatprep.subr.mxu0 0.0
        %4979 = vmatpush1.msra.mxu0 0.0
        %4980 = vmatprep.subr.mxu0 0.0
        %4981 = vmatpush1.msra.mxu0 0.0
        %4982 = vmatprep.mubr.f32.mxu0 0.0
        %4983 = vmatmul.mubr.f32.gmra.mrb[0].mxu0 %v4916
        %v4984 = vpop.f32.mrb[0].mxu0
        %v4985 = vadd.f32 0.0, %v4984
        %v4986 = vpop.f32.mrb[0].mxu0
        %4987 = vdwg.mxu0
        %v4989 = vsel %vm1533, %v4748, 0
        %4991 = vmatprep.subr.mxu0 0.0
        %4992 = vmatpush1.msra.mxu0 %v1639
        %4993 = vmatprep.subr.mxu0 0.0
        %4994 = vmatpush1.msra.mxu0 %v4767
        %4995 = vmatprep.subr.mxu0 0.0
        %4996 = vmatpush1.msra.mxu0 %v4799
        %4997 = vmatprep.subr.mxu0 0.0
        %4998 = vmatpush1.msra.mxu0 %v4823
        %4999 = vmatprep.subr.mxu0 0.0
        %5000 = vmatpush1.msra.mxu0 0.0
        %5001 = vmatprep.subr.mxu0 0.0
        %5002 = vmatpush1.msra.mxu0 0.0
        %5003 = vmatprep.subr.mxu0 0.0
        %5004 = vmatpush1.msra.mxu0 0.0
        %5005 = vmatprep.subr.mxu0 0.0
        %5006 = vmatpush1.msra.mxu0 0.0
        %5007 = vmatprep.subr.mxu0 0.0
        %5008 = vmatpush1.msra.mxu0 0.0
        %5009 = vmatprep.subr.mxu0 0.0
        %5010 = vmatpush1.msra.mxu0 0.0
        %5011 = vmatprep.subr.mxu0 0.0
        %5012 = vmatpush1.msra.mxu0 0.0
        %5013 = vmatprep.subr.mxu0 0.0
        %5014 = vmatpush1.msra.mxu0 0.0
        %5015 = vmatprep.subr.mxu0 0.0
        %5016 = vmatpush1.msra.mxu0 0.0
        %5017 = vmatprep.subr.mxu0 0.0
        %5018 = vmatpush1.msra.mxu0 0.0
        %5019 = vmatprep.subr.mxu0 0.0
        %5020 = vmatpush1.msra.mxu0 0.0
        %5021 = vmatprep.subr.mxu0 0.0
        %5022 = vmatpush1.msra.mxu0 0.0
        %5023 = vmatprep.subr.mxu0 0.0
        %5024 = vmatpush1.msra.mxu0 0.0
        %5025 = vmatprep.subr.mxu0 0.0
        %5026 = vmatpush1.msra.mxu0 0.0
        %5027 = vmatprep.subr.mxu0 0.0
        %5028 = vmatpush1.msra.mxu0 0.0
        %5029 = vmatprep.subr.mxu0 0.0
        %5030 = vmatpush1.msra.mxu0 0.0
        %5031 = vmatprep.subr.mxu0 0.0
        %5032 = vmatpush1.msra.mxu0 0.0
        %5033 = vmatprep.subr.mxu0 0.0
        %5034 = vmatpush1.msra.mxu0 0.0
        %5035 = vmatprep.subr.mxu0 0.0
        %5036 = vmatpush1.msra.mxu0 0.0
        %5037 = vmatprep.subr.mxu0 0.0
        %5038 = vmatpush1.msra.mxu0 0.0
        %5039 = vmatprep.subr.mxu0 0.0
        %5040 = vmatpush1.msra.mxu0 0.0
        %5041 = vmatprep.subr.mxu0 0.0
        %5042 = vmatpush1.msra.mxu0 0.0
        %5043 = vmatprep.subr.mxu0 0.0
        %5044 = vmatpush1.msra.mxu0 0.0
        %5045 = vmatprep.subr.mxu0 0.0
        %5046 = vmatpush1.msra.mxu0 0.0
        %5047 = vmatprep.subr.mxu0 0.0
        %5048 = vmatpush1.msra.mxu0 0.0
        %5049 = vmatprep.subr.mxu0 0.0
        %5050 = vmatpush1.msra.mxu0 0.0
        %5051 = vmatprep.subr.mxu0 0.0
        %5052 = vmatpush1.msra.mxu0 0.0
        %5053 = vmatprep.subr.mxu0 0.0
        %5054 = vmatpush1.msra.mxu0 0.0
        %5055 = vmatprep.mubr.f32.mxu0 0.0
        %5056 = vmatmul.mubr.f32.gmra.mrb[0].mxu0 %v4989
        %v5057 = vpop.f32.mrb[0].mxu0
        %v5058 = vadd.f32 0.0, %v5057
        %v5059 = vpop.f32.mrb[0].mxu0
        %5060 = vdwg.mxu0
        %v5062 = vsel %vm1533, %v4749, 0
        %5064 = vmatprep.subr.mxu0 0.0
        %5065 = vmatpush1.msra.mxu0 %v1645
        %5066 = vmatprep.subr.mxu0 0.0
        %5067 = vmatpush1.msra.mxu0 %v4769
        %5068 = vmatprep.subr.mxu0 0.0
        %5069 = vmatpush1.msra.mxu0 %v4801
        %5070 = vmatprep.subr.mxu0 0.0
        %5071 = vmatpush1.msra.mxu0 %v4825
        %5072 = vmatprep.subr.mxu0 0.0
        %5073 = vmatpush1.msra.mxu0 0.0
        %5074 = vmatprep.subr.mxu0 0.0
        %5075 = vmatpush1.msra.mxu0 0.0
        %5076 = vmatprep.subr.mxu0 0.0
        %5077 = vmatpush1.msra.mxu0 0.0
        %5078 = vmatprep.subr.mxu0 0.0
        %5079 = vmatpush1.msra.mxu0 0.0
        %5080 = vmatprep.subr.mxu0 0.0
        %5081 = vmatpush1.msra.mxu0 0.0
        %5082 = vmatprep.subr.mxu0 0.0
        %5083 = vmatpush1.msra.mxu0 0.0
        %5084 = vmatprep.subr.mxu0 0.0
        %5085 = vmatpush1.msra.mxu0 0.0
        %5086 = vmatprep.subr.mxu0 0.0
        %5087 = vmatpush1.msra.mxu0 0.0
        %5088 = vmatprep.subr.mxu0 0.0
        %5089 = vmatpush1.msra.mxu0 0.0
        %5090 = vmatprep.subr.mxu0 0.0
        %5091 = vmatpush1.msra.mxu0 0.0
        %5092 = vmatprep.subr.mxu0 0.0
        %5093 = vmatpush1.msra.mxu0 0.0
        %5094 = vmatprep.subr.mxu0 0.0
        %5095 = vmatpush1.msra.mxu0 0.0
        %5096 = vmatprep.subr.mxu0 0.0
        %5097 = vmatpush1.msra.mxu0 0.0
        %5098 = vmatprep.subr.mxu0 0.0
        %5099 = vmatpush1.msra.mxu0 0.0
        %5100 = vmatprep.subr.mxu0 0.0
        %5101 = vmatpush1.msra.mxu0 0.0
        %5102 = vmatprep.subr.mxu0 0.0
        %5103 = vmatpush1.msra.mxu0 0.0
        %5104 = vmatprep.subr.mxu0 0.0
        %5105 = vmatpush1.msra.mxu0 0.0
        %5106 = vmatprep.subr.mxu0 0.0
        %5107 = vmatpush1.msra.mxu0 0.0
        %5108 = vmatprep.subr.mxu0 0.0
        %5109 = vmatpush1.msra.mxu0 0.0
        %5110 = vmatprep.subr.mxu0 0.0
        %5111 = vmatpush1.msra.mxu0 0.0
        %5112 = vmatprep.subr.mxu0 0.0
        %5113 = vmatpush1.msra.mxu0 0.0
        %5114 = vmatprep.subr.mxu0 0.0
        %5115 = vmatpush1.msra.mxu0 0.0
        %5116 = vmatprep.subr.mxu0 0.0
        %5117 = vmatpush1.msra.mxu0 0.0
        %5118 = vmatprep.subr.mxu0 0.0
        %5119 = vmatpush1.msra.mxu0 0.0
        %5120 = vmatprep.subr.mxu0 0.0
        %5121 = vmatpush1.msra.mxu0 0.0
        %5122 = vmatprep.subr.mxu0 0.0
        %5123 = vmatpush1.msra.mxu0 0.0
        %5124 = vmatprep.subr.mxu0 0.0
        %5125 = vmatpush1.msra.mxu0 0.0
        %5126 = vmatprep.subr.mxu0 0.0
        %5127 = vmatpush1.msra.mxu0 0.0
        %5128 = vmatprep.mubr.f32.mxu0 0.0
        %5129 = vmatmul.mubr.f32.gmra.mrb[0].mxu0 %v5062
        %v5130 = vpop.f32.mrb[0].mxu0
        %v5131 = vadd.f32 0.0, %v5130
        %v5132 = vpop.f32.mrb[0].mxu0
        %5133 = vdwg.mxu0
        %v5135 = vsel %vm1533, %v4750, 0
        %5137 = vmatprep.subr.mxu0 0.0
        %5138 = vmatpush1.msra.mxu0 %v1651
        %5139 = vmatprep.subr.mxu0 0.0
        %5140 = vmatpush1.msra.mxu0 %v4771
        %5141 = vmatprep.subr.mxu0 0.0
        %5142 = vmatpush1.msra.mxu0 %v4803
        %5143 = vmatprep.subr.mxu0 0.0
        %5144 = vmatpush1.msra.mxu0 %v4827
        %5145 = vmatprep.subr.mxu0 0.0
        %5146 = vmatpush1.msra.mxu0 0.0
        %5147 = vmatprep.subr.mxu0 0.0
        %5148 = vmatpush1.msra.mxu0 0.0
        %5149 = vmatprep.subr.mxu0 0.0
        %5150 = vmatpush1.msra.mxu0 0.0
        %5151 = vmatprep.subr.mxu0 0.0
        %5152 = vmatpush1.msra.mxu0 0.0
        %5153 = vmatprep.subr.mxu0 0.0
        %5154 = vmatpush1.msra.mxu0 0.0
        %5155 = vmatprep.subr.mxu0 0.0
        %5156 = vmatpush1.msra.mxu0 0.0
        %5157 = vmatprep.subr.mxu0 0.0
        %5158 = vmatpush1.msra.mxu0 0.0
        %5159 = vmatprep.subr.mxu0 0.0
        %5160 = vmatpush1.msra.mxu0 0.0
        %5161 = vmatprep.subr.mxu0 0.0
        %5162 = vmatpush1.msra.mxu0 0.0
        %5163 = vmatprep.subr.mxu0 0.0
        %5164 = vmatpush1.msra.mxu0 0.0
        %5165 = vmatprep.subr.mxu0 0.0
        %5166 = vmatpush1.msra.mxu0 0.0
        %5167 = vmatprep.subr.mxu0 0.0
        %5168 = vmatpush1.msra.mxu0 0.0
        %5169 = vmatprep.subr.mxu0 0.0
        %5170 = vmatpush1.msra.mxu0 0.0
        %5171 = vmatprep.subr.mxu0 0.0
        %5172 = vmatpush1.msra.mxu0 0.0
        %5173 = vmatprep.subr.mxu0 0.0
        %5174 = vmatpush1.msra.mxu0 0.0
        %5175 = vmatprep.subr.mxu0 0.0
        %5176 = vmatpush1.msra.mxu0 0.0
        %5177 = vmatprep.subr.mxu0 0.0
        %5178 = vmatpush1.msra.mxu0 0.0
        %5179 = vmatprep.subr.mxu0 0.0
        %5180 = vmatpush1.msra.mxu0 0.0
        %5181 = vmatprep.subr.mxu0 0.0
        %5182 = vmatpush1.msra.mxu0 0.0
        %5183 = vmatprep.subr.mxu0 0.0
        %5184 = vmatpush1.msra.mxu0 0.0
        %5185 = vmatprep.subr.mxu0 0.0
        %5186 = vmatpush1.msra.mxu0 0.0
        %5187 = vmatprep.subr.mxu0 0.0
        %5188 = vmatpush1.msra.mxu0 0.0
        %5189 = vmatprep.subr.mxu0 0.0
        %5190 = vmatpush1.msra.mxu0 0.0
        %5191 = vmatprep.subr.mxu0 0.0
        %5192 = vmatpush1.msra.mxu0 0.0
        %5193 = vmatprep.subr.mxu0 0.0
        %5194 = vmatpush1.msra.mxu0 0.0
        %5195 = vmatprep.subr.mxu0 0.0
        %5196 = vmatpush1.msra.mxu0 0.0
        %5197 = vmatprep.subr.mxu0 0.0
        %5198 = vmatpush1.msra.mxu0 0.0
        %5199 = vmatprep.subr.mxu0 0.0
        %5200 = vmatpush1.msra.mxu0 0.0
        %5201 = vmatprep.mubr.f32.mxu0 0.0
        %5202 = vmatmul.mubr.f32.gmra.mrb[0].mxu0 %v5135
        %v5203 = vpop.f32.mrb[0].mxu0
        %v5204 = vadd.f32 0.0, %v5203
        %v5205 = vpop.f32.mrb[0].mxu0
        %5206 = vdwg.mxu0
        %v5208 = vsel %vm1533, %v4751, 0
        %5210 = vmatprep.subr.mxu0 0.0
        %5211 = vmatpush1.msra.mxu0 %v1657
        %5212 = vmatprep.subr.mxu0 0.0
        %5213 = vmatpush1.msra.mxu0 %v4773
        %5214 = vmatprep.subr.mxu0 0.0
        %5215 = vmatpush1.msra.mxu0 %v4805
        %5216 = vmatprep.subr.mxu0 0.0
        %5217 = vmatpush1.msra.mxu0 %v4829
        %5218 = vmatprep.subr.mxu0 0.0
        %5219 = vmatpush1.msra.mxu0 0.0
        %5220 = vmatprep.subr.mxu0 0.0
        %5221 = vmatpush1.msra.mxu0 0.0
        %5222 = vmatprep.subr.mxu0 0.0
        %5223 = vmatpush1.msra.mxu0 0.0
        %5224 = vmatprep.subr.mxu0 0.0
        %5225 = vmatpush1.msra.mxu0 0.0
        %5226 = vmatprep.subr.mxu0 0.0
        %5227 = vmatpush1.msra.mxu0 0.0
        %5228 = vmatprep.subr.mxu0 0.0
        %5229 = vmatpush1.msra.mxu0 0.0
        %5230 = vmatprep.subr.mxu0 0.0
        %5231 = vmatpush1.msra.mxu0 0.0
        %5232 = vmatprep.subr.mxu0 0.0
        %5233 = vmatpush1.msra.mxu0 0.0
        %5234 = vmatprep.subr.mxu0 0.0
        %5235 = vmatpush1.msra.mxu0 0.0
        %5236 = vmatprep.subr.mxu0 0.0
        %5237 = vmatpush1.msra.mxu0 0.0
        %5238 = vmatprep.subr.mxu0 0.0
        %5239 = vmatpush1.msra.mxu0 0.0
        %5240 = vmatprep.subr.mxu0 0.0
        %5241 = vmatpush1.msra.mxu0 0.0
        %5242 = vmatprep.subr.mxu0 0.0
        %5243 = vmatpush1.msra.mxu0 0.0
        %5244 = vmatprep.subr.mxu0 0.0
        %5245 = vmatpush1.msra.mxu0 0.0
        %5246 = vmatprep.subr.mxu0 0.0
        %5247 = vmatpush1.msra.mxu0 0.0
        %5248 = vmatprep.subr.mxu0 0.0
        %5249 = vmatpush1.msra.mxu0 0.0
        %5250 = vmatprep.subr.mxu0 0.0
        %5251 = vmatpush1.msra.mxu0 0.0
        %5252 = vmatprep.subr.mxu0 0.0
        %5253 = vmatpush1.msra.mxu0 0.0
        %5254 = vmatprep.subr.mxu0 0.0
        %5255 = vmatpush1.msra.mxu0 0.0
        %5256 = vmatprep.subr.mxu0 0.0
        %5257 = vmatpush1.msra.mxu0 0.0
        %5258 = vmatprep.subr.mxu0 0.0
        %5259 = vmatpush1.msra.mxu0 0.0
        %5260 = vmatprep.subr.mxu0 0.0
        %5261 = vmatpush1.msra.mxu0 0.0
        %5262 = vmatprep.subr.mxu0 0.0
        %5263 = vmatpush1.msra.mxu0 0.0
        %5264 = vmatprep.subr.mxu0 0.0
        %5265 = vmatpush1.msra.mxu0 0.0
        %5266 = vmatprep.subr.mxu0 0.0
        %5267 = vmatpush1.msra.mxu0 0.0
        %5268 = vmatprep.subr.mxu0 0.0
        %5269 = vmatpush1.msra.mxu0 0.0
        %5270 = vmatprep.subr.mxu0 0.0
        %5271 = vmatpush1.msra.mxu0 0.0
        %5272 = vmatprep.subr.mxu0 0.0
        %5273 = vmatpush1.msra.mxu0 0.0
        %5274 = vmatprep.mubr.f32.mxu0 0.0
        %5275 = vmatmul.mubr.f32.gmra.mrb[0].mxu0 %v5208
        %v5276 = vpop.f32.mrb[0].mxu0
        %v5277 = vadd.f32 0.0, %v5276
        %v5278 = vpop.f32.mrb[0].mxu0
        %5279 = vdwg.mxu0
        %v5281 = vsel %vm1533, %v4752, 0
        %5283 = vmatprep.subr.mxu0 0.0
        %5284 = vmatpush1.msra.mxu0 %v1663
        %5285 = vmatprep.subr.mxu0 0.0
        %5286 = vmatpush1.msra.mxu0 %v4775
        %5287 = vmatprep.subr.mxu0 0.0
        %5288 = vmatpush1.msra.mxu0 %v4807
        %5289 = vmatprep.subr.mxu0 0.0
        %5290 = vmatpush1.msra.mxu0 %v4831
        %5291 = vmatprep.subr.mxu0 0.0
        %5292 = vmatpush1.msra.mxu0 0.0
        %5293 = vmatprep.subr.mxu0 0.0
        %5294 = vmatpush1.msra.mxu0 0.0
        %5295 = vmatprep.subr.mxu0 0.0
        %5296 = vmatpush1.msra.mxu0 0.0
        %5297 = vmatprep.subr.mxu0 0.0
        %5298 = vmatpush1.msra.mxu0 0.0
        %5299 = vmatprep.subr.mxu0 0.0
        %5300 = vmatpush1.msra.mxu0 0.0
        %5301 = vmatprep.subr.mxu0 0.0
        %5302 = vmatpush1.msra.mxu0 0.0
        %5303 = vmatprep.subr.mxu0 0.0
        %5304 = vmatpush1.msra.mxu0 0.0
        %5305 = vmatprep.subr.mxu0 0.0
        %5306 = vmatpush1.msra.mxu0 0.0
        %5307 = vmatprep.subr.mxu0 0.0
        %5308 = vmatpush1.msra.mxu0 0.0
        %5309 = vmatprep.subr.mxu0 0.0
        %5310 = vmatpush1.msra.mxu0 0.0
        %5311 = vmatprep.subr.mxu0 0.0
        %5312 = vmatpush1.msra.mxu0 0.0
        %5313 = vmatprep.subr.mxu0 0.0
        %5314 = vmatpush1.msra.mxu0 0.0
        %5315 = vmatprep.subr.mxu0 0.0
        %5316 = vmatpush1.msra.mxu0 0.0
        %5317 = vmatprep.subr.mxu0 0.0
        %5318 = vmatpush1.msra.mxu0 0.0
        %5319 = vmatprep.subr.mxu0 0.0
        %5320 = vmatpush1.msra.mxu0 0.0
        %5321 = vmatprep.subr.mxu0 0.0
        %5322 = vmatpush1.msra.mxu0 0.0
        %5323 = vmatprep.subr.mxu0 0.0
        %5324 = vmatpush1.msra.mxu0 0.0
        %5325 = vmatprep.subr.mxu0 0.0
        %5326 = vmatpush1.msra.mxu0 0.0
        %5327 = vmatprep.subr.mxu0 0.0
        %5328 = vmatpush1.msra.mxu0 0.0
        %5329 = vmatprep.subr.mxu0 0.0
        %5330 = vmatpush1.msra.mxu0 0.0
        %5331 = vmatprep.subr.mxu0 0.0
        %5332 = vmatpush1.msra.mxu0 0.0
        %5333 = vmatprep.subr.mxu0 0.0
        %5334 = vmatpush1.msra.mxu0 0.0
        %5335 = vmatprep.subr.mxu0 0.0
        %5336 = vmatpush1.msra.mxu0 0.0
        %5337 = vmatprep.subr.mxu0 0.0
        %5338 = vmatpush1.msra.mxu0 0.0
        %5339 = vmatprep.subr.mxu0 0.0
        %5340 = vmatpush1.msra.mxu0 0.0
        %5341 = vmatprep.subr.mxu0 0.0
        %5342 = vmatpush1.msra.mxu0 0.0
        %5343 = vmatprep.subr.mxu0 0.0
        %5344 = vmatpush1.msra.mxu0 0.0
        %5345 = vmatprep.subr.mxu0 0.0
        %5346 = vmatpush1.msra.mxu0 0.0
        %5347 = vmatprep.mubr.f32.mxu0 0.0
        %5348 = vmatmul.mubr.f32.gmra.mrb[0].mxu0 %v5281
        %v5349 = vpop.f32.mrb[0].mxu0
        %v5350 = vadd.f32 0.0, %v5349
        %v5351 = vpop.f32.mrb[0].mxu0
        %5352 = vdwg.mxu0
        %v5354 = vsel %vm1533, %v4753, 0
        %5356 = vmatprep.subr.mxu0 0.0
        %5357 = vmatpush1.msra.mxu0 %v1669
        %5358 = vmatprep.subr.mxu0 0.0
        %5359 = vmatpush1.msra.mxu0 %v4777
        %5360 = vmatprep.subr.mxu0 0.0
        %5361 = vmatpush1.msra.mxu0 %v4809
        %5362 = vmatprep.subr.mxu0 0.0
        %5363 = vmatpush1.msra.mxu0 %v4833
        %5364 = vmatprep.subr.mxu0 0.0
        %5365 = vmatpush1.msra.mxu0 0.0
        %5366 = vmatprep.subr.mxu0 0.0
        %5367 = vmatpush1.msra.mxu0 0.0
        %5368 = vmatprep.subr.mxu0 0.0
        %5369 = vmatpush1.msra.mxu0 0.0
        %5370 = vmatprep.subr.mxu0 0.0
        %5371 = vmatpush1.msra.mxu0 0.0
        %5372 = vmatprep.subr.mxu0 0.0
        %5373 = vmatpush1.msra.mxu0 0.0
        %5374 = vmatprep.subr.mxu0 0.0
        %5375 = vmatpush1.msra.mxu0 0.0
        %5376 = vmatprep.subr.mxu0 0.0
        %5377 = vmatpush1.msra.mxu0 0.0
        %5378 = vmatprep.subr.mxu0 0.0
        %5379 = vmatpush1.msra.mxu0 0.0
        %5380 = vmatprep.subr.mxu0 0.0
        %5381 = vmatpush1.msra.mxu0 0.0
        %5382 = vmatprep.subr.mxu0 0.0
        %5383 = vmatpush1.msra.mxu0 0.0
        %5384 = vmatprep.subr.mxu0 0.0
        %5385 = vmatpush1.msra.mxu0 0.0
        %5386 = vmatprep.subr.mxu0 0.0
        %5387 = vmatpush1.msra.mxu0 0.0
        %5388 = vmatprep.subr.mxu0 0.0
        %5389 = vmatpush1.msra.mxu0 0.0
        %5390 = vmatprep.subr.mxu0 0.0
        %5391 = vmatpush1.msra.mxu0 0.0
        %5392 = vmatprep.subr.mxu0 0.0
        %5393 = vmatpush1.msra.mxu0 0.0
        %5394 = vmatprep.subr.mxu0 0.0
        %5395 = vmatpush1.msra.mxu0 0.0
        %5396 = vmatprep.subr.mxu0 0.0
        %5397 = vmatpush1.msra.mxu0 0.0
        %5398 = vmatprep.subr.mxu0 0.0
        %5399 = vmatpush1.msra.mxu0 0.0
        %5400 = vmatprep.subr.mxu0 0.0
        %5401 = vmatpush1.msra.mxu0 0.0
        %5402 = vmatprep.subr.mxu0 0.0
        %5403 = vmatpush1.msra.mxu0 0.0
        %5404 = vmatprep.subr.mxu0 0.0
        %5405 = vmatpush1.msra.mxu0 0.0
        %5406 = vmatprep.subr.mxu0 0.0
        %5407 = vmatpush1.msra.mxu0 0.0
        %5408 = vmatprep.subr.mxu0 0.0
        %5409 = vmatpush1.msra.mxu0 0.0
        %5410 = vmatprep.subr.mxu0 0.0
        %5411 = vmatpush1.msra.mxu0 0.0
        %5412 = vmatprep.subr.mxu0 0.0
        %5413 = vmatpush1.msra.mxu0 0.0
        %5414 = vmatprep.subr.mxu0 0.0
        %5415 = vmatpush1.msra.mxu0 0.0
        %5416 = vmatprep.subr.mxu0 0.0
        %5417 = vmatpush1.msra.mxu0 0.0
        %5418 = vmatprep.subr.mxu0 0.0
        %5419 = vmatpush1.msra.mxu0 0.0
        %5420 = vmatprep.mubr.f32.mxu0 0.0
        %5421 = vmatmul.mubr.f32.gmra.mrb[0].mxu0 %v5354
        %v5422 = vpop.f32.mrb[0].mxu0
        %v5423 = vadd.f32 0.0, %v5422
        %v5424 = vpop.f32.mrb[0].mxu0
        %5425 = vdwg.mxu0
        %v5426 = vmul.f32 %v4912, %v1445
        %v5427 = vmul.f32 %v4985, %v1446
        %v5428 = vmul.f32 %v5058, %v1447
        %v5429 = vmul.f32 %v5131, %v1448
        %v5430 = vmul.f32 %v5204, %v1449
        %v5431 = vmul.f32 %v5277, %v1450
        %v5432 = vmul.f32 %v5350, %v1451
        %v5433 = vmul.f32 %v5423, %v1452
        %v5434 = vmul.f32 %v3208, %v1244
        %v5435 = vmul.f32 %v3209, %v1245
        %v5436 = vmul.f32 %v3210, %v1246
        %v5437 = vmul.f32 %v3211, %v1247
        %v5438 = vmul.f32 %v3212, %v1248
        %v5439 = vmul.f32 %v3213, %v1249
        %v5440 = vmul.f32 %v3214, %v1250
        %v5441 = vmul.f32 %v3215, %v1251
        %v5442 = vmul.f32 %v3208, %v1252
        %v5443 = vmul.f32 %v3209, %v1253
        %v5444 = vmul.f32 %v3210, %v1254
        %v5445 = vmul.f32 %v3211, %v1255
        %v5446 = vmul.f32 %v3212, %v1256
        %v5447 = vmul.f32 %v3213, %v1257
        %v5448 = vmul.f32 %v3214, %v1258
        %v5449 = vmul.f32 %v3215, %v1259
        %v5450 = vmul.f32 %v4568, %v1308
        %v5451 = vmul.f32 %v4569, %v1309
        %v5452 = vmul.f32 %v4570, %v1310
        %v5453 = vmul.f32 %v4571, %v1311
        %v5454 = vmul.f32 %v4572, %v1312
        %v5455 = vmul.f32 %v4573, %v1313
        %v5456 = vmul.f32 %v4574, %v1314
        %v5457 = vmul.f32 %v4575, %v1315
        %v5458 = vmul.f32 %v4568, %v1316
        %v5459 = vmul.f32 %v4569, %v1317
        %v5460 = vmul.f32 %v4570, %v1318
        %v5461 = vmul.f32 %v4571, %v1319
        %v5462 = vmul.f32 %v4572, %v1320
        %v5463 = vmul.f32 %v4573, %v1321
        %v5464 = vmul.f32 %v4574, %v1322
        %v5465 = vmul.f32 %v4575, %v1323
        %5474 = vrot.lane.b32.xlu0 %v5442, 8
        %v5475 = vpop.permute.xlu0 %5474
        %5476 = vrot.lane.b32.xlu0 %v5443, 8
        %v5477 = vpop.permute.xlu0 %5476
        %5478 = vrot.lane.b32.xlu0 %v5444, 8
        %v5479 = vpop.permute.xlu0 %5478
        %5480 = vrot.lane.b32.xlu0 %v5445, 8
        %v5481 = vpop.permute.xlu0 %5480
        %5482 = vrot.lane.b32.xlu0 %v5446, 8
        %v5483 = vpop.permute.xlu0 %5482
        %5484 = vrot.lane.b32.xlu0 %v5447, 8
        %v5485 = vpop.permute.xlu0 %5484
        %5486 = vrot.lane.b32.xlu0 %v5448, 8
        %v5487 = vpop.permute.xlu0 %5486
        %5488 = vrot.lane.b32.xlu0 %v5449, 8
        %v5489 = vpop.permute.xlu0 %5488
        %5506 = vrot.lane.b32.xlu0 %v5450, 16
        %v5507 = vpop.permute.xlu0 %5506
        %5508 = vrot.lane.b32.xlu0 %v5451, 16
        %v5509 = vpop.permute.xlu0 %5508
        %5510 = vrot.lane.b32.xlu0 %v5452, 16
        %v5511 = vpop.permute.xlu0 %5510
        %5512 = vrot.lane.b32.xlu0 %v5453, 16
        %v5513 = vpop.permute.xlu0 %5512
        %5514 = vrot.lane.b32.xlu0 %v5454, 16
        %v5515 = vpop.permute.xlu0 %5514
        %5516 = vrot.lane.b32.xlu0 %v5455, 16
        %v5517 = vpop.permute.xlu0 %5516
        %5518 = vrot.lane.b32.xlu0 %v5456, 16
        %v5519 = vpop.permute.xlu0 %5518
        %5520 = vrot.lane.b32.xlu0 %v5457, 16
        %v5521 = vpop.permute.xlu0 %5520
        %5538 = vrot.lane.b32.xlu0 %v5458, 24
        %v5539 = vpop.permute.xlu0 %5538
        %5540 = vrot.lane.b32.xlu0 %v5459, 24
        %v5541 = vpop.permute.xlu0 %5540
        %5542 = vrot.lane.b32.xlu0 %v5460, 24
        %v5543 = vpop.permute.xlu0 %5542
        %5544 = vrot.lane.b32.xlu0 %v5461, 24
        %v5545 = vpop.permute.xlu0 %5544
        %5546 = vrot.lane.b32.xlu0 %v5462, 24
        %v5547 = vpop.permute.xlu0 %5546
        %5548 = vrot.lane.b32.xlu0 %v5463, 24
        %v5549 = vpop.permute.xlu0 %5548
        %5550 = vrot.lane.b32.xlu0 %v5464, 24
        %v5551 = vpop.permute.xlu0 %5550
        %5552 = vrot.lane.b32.xlu0 %v5465, 24
        %v5553 = vpop.permute.xlu0 %5552
        %v5562 = vsel %vm1324, %v5434, %v5475
        %v5563 = vsel %vm1324, %v5435, %v5477
        %v5564 = vsel %vm1324, %v5436, %v5479
        %v5565 = vsel %vm1324, %v5437, %v5481
        %v5566 = vsel %vm1324, %v5438, %v5483
        %v5567 = vsel %vm1324, %v5439, %v5485
        %v5568 = vsel %vm1324, %v5440, %v5487
        %v5569 = vsel %vm1324, %v5441, %v5489
        %v5570 = vsel %vm4736, %v5562, %v5507
        %v5571 = vsel %vm4736, %v5563, %v5509
        %v5572 = vsel %vm4736, %v5564, %v5511
        %v5573 = vsel %vm4736, %v5565, %v5513
        %v5574 = vsel %vm4736, %v5566, %v5515
        %v5575 = vsel %vm4736, %v5567, %v5517
        %v5576 = vsel %vm4736, %v5568, %v5519
        %v5577 = vsel %vm4736, %v5569, %v5521
        %v5578 = vsel %vm4745, %v5570, %v5539
        %v5579 = vsel %vm4745, %v5571, %v5541
        %v5580 = vsel %vm4745, %v5572, %v5543
        %v5581 = vsel %vm4745, %v5573, %v5545
        %v5582 = vsel %vm4745, %v5574, %v5547
        %v5583 = vsel %vm4745, %v5575, %v5549
        %v5584 = vsel %vm4745, %v5576, %v5551
        %v5585 = vsel %vm4745, %v5577, %v5553
        %5586 = vrot.lane.b32.xlu0 %v1764, 64
        %v5587 = vpop.permute.xlu0 %5586
        %5588 = vrot.lane.b32.xlu0 %v1770, 64
        %v5589 = vpop.permute.xlu0 %5588
        %5590 = vrot.lane.b32.xlu0 %v1776, 64
        %v5591 = vpop.permute.xlu0 %5590
        %5592 = vrot.lane.b32.xlu0 %v1782, 64
        %v5593 = vpop.permute.xlu0 %5592
        %5594 = vrot.lane.b32.xlu0 %v1788, 64
        %v5595 = vpop.permute.xlu0 %5594
        %5596 = vrot.lane.b32.xlu0 %v1794, 64
        %v5597 = vpop.permute.xlu0 %5596
        %5598 = vrot.lane.b32.xlu0 %v1800, 64
        %v5599 = vpop.permute.xlu0 %5598
        %5600 = vrot.lane.b32.xlu0 %v1806, 64
        %v5601 = vpop.permute.xlu0 %5600
        %5610 = vrot.lane.b32.xlu0 %v1627, 96
        %v5611 = vpop.permute.xlu0 %5610
        %5612 = vrot.lane.b32.xlu0 %v1633, 96
        %v5613 = vpop.permute.xlu0 %5612
        %5614 = vrot.lane.b32.xlu0 %v1639, 96
        %v5615 = vpop.permute.xlu0 %5614
        %5616 = vrot.lane.b32.xlu0 %v1645, 96
        %v5617 = vpop.permute.xlu0 %5616
        %5618 = vrot.lane.b32.xlu0 %v1651, 96
        %v5619 = vpop.permute.xlu0 %5618
        %5620 = vrot.lane.b32.xlu0 %v1657, 96
        %v5621 = vpop.permute.xlu0 %5620
        %5622 = vrot.lane.b32.xlu0 %v1663, 96
        %v5623 = vpop.permute.xlu0 %5622
        %5624 = vrot.lane.b32.xlu0 %v1669, 96
        %v5625 = vpop.permute.xlu0 %5624
        %5634 = vrot.lane.b32.xlu0 %v1627, 32
        %v5635 = vpop.permute.xlu0 %5634
        %5636 = vrot.lane.b32.xlu0 %v1633, 32
        %v5637 = vpop.permute.xlu0 %5636
        %5638 = vrot.lane.b32.xlu0 %v1639, 32
        %v5639 = vpop.permute.xlu0 %5638
        %5640 = vrot.lane.b32.xlu0 %v1645, 32
        %v5641 = vpop.permute.xlu0 %5640
        %5642 = vrot.lane.b32.xlu0 %v1651, 32
        %v5643 = vpop.permute.xlu0 %5642
        %5644 = vrot.lane.b32.xlu0 %v1657, 32
        %v5645 = vpop.permute.xlu0 %5644
        %5646 = vrot.lane.b32.xlu0 %v1663, 32
        %v5647 = vpop.permute.xlu0 %5646
        %5648 = vrot.lane.b32.xlu0 %v1669, 32
        %v5649 = vpop.permute.xlu0 %5648
        %v5659 = vsel %vm1533, %v5578, 0
        %5661 = vmatprep.subr.mxu0 0.0
        %5662 = vmatpush1.msra.mxu0 %v1764
        %5663 = vmatprep.subr.mxu0 0.0
        %5664 = vmatpush1.msra.mxu0 %v5587
        %5665 = vmatprep.subr.mxu0 0.0
        %5666 = vmatpush1.msra.mxu0 %v5611
        %5667 = vmatprep.subr.mxu0 0.0
        %5668 = vmatpush1.msra.mxu0 %v5635
        %5669 = vmatprep.subr.mxu0 0.0
        %5670 = vmatpush1.msra.mxu0 0.0
        %5671 = vmatprep.subr.mxu0 0.0
        %5672 = vmatpush1.msra.mxu0 0.0
        %5673 = vmatprep.subr.mxu0 0.0
        %5674 = vmatpush1.msra.mxu0 0.0
        %5675 = vmatprep.subr.mxu0 0.0
        %5676 = vmatpush1.msra.mxu0 0.0
        %5677 = vmatprep.subr.mxu0 0.0
        %5678 = vmatpush1.msra.mxu0 0.0
        %5679 = vmatprep.subr.mxu0 0.0
        %5680 = vmatpush1.msra.mxu0 0.0
        %5681 = vmatprep.subr.mxu0 0.0
        %5682 = vmatpush1.msra.mxu0 0.0
        %5683 = vmatprep.subr.mxu0 0.0
        %5684 = vmatpush1.msra.mxu0 0.0
        %5685 = vmatprep.subr.mxu0 0.0
        %5686 = vmatpush1.msra.mxu0 0.0
        %5687 = vmatprep.subr.mxu0 0.0
        %5688 = vmatpush1.msra.mxu0 0.0
        %5689 = vmatprep.subr.mxu0 0.0
        %5690 = vmatpush1.msra.mxu0 0.0
        %5691 = vmatprep.subr.mxu0 0.0
        %5692 = vmatpush1.msra.mxu0 0.0
        %5693 = vmatprep.subr.mxu0 0.0
        %5694 = vmatpush1.msra.mxu0 0.0
        %5695 = vmatprep.subr.mxu0 0.0
        %5696 = vmatpush1.msra.mxu0 0.0
        %5697 = vmatprep.subr.mxu0 0.0
        %5698 = vmatpush1.msra.mxu0 0.0
        %5699 = vmatprep.subr.mxu0 0.0
        %5700 = vmatpush1.msra.mxu0 0.0
        %5701 = vmatprep.subr.mxu0 0.0
        %5702 = vmatpush1.msra.mxu0 0.0
        %5703 = vmatprep.subr.mxu0 0.0
        %5704 = vmatpush1.msra.mxu0 0.0
        %5705 = vmatprep.subr.mxu0 0.0
        %5706 = vmatpush1.msra.mxu0 0.0
        %5707 = vmatprep.subr.mxu0 0.0
        %5708 = vmatpush1.msra.mxu0 0.0
        %5709 = vmatprep.subr.mxu0 0.0
        %5710 = vmatpush1.msra.mxu0 0.0
        %5711 = vmatprep.subr.mxu0 0.0
        %5712 = vmatpush1.msra.mxu0 0.0
        %5713 = vmatprep.subr.mxu0 0.0
        %5714 = vmatpush1.msra.mxu0 0.0
        %5715 = vmatprep.subr.mxu0 0.0
        %5716 = vmatpush1.msra.mxu0 0.0
        %5717 = vmatprep.subr.mxu0 0.0
        %5718 = vmatpush1.msra.mxu0 0.0
        %5719 = vmatprep.subr.mxu0 0.0
        %5720 = vmatpush1.msra.mxu0 0.0
        %5721 = vmatprep.subr.mxu0 0.0
        %5722 = vmatpush1.msra.mxu0 0.0
        %5723 = vmatprep.subr.mxu0 0.0
        %5724 = vmatpush1.msra.mxu0 0.0
        %5725 = vmatprep.mubr.f32.mxu0 0.0
        %5726 = vmatmul.mubr.f32.gmra.mrb[0].mxu0 %v5659
        %v5727 = vpop.f32.mrb[0].mxu0
        %v5728 = vadd.f32 0.0, %v5727
        %v5729 = vpop.f32.mrb[0].mxu0
        %5730 = vdwg.mxu0
        %v5732 = vsel %vm1533, %v5579, 0
        %5734 = vmatprep.subr.mxu0 0.0
        %5735 = vmatpush1.msra.mxu0 %v1770
        %5736 = vmatprep.subr.mxu0 0.0
        %5737 = vmatpush1.msra.mxu0 %v5589
        %5738 = vmatprep.subr.mxu0 0.0
        %5739 = vmatpush1.msra.mxu0 %v5613
        %5740 = vmatprep.subr.mxu0 0.0
        %5741 = vmatpush1.msra.mxu0 %v5637
        %5742 = vmatprep.subr.mxu0 0.0
        %5743 = vmatpush1.msra.mxu0 0.0
        %5744 = vmatprep.subr.mxu0 0.0
        %5745 = vmatpush1.msra.mxu0 0.0
        %5746 = vmatprep.subr.mxu0 0.0
        %5747 = vmatpush1.msra.mxu0 0.0
        %5748 = vmatprep.subr.mxu0 0.0
        %5749 = vmatpush1.msra.mxu0 0.0
        %5750 = vmatprep.subr.mxu0 0.0
        %5751 = vmatpush1.msra.mxu0 0.0
        %5752 = vmatprep.subr.mxu0 0.0
        %5753 = vmatpush1.msra.mxu0 0.0
        %5754 = vmatprep.subr.mxu0 0.0
        %5755 = vmatpush1.msra.mxu0 0.0
        %5756 = vmatprep.subr.mxu0 0.0
        %5757 = vmatpush1.msra.mxu0 0.0
        %5758 = vmatprep.subr.mxu0 0.0
        %5759 = vmatpush1.msra.mxu0 0.0
        %5760 = vmatprep.subr.mxu0 0.0
        %5761 = vmatpush1.msra.mxu0 0.0
        %5762 = vmatprep.subr.mxu0 0.0
        %5763 = vmatpush1.msra.mxu0 0.0
        %5764 = vmatprep.subr.mxu0 0.0
        %5765 = vmatpush1.msra.mxu0 0.0
        %5766 = vmatprep.subr.mxu0 0.0
        %5767 = vmatpush1.msra.mxu0 0.0
        %5768 = vmatprep.subr.mxu0 0.0
        %5769 = vmatpush1.msra.mxu0 0.0
        %5770 = vmatprep.subr.mxu0 0.0
        %5771 = vmatpush1.msra.mxu0 0.0
        %5772 = vmatprep.subr.mxu0 0.0
        %5773 = vmatpush1.msra.mxu0 0.0
        %5774 = vmatprep.subr.mxu0 0.0
        %5775 = vmatpush1.msra.mxu0 0.0
        %5776 = vmatprep.subr.mxu0 0.0
        %5777 = vmatpush1.msra.mxu0 0.0
        %5778 = vmatprep.subr.mxu0 0.0
        %5779 = vmatpush1.msra.mxu0 0.0
        %5780 = vmatprep.subr.mxu0 0.0
        %5781 = vmatpush1.msra.mxu0 0.0
        %5782 = vmatprep.subr.mxu0 0.0
        %5783 = vmatpush1.msra.mxu0 0.0
        %5784 = vmatprep.subr.mxu0 0.0
        %5785 = vmatpush1.msra.mxu0 0.0
        %5786 = vmatprep.subr.mxu0 0.0
        %5787 = vmatpush1.msra.mxu0 0.0
        %5788 = vmatprep.subr.mxu0 0.0
        %5789 = vmatpush1.msra.mxu0 0.0
        %5790 = vmatprep.subr.mxu0 0.0
        %5791 = vmatpush1.msra.mxu0 0.0
        %5792 = vmatprep.subr.mxu0 0.0
        %5793 = vmatpush1.msra.mxu0 0.0
        %5794 = vmatprep.subr.mxu0 0.0
        %5795 = vmatpush1.msra.mxu0 0.0
        %5796 = vmatprep.subr.mxu0 0.0
        %5797 = vmatpush1.msra.mxu0 0.0
        %5798 = vmatprep.mubr.f32.mxu0 0.0
        %5799 = vmatmul.mubr.f32.gmra.mrb[0].mxu0 %v5732
        %v5800 = vpop.f32.mrb[0].mxu0
        %v5801 = vadd.f32 0.0, %v5800
        %v5802 = vpop.f32.mrb[0].mxu0
        %5803 = vdwg.mxu0
        %v5805 = vsel %vm1533, %v5580, 0
        %5807 = vmatprep.subr.mxu0 0.0
        %5808 = vmatpush1.msra.mxu0 %v1776
        %5809 = vmatprep.subr.mxu0 0.0
        %5810 = vmatpush1.msra.mxu0 %v5591
        %5811 = vmatprep.subr.mxu0 0.0
        %5812 = vmatpush1.msra.mxu0 %v5615
        %5813 = vmatprep.subr.mxu0 0.0
        %5814 = vmatpush1.msra.mxu0 %v5639
        %5815 = vmatprep.subr.mxu0 0.0
        %5816 = vmatpush1.msra.mxu0 0.0
        %5817 = vmatprep.subr.mxu0 0.0
        %5818 = vmatpush1.msra.mxu0 0.0
        %5819 = vmatprep.subr.mxu0 0.0
        %5820 = vmatpush1.msra.mxu0 0.0
        %5821 = vmatprep.subr.mxu0 0.0
        %5822 = vmatpush1.msra.mxu0 0.0
        %5823 = vmatprep.subr.mxu0 0.0
        %5824 = vmatpush1.msra.mxu0 0.0
        %5825 = vmatprep.subr.mxu0 0.0
        %5826 = vmatpush1.msra.mxu0 0.0
        %5827 = vmatprep.subr.mxu0 0.0
        %5828 = vmatpush1.msra.mxu0 0.0
        %5829 = vmatprep.subr.mxu0 0.0
        %5830 = vmatpush1.msra.mxu0 0.0
        %5831 = vmatprep.subr.mxu0 0.0
        %5832 = vmatpush1.msra.mxu0 0.0
        %5833 = vmatprep.subr.mxu0 0.0
        %5834 = vmatpush1.msra.mxu0 0.0
        %5835 = vmatprep.subr.mxu0 0.0
        %5836 = vmatpush1.msra.mxu0 0.0
        %5837 = vmatprep.subr.mxu0 0.0
        %5838 = vmatpush1.msra.mxu0 0.0
        %5839 = vmatprep.subr.mxu0 0.0
        %5840 = vmatpush1.msra.mxu0 0.0
        %5841 = vmatprep.subr.mxu0 0.0
        %5842 = vmatpush1.msra.mxu0 0.0
        %5843 = vmatprep.subr.mxu0 0.0
        %5844 = vmatpush1.msra.mxu0 0.0
        %5845 = vmatprep.subr.mxu0 0.0
        %5846 = vmatpush1.msra.mxu0 0.0
        %5847 = vmatprep.subr.mxu0 0.0
        %5848 = vmatpush1.msra.mxu0 0.0
        %5849 = vmatprep.subr.mxu0 0.0
        %5850 = vmatpush1.msra.mxu0 0.0
        %5851 = vmatprep.subr.mxu0 0.0
        %5852 = vmatpush1.msra.mxu0 0.0
        %5853 = vmatprep.subr.mxu0 0.0
        %5854 = vmatpush1.msra.mxu0 0.0
        %5855 = vmatprep.subr.mxu0 0.0
        %5856 = vmatpush1.msra.mxu0 0.0
        %5857 = vmatprep.subr.mxu0 0.0
        %5858 = vmatpush1.msra.mxu0 0.0
        %5859 = vmatprep.subr.mxu0 0.0
        %5860 = vmatpush1.msra.mxu0 0.0
        %5861 = vmatprep.subr.mxu0 0.0
        %5862 = vmatpush1.msra.mxu0 0.0
        %5863 = vmatprep.subr.mxu0 0.0
        %5864 = vmatpush1.msra.mxu0 0.0
        %5865 = vmatprep.subr.mxu0 0.0
        %5866 = vmatpush1.msra.mxu0 0.0
        %5867 = vmatprep.subr.mxu0 0.0
        %5868 = vmatpush1.msra.mxu0 0.0
        %5869 = vmatprep.subr.mxu0 0.0
        %5870 = vmatpush1.msra.mxu0 0.0
        %5871 = vmatprep.mubr.f32.mxu0 0.0
        %5872 = vmatmul.mubr.f32.gmra.mrb[0].mxu0 %v5805
        %v5873 = vpop.f32.mrb[0].mxu0
        %v5874 = vadd.f32 0.0, %v5873
        %v5875 = vpop.f32.mrb[0].mxu0
        %5876 = vdwg.mxu0
        %v5878 = vsel %vm1533, %v5581, 0
        %5880 = vmatprep.subr.mxu0 0.0
        %5881 = vmatpush1.msra.mxu0 %v1782
        %5882 = vmatprep.subr.mxu0 0.0
        %5883 = vmatpush1.msra.mxu0 %v5593
        %5884 = vmatprep.subr.mxu0 0.0
        %5885 = vmatpush1.msra.mxu0 %v5617
        %5886 = vmatprep.subr.mxu0 0.0
        %5887 = vmatpush1.msra.mxu0 %v5641
        %5888 = vmatprep.subr.mxu0 0.0
        %5889 = vmatpush1.msra.mxu0 0.0
        %5890 = vmatprep.subr.mxu0 0.0
        %5891 = vmatpush1.msra.mxu0 0.0
        %5892 = vmatprep.subr.mxu0 0.0
        %5893 = vmatpush1.msra.mxu0 0.0
        %5894 = vmatprep.subr.mxu0 0.0
        %5895 = vmatpush1.msra.mxu0 0.0
        %5896 = vmatprep.subr.mxu0 0.0
        %5897 = vmatpush1.msra.mxu0 0.0
        %5898 = vmatprep.subr.mxu0 0.0
        %5899 = vmatpush1.msra.mxu0 0.0
        %5900 = vmatprep.subr.mxu0 0.0
        %5901 = vmatpush1.msra.mxu0 0.0
        %5902 = vmatprep.subr.mxu0 0.0
        %5903 = vmatpush1.msra.mxu0 0.0
        %5904 = vmatprep.subr.mxu0 0.0
        %5905 = vmatpush1.msra.mxu0 0.0
        %5906 = vmatprep.subr.mxu0 0.0
        %5907 = vmatpush1.msra.mxu0 0.0
        %5908 = vmatprep.subr.mxu0 0.0
        %5909 = vmatpush1.msra.mxu0 0.0
        %5910 = vmatprep.subr.mxu0 0.0
        %5911 = vmatpush1.msra.mxu0 0.0
        %5912 = vmatprep.subr.mxu0 0.0
        %5913 = vmatpush1.msra.mxu0 0.0
        %5914 = vmatprep.subr.mxu0 0.0
        %5915 = vmatpush1.msra.mxu0 0.0
        %5916 = vmatprep.subr.mxu0 0.0
        %5917 = vmatpush1.msra.mxu0 0.0
        %5918 = vmatprep.subr.mxu0 0.0
        %5919 = vmatpush1.msra.mxu0 0.0
        %5920 = vmatprep.subr.mxu0 0.0
        %5921 = vmatpush1.msra.mxu0 0.0
        %5922 = vmatprep.subr.mxu0 0.0
        %5923 = vmatpush1.msra.mxu0 0.0
        %5924 = vmatprep.subr.mxu0 0.0
        %5925 = vmatpush1.msra.mxu0 0.0
        %5926 = vmatprep.subr.mxu0 0.0
        %5927 = vmatpush1.msra.mxu0 0.0
        %5928 = vmatprep.subr.mxu0 0.0
        %5929 = vmatpush1.msra.mxu0 0.0
        %5930 = vmatprep.subr.mxu0 0.0
        %5931 = vmatpush1.msra.mxu0 0.0
        %5932 = vmatprep.subr.mxu0 0.0
        %5933 = vmatpush1.msra.mxu0 0.0
        %5934 = vmatprep.subr.mxu0 0.0
        %5935 = vmatpush1.msra.mxu0 0.0
        %5936 = vmatprep.subr.mxu0 0.0
        %5937 = vmatpush1.msra.mxu0 0.0
        %5938 = vmatprep.subr.mxu0 0.0
        %5939 = vmatpush1.msra.mxu0 0.0
        %5940 = vmatprep.subr.mxu0 0.0
        %5941 = vmatpush1.msra.mxu0 0.0
        %5942 = vmatprep.subr.mxu0 0.0
        %5943 = vmatpush1.msra.mxu0 0.0
        %5944 = vmatprep.mubr.f32.mxu0 0.0
        %5945 = vmatmul.mubr.f32.gmra.mrb[0].mxu0 %v5878
        %v5946 = vpop.f32.mrb[0].mxu0
        %v5947 = vadd.f32 0.0, %v5946
        %v5948 = vpop.f32.mrb[0].mxu0
        %5949 = vdwg.mxu0
        %v5951 = vsel %vm1533, %v5582, 0
        %5953 = vmatprep.subr.mxu0 0.0
        %5954 = vmatpush1.msra.mxu0 %v1788
        %5955 = vmatprep.subr.mxu0 0.0
        %5956 = vmatpush1.msra.mxu0 %v5595
        %5957 = vmatprep.subr.mxu0 0.0
        %5958 = vmatpush1.msra.mxu0 %v5619
        %5959 = vmatprep.subr.mxu0 0.0
        %5960 = vmatpush1.msra.mxu0 %v5643
        %5961 = vmatprep.subr.mxu0 0.0
        %5962 = vmatpush1.msra.mxu0 0.0
        %5963 = vmatprep.subr.mxu0 0.0
        %5964 = vmatpush1.msra.mxu0 0.0
        %5965 = vmatprep.subr.mxu0 0.0
        %5966 = vmatpush1.msra.mxu0 0.0
        %5967 = vmatprep.subr.mxu0 0.0
        %5968 = vmatpush1.msra.mxu0 0.0
        %5969 = vmatprep.subr.mxu0 0.0
        %5970 = vmatpush1.msra.mxu0 0.0
        %5971 = vmatprep.subr.mxu0 0.0
        %5972 = vmatpush1.msra.mxu0 0.0
        %5973 = vmatprep.subr.mxu0 0.0
        %5974 = vmatpush1.msra.mxu0 0.0
        %5975 = vmatprep.subr.mxu0 0.0
        %5976 = vmatpush1.msra.mxu0 0.0
        %5977 = vmatprep.subr.mxu0 0.0
        %5978 = vmatpush1.msra.mxu0 0.0
        %5979 = vmatprep.subr.mxu0 0.0
        %5980 = vmatpush1.msra.mxu0 0.0
        %5981 = vmatprep.subr.mxu0 0.0
        %5982 = vmatpush1.msra.mxu0 0.0
        %5983 = vmatprep.subr.mxu0 0.0
        %5984 = vmatpush1.msra.mxu0 0.0
        %5985 = vmatprep.subr.mxu0 0.0
        %5986 = vmatpush1.msra.mxu0 0.0
        %5987 = vmatprep.subr.mxu0 0.0
        %5988 = vmatpush1.msra.mxu0 0.0
        %5989 = vmatprep.subr.mxu0 0.0
        %5990 = vmatpush1.msra.mxu0 0.0
        %5991 = vmatprep.subr.mxu0 0.0
        %5992 = vmatpush1.msra.mxu0 0.0
        %5993 = vmatprep.subr.mxu0 0.0
        %5994 = vmatpush1.msra.mxu0 0.0
        %5995 = vmatprep.subr.mxu0 0.0
        %5996 = vmatpush1.msra.mxu0 0.0
        %5997 = vmatprep.subr.mxu0 0.0
        %5998 = vmatpush1.msra.mxu0 0.0
        %5999 = vmatprep.subr.mxu0 0.0
        %6000 = vmatpush1.msra.mxu0 0.0
        %6001 = vmatprep.subr.mxu0 0.0
        %6002 = vmatpush1.msra.mxu0 0.0
        %6003 = vmatprep.subr.mxu0 0.0
        %6004 = vmatpush1.msra.mxu0 0.0
        %6005 = vmatprep.subr.mxu0 0.0
        %6006 = vmatpush1.msra.mxu0 0.0
        %6007 = vmatprep.subr.mxu0 0.0
        %6008 = vmatpush1.msra.mxu0 0.0
        %6009 = vmatprep.subr.mxu0 0.0
        %6010 = vmatpush1.msra.mxu0 0.0
        %6011 = vmatprep.subr.mxu0 0.0
        %6012 = vmatpush1.msra.mxu0 0.0
        %6013 = vmatprep.subr.mxu0 0.0
        %6014 = vmatpush1.msra.mxu0 0.0
        %6015 = vmatprep.subr.mxu0 0.0
        %6016 = vmatpush1.msra.mxu0 0.0
        %6017 = vmatprep.mubr.f32.mxu0 0.0
        %6018 = vmatmul.mubr.f32.gmra.mrb[0].mxu0 %v5951
        %v6019 = vpop.f32.mrb[0].mxu0
        %v6020 = vadd.f32 0.0, %v6019
        %v6021 = vpop.f32.mrb[0].mxu0
        %6022 = vdwg.mxu0
        %v6024 = vsel %vm1533, %v5583, 0
        %6026 = vmatprep.subr.mxu0 0.0
        %6027 = vmatpush1.msra.mxu0 %v1794
        %6028 = vmatprep.subr.mxu0 0.0
        %6029 = vmatpush1.msra.mxu0 %v5597
        %6030 = vmatprep.subr.mxu0 0.0
        %6031 = vmatpush1.msra.mxu0 %v5621
        %6032 = vmatprep.subr.mxu0 0.0
        %6033 = vmatpush1.msra.mxu0 %v5645
        %6034 = vmatprep.subr.mxu0 0.0
        %6035 = vmatpush1.msra.mxu0 0.0
        %6036 = vmatprep.subr.mxu0 0.0
        %6037 = vmatpush1.msra.mxu0 0.0
        %6038 = vmatprep.subr.mxu0 0.0
        %6039 = vmatpush1.msra.mxu0 0.0
        %6040 = vmatprep.subr.mxu0 0.0
        %6041 = vmatpush1.msra.mxu0 0.0
        %6042 = vmatprep.subr.mxu0 0.0
        %6043 = vmatpush1.msra.mxu0 0.0
        %6044 = vmatprep.subr.mxu0 0.0
        %6045 = vmatpush1.msra.mxu0 0.0
        %6046 = vmatprep.subr.mxu0 0.0
        %6047 = vmatpush1.msra.mxu0 0.0
        %6048 = vmatprep.subr.mxu0 0.0
        %6049 = vmatpush1.msra.mxu0 0.0
        %6050 = vmatprep.subr.mxu0 0.0
        %6051 = vmatpush1.msra.mxu0 0.0
        %6052 = vmatprep.subr.mxu0 0.0
        %6053 = vmatpush1.msra.mxu0 0.0
        %6054 = vmatprep.subr.mxu0 0.0
        %6055 = vmatpush1.msra.mxu0 0.0
        %6056 = vmatprep.subr.mxu0 0.0
        %6057 = vmatpush1.msra.mxu0 0.0
        %6058 = vmatprep.subr.mxu0 0.0
        %6059 = vmatpush1.msra.mxu0 0.0
        %6060 = vmatprep.subr.mxu0 0.0
        %6061 = vmatpush1.msra.mxu0 0.0
        %6062 = vmatprep.subr.mxu0 0.0
        %6063 = vmatpush1.msra.mxu0 0.0
        %6064 = vmatprep.subr.mxu0 0.0
        %6065 = vmatpush1.msra.mxu0 0.0
        %6066 = vmatprep.subr.mxu0 0.0
        %6067 = vmatpush1.msra.mxu0 0.0
        %6068 = vmatprep.subr.mxu0 0.0
        %6069 = vmatpush1.msra.mxu0 0.0
        %6070 = vmatprep.subr.mxu0 0.0
        %6071 = vmatpush1.msra.mxu0 0.0
        %6072 = vmatprep.subr.mxu0 0.0
        %6073 = vmatpush1.msra.mxu0 0.0
        %6074 = vmatprep.subr.mxu0 0.0
        %6075 = vmatpush1.msra.mxu0 0.0
        %6076 = vmatprep.subr.mxu0 0.0
        %6077 = vmatpush1.msra.mxu0 0.0
        %6078 = vmatprep.subr.mxu0 0.0
        %6079 = vmatpush1.msra.mxu0 0.0
        %6080 = vmatprep.subr.mxu0 0.0
        %6081 = vmatpush1.msra.mxu0 0.0
        %6082 = vmatprep.subr.mxu0 0.0
        %6083 = vmatpush1.msra.mxu0 0.0
        %6084 = vmatprep.subr.mxu0 0.0
        %6085 = vmatpush1.msra.mxu0 0.0
        %6086 = vmatprep.subr.mxu0 0.0
        %6087 = vmatpush1.msra.mxu0 0.0
        %6088 = vmatprep.subr.mxu0 0.0
        %6089 = vmatpush1.msra.mxu0 0.0
        %6090 = vmatprep.mubr.f32.mxu0 0.0
        %6091 = vmatmul.mubr.f32.gmra.mrb[0].mxu0 %v6024
        %v6092 = vpop.f32.mrb[0].mxu0
        %v6093 = vadd.f32 0.0, %v6092
        %v6094 = vpop.f32.mrb[0].mxu0
        %6095 = vdwg.mxu0
        %v6097 = vsel %vm1533, %v5584, 0
        %6099 = vmatprep.subr.mxu0 0.0
        %6100 = vmatpush1.msra.mxu0 %v1800
        %6101 = vmatprep.subr.mxu0 0.0
        %6102 = vmatpush1.msra.mxu0 %v5599
        %6103 = vmatprep.subr.mxu0 0.0
        %6104 = vmatpush1.msra.mxu0 %v5623
        %6105 = vmatprep.subr.mxu0 0.0
        %6106 = vmatpush1.msra.mxu0 %v5647
        %6107 = vmatprep.subr.mxu0 0.0
        %6108 = vmatpush1.msra.mxu0 0.0
        %6109 = vmatprep.subr.mxu0 0.0
        %6110 = vmatpush1.msra.mxu0 0.0
        %6111 = vmatprep.subr.mxu0 0.0
        %6112 = vmatpush1.msra.mxu0 0.0
        %6113 = vmatprep.subr.mxu0 0.0
        %6114 = vmatpush1.msra.mxu0 0.0
        %6115 = vmatprep.subr.mxu0 0.0
        %6116 = vmatpush1.msra.mxu0 0.0
        %6117 = vmatprep.subr.mxu0 0.0
        %6118 = vmatpush1.msra.mxu0 0.0
        %6119 = vmatprep.subr.mxu0 0.0
        %6120 = vmatpush1.msra.mxu0 0.0
        %6121 = vmatprep.subr.mxu0 0.0
        %6122 = vmatpush1.msra.mxu0 0.0
        %6123 = vmatprep.subr.mxu0 0.0
        %6124 = vmatpush1.msra.mxu0 0.0
        %6125 = vmatprep.subr.mxu0 0.0
        %6126 = vmatpush1.msra.mxu0 0.0
        %6127 = vmatprep.subr.mxu0 0.0
        %6128 = vmatpush1.msra.mxu0 0.0
        %6129 = vmatprep.subr.mxu0 0.0
        %6130 = vmatpush1.msra.mxu0 0.0
        %6131 = vmatprep.subr.mxu0 0.0
        %6132 = vmatpush1.msra.mxu0 0.0
        %6133 = vmatprep.subr.mxu0 0.0
        %6134 = vmatpush1.msra.mxu0 0.0
        %6135 = vmatprep.subr.mxu0 0.0
        %6136 = vmatpush1.msra.mxu0 0.0
        %6137 = vmatprep.subr.mxu0 0.0
        %6138 = vmatpush1.msra.mxu0 0.0
        %6139 = vmatprep.subr.mxu0 0.0
        %6140 = vmatpush1.msra.mxu0 0.0
        %6141 = vmatprep.subr.mxu0 0.0
        %6142 = vmatpush1.msra.mxu0 0.0
        %6143 = vmatprep.subr.mxu0 0.0
        %6144 = vmatpush1.msra.mxu0 0.0
        %6145 = vmatprep.subr.mxu0 0.0
        %6146 = vmatpush1.msra.mxu0 0.0
        %6147 = vmatprep.subr.mxu0 0.0
        %6148 = vmatpush1.msra.mxu0 0.0
        %6149 = vmatprep.subr.mxu0 0.0
        %6150 = vmatpush1.msra.mxu0 0.0
        %6151 = vmatprep.subr.mxu0 0.0
        %6152 = vmatpush1.msra.mxu0 0.0
        %6153 = vmatprep.subr.mxu0 0.0
        %6154 = vmatpush1.msra.mxu0 0.0
        %6155 = vmatprep.subr.mxu0 0.0
        %6156 = vmatpush1.msra.mxu0 0.0
        %6157 = vmatprep.subr.mxu0 0.0
        %6158 = vmatpush1.msra.mxu0 0.0
        %6159 = vmatprep.subr.mxu0 0.0
        %6160 = vmatpush1.msra.mxu0 0.0
        %6161 = vmatprep.subr.mxu0 0.0
        %6162 = vmatpush1.msra.mxu0 0.0
        %6163 = vmatprep.mubr.f32.mxu0 0.0
        %6164 = vmatmul.mubr.f32.gmra.mrb[0].mxu0 %v6097
        %v6165 = vpop.f32.mrb[0].mxu0
        %v6166 = vadd.f32 0.0, %v6165
        %v6167 = vpop.f32.mrb[0].mxu0
        %6168 = vdwg.mxu0
        %v6170 = vsel %vm1533, %v5585, 0
        %6172 = vmatprep.subr.mxu0 0.0
        %6173 = vmatpush1.msra.mxu0 %v1806
        %6174 = vmatprep.subr.mxu0 0.0
        %6175 = vmatpush1.msra.mxu0 %v5601
        %6176 = vmatprep.subr.mxu0 0.0
        %6177 = vmatpush1.msra.mxu0 %v5625
        %6178 = vmatprep.subr.mxu0 0.0
        %6179 = vmatpush1.msra.mxu0 %v5649
        %6180 = vmatprep.subr.mxu0 0.0
        %6181 = vmatpush1.msra.mxu0 0.0
        %6182 = vmatprep.subr.mxu0 0.0
        %6183 = vmatpush1.msra.mxu0 0.0
        %6184 = vmatprep.subr.mxu0 0.0
        %6185 = vmatpush1.msra.mxu0 0.0
        %6186 = vmatprep.subr.mxu0 0.0
        %6187 = vmatpush1.msra.mxu0 0.0
        %6188 = vmatprep.subr.mxu0 0.0
        %6189 = vmatpush1.msra.mxu0 0.0
        %6190 = vmatprep.subr.mxu0 0.0
        %6191 = vmatpush1.msra.mxu0 0.0
        %6192 = vmatprep.subr.mxu0 0.0
        %6193 = vmatpush1.msra.mxu0 0.0
        %6194 = vmatprep.subr.mxu0 0.0
        %6195 = vmatpush1.msra.mxu0 0.0
        %6196 = vmatprep.subr.mxu0 0.0
        %6197 = vmatpush1.msra.mxu0 0.0
        %6198 = vmatprep.subr.mxu0 0.0
        %6199 = vmatpush1.msra.mxu0 0.0
        %6200 = vmatprep.subr.mxu0 0.0
        %6201 = vmatpush1.msra.mxu0 0.0
        %6202 = vmatprep.subr.mxu0 0.0
        %6203 = vmatpush1.msra.mxu0 0.0
        %6204 = vmatprep.subr.mxu0 0.0
        %6205 = vmatpush1.msra.mxu0 0.0
        %6206 = vmatprep.subr.mxu0 0.0
        %6207 = vmatpush1.msra.mxu0 0.0
        %6208 = vmatprep.subr.mxu0 0.0
        %6209 = vmatpush1.msra.mxu0 0.0
        %6210 = vmatprep.subr.mxu0 0.0
        %6211 = vmatpush1.msra.mxu0 0.0
        %6212 = vmatprep.subr.mxu0 0.0
        %6213 = vmatpush1.msra.mxu0 0.0
        %6214 = vmatprep.subr.mxu0 0.0
        %6215 = vmatpush1.msra.mxu0 0.0
        %6216 = vmatprep.subr.mxu0 0.0
        %6217 = vmatpush1.msra.mxu0 0.0
        %6218 = vmatprep.subr.mxu0 0.0
        %6219 = vmatpush1.msra.mxu0 0.0
        %6220 = vmatprep.subr.mxu0 0.0
        %6221 = vmatpush1.msra.mxu0 0.0
        %6222 = vmatprep.subr.mxu0 0.0
        %6223 = vmatpush1.msra.mxu0 0.0
        %6224 = vmatprep.subr.mxu0 0.0
        %6225 = vmatpush1.msra.mxu0 0.0
        %6226 = vmatprep.subr.mxu0 0.0
        %6227 = vmatpush1.msra.mxu0 0.0
        %6228 = vmatprep.subr.mxu0 0.0
        %6229 = vmatpush1.msra.mxu0 0.0
        %6230 = vmatprep.subr.mxu0 0.0
        %6231 = vmatpush1.msra.mxu0 0.0
        %6232 = vmatprep.subr.mxu0 0.0
        %6233 = vmatpush1.msra.mxu0 0.0
        %6234 = vmatprep.subr.mxu0 0.0
        %6235 = vmatpush1.msra.mxu0 0.0
        %6236 = vmatprep.mubr.f32.mxu0 0.0
        %6237 = vmatmul.mubr.f32.gmra.mrb[0].mxu0 %v6170
        %v6238 = vpop.f32.mrb[0].mxu0
        %v6239 = vadd.f32 0.0, %v6238
        %v6240 = vpop.f32.mrb[0].mxu0
        %6241 = vdwg.mxu0
        %v6242 = vmul.f32 %v5728, %v1461
        %v6243 = vmul.f32 %v5801, %v1462
        %v6244 = vmul.f32 %v5874, %v1463
        %v6245 = vmul.f32 %v5947, %v1464
        %v6246 = vmul.f32 %v6020, %v1465
        %v6247 = vmul.f32 %v6093, %v1466
        %v6248 = vmul.f32 %v6166, %v1467
        %v6249 = vmul.f32 %v6239, %v1468
        %6258 = vrot.lane.b32.xlu0 %v5426, 96
        %v6259 = vpop.permute.xlu0 %6258
        %6260 = vrot.lane.b32.xlu0 %v5427, 96
        %v6261 = vpop.permute.xlu0 %6260
        %6262 = vrot.lane.b32.xlu0 %v5428, 96
        %v6263 = vpop.permute.xlu0 %6262
        %6264 = vrot.lane.b32.xlu0 %v5429, 96
        %v6265 = vpop.permute.xlu0 %6264
        %6266 = vrot.lane.b32.xlu0 %v5430, 96
        %v6267 = vpop.permute.xlu0 %6266
        %6268 = vrot.lane.b32.xlu0 %v5431, 96
        %v6269 = vpop.permute.xlu0 %6268
        %6270 = vrot.lane.b32.xlu0 %v5432, 96
        %v6271 = vpop.permute.xlu0 %6270
        %6272 = vrot.lane.b32.xlu0 %v5433, 96
        %v6273 = vpop.permute.xlu0 %6272
        %v6282 = vadd.f32 %v4584, %v6259
        %v6283 = vadd.f32 %v4585, %v6261
        %v6284 = vadd.f32 %v4586, %v6263
        %v6285 = vadd.f32 %v4587, %v6265
        %v6286 = vadd.f32 %v4588, %v6267
        %v6287 = vadd.f32 %v4589, %v6269
        %v6288 = vadd.f32 %v4590, %v6271
        %v6289 = vadd.f32 %v4591, %v6273
        %v6290 = vmax.f32 %v6282, 0.0
        %v6291 = vmax.f32 %v6283, 0.0
        %v6292 = vmax.f32 %v6284, 0.0
        %v6293 = vmax.f32 %v6285, 0.0
        %v6294 = vmax.f32 %v6286, 0.0
        %v6295 = vmax.f32 %v6287, 0.0
        %v6296 = vmax.f32 %v6288, 0.0
        %v6297 = vmax.f32 %v6289, 0.0
        %6306 = vrot.lane.b32.xlu0 %v6242, 96
        %v6307 = vpop.permute.xlu0 %6306
        %6308 = vrot.lane.b32.xlu0 %v6243, 96
        %v6309 = vpop.permute.xlu0 %6308
        %6310 = vrot.lane.b32.xlu0 %v6244, 96
        %v6311 = vpop.permute.xlu0 %6310
        %6312 = vrot.lane.b32.xlu0 %v6245, 96
        %v6313 = vpop.permute.xlu0 %6312
        %6314 = vrot.lane.b32.xlu0 %v6246, 96
        %v6315 = vpop.permute.xlu0 %6314
        %6316 = vrot.lane.b32.xlu0 %v6247, 96
        %v6317 = vpop.permute.xlu0 %6316
        %6318 = vrot.lane.b32.xlu0 %v6248, 96
        %v6319 = vpop.permute.xlu0 %6318
        %6320 = vrot.lane.b32.xlu0 %v6249, 96
        %v6321 = vpop.permute.xlu0 %6320
        %v6330 = vadd.f32 %v4592, %v6307
        %v6331 = vadd.f32 %v4593, %v6309
        %v6332 = vadd.f32 %v4594, %v6311
        %v6333 = vadd.f32 %v4595, %v6313
        %v6334 = vadd.f32 %v4596, %v6315
        %v6335 = vadd.f32 %v4597, %v6317
        %v6336 = vadd.f32 %v4598, %v6319
        %v6337 = vadd.f32 %v4599, %v6321
        %v6338 = vmax.f32 %v6330, 0.0
        %v6339 = vmax.f32 %v6331, 0.0
        %v6340 = vmax.f32 %v6332, 0.0
        %v6341 = vmax.f32 %v6333, 0.0
        %v6342 = vmax.f32 %v6334, 0.0
        %v6343 = vmax.f32 %v6335, 0.0
        %v6344 = vmax.f32 %v6336, 0.0
        %v6345 = vmax.f32 %v6337, 0.0
        %6354 = vrot.lane.b32.xlu0 %v6290, 32
        %v6355 = vpop.permute.xlu0 %6354
        %6356 = vrot.lane.b32.xlu0 %v6291, 32
        %v6357 = vpop.permute.xlu0 %6356
        %6358 = vrot.lane.b32.xlu0 %v6292, 32
        %v6359 = vpop.permute.xlu0 %6358
        %6360 = vrot.lane.b32.xlu0 %v6293, 32
        %v6361 = vpop.permute.xlu0 %6360
        %6362 = vrot.lane.b32.xlu0 %v6294, 32
        %v6363 = vpop.permute.xlu0 %6362
        %6364 = vrot.lane.b32.xlu0 %v6295, 32
        %v6365 = vpop.permute.xlu0 %6364
        %6366 = vrot.lane.b32.xlu0 %v6296, 32
        %v6367 = vpop.permute.xlu0 %6366
        %6368 = vrot.lane.b32.xlu0 %v6297, 32
        %v6369 = vpop.permute.xlu0 %6368
        %v6378 = vcombine.low %v6355, %v6359
        %v6379 = vcombine.high %v6355, %v6359
        %v6381 = vunpack.c.l.s4 1983009808
        %v6382 = vunpack.c.0.s8 %v6381
        %v6383 = vlaneseq
        %v6384 = vshrl.u32 %v6383, 7
        %v6385 = vsub.s32 %v6382, %v6384
        %v6386 = vrot.slane %v6378, %v6385
        %v6388 = vunpack.c.l.s4 1983009808
        %v6389 = vunpack.c.0.s8 %v6388
        %v6390 = vlaneseq
        %v6391 = vshrl.u32 %v6390, 7
        %v6392 = vsub.s32 %v6389, %v6391
        %v6393 = vrot.slane %v6379, %v6392
        %v6394 = vcombine.low %v6357, %v6361
        %v6395 = vcombine.high %v6357, %v6361
        %v6397 = vunpack.c.l.s4 1983009808
        %v6398 = vunpack.c.0.s8 %v6397
        %v6399 = vlaneseq
        %v6400 = vshrl.u32 %v6399, 7
        %v6401 = vsub.s32 %v6398, %v6400
        %v6402 = vrot.slane %v6394, %v6401
        %v6404 = vunpack.c.l.s4 1983009808
        %v6405 = vunpack.c.0.s8 %v6404
        %v6406 = vlaneseq
        %v6407 = vshrl.u32 %v6406, 7
        %v6408 = vsub.s32 %v6405, %v6407
        %v6409 = vrot.slane %v6395, %v6408
        %v6410 = vcombine.low %v6363, %v6367
        %v6411 = vcombine.high %v6363, %v6367
        %v6413 = vunpack.c.l.s4 1983009808
        %v6414 = vunpack.c.0.s8 %v6413
        %v6415 = vlaneseq
        %v6416 = vshrl.u32 %v6415, 7
        %v6417 = vsub.s32 %v6414, %v6416
        %v6418 = vrot.slane %v6410, %v6417
        %v6420 = vunpack.c.l.s4 1983009808
        %v6421 = vunpack.c.0.s8 %v6420
        %v6422 = vlaneseq
        %v6423 = vshrl.u32 %v6422, 7
        %v6424 = vsub.s32 %v6421, %v6423
        %v6425 = vrot.slane %v6411, %v6424
        %v6426 = vcombine.low %v6365, %v6369
        %v6427 = vcombine.high %v6365, %v6369
        %v6429 = vunpack.c.l.s4 1983009808
        %v6430 = vunpack.c.0.s8 %v6429
        %v6431 = vlaneseq
        %v6432 = vshrl.u32 %v6431, 7
        %v6433 = vsub.s32 %v6430, %v6432
        %v6434 = vrot.slane %v6426, %v6433
        %v6436 = vunpack.c.l.s4 1983009808
        %v6437 = vunpack.c.0.s8 %v6436
        %v6438 = vlaneseq
        %v6439 = vshrl.u32 %v6438, 7
        %v6440 = vsub.s32 %v6437, %v6439
        %v6441 = vrot.slane %v6427, %v6440
        %v6442 = vcombine.low %v6386, %v6402
        %v6443 = vcombine.high %v6386, %v6402
        %v6445 = vunpack.c.l.s4 1934713408
        %v6446 = vunpack.c.0.s8 %v6445
        %v6447 = vlaneseq
        %v6448 = vshrl.u32 %v6447, 7
        %v6449 = vsub.s32 %v6446, %v6448
        %v6450 = vrot.slane %v6442, %v6449
        %v6452 = vunpack.c.l.s4 1934713408
        %v6453 = vunpack.c.0.s8 %v6452
        %v6454 = vlaneseq
        %v6455 = vshrl.u32 %v6454, 7
        %v6456 = vsub.s32 %v6453, %v6455
        %v6457 = vrot.slane %v6443, %v6456
        %v6458 = vcombine.low %v6393, %v6409
        %v6459 = vcombine.high %v6393, %v6409
        %v6461 = vunpack.c.l.s4 1934713408
        %v6462 = vunpack.c.0.s8 %v6461
        %v6463 = vlaneseq
        %v6464 = vshrl.u32 %v6463, 7
        %v6465 = vsub.s32 %v6462, %v6464
        %v6466 = vrot.slane %v6458, %v6465
        %v6468 = vunpack.c.l.s4 1934713408
        %v6469 = vunpack.c.0.s8 %v6468
        %v6470 = vlaneseq
        %v6471 = vshrl.u32 %v6470, 7
        %v6472 = vsub.s32 %v6469, %v6471
        %v6473 = vrot.slane %v6459, %v6472
        %v6474 = vcombine.low %v6418, %v6434
        %v6475 = vcombine.high %v6418, %v6434
        %v6477 = vunpack.c.l.s4 1934713408
        %v6478 = vunpack.c.0.s8 %v6477
        %v6479 = vlaneseq
        %v6480 = vshrl.u32 %v6479, 7
        %v6481 = vsub.s32 %v6478, %v6480
        %v6482 = vrot.slane %v6474, %v6481
        %v6484 = vunpack.c.l.s4 1934713408
        %v6485 = vunpack.c.0.s8 %v6484
        %v6486 = vlaneseq
        %v6487 = vshrl.u32 %v6486, 7
        %v6488 = vsub.s32 %v6485, %v6487
        %v6489 = vrot.slane %v6475, %v6488
        %v6490 = vcombine.low %v6425, %v6441
        %v6491 = vcombine.high %v6425, %v6441
        %v6493 = vunpack.c.l.s4 1934713408
        %v6494 = vunpack.c.0.s8 %v6493
        %v6495 = vlaneseq
        %v6496 = vshrl.u32 %v6495, 7
        %v6497 = vsub.s32 %v6494, %v6496
        %v6498 = vrot.slane %v6490, %v6497
        %v6500 = vunpack.c.l.s4 1934713408
        %v6501 = vunpack.c.0.s8 %v6500
        %v6502 = vlaneseq
        %v6503 = vshrl.u32 %v6502, 7
        %v6504 = vsub.s32 %v6501, %v6503
        %v6505 = vrot.slane %v6491, %v6504
        %v6506 = vcombine.low %v6450, %v6482
        %v6507 = vcombine.high %v6450, %v6482
        %v6508 = vcombine.low %v6457, %v6489
        %v6509 = vcombine.high %v6457, %v6489
        %v6510 = vcombine.low %v6466, %v6498
        %v6511 = vcombine.high %v6466, %v6498
        %v6512 = vcombine.low %v6473, %v6505
        %v6513 = vcombine.high %v6473, %v6505
        %6515 = vrot.lane.b32.xlu0 %v6507, 32
        %v6516 = vpop.permute.xlu0 %6515
        %6519 = vrot.lane.b32.xlu0 %v6508, 64
        %v6520 = vpop.permute.xlu0 %6519
        %6523 = vrot.lane.b32.xlu0 %v6509, 96
        %v6524 = vpop.permute.xlu0 %6523
        %6527 = vrot.lane.b32.xlu0 %v6511, 32
        %v6528 = vpop.permute.xlu0 %6527
        %6531 = vrot.lane.b32.xlu0 %v6512, 64
        %v6532 = vpop.permute.xlu0 %6531
        %6535 = vrot.lane.b32.xlu0 %v6513, 96
        %v6536 = vpop.permute.xlu0 %6535
        %v6538 = vsel %vm1533, %v6506, %v6516
        %vm6539 = vcmask 523264
        %v6540 = vsel %vm6539, %v6538, %v6520
        %vm6541 = vcmask 785408
        %v6542 = vsel %vm6541, %v6540, %v6524
        %v6543 = vsel %vm1533, %v6510, %v6528
        %v6544 = vsel %vm6539, %v6543, %v6532
        %v6545 = vsel %vm6541, %v6544, %v6536
        %6546 = vst [vmem:[%s777] sm:$0xff] %v6542
        %6547 = vst [vmem:[%s777 + $0x8] sm:$0xff] %v6545
        %6556 = vrot.lane.b32.xlu0 %v6338, 32
        %v6557 = vpop.permute.xlu0 %6556
        %6558 = vrot.lane.b32.xlu0 %v6339, 32
        %v6559 = vpop.permute.xlu0 %6558
        %6560 = vrot.lane.b32.xlu0 %v6340, 32
        %v6561 = vpop.permute.xlu0 %6560
        %6562 = vrot.lane.b32.xlu0 %v6341, 32
        %v6563 = vpop.permute.xlu0 %6562
        %6564 = vrot.lane.b32.xlu0 %v6342, 32
        %v6565 = vpop.permute.xlu0 %6564
        %6566 = vrot.lane.b32.xlu0 %v6343, 32
        %v6567 = vpop.permute.xlu0 %6566
        %6568 = vrot.lane.b32.xlu0 %v6344, 32
        %v6569 = vpop.permute.xlu0 %6568
        %6570 = vrot.lane.b32.xlu0 %v6345, 32
        %v6571 = vpop.permute.xlu0 %6570
        %v6580 = vcombine.low %v6557, %v6561
        %v6581 = vcombine.high %v6557, %v6561
        %v6583 = vunpack.c.l.s4 1983009808
        %v6584 = vunpack.c.0.s8 %v6583
        %v6585 = vlaneseq
        %v6586 = vshrl.u32 %v6585, 7
        %v6587 = vsub.s32 %v6584, %v6586
        %v6588 = vrot.slane %v6580, %v6587
        %v6590 = vunpack.c.l.s4 1983009808
        %v6591 = vunpack.c.0.s8 %v6590
        %v6592 = vlaneseq
        %v6593 = vshrl.u32 %v6592, 7
        %v6594 = vsub.s32 %v6591, %v6593
        %v6595 = vrot.slane %v6581, %v6594
        %v6596 = vcombine.low %v6559, %v6563
        %v6597 = vcombine.high %v6559, %v6563
        %v6599 = vunpack.c.l.s4 1983009808
        %v6600 = vunpack.c.0.s8 %v6599
        %v6601 = vlaneseq
        %v6602 = vshrl.u32 %v6601, 7
        %v6603 = vsub.s32 %v6600, %v6602
        %v6604 = vrot.slane %v6596, %v6603
        %v6606 = vunpack.c.l.s4 1983009808
        %v6607 = vunpack.c.0.s8 %v6606
        %v6608 = vlaneseq
        %v6609 = vshrl.u32 %v6608, 7
        %v6610 = vsub.s32 %v6607, %v6609
        %v6611 = vrot.slane %v6597, %v6610
        %v6612 = vcombine.low %v6565, %v6569
        %v6613 = vcombine.high %v6565, %v6569
        %v6615 = vunpack.c.l.s4 1983009808
        %v6616 = vunpack.c.0.s8 %v6615
        %v6617 = vlaneseq
        %v6618 = vshrl.u32 %v6617, 7
        %v6619 = vsub.s32 %v6616, %v6618
        %v6620 = vrot.slane %v6612, %v6619
        %v6622 = vunpack.c.l.s4 1983009808
        %v6623 = vunpack.c.0.s8 %v6622
        %v6624 = vlaneseq
        %v6625 = vshrl.u32 %v6624, 7
        %v6626 = vsub.s32 %v6623, %v6625
        %v6627 = vrot.slane %v6613, %v6626
        %v6628 = vcombine.low %v6567, %v6571
        %v6629 = vcombine.high %v6567, %v6571
        %v6631 = vunpack.c.l.s4 1983009808
        %v6632 = vunpack.c.0.s8 %v6631
        %v6633 = vlaneseq
        %v6634 = vshrl.u32 %v6633, 7
        %v6635 = vsub.s32 %v6632, %v6634
        %v6636 = vrot.slane %v6628, %v6635
        %v6638 = vunpack.c.l.s4 1983009808
        %v6639 = vunpack.c.0.s8 %v6638
        %v6640 = vlaneseq
        %v6641 = vshrl.u32 %v6640, 7
        %v6642 = vsub.s32 %v6639, %v6641
        %v6643 = vrot.slane %v6629, %v6642
        %v6644 = vcombine.low %v6588, %v6604
        %v6645 = vcombine.high %v6588, %v6604
        %v6647 = vunpack.c.l.s4 1934713408
        %v6648 = vunpack.c.0.s8 %v6647
        %v6649 = vlaneseq
        %v6650 = vshrl.u32 %v6649, 7
        %v6651 = vsub.s32 %v6648, %v6650
        %v6652 = vrot.slane %v6644, %v6651
        %v6654 = vunpack.c.l.s4 1934713408
        %v6655 = vunpack.c.0.s8 %v6654
        %v6656 = vlaneseq
        %v6657 = vshrl.u32 %v6656, 7
        %v6658 = vsub.s32 %v6655, %v6657
        %v6659 = vrot.slane %v6645, %v6658
        %v6660 = vcombine.low %v6595, %v6611
        %v6661 = vcombine.high %v6595, %v6611
        %v6663 = vunpack.c.l.s4 1934713408
        %v6664 = vunpack.c.0.s8 %v6663
        %v6665 = vlaneseq
        %v6666 = vshrl.u32 %v6665, 7
        %v6667 = vsub.s32 %v6664, %v6666
        %v6668 = vrot.slane %v6660, %v6667
        %v6670 = vunpack.c.l.s4 1934713408
        %v6671 = vunpack.c.0.s8 %v6670
        %v6672 = vlaneseq
        %v6673 = vshrl.u32 %v6672, 7
        %v6674 = vsub.s32 %v6671, %v6673
        %v6675 = vrot.slane %v6661, %v6674
        %v6676 = vcombine.low %v6620, %v6636
        %v6677 = vcombine.high %v6620, %v6636
        %v6679 = vunpack.c.l.s4 1934713408
        %v6680 = vunpack.c.0.s8 %v6679
        %v6681 = vlaneseq
        %v6682 = vshrl.u32 %v6681, 7
        %v6683 = vsub.s32 %v6680, %v6682
        %v6684 = vrot.slane %v6676, %v6683
        %v6686 = vunpack.c.l.s4 1934713408
        %v6687 = vunpack.c.0.s8 %v6686
        %v6688 = vlaneseq
        %v6689 = vshrl.u32 %v6688, 7
        %v6690 = vsub.s32 %v6687, %v6689
        %v6691 = vrot.slane %v6677, %v6690
        %v6692 = vcombine.low %v6627, %v6643
        %v6693 = vcombine.high %v6627, %v6643
        %v6695 = vunpack.c.l.s4 1934713408
        %v6696 = vunpack.c.0.s8 %v6695
        %v6697 = vlaneseq
        %v6698 = vshrl.u32 %v6697, 7
        %v6699 = vsub.s32 %v6696, %v6698
        %v6700 = vrot.slane %v6692, %v6699
        %v6702 = vunpack.c.l.s4 1934713408
        %v6703 = vunpack.c.0.s8 %v6702
        %v6704 = vlaneseq
        %v6705 = vshrl.u32 %v6704, 7
        %v6706 = vsub.s32 %v6703, %v6705
        %v6707 = vrot.slane %v6693, %v6706
        %v6708 = vcombine.low %v6652, %v6684
        %v6709 = vcombine.high %v6652, %v6684
        %v6710 = vcombine.low %v6659, %v6691
        %v6711 = vcombine.high %v6659, %v6691
        %v6712 = vcombine.low %v6668, %v6700
        %v6713 = vcombine.high %v6668, %v6700
        %v6714 = vcombine.low %v6675, %v6707
        %v6715 = vcombine.high %v6675, %v6707
        %6717 = vrot.lane.b32.xlu0 %v6709, 32
        %v6718 = vpop.permute.xlu0 %6717
        %6721 = vrot.lane.b32.xlu0 %v6710, 64
        %v6722 = vpop.permute.xlu0 %6721
        %6725 = vrot.lane.b32.xlu0 %v6711, 96
        %v6726 = vpop.permute.xlu0 %6725
        %6729 = vrot.lane.b32.xlu0 %v6713, 32
        %v6730 = vpop.permute.xlu0 %6729
        %6733 = vrot.lane.b32.xlu0 %v6714, 64
        %v6734 = vpop.permute.xlu0 %6733
        %6737 = vrot.lane.b32.xlu0 %v6715, 96
        %v6738 = vpop.permute.xlu0 %6737
        %v6740 = vsel %vm1533, %v6708, %v6718
        %v6741 = vsel %vm6539, %v6740, %v6722
        %v6742 = vsel %vm6541, %v6741, %v6726
        %v6743 = vsel %vm1533, %v6712, %v6730
        %v6744 = vsel %vm6539, %v6743, %v6734
        %v6745 = vsel %vm6541, %v6744, %v6738
        %6746 = vst [vmem:[%s784] sm:$0xff] %v6742
        %6747 = vst [vmem:[%s784 + $0x8] sm:$0xff] %v6745
        %s6748 = sand.u32 %s471, 1
        %s6749 = scalar_lea.sflag [#allocation3], %s6748
        %s6750 = sand.u32 %s471, 1
        %s6751 = smul.addr %s6750, 16
        %s6752 = scalar_lea.vmem [#allocation2], %s6751
        %s6753 = sand.u32 %s497, 1
        %s6754 = scalar_lea.sflag [#allocation5], %s6753
        %s6755 = sand.u32 %s497, 1
        %s6756 = smul.addr %s6755, 16
        %s6757 = scalar_lea.vmem [#allocation4], %s6756
        // Predicated region
        $region89: #{tpu_custom_call.1} parent=87 // pred_check
          %p6758 = pneg %p481
        $region90: #{tpu_custom_call.1} parent=87 // pred_check_branch
          %6760 = sbr.rel (%p6758) target = $region92
        $region91: #{tpu_custom_call.1} parent=87 // pred_region
          %s6762 = ssub.s32 256, 256
          %6763 = vsyncadd %s6749, %s6762
          %s6764 = smul.addr %s36, 2
          %s6765 = smul.addr %s6764, 128
          %s6766 = scalar_lea.hbm %s17, %s6765
          %s6768 = sshll.u32 %s6752, 4
          %s6769 = int_to_ptr.vmem [resolvable:$true] %s6768
          %6771 = dma.vmem_to_hbm [thread:$0]  %s6769, 256, %s6766, %s6749
        $region92: #{tpu_custom_call.1} parent=87 // pred_fallthru
          _
        // Predicated region
        $region93: #{tpu_custom_call.1} parent=87 // pred_check
          %p6772 = pneg %p507
        $region94: #{tpu_custom_call.1} parent=87 // pred_check_branch
          %6774 = sbr.rel (%p6772) target = $region96
        $region95: #{tpu_custom_call.1} parent=87 // pred_region
          %s6776 = ssub.s32 256, 256
          %6777 = vsyncadd %s6754, %s6776
          %s6778 = smul.addr %s36, 2
          %s6779 = smul.addr %s6778, 128
          %s6780 = scalar_lea.hbm %s18, %s6779
          %s6782 = sshll.u32 %s6757, 4
          %s6783 = int_to_ptr.vmem [resolvable:$true] %s6782
          %6785 = dma.vmem_to_hbm [thread:$0]  %s6783, 256, %s6780, %s6754
        $region96: #{tpu_custom_call.1} parent=87 // pred_fallthru
          _
      $region88: #{tpu_custom_call.1} parent=5 // pred_fallthru
        _
      %p6786 = scmp.le.s32.totalorder 2, %s31
      // Predicated region
      $region97: #{tpu_custom_call.1} parent=5 // pred_check
        %p6787 = pneg %p6786
      $region98: #{tpu_custom_call.1} parent=5 // pred_check_branch
        %6789 = sbr.rel (%p6787) target = $region100
      $region99: #{tpu_custom_call.1} parent=5 // pred_region
        %s6790 = ssub.s32 %s31, 2
        // Predicated region
        $region101: #{tpu_custom_call.1} parent=99 // pred_check
          %p6791 = pneg %p487
        $region102: #{tpu_custom_call.1} parent=99 // pred_check_branch
          %6793 = sbr.rel (%p6791) target = $region104
        $region103: #{tpu_custom_call.1} parent=99 // pred_region
          %s6794 = sand.u32 %s472, 1
          %s6795 = scalar_lea.sflag [#allocation3], %s6794
          %s6796 = sand.u32 %s472, 1
          %s6797 = smul.addr %s6796, 16
          %s6798 = scalar_lea.vmem [#allocation2], %s6797
          %6799 = dma.done %s6795, 256
        $region104: #{tpu_custom_call.1} parent=99 // pred_fallthru
          _
        // Predicated region
        $region105: #{tpu_custom_call.1} parent=99 // pred_check
          %p6800 = pneg %p513
        $region106: #{tpu_custom_call.1} parent=99 // pred_check_branch
          %6802 = sbr.rel (%p6800) target = $region108
        $region107: #{tpu_custom_call.1} parent=99 // pred_region
          %s6803 = sand.u32 %s498, 1
          %s6804 = scalar_lea.sflag [#allocation5], %s6803
          %s6805 = sand.u32 %s498, 1
          %s6806 = smul.addr %s6805, 16
          %s6807 = scalar_lea.vmem [#allocation4], %s6806
          %6808 = dma.done %s6804, 256
        $region108: #{tpu_custom_call.1} parent=99 // pred_fallthru
          _
      $region100: #{tpu_custom_call.1} parent=5 // pred_fallthru
        _
    $region6: #{tpu_custom_call.1} parent=1 // loop_footer
      %s35 = sadd.s32 1, %s31
    $region7: #{tpu_custom_call.1} parent=1 // loop_footer_branch
      %30 = sbr.rel target = $region3
    $region8: #{tpu_custom_call.1} parent=1 // loop_exit
      _
    %6809 = vsyncpa [#allocation3], 1
    %s6810 = scalar_lea.sflag [#allocation3], 1
    %6811 = vsyncpa %s6810, 1
    %6812 = vsyncpa [#allocation5], 1
    %s6813 = scalar_lea.sflag [#allocation5], 1
    %6814 = vsyncpa %s6813, 1

</llo_original>
